<compile_context>
chip_gen: v5e
topology: v5e:2x2
jax: 0.10.0
libtpu: 0.0.40
codegen_flags: <defaults>
</compile_context>

<pallas_src>
import math
import jax
import jax.numpy as jnp
from jax import lax
from jax.experimental import pallas as pl
from jax.experimental.pallas import tpu as pltpu

# ---------------- model constants (from the PyTorch spec) ----------------
D_MODEL = 100
N_HEADS = 4
HEAD_DIM = D_MODEL // N_HEADS          # 25
D_FF = 2048
EPS = 1e-5
NUM_LAYERS = 2

SEQ_LEN = 8                            # input sequence length (before class token)

# ---------------- padded kernel-side layout ----------------
DP = 128                               # d_model padded to one full lane tile
HP = 128                               # per-head dim padded to one full lane tile
QKV_W = 3 * N_HEADS * HP               # 1536: fused QKV projection width
QK_OFF = N_HEADS * HP                  # 512 : start of K heads inside fused QKV
QV_OFF = 2 * N_HEADS * HP              # 1024: start of V heads inside fused QKV
N_REAL = SEQ_LEN + 1                   # 9 real positions (8 input rows + CLS)
S_PAD = 16                             # padded sequence length (multiple of 8)
CLS_ROW = SEQ_LEN                      # CLS token lives at padded row 8
FF_CHUNK = 512                         # K-chunk size for the FFN
NEG_INF = -1e30
PARAMS_PER_LAYER = 12


# ----------------------------- Pallas kernel ---------------------------------
def model_kernel(*refs):
    n_fixed = 4
    x_ref, lanesel_ref, rowsel_ref, base_ref = refs[:n_fixed]
    layer_refs = [refs[n_fixed + PARAMS_PER_LAYER * l: n_fixed + PARAMS_PER_LAYER * (l + 1)]
                  for l in range(NUM_LAYERS)]
    o_ref = refs[n_fixed + PARAMS_PER_LAYER * NUM_LAYERS]
    qkv_scr, heads_scr = refs[n_fixed + PARAMS_PER_LAYER * NUM_LAYERS + 1:]

    f32 = jnp.float32
    scale = 1.0 / math.sqrt(HEAD_DIM)
    inv_d = 1.0 / D_MODEL

    # Build the padded sequence entirely in-kernel using exact 0/1 selector matmuls
    # (keeps every tensor lane-dense, no unaligned concatenates or masked stores):
    #   rows 0..7  = input x (original positions 1..8)
    #   row  8     = class token (original position 0)
    #   rows 9..15 = zero padding (masked out of attention keys)
    # base_ref already holds class_token + positional encoding, zero elsewhere.
    x_lanes = jnp.dot(x_ref[...], lanesel_ref[...], preferred_element_type=f32)        # (8, 128)
    x = jnp.dot(rowsel_ref[...], x_lanes, preferred_element_type=f32) + base_ref[...]  # (16, 128)

    key_ids = lax.broadcasted_iota(jnp.int32, (S_PAD, S_PAD), 1)
    key_mask = key_ids < N_REAL                                                         # (16, 16)

    def layer_norm(v, g, b):
        # padded lanes of v are exactly zero -> divide sums by 100, not 128
        mean = jnp.sum(v, axis=-1, keepdims=True) * inv_d
        var = jnp.sum(v * v, axis=-1, keepdims=True) * inv_d - mean * mean
        # g, b are zero on padded lanes -> output padding stays exactly zero
        return (v - mean) * lax.rsqrt(var + EPS) * g + b

    for l in range(NUM_LAYERS):
        (wqkv_ref, bqkv_ref, wo_ref, bo_ref, w1_ref, b1_ref,
         w2_ref, b2_ref, g1_ref, be1_ref, g2_ref, be2_ref) = layer_refs[l]

        # ---- fused Q/K/V projection: one (16,128) @ (128,1536) matmul ----
        qkv_scr[...] = jnp.dot(x, wqkv_ref[...], preferred_element_type=f32) + bqkv_ref[...]

        # ---- per-head scaled-dot-product attention (every slice a clean 128-lane tile) ----
        for h in range(N_HEADS):
            q = qkv_scr[:, h * HP:(h + 1) * HP]
            k = qkv_scr[:, QK_OFF + h * HP: QK_OFF + (h + 1) * HP]
            v = qkv_scr[:, QV_OFF + h * HP: QV_OFF + (h + 1) * HP]
            s = lax.dot_general(q, k, (((1,), (1,)), ((), ())),
                                preferred_element_type=f32) * scale                    # (16, 16)
            s = jnp.where(key_mask, s, NEG_INF)                 # mask padded key rows
            s = s - jnp.max(s, axis=-1, keepdims=True)
            p = jnp.exp(s)
            denom = jnp.sum(p, axis=-1, keepdims=True)
            r = pl.reciprocal(denom, approx=True)               # EUP, off the VALU divide path
            r = r * (2.0 - denom * r)                           # one Newton step -> fp32-accurate
            p = p * r
            heads_scr[:, h * HP:(h + 1) * HP] = jnp.dot(p, v, preferred_element_type=f32)

        # ---- fused output projection: one (16,512) @ (512,128) matmul ----
        attn = jnp.dot(heads_scr[...], wo_ref[...], preferred_element_type=f32) + bo_ref[...]

        # ---- residual + LayerNorm1 (post-norm) ----
        y = layer_norm(x + attn, g1_ref[...], be1_ref[...])

        # ---- feed-forward (relu), K-chunked over D_FF ----
        ff = jnp.zeros((S_PAD, DP), f32)
        for c in range(0, D_FF, FF_CHUNK):
            h1 = jnp.dot(y, w1_ref[:, c:c + FF_CHUNK], preferred_element_type=f32) \
                 + b1_ref[:, c:c + FF_CHUNK]
            h1 = jnp.maximum(h1, 0.0)
            ff = ff + jnp.dot(h1, w2_ref[c:c + FF_CHUNK, :], preferred_element_type=f32)
        ff = ff + b2_ref[...]

        # ---- residual + LayerNorm2 ----
        x = layer_norm(y + ff, g2_ref[...], be2_ref[...])

    # CLS token (original position 0) lives at padded row CLS_ROW
    o_ref[...] = x[CLS_ROW:CLS_ROW + 1, :]


def model_forward_pallas(x, base, lanesel, rowsel, layer_params):
    args = (x, lanesel, rowsel, base)
    for lp in layer_params:
        args = args + tuple(lp)
    vmem = lambda: pl.BlockSpec(memory_space=pltpu.MemorySpace.VMEM)
    out = pl.pallas_call(
        model_kernel,
        out_shape=jax.ShapeDtypeStruct((1, DP), jnp.float32),
        in_specs=[vmem() for _ in args],
        out_specs=vmem(),
        scratch_shapes=[pltpu.VMEM((S_PAD, QKV_W), jnp.float32),     # fused QKV activations
                        pltpu.VMEM((S_PAD, QK_OFF), jnp.float32)],   # concatenated head outputs
        compiler_params=pltpu.CompilerParams(vmem_limit_bytes=32 * 1024 * 1024),
    )(*args)
    return out[:, :D_MODEL]                                          # (1, 100) CLS encoding


model_forward = jax.jit(model_forward_pallas)


# ---------------------------- parameter setup --------------------------------
def make_layer_params(key):
    """Deterministic raw weights in nn.TransformerEncoderLayer(d_model=100, nhead=4) shapes."""
    ks = jax.random.split(key, 10)

    def init(k, shape, fan_in):
        return jax.random.normal(k, shape, jnp.float32) / math.sqrt(fan_in)

    raw = dict(
        Wq=init(ks[0], (D_MODEL, D_MODEL), D_MODEL),
        Wk=init(ks[1], (D_MODEL, D_MODEL), D_MODEL),
        Wv=init(ks[2], (D_MODEL, D_MODEL), D_MODEL),
        Wo=init(ks[3], (D_MODEL, D_MODEL), D_MODEL),
        bq=0.01 * jax.random.normal(ks[4], (D_MODEL,), jnp.float32),
        bk=0.01 * jax.random.normal(ks[5], (D_MODEL,), jnp.float32),
        bv=0.01 * jax.random.normal(ks[6], (D_MODEL,), jnp.float32),
        bo=0.01 * jax.random.normal(ks[7], (D_MODEL,), jnp.float32),
        W1=init(ks[8], (D_FF, D_MODEL), D_MODEL),
        W2=init(ks[9], (D_MODEL, D_FF), D_FF),
        b1=jnp.zeros((D_FF,), jnp.float32),
        b2=jnp.zeros((D_MODEL,), jnp.float32),
        g1=jnp.ones((D_MODEL,), jnp.float32),
        be1=jnp.zeros((D_MODEL,), jnp.float32),
        g2=jnp.ones((D_MODEL,), jnp.float32),
        be2=jnp.zeros((D_MODEL,), jnp.float32),
    )
    return raw


def to_kernel_layout(raw):
    """Convert PyTorch-convention weights into the padded, fused kernel layout."""
    f32 = jnp.float32

    def qkv_block(W, b):
        Wt = W.T                                               # (in=100, out=100)
        Wblk = jnp.zeros((DP, N_HEADS * HP), f32)
        bblk = jnp.zeros((N_HEADS * HP,), f32)
        for h in range(N_HEADS):
            Wblk = Wblk.at[:D_MODEL, h * HP:h * HP + HEAD_DIM].set(
                Wt[:, h * HEAD_DIM:(h + 1) * HEAD_DIM])
            bblk = bblk.at[h * HP:h * HP + HEAD_DIM].set(
                b[h * HEAD_DIM:(h + 1) * HEAD_DIM])
        return Wblk, bblk

    wq, bq = qkv_block(raw["Wq"], raw["bq"])
    wk, bk = qkv_block(raw["Wk"], raw["bk"])
    wv, bv = qkv_block(raw["Wv"], raw["bv"])
    w_qkv = jnp.concatenate([wq, wk, wv], axis=1)              # (128, 1536)
    b_qkv = jnp.concatenate([bq, bk, bv])[None, :]             # (1, 1536)

    WoT = raw["Wo"].T                                          # (in=100, out=100)
    w_o = jnp.zeros((N_HEADS * HP, DP), f32)
    for h in range(N_HEADS):
        w_o = w_o.at[h * HP:h * HP + HEAD_DIM, :D_MODEL].set(
            WoT[h * HEAD_DIM:(h + 1) * HEAD_DIM, :])
    b_o = jnp.zeros((1, DP), f32).at[0, :D_MODEL].set(raw["bo"])

    w1 = jnp.zeros((DP, D_FF), f32).at[:D_MODEL, :].set(raw["W1"].T)   # (128, 2048)
    b1 = raw["b1"][None, :]                                            # (1, 2048)
    w2 = jnp.zeros((D_FF, DP), f32).at[:, :D_MODEL].set(raw["W2"].T)   # (2048, 128)
    b2 = jnp.zeros((1, DP), f32).at[0, :D_MODEL].set(raw["b2"])

    def pad_vec(v):   # gamma/beta padded with ZEROS so padded lanes stay zero after LN
        return jnp.zeros((1, DP), f32).at[0, :D_MODEL].set(v)

    g1, be1 = pad_vec(raw["g1"]), pad_vec(raw["be1"])
    g2, be2 = pad_vec(raw["g2"]), pad_vec(raw["be2"])

    return (w_qkv, b_qkv, w_o, b_o, w1, b1, w2, b2, g1, be1, g2, be2)


def positional_encoding(max_len=200, d_model=D_MODEL):
    position = jnp.arange(max_len, dtype=jnp.float32)[:, None]
    div_term = jnp.exp(jnp.arange(0, d_model, 2, dtype=jnp.float32)
                       * (-math.log(10000.0) / d_model))
    pe = jnp.zeros((max_len, d_model), jnp.float32)
    pe = pe.at[:, 0::2].set(jnp.sin(position * div_term))
    pe = pe.at[:, 1::2].set(jnp.cos(position * div_term))
    return pe


def make_static_inputs(class_token, pe):
    """Precompute the CLS+PE base buffer and the exact 0/1 placement selectors."""
    f32 = jnp.float32
    base = jnp.zeros((S_PAD, DP), f32)
    base = base.at[:SEQ_LEN, :D_MODEL].set(pe[1:N_REAL, :])              # x rows get pe[1..8]
    base = base.at[CLS_ROW, :D_MODEL].set(class_token[0] + pe[0])        # CLS row gets cls + pe[0]
    lanesel = jnp.eye(D_MODEL, DP, dtype=f32)                            # (100, 128) lane padding
    rowsel = jnp.eye(S_PAD, SEQ_LEN, dtype=f32)                          # (16, 8) row placement
    return base, lanesel, rowsel


# ------------------------------ pure-JAX reference ----------------------------
def encoder_layer_ref(x, r):
    S = x.shape[0]
    q = x @ r["Wq"].T + r["bq"]
    k = x @ r["Wk"].T + r["bk"]
    v = x @ r["Wv"].T + r["bv"]
    q = q.reshape(S, N_HEADS, HEAD_DIM).transpose(1, 0, 2)
    k = k.reshape(S, N_HEADS, HEAD_DIM).transpose(1, 0, 2)
    v = v.reshape(S, N_HEADS, HEAD_DIM).transpose(1, 0, 2)
    s = jnp.einsum("hqd,hkd->hqk", q, k) / math.sqrt(HEAD_DIM)
    p = jax.nn.softmax(s, axis=-1)
    o = jnp.einsum("hqk,hkd->hqd", p, v).transpose(1, 0, 2).reshape(S, D_MODEL)
    attn = o @ r["Wo"].T + r["bo"]

    def ln(y, g, b):
        m = jnp.mean(y, -1, keepdims=True)
        vv = jnp.mean((y - m) ** 2, -1, keepdims=True)
        return (y - m) / jnp.sqrt(vv + EPS) * g + b

    y = ln(x + attn, r["g1"], r["be1"])
    ff = jnp.maximum(y @ r["W1"].T + r["b1"], 0.0) @ r["W2"].T + r["b2"]
    return ln(y + ff, r["g2"], r["be2"])


def model_forward_ref(x, class_token, pe, all_raw):
    x = jnp.concatenate([class_token, x], axis=0)
    x = x + pe[: x.shape[0]]
    for r in all_raw:
        x = encoder_layer_ref(x, r)
    return x[0:1, :]


# ----------------------------------- main --------------------------------------
if __name__ == "__main__":
    key = jax.random.PRNGKey(0)
    k_x, k_cls, k_l0, k_l1 = jax.random.split(key, 4)

    x = jax.random.normal(k_x, (SEQ_LEN, D_MODEL), jnp.float32)
    class_token = jax.random.normal(k_cls, (1, D_MODEL), jnp.float32)
    pe = positional_encoding()

    r0 = make_layer_params(k_l0)
    r1 = make_layer_params(k_l1)
    p0 = to_kernel_layout(r0)
    p1 = to_kernel_layout(r1)
    base, lanesel, rowsel = make_static_inputs(class_token, pe)

    out = model_forward(x, base, lanesel, rowsel, [p0, p1])
    out = jax.block_until_ready(out)

    ref = model_forward_ref(x, class_token, pe, [r0, r1])
    ref = jax.block_until_ready(ref)

    assert out.shape == (1, D_MODEL), out.shape
    err = float(jnp.max(jnp.abs(out - ref)))
    assert jnp.allclose(out, ref, rtol=1e-3, atol=1e-3), err
    print("KERNEL_OK")
</pallas_src>

<mosaic_0001>
module attributes {stable_mosaic.version = 11 : i64} {
  func.func @model_kernel(%arg0: memref<8x100xf32, #tpu.memory_space<vmem>>, %arg1: memref<100x128xf32, #tpu.memory_space<vmem>>, %arg2: memref<16x8xf32, #tpu.memory_space<vmem>>, %arg3: memref<16x128xf32, #tpu.memory_space<vmem>>, %arg4: memref<128x1536xf32, #tpu.memory_space<vmem>>, %arg5: memref<1x1536xf32, #tpu.memory_space<vmem>>, %arg6: memref<512x128xf32, #tpu.memory_space<vmem>>, %arg7: memref<1x128xf32, #tpu.memory_space<vmem>>, %arg8: memref<128x2048xf32, #tpu.memory_space<vmem>>, %arg9: memref<1x2048xf32, #tpu.memory_space<vmem>>, %arg10: memref<2048x128xf32, #tpu.memory_space<vmem>>, %arg11: memref<1x128xf32, #tpu.memory_space<vmem>>, %arg12: memref<1x128xf32, #tpu.memory_space<vmem>>, %arg13: memref<1x128xf32, #tpu.memory_space<vmem>>, %arg14: memref<1x128xf32, #tpu.memory_space<vmem>>, %arg15: memref<1x128xf32, #tpu.memory_space<vmem>>, %arg16: memref<128x1536xf32, #tpu.memory_space<vmem>>, %arg17: memref<1x1536xf32, #tpu.memory_space<vmem>>, %arg18: memref<512x128xf32, #tpu.memory_space<vmem>>, %arg19: memref<1x128xf32, #tpu.memory_space<vmem>>, %arg20: memref<128x2048xf32, #tpu.memory_space<vmem>>, %arg21: memref<1x2048xf32, #tpu.memory_space<vmem>>, %arg22: memref<2048x128xf32, #tpu.memory_space<vmem>>, %arg23: memref<1x128xf32, #tpu.memory_space<vmem>>, %arg24: memref<1x128xf32, #tpu.memory_space<vmem>>, %arg25: memref<1x128xf32, #tpu.memory_space<vmem>>, %arg26: memref<1x128xf32, #tpu.memory_space<vmem>>, %arg27: memref<1x128xf32, #tpu.memory_space<vmem>>, %arg28: memref<1x128xf32, #tpu.memory_space<vmem>>, %arg29: memref<16x1536xf32, #tpu.memory_space<vmem>>, %arg30: memref<16x512xf32, #tpu.memory_space<vmem>>) attributes {dimension_semantics = [], scalar_prefetch = 0 : i64, scratch_operands = 2 : i64, tpu.core_type = #tpu.core_type<tc>} {
    %c0 = arith.constant 0 : index
    %c0_0 = arith.constant 0 : index
    %0 = vector.load %arg0[%c0, %c0_0] : memref<8x100xf32, #tpu.memory_space<vmem>>, vector<8x100xf32>
    %c0_1 = arith.constant 0 : index
    %c0_2 = arith.constant 0 : index
    %1 = vector.load %arg1[%c0_1, %c0_2] : memref<100x128xf32, #tpu.memory_space<vmem>>, vector<100x128xf32>
    %cst = arith.constant dense<0.000000e+00> : vector<8x128xf32>
    %2 = tpu.matmul %0, %1, %cst {dimension_numbers = #tpu.dot_dimension_numbers<[1], [0], [0], [1], [0, 0, 1, 1], [], []>} : vector<8x100xf32>, vector<100x128xf32>, vector<8x128xf32> -> vector<8x128xf32>
    %c0_3 = arith.constant 0 : index
    %c0_4 = arith.constant 0 : index
    %3 = vector.load %arg2[%c0_3, %c0_4] : memref<16x8xf32, #tpu.memory_space<vmem>>, vector<16x8xf32>
    %cst_5 = arith.constant dense<0.000000e+00> : vector<16x128xf32>
    %4 = tpu.matmul %3, %2, %cst_5 {dimension_numbers = #tpu.dot_dimension_numbers<[1], [0], [0], [1], [0, 0, 1, 1], [], []>} : vector<16x8xf32>, vector<8x128xf32>, vector<16x128xf32> -> vector<16x128xf32>
    %c0_6 = arith.constant 0 : index
    %c0_7 = arith.constant 0 : index
    %5 = vector.load %arg3[%c0_6, %c0_7] : memref<16x128xf32, #tpu.memory_space<vmem>>, vector<16x128xf32>
    %6 = arith.addf %4, %5 : vector<16x128xf32>
    %7 = tpu.iota {dimensions = array<i32: 1>} : vector<16x16xi32>
    %c9_i32 = arith.constant 9 : i32
    %8 = vector.broadcast %c9_i32 : i32 to vector<16x16xi32>
    %9 = arith.cmpi slt, %7, %8 : vector<16x16xi32>
    %c0_8 = arith.constant 0 : index
    %c0_9 = arith.constant 0 : index
    %10 = vector.load %arg4[%c0_8, %c0_9] : memref<128x1536xf32, #tpu.memory_space<vmem>>, vector<128x1536xf32>
    %cst_10 = arith.constant dense<0.000000e+00> : vector<16x1536xf32>
    %11 = tpu.matmul %6, %10, %cst_10 {dimension_numbers = #tpu.dot_dimension_numbers<[1], [0], [0], [1], [0, 0, 1, 1], [], []>} : vector<16x128xf32>, vector<128x1536xf32>, vector<16x1536xf32> -> vector<16x1536xf32>
    %c0_11 = arith.constant 0 : index
    %c0_12 = arith.constant 0 : index
    %12 = vector.load %arg5[%c0_11, %c0_12] : memref<1x1536xf32, #tpu.memory_space<vmem>>, vector<1x1536xf32>
    %13 = vector.broadcast %12 : vector<1x1536xf32> to vector<16x1536xf32>
    %14 = arith.addf %11, %13 : vector<16x1536xf32>
    %c0_13 = arith.constant 0 : index
    %c0_14 = arith.constant 0 : index
    %15 = vector.load %arg29[%c0_13, %c0_14] : memref<16x1536xf32, #tpu.memory_space<vmem>>, vector<16x1536xf32>
    tpu.vector_store %arg29[%c0_13, %c0_14], %14 {strides = array<i32>} : memref<16x1536xf32, #tpu.memory_space<vmem>>, vector<16x1536xf32>,
    %c0_15 = arith.constant 0 : index
    %c0_16 = arith.constant 0 : index
    %16 = vector.load %arg29[%c0_15, %c0_16] : memref<16x1536xf32, #tpu.memory_space<vmem>>, vector<16x128xf32>
    %c0_17 = arith.constant 0 : index
    %c512 = arith.constant 512 : index
    %17 = vector.load %arg29[%c0_17, %c512] : memref<16x1536xf32, #tpu.memory_space<vmem>>, vector<16x128xf32>
    %c0_18 = arith.constant 0 : index
    %c1024 = arith.constant 1024 : index
    %18 = vector.load %arg29[%c0_18, %c1024] : memref<16x1536xf32, #tpu.memory_space<vmem>>, vector<16x128xf32>
    %cst_19 = arith.constant dense<0.000000e+00> : vector<16x16xf32>
    %19 = tpu.matmul %16, %17, %cst_19 {dimension_numbers = #tpu.dot_dimension_numbers<[1], [1], [0], [0], [0, 0, 1, 0], [], []>} : vector<16x128xf32>, vector<16x128xf32>, vector<16x16xf32> -> vector<16x16xf32>
    %cst_20 = arith.constant 2.000000e-01 : f32
    %20 = vector.broadcast %cst_20 : f32 to vector<16x16xf32>
    %21 = arith.mulf %19, %20 : vector<16x16xf32>
    %cst_21 = arith.constant -1.000000e+30 : f32
    %22 = vector.broadcast %cst_21 : f32 to vector<16x16xf32>
    %23 = arith.select %9, %21, %22 : vector<16x16xi1>, vector<16x16xf32>
    %cst_22 = arith.constant dense<0xFF800000> : vector<16xf32>
    %24 = vector.multi_reduction <maximumf>, %23, %cst_22 [1] : vector<16x16xf32> to vector<16xf32>
    %25 = vector.shape_cast %24 : vector<16xf32> to vector<16x1xf32>
    %26 = vector.broadcast %25 : vector<16x1xf32> to vector<16x16xf32>
    %27 = arith.subf %23, %26 : vector<16x16xf32>
    %28 = math.exp %27 : vector<16x16xf32>
    %cst_23 = arith.constant dense<0.000000e+00> : vector<16xf32>
    %29 = vector.multi_reduction <add>, %28, %cst_23 [1] : vector<16x16xf32> to vector<16xf32>
    %30 = vector.shape_cast %29 : vector<16xf32> to vector<16x1xf32>
    %31 = tpu.reciprocal %30 {approx = true} : vector<16x1xf32> -> vector<16x1xf32>
    %32 = arith.mulf %30, %31 : vector<16x1xf32>
    %cst_24 = arith.constant 2.000000e+00 : f32
    %33 = vector.broadcast %cst_24 : f32 to vector<16x1xf32>
    %34 = arith.subf %33, %32 : vector<16x1xf32>
    %35 = arith.mulf %31, %34 : vector<16x1xf32>
    %36 = vector.broadcast %35 : vector<16x1xf32> to vector<16x16xf32>
    %37 = arith.mulf %28, %36 : vector<16x16xf32>
    %cst_25 = arith.constant dense<0.000000e+00> : vector<16x128xf32>
    %38 = tpu.matmul %37, %18, %cst_25 {dimension_numbers = #tpu.dot_dimension_numbers<[1], [0], [0], [1], [0, 0, 1, 1], [], []>} : vector<16x16xf32>, vector<16x128xf32>, vector<16x128xf32> -> vector<16x128xf32>
    %c0_26 = arith.constant 0 : index
    %c0_27 = arith.constant 0 : index
    %39 = vector.load %arg30[%c0_26, %c0_27] : memref<16x512xf32, #tpu.memory_space<vmem>>, vector<16x128xf32>
    tpu.vector_store %arg30[%c0_26, %c0_27], %38 {strides = array<i32>} : memref<16x512xf32, #tpu.memory_space<vmem>>, vector<16x128xf32>,
    %c0_28 = arith.constant 0 : index
    %c128 = arith.constant 128 : index
    %40 = vector.load %arg29[%c0_28, %c128] : memref<16x1536xf32, #tpu.memory_space<vmem>>, vector<16x128xf32>
    %c0_29 = arith.constant 0 : index
    %c640 = arith.constant 640 : index
    %41 = vector.load %arg29[%c0_29, %c640] : memref<16x1536xf32, #tpu.memory_space<vmem>>, vector<16x128xf32>
    %c0_30 = arith.constant 0 : index
    %c1152 = arith.constant 1152 : index
    %42 = vector.load %arg29[%c0_30, %c1152] : memref<16x1536xf32, #tpu.memory_space<vmem>>, vector<16x128xf32>
    %cst_31 = arith.constant dense<0.000000e+00> : vector<16x16xf32>
    %43 = tpu.matmul %40, %41, %cst_31 {dimension_numbers = #tpu.dot_dimension_numbers<[1], [1], [0], [0], [0, 0, 1, 0], [], []>} : vector<16x128xf32>, vector<16x128xf32>, vector<16x16xf32> -> vector<16x16xf32>
    %cst_32 = arith.constant 2.000000e-01 : f32
    %44 = vector.broadcast %cst_32 : f32 to vector<16x16xf32>
    %45 = arith.mulf %43, %44 : vector<16x16xf32>
    %cst_33 = arith.constant -1.000000e+30 : f32
    %46 = vector.broadcast %cst_33 : f32 to vector<16x16xf32>
    %47 = arith.select %9, %45, %46 : vector<16x16xi1>, vector<16x16xf32>
    %cst_34 = arith.constant dense<0xFF800000> : vector<16xf32>
    %48 = vector.multi_reduction <maximumf>, %47, %cst_34 [1] : vector<16x16xf32> to vector<16xf32>
    %49 = vector.shape_cast %48 : vector<16xf32> to vector<16x1xf32>
    %50 = vector.broadcast %49 : vector<16x1xf32> to vector<16x16xf32>
    %51 = arith.subf %47, %50 : vector<16x16xf32>
    %52 = math.exp %51 : vector<16x16xf32>
    %cst_35 = arith.constant dense<0.000000e+00> : vector<16xf32>
    %53 = vector.multi_reduction <add>, %52, %cst_35 [1] : vector<16x16xf32> to vector<16xf32>
    %54 = vector.shape_cast %53 : vector<16xf32> to vector<16x1xf32>
    %55 = tpu.reciprocal %54 {approx = true} : vector<16x1xf32> -> vector<16x1xf32>
    %56 = arith.mulf %54, %55 : vector<16x1xf32>
    %cst_36 = arith.constant 2.000000e+00 : f32
    %57 = vector.broadcast %cst_36 : f32 to vector<16x1xf32>
    %58 = arith.subf %57, %56 : vector<16x1xf32>
    %59 = arith.mulf %55, %58 : vector<16x1xf32>
    %60 = vector.broadcast %59 : vector<16x1xf32> to vector<16x16xf32>
    %61 = arith.mulf %52, %60 : vector<16x16xf32>
    %cst_37 = arith.constant dense<0.000000e+00> : vector<16x128xf32>
    %62 = tpu.matmul %61, %42, %cst_37 {dimension_numbers = #tpu.dot_dimension_numbers<[1], [0], [0], [1], [0, 0, 1, 1], [], []>} : vector<16x16xf32>, vector<16x128xf32>, vector<16x128xf32> -> vector<16x128xf32>
    %c0_38 = arith.constant 0 : index
    %c128_39 = arith.constant 128 : index
    %63 = vector.load %arg30[%c0_38, %c128_39] : memref<16x512xf32, #tpu.memory_space<vmem>>, vector<16x128xf32>
    tpu.vector_store %arg30[%c0_38, %c128_39], %62 {strides = array<i32>} : memref<16x512xf32, #tpu.memory_space<vmem>>, vector<16x128xf32>,
    %c0_40 = arith.constant 0 : index
    %c256 = arith.constant 256 : index
    %64 = vector.load %arg29[%c0_40, %c256] : memref<16x1536xf32, #tpu.memory_space<vmem>>, vector<16x128xf32>
    %c0_41 = arith.constant 0 : index
    %c768 = arith.constant 768 : index
    %65 = vector.load %arg29[%c0_41, %c768] : memref<16x1536xf32, #tpu.memory_space<vmem>>, vector<16x128xf32>
    %c0_42 = arith.constant 0 : index
    %c1280 = arith.constant 1280 : index
    %66 = vector.load %arg29[%c0_42, %c1280] : memref<16x1536xf32, #tpu.memory_space<vmem>>, vector<16x128xf32>
    %cst_43 = arith.constant dense<0.000000e+00> : vector<16x16xf32>
    %67 = tpu.matmul %64, %65, %cst_43 {dimension_numbers = #tpu.dot_dimension_numbers<[1], [1], [0], [0], [0, 0, 1, 0], [], []>} : vector<16x128xf32>, vector<16x128xf32>, vector<16x16xf32> -> vector<16x16xf32>
    %cst_44 = arith.constant 2.000000e-01 : f32
    %68 = vector.broadcast %cst_44 : f32 to vector<16x16xf32>
    %69 = arith.mulf %67, %68 : vector<16x16xf32>
    %cst_45 = arith.constant -1.000000e+30 : f32
    %70 = vector.broadcast %cst_45 : f32 to vector<16x16xf32>
    %71 = arith.select %9, %69, %70 : vector<16x16xi1>, vector<16x16xf32>
    %cst_46 = arith.constant dense<0xFF800000> : vector<16xf32>
    %72 = vector.multi_reduction <maximumf>, %71, %cst_46 [1] : vector<16x16xf32> to vector<16xf32>
    %73 = vector.shape_cast %72 : vector<16xf32> to vector<16x1xf32>
    %74 = vector.broadcast %73 : vector<16x1xf32> to vector<16x16xf32>
    %75 = arith.subf %71, %74 : vector<16x16xf32>
    %76 = math.exp %75 : vector<16x16xf32>
    %cst_47 = arith.constant dense<0.000000e+00> : vector<16xf32>
    %77 = vector.multi_reduction <add>, %76, %cst_47 [1] : vector<16x16xf32> to vector<16xf32>
    %78 = vector.shape_cast %77 : vector<16xf32> to vector<16x1xf32>
    %79 = tpu.reciprocal %78 {approx = true} : vector<16x1xf32> -> vector<16x1xf32>
    %80 = arith.mulf %78, %79 : vector<16x1xf32>
    %cst_48 = arith.constant 2.000000e+00 : f32
    %81 = vector.broadcast %cst_48 : f32 to vector<16x1xf32>
    %82 = arith.subf %81, %80 : vector<16x1xf32>
    %83 = arith.mulf %79, %82 : vector<16x1xf32>
    %84 = vector.broadcast %83 : vector<16x1xf32> to vector<16x16xf32>
    %85 = arith.mulf %76, %84 : vector<16x16xf32>
    %cst_49 = arith.constant dense<0.000000e+00> : vector<16x128xf32>
    %86 = tpu.matmul %85, %66, %cst_49 {dimension_numbers = #tpu.dot_dimension_numbers<[1], [0], [0], [1], [0, 0, 1, 1], [], []>} : vector<16x16xf32>, vector<16x128xf32>, vector<16x128xf32> -> vector<16x128xf32>
    %c0_50 = arith.constant 0 : index
    %c256_51 = arith.constant 256 : index
    %87 = vector.load %arg30[%c0_50, %c256_51] : memref<16x512xf32, #tpu.memory_space<vmem>>, vector<16x128xf32>
    tpu.vector_store %arg30[%c0_50, %c256_51], %86 {strides = array<i32>} : memref<16x512xf32, #tpu.memory_space<vmem>>, vector<16x128xf32>,
    %c0_52 = arith.constant 0 : index
    %c384 = arith.constant 384 : index
    %88 = vector.load %arg29[%c0_52, %c384] : memref<16x1536xf32, #tpu.memory_space<vmem>>, vector<16x128xf32>
    %c0_53 = arith.constant 0 : index
    %c896 = arith.constant 896 : index
    %89 = vector.load %arg29[%c0_53, %c896] : memref<16x1536xf32, #tpu.memory_space<vmem>>, vector<16x128xf32>
    %c0_54 = arith.constant 0 : index
    %c1408 = arith.constant 1408 : index
    %90 = vector.load %arg29[%c0_54, %c1408] : memref<16x1536xf32, #tpu.memory_space<vmem>>, vector<16x128xf32>
    %cst_55 = arith.constant dense<0.000000e+00> : vector<16x16xf32>
    %91 = tpu.matmul %88, %89, %cst_55 {dimension_numbers = #tpu.dot_dimension_numbers<[1], [1], [0], [0], [0, 0, 1, 0], [], []>} : vector<16x128xf32>, vector<16x128xf32>, vector<16x16xf32> -> vector<16x16xf32>
    %cst_56 = arith.constant 2.000000e-01 : f32
    %92 = vector.broadcast %cst_56 : f32 to vector<16x16xf32>
    %93 = arith.mulf %91, %92 : vector<16x16xf32>
    %cst_57 = arith.constant -1.000000e+30 : f32
    %94 = vector.broadcast %cst_57 : f32 to vector<16x16xf32>
    %95 = arith.select %9, %93, %94 : vector<16x16xi1>, vector<16x16xf32>
    %cst_58 = arith.constant dense<0xFF800000> : vector<16xf32>
    %96 = vector.multi_reduction <maximumf>, %95, %cst_58 [1] : vector<16x16xf32> to vector<16xf32>
    %97 = vector.shape_cast %96 : vector<16xf32> to vector<16x1xf32>
    %98 = vector.broadcast %97 : vector<16x1xf32> to vector<16x16xf32>
    %99 = arith.subf %95, %98 : vector<16x16xf32>
    %100 = math.exp %99 : vector<16x16xf32>
    %cst_59 = arith.constant dense<0.000000e+00> : vector<16xf32>
    %101 = vector.multi_reduction <add>, %100, %cst_59 [1] : vector<16x16xf32> to vector<16xf32>
    %102 = vector.shape_cast %101 : vector<16xf32> to vector<16x1xf32>
    %103 = tpu.reciprocal %102 {approx = true} : vector<16x1xf32> -> vector<16x1xf32>
    %104 = arith.mulf %102, %103 : vector<16x1xf32>
    %cst_60 = arith.constant 2.000000e+00 : f32
    %105 = vector.broadcast %cst_60 : f32 to vector<16x1xf32>
    %106 = arith.subf %105, %104 : vector<16x1xf32>
    %107 = arith.mulf %103, %106 : vector<16x1xf32>
    %108 = vector.broadcast %107 : vector<16x1xf32> to vector<16x16xf32>
    %109 = arith.mulf %100, %108 : vector<16x16xf32>
    %cst_61 = arith.constant dense<0.000000e+00> : vector<16x128xf32>
    %110 = tpu.matmul %109, %90, %cst_61 {dimension_numbers = #tpu.dot_dimension_numbers<[1], [0], [0], [1], [0, 0, 1, 1], [], []>} : vector<16x16xf32>, vector<16x128xf32>, vector<16x128xf32> -> vector<16x128xf32>
    %c0_62 = arith.constant 0 : index
    %c384_63 = arith.constant 384 : index
    %111 = vector.load %arg30[%c0_62, %c384_63] : memref<16x512xf32, #tpu.memory_space<vmem>>, vector<16x128xf32>
    tpu.vector_store %arg30[%c0_62, %c384_63], %110 {strides = array<i32>} : memref<16x512xf32, #tpu.memory_space<vmem>>, vector<16x128xf32>,
    %c0_64 = arith.constant 0 : index
    %c0_65 = arith.constant 0 : index
    %112 = vector.load %arg30[%c0_64, %c0_65] : memref<16x512xf32, #tpu.memory_space<vmem>>, vector<16x512xf32>
    %c0_66 = arith.constant 0 : index
    %c0_67 = arith.constant 0 : index
    %113 = vector.load %arg6[%c0_66, %c0_67] : memref<512x128xf32, #tpu.memory_space<vmem>>, vector<512x128xf32>
    %cst_68 = arith.constant dense<0.000000e+00> : vector<16x128xf32>
    %114 = tpu.matmul %112, %113, %cst_68 {dimension_numbers = #tpu.dot_dimension_numbers<[1], [0], [0], [1], [0, 0, 1, 1], [], []>} : vector<16x512xf32>, vector<512x128xf32>, vector<16x128xf32> -> vector<16x128xf32>
    %c0_69 = arith.constant 0 : index
    %c0_70 = arith.constant 0 : index
    %115 = vector.load %arg7[%c0_69, %c0_70] : memref<1x128xf32, #tpu.memory_space<vmem>>, vector<1x128xf32>
    %116 = vector.broadcast %115 : vector<1x128xf32> to vector<16x128xf32>
    %117 = arith.addf %114, %116 : vector<16x128xf32>
    %118 = arith.addf %6, %117 : vector<16x128xf32>
    %c0_71 = arith.constant 0 : index
    %c0_72 = arith.constant 0 : index
    %119 = vector.load %arg12[%c0_71, %c0_72] : memref<1x128xf32, #tpu.memory_space<vmem>>, vector<1x128xf32>
    %c0_73 = arith.constant 0 : index
    %c0_74 = arith.constant 0 : index
    %120 = vector.load %arg13[%c0_73, %c0_74] : memref<1x128xf32, #tpu.memory_space<vmem>>, vector<1x128xf32>
    %cst_75 = arith.constant dense<0.000000e+00> : vector<16xf32>
    %121 = vector.multi_reduction <add>, %118, %cst_75 [1] : vector<16x128xf32> to vector<16xf32>
    %122 = vector.shape_cast %121 : vector<16xf32> to vector<16x1xf32>
    %cst_76 = arith.constant 0.00999999977 : f32
    %123 = vector.broadcast %cst_76 : f32 to vector<16x1xf32>
    %124 = arith.mulf %122, %123 : vector<16x1xf32>
    %125 = arith.mulf %118, %118 : vector<16x128xf32>
    %cst_77 = arith.constant dense<0.000000e+00> : vector<16xf32>
    %126 = vector.multi_reduction <add>, %125, %cst_77 [1] : vector<16x128xf32> to vector<16xf32>
    %127 = vector.shape_cast %126 : vector<16xf32> to vector<16x1xf32>
    %cst_78 = arith.constant 0.00999999977 : f32
    %128 = vector.broadcast %cst_78 : f32 to vector<16x1xf32>
    %129 = arith.mulf %127, %128 : vector<16x1xf32>
    %130 = arith.mulf %124, %124 : vector<16x1xf32>
    %131 = arith.subf %129, %130 : vector<16x1xf32>
    %132 = vector.broadcast %124 : vector<16x1xf32> to vector<16x128xf32>
    %133 = arith.subf %118, %132 : vector<16x128xf32>
    %cst_79 = arith.constant 9.99999974E-6 : f32
    %134 = vector.broadcast %cst_79 : f32 to vector<16x1xf32>
    %135 = arith.addf %131, %134 : vector<16x1xf32>
    %136 = math.rsqrt %135 : vector<16x1xf32>
    %137 = vector.broadcast %136 : vector<16x1xf32> to vector<16x128xf32>
    %138 = arith.mulf %133, %137 : vector<16x128xf32>
    %139 = vector.broadcast %119 : vector<1x128xf32> to vector<16x128xf32>
    %140 = arith.mulf %138, %139 : vector<16x128xf32>
    %141 = vector.broadcast %120 : vector<1x128xf32> to vector<16x128xf32>
    %142 = arith.addf %140, %141 : vector<16x128xf32>
    %cst_80 = arith.constant 0.000000e+00 : f32
    %143 = vector.broadcast %cst_80 : f32 to vector<16x128xf32>
    %c0_81 = arith.constant 0 : index
    %c0_82 = arith.constant 0 : index
    %144 = vector.load %arg8[%c0_81, %c0_82] : memref<128x2048xf32, #tpu.memory_space<vmem>>, vector<128x512xf32>
    %cst_83 = arith.constant dense<0.000000e+00> : vector<16x512xf32>
    %145 = tpu.matmul %142, %144, %cst_83 {dimension_numbers = #tpu.dot_dimension_numbers<[1], [0], [0], [1], [0, 0, 1, 1], [], []>} : vector<16x128xf32>, vector<128x512xf32>, vector<16x512xf32> -> vector<16x512xf32>
    %c0_84 = arith.constant 0 : index
    %c0_85 = arith.constant 0 : index
    %146 = vector.load %arg9[%c0_84, %c0_85] : memref<1x2048xf32, #tpu.memory_space<vmem>>, vector<1x512xf32>
    %147 = vector.broadcast %146 : vector<1x512xf32> to vector<16x512xf32>
    %148 = arith.addf %145, %147 : vector<16x512xf32>
    %cst_86 = arith.constant 0.000000e+00 : f32
    %149 = vector.broadcast %cst_86 : f32 to vector<16x512xf32>
    %150 = arith.maximumf %148, %149 : vector<16x512xf32>
    %c0_87 = arith.constant 0 : index
    %c0_88 = arith.constant 0 : index
    %151 = vector.load %arg10[%c0_87, %c0_88] : memref<2048x128xf32, #tpu.memory_space<vmem>>, vector<512x128xf32>
    %cst_89 = arith.constant dense<0.000000e+00> : vector<16x128xf32>
    %152 = tpu.matmul %150, %151, %cst_89 {dimension_numbers = #tpu.dot_dimension_numbers<[1], [0], [0], [1], [0, 0, 1, 1], [], []>} : vector<16x512xf32>, vector<512x128xf32>, vector<16x128xf32> -> vector<16x128xf32>
    %153 = arith.addf %143, %152 : vector<16x128xf32>
    %c0_90 = arith.constant 0 : index
    %c512_91 = arith.constant 512 : index
    %154 = vector.load %arg8[%c0_90, %c512_91] : memref<128x2048xf32, #tpu.memory_space<vmem>>, vector<128x512xf32>
    %cst_92 = arith.constant dense<0.000000e+00> : vector<16x512xf32>
    %155 = tpu.matmul %142, %154, %cst_92 {dimension_numbers = #tpu.dot_dimension_numbers<[1], [0], [0], [1], [0, 0, 1, 1], [], []>} : vector<16x128xf32>, vector<128x512xf32>, vector<16x512xf32> -> vector<16x512xf32>
    %c0_93 = arith.constant 0 : index
    %c512_94 = arith.constant 512 : index
    %156 = vector.load %arg9[%c0_93, %c512_94] : memref<1x2048xf32, #tpu.memory_space<vmem>>, vector<1x512xf32>
    %157 = vector.broadcast %156 : vector<1x512xf32> to vector<16x512xf32>
    %158 = arith.addf %155, %157 : vector<16x512xf32>
    %cst_95 = arith.constant 0.000000e+00 : f32
    %159 = vector.broadcast %cst_95 : f32 to vector<16x512xf32>
    %160 = arith.maximumf %158, %159 : vector<16x512xf32>
    %c512_96 = arith.constant 512 : index
    %c0_97 = arith.constant 0 : index
    %161 = vector.load %arg10[%c512_96, %c0_97] : memref<2048x128xf32, #tpu.memory_space<vmem>>, vector<512x128xf32>
    %cst_98 = arith.constant dense<0.000000e+00> : vector<16x128xf32>
    %162 = tpu.matmul %160, %161, %cst_98 {dimension_numbers = #tpu.dot_dimension_numbers<[1], [0], [0], [1], [0, 0, 1, 1], [], []>} : vector<16x512xf32>, vector<512x128xf32>, vector<16x128xf32> -> vector<16x128xf32>
    %163 = arith.addf %153, %162 : vector<16x128xf32>
    %c0_99 = arith.constant 0 : index
    %c1024_100 = arith.constant 1024 : index
    %164 = vector.load %arg8[%c0_99, %c1024_100] : memref<128x2048xf32, #tpu.memory_space<vmem>>, vector<128x512xf32>
    %cst_101 = arith.constant dense<0.000000e+00> : vector<16x512xf32>
    %165 = tpu.matmul %142, %164, %cst_101 {dimension_numbers = #tpu.dot_dimension_numbers<[1], [0], [0], [1], [0, 0, 1, 1], [], []>} : vector<16x128xf32>, vector<128x512xf32>, vector<16x512xf32> -> vector<16x512xf32>
    %c0_102 = arith.constant 0 : index
    %c1024_103 = arith.constant 1024 : index
    %166 = vector.load %arg9[%c0_102, %c1024_103] : memref<1x2048xf32, #tpu.memory_space<vmem>>, vector<1x512xf32>
    %167 = vector.broadcast %166 : vector<1x512xf32> to vector<16x512xf32>
    %168 = arith.addf %165, %167 : vector<16x512xf32>
    %cst_104 = arith.constant 0.000000e+00 : f32
    %169 = vector.broadcast %cst_104 : f32 to vector<16x512xf32>
    %170 = arith.maximumf %168, %169 : vector<16x512xf32>
    %c1024_105 = arith.constant 1024 : index
    %c0_106 = arith.constant 0 : index
    %171 = vector.load %arg10[%c1024_105, %c0_106] : memref<2048x128xf32, #tpu.memory_space<vmem>>, vector<512x128xf32>
    %cst_107 = arith.constant dense<0.000000e+00> : vector<16x128xf32>
    %172 = tpu.matmul %170, %171, %cst_107 {dimension_numbers = #tpu.dot_dimension_numbers<[1], [0], [0], [1], [0, 0, 1, 1], [], []>} : vector<16x512xf32>, vector<512x128xf32>, vector<16x128xf32> -> vector<16x128xf32>
    %173 = arith.addf %163, %172 : vector<16x128xf32>
    %c0_108 = arith.constant 0 : index
    %c1536 = arith.constant 1536 : index
    %174 = vector.load %arg8[%c0_108, %c1536] : memref<128x2048xf32, #tpu.memory_space<vmem>>, vector<128x512xf32>
    %cst_109 = arith.constant dense<0.000000e+00> : vector<16x512xf32>
    %175 = tpu.matmul %142, %174, %cst_109 {dimension_numbers = #tpu.dot_dimension_numbers<[1], [0], [0], [1], [0, 0, 1, 1], [], []>} : vector<16x128xf32>, vector<128x512xf32>, vector<16x512xf32> -> vector<16x512xf32>
    %c0_110 = arith.constant 0 : index
    %c1536_111 = arith.constant 1536 : index
    %176 = vector.load %arg9[%c0_110, %c1536_111] : memref<1x2048xf32, #tpu.memory_space<vmem>>, vector<1x512xf32>
    %177 = vector.broadcast %176 : vector<1x512xf32> to vector<16x512xf32>
    %178 = arith.addf %175, %177 : vector<16x512xf32>
    %cst_112 = arith.constant 0.000000e+00 : f32
    %179 = vector.broadcast %cst_112 : f32 to vector<16x512xf32>
    %180 = arith.maximumf %178, %179 : vector<16x512xf32>
    %c1536_113 = arith.constant 1536 : index
    %c0_114 = arith.constant 0 : index
    %181 = vector.load %arg10[%c1536_113, %c0_114] : memref<2048x128xf32, #tpu.memory_space<vmem>>, vector<512x128xf32>
    %cst_115 = arith.constant dense<0.000000e+00> : vector<16x128xf32>
    %182 = tpu.matmul %180, %181, %cst_115 {dimension_numbers = #tpu.dot_dimension_numbers<[1], [0], [0], [1], [0, 0, 1, 1], [], []>} : vector<16x512xf32>, vector<512x128xf32>, vector<16x128xf32> -> vector<16x128xf32>
    %183 = arith.addf %173, %182 : vector<16x128xf32>
    %c0_116 = arith.constant 0 : index
    %c0_117 = arith.constant 0 : index
    %184 = vector.load %arg11[%c0_116, %c0_117] : memref<1x128xf32, #tpu.memory_space<vmem>>, vector<1x128xf32>
    %185 = vector.broadcast %184 : vector<1x128xf32> to vector<16x128xf32>
    %186 = arith.addf %183, %185 : vector<16x128xf32>
    %187 = arith.addf %142, %186 : vector<16x128xf32>
    %c0_118 = arith.constant 0 : index
    %c0_119 = arith.constant 0 : index
    %188 = vector.load %arg14[%c0_118, %c0_119] : memref<1x128xf32, #tpu.memory_space<vmem>>, vector<1x128xf32>
    %c0_120 = arith.constant 0 : index
    %c0_121 = arith.constant 0 : index
    %189 = vector.load %arg15[%c0_120, %c0_121] : memref<1x128xf32, #tpu.memory_space<vmem>>, vector<1x128xf32>
    %cst_122 = arith.constant dense<0.000000e+00> : vector<16xf32>
    %190 = vector.multi_reduction <add>, %187, %cst_122 [1] : vector<16x128xf32> to vector<16xf32>
    %191 = vector.shape_cast %190 : vector<16xf32> to vector<16x1xf32>
    %cst_123 = arith.constant 0.00999999977 : f32
    %192 = vector.broadcast %cst_123 : f32 to vector<16x1xf32>
    %193 = arith.mulf %191, %192 : vector<16x1xf32>
    %194 = arith.mulf %187, %187 : vector<16x128xf32>
    %cst_124 = arith.constant dense<0.000000e+00> : vector<16xf32>
    %195 = vector.multi_reduction <add>, %194, %cst_124 [1] : vector<16x128xf32> to vector<16xf32>
    %196 = vector.shape_cast %195 : vector<16xf32> to vector<16x1xf32>
    %cst_125 = arith.constant 0.00999999977 : f32
    %197 = vector.broadcast %cst_125 : f32 to vector<16x1xf32>
    %198 = arith.mulf %196, %197 : vector<16x1xf32>
    %199 = arith.mulf %193, %193 : vector<16x1xf32>
    %200 = arith.subf %198, %199 : vector<16x1xf32>
    %201 = vector.broadcast %193 : vector<16x1xf32> to vector<16x128xf32>
    %202 = arith.subf %187, %201 : vector<16x128xf32>
    %cst_126 = arith.constant 9.99999974E-6 : f32
    %203 = vector.broadcast %cst_126 : f32 to vector<16x1xf32>
    %204 = arith.addf %200, %203 : vector<16x1xf32>
    %205 = math.rsqrt %204 : vector<16x1xf32>
    %206 = vector.broadcast %205 : vector<16x1xf32> to vector<16x128xf32>
    %207 = arith.mulf %202, %206 : vector<16x128xf32>
    %208 = vector.broadcast %188 : vector<1x128xf32> to vector<16x128xf32>
    %209 = arith.mulf %207, %208 : vector<16x128xf32>
    %210 = vector.broadcast %189 : vector<1x128xf32> to vector<16x128xf32>
    %211 = arith.addf %209, %210 : vector<16x128xf32>
    %c0_127 = arith.constant 0 : index
    %c0_128 = arith.constant 0 : index
    %212 = vector.load %arg16[%c0_127, %c0_128] : memref<128x1536xf32, #tpu.memory_space<vmem>>, vector<128x1536xf32>
    %cst_129 = arith.constant dense<0.000000e+00> : vector<16x1536xf32>
    %213 = tpu.matmul %211, %212, %cst_129 {dimension_numbers = #tpu.dot_dimension_numbers<[1], [0], [0], [1], [0, 0, 1, 1], [], []>} : vector<16x128xf32>, vector<128x1536xf32>, vector<16x1536xf32> -> vector<16x1536xf32>
    %c0_130 = arith.constant 0 : index
    %c0_131 = arith.constant 0 : index
    %214 = vector.load %arg17[%c0_130, %c0_131] : memref<1x1536xf32, #tpu.memory_space<vmem>>, vector<1x1536xf32>
    %215 = vector.broadcast %214 : vector<1x1536xf32> to vector<16x1536xf32>
    %216 = arith.addf %213, %215 : vector<16x1536xf32>
    %c0_132 = arith.constant 0 : index
    %c0_133 = arith.constant 0 : index
    %217 = vector.load %arg29[%c0_132, %c0_133] : memref<16x1536xf32, #tpu.memory_space<vmem>>, vector<16x1536xf32>
    tpu.vector_store %arg29[%c0_132, %c0_133], %216 {strides = array<i32>} : memref<16x1536xf32, #tpu.memory_space<vmem>>, vector<16x1536xf32>,
    %c0_134 = arith.constant 0 : index
    %c0_135 = arith.constant 0 : index
    %218 = vector.load %arg29[%c0_134, %c0_135] : memref<16x1536xf32, #tpu.memory_space<vmem>>, vector<16x128xf32>
    %c0_136 = arith.constant 0 : index
    %c512_137 = arith.constant 512 : index
    %219 = vector.load %arg29[%c0_136, %c512_137] : memref<16x1536xf32, #tpu.memory_space<vmem>>, vector<16x128xf32>
    %c0_138 = arith.constant 0 : index
    %c1024_139 = arith.constant 1024 : index
    %220 = vector.load %arg29[%c0_138, %c1024_139] : memref<16x1536xf32, #tpu.memory_space<vmem>>, vector<16x128xf32>
    %cst_140 = arith.constant dense<0.000000e+00> : vector<16x16xf32>
    %221 = tpu.matmul %218, %219, %cst_140 {dimension_numbers = #tpu.dot_dimension_numbers<[1], [1], [0], [0], [0, 0, 1, 0], [], []>} : vector<16x128xf32>, vector<16x128xf32>, vector<16x16xf32> -> vector<16x16xf32>
    %cst_141 = arith.constant 2.000000e-01 : f32
    %222 = vector.broadcast %cst_141 : f32 to vector<16x16xf32>
    %223 = arith.mulf %221, %222 : vector<16x16xf32>
    %cst_142 = arith.constant -1.000000e+30 : f32
    %224 = vector.broadcast %cst_142 : f32 to vector<16x16xf32>
    %225 = arith.select %9, %223, %224 : vector<16x16xi1>, vector<16x16xf32>
    %cst_143 = arith.constant dense<0xFF800000> : vector<16xf32>
    %226 = vector.multi_reduction <maximumf>, %225, %cst_143 [1] : vector<16x16xf32> to vector<16xf32>
    %227 = vector.shape_cast %226 : vector<16xf32> to vector<16x1xf32>
    %228 = vector.broadcast %227 : vector<16x1xf32> to vector<16x16xf32>
    %229 = arith.subf %225, %228 : vector<16x16xf32>
    %230 = math.exp %229 : vector<16x16xf32>
    %cst_144 = arith.constant dense<0.000000e+00> : vector<16xf32>
    %231 = vector.multi_reduction <add>, %230, %cst_144 [1] : vector<16x16xf32> to vector<16xf32>
    %232 = vector.shape_cast %231 : vector<16xf32> to vector<16x1xf32>
    %233 = tpu.reciprocal %232 {approx = true} : vector<16x1xf32> -> vector<16x1xf32>
    %234 = arith.mulf %232, %233 : vector<16x1xf32>
    %cst_145 = arith.constant 2.000000e+00 : f32
    %235 = vector.broadcast %cst_145 : f32 to vector<16x1xf32>
    %236 = arith.subf %235, %234 : vector<16x1xf32>
    %237 = arith.mulf %233, %236 : vector<16x1xf32>
    %238 = vector.broadcast %237 : vector<16x1xf32> to vector<16x16xf32>
    %239 = arith.mulf %230, %238 : vector<16x16xf32>
    %cst_146 = arith.constant dense<0.000000e+00> : vector<16x128xf32>
    %240 = tpu.matmul %239, %220, %cst_146 {dimension_numbers = #tpu.dot_dimension_numbers<[1], [0], [0], [1], [0, 0, 1, 1], [], []>} : vector<16x16xf32>, vector<16x128xf32>, vector<16x128xf32> -> vector<16x128xf32>
    %c0_147 = arith.constant 0 : index
    %c0_148 = arith.constant 0 : index
    %241 = vector.load %arg30[%c0_147, %c0_148] : memref<16x512xf32, #tpu.memory_space<vmem>>, vector<16x128xf32>
    tpu.vector_store %arg30[%c0_147, %c0_148], %240 {strides = array<i32>} : memref<16x512xf32, #tpu.memory_space<vmem>>, vector<16x128xf32>,
    %c0_149 = arith.constant 0 : index
    %c128_150 = arith.constant 128 : index
    %242 = vector.load %arg29[%c0_149, %c128_150] : memref<16x1536xf32, #tpu.memory_space<vmem>>, vector<16x128xf32>
    %c0_151 = arith.constant 0 : index
    %c640_152 = arith.constant 640 : index
    %243 = vector.load %arg29[%c0_151, %c640_152] : memref<16x1536xf32, #tpu.memory_space<vmem>>, vector<16x128xf32>
    %c0_153 = arith.constant 0 : index
    %c1152_154 = arith.constant 1152 : index
    %244 = vector.load %arg29[%c0_153, %c1152_154] : memref<16x1536xf32, #tpu.memory_space<vmem>>, vector<16x128xf32>
    %cst_155 = arith.constant dense<0.000000e+00> : vector<16x16xf32>
    %245 = tpu.matmul %242, %243, %cst_155 {dimension_numbers = #tpu.dot_dimension_numbers<[1], [1], [0], [0], [0, 0, 1, 0], [], []>} : vector<16x128xf32>, vector<16x128xf32>, vector<16x16xf32> -> vector<16x16xf32>
    %cst_156 = arith.constant 2.000000e-01 : f32
    %246 = vector.broadcast %cst_156 : f32 to vector<16x16xf32>
    %247 = arith.mulf %245, %246 : vector<16x16xf32>
    %cst_157 = arith.constant -1.000000e+30 : f32
    %248 = vector.broadcast %cst_157 : f32 to vector<16x16xf32>
    %249 = arith.select %9, %247, %248 : vector<16x16xi1>, vector<16x16xf32>
    %cst_158 = arith.constant dense<0xFF800000> : vector<16xf32>
    %250 = vector.multi_reduction <maximumf>, %249, %cst_158 [1] : vector<16x16xf32> to vector<16xf32>
    %251 = vector.shape_cast %250 : vector<16xf32> to vector<16x1xf32>
    %252 = vector.broadcast %251 : vector<16x1xf32> to vector<16x16xf32>
    %253 = arith.subf %249, %252 : vector<16x16xf32>
    %254 = math.exp %253 : vector<16x16xf32>
    %cst_159 = arith.constant dense<0.000000e+00> : vector<16xf32>
    %255 = vector.multi_reduction <add>, %254, %cst_159 [1] : vector<16x16xf32> to vector<16xf32>
    %256 = vector.shape_cast %255 : vector<16xf32> to vector<16x1xf32>
    %257 = tpu.reciprocal %256 {approx = true} : vector<16x1xf32> -> vector<16x1xf32>
    %258 = arith.mulf %256, %257 : vector<16x1xf32>
    %cst_160 = arith.constant 2.000000e+00 : f32
    %259 = vector.broadcast %cst_160 : f32 to vector<16x1xf32>
    %260 = arith.subf %259, %258 : vector<16x1xf32>
    %261 = arith.mulf %257, %260 : vector<16x1xf32>
    %262 = vector.broadcast %261 : vector<16x1xf32> to vector<16x16xf32>
    %263 = arith.mulf %254, %262 : vector<16x16xf32>
    %cst_161 = arith.constant dense<0.000000e+00> : vector<16x128xf32>
    %264 = tpu.matmul %263, %244, %cst_161 {dimension_numbers = #tpu.dot_dimension_numbers<[1], [0], [0], [1], [0, 0, 1, 1], [], []>} : vector<16x16xf32>, vector<16x128xf32>, vector<16x128xf32> -> vector<16x128xf32>
    %c0_162 = arith.constant 0 : index
    %c128_163 = arith.constant 128 : index
    %265 = vector.load %arg30[%c0_162, %c128_163] : memref<16x512xf32, #tpu.memory_space<vmem>>, vector<16x128xf32>
    tpu.vector_store %arg30[%c0_162, %c128_163], %264 {strides = array<i32>} : memref<16x512xf32, #tpu.memory_space<vmem>>, vector<16x128xf32>,
    %c0_164 = arith.constant 0 : index
    %c256_165 = arith.constant 256 : index
    %266 = vector.load %arg29[%c0_164, %c256_165] : memref<16x1536xf32, #tpu.memory_space<vmem>>, vector<16x128xf32>
    %c0_166 = arith.constant 0 : index
    %c768_167 = arith.constant 768 : index
    %267 = vector.load %arg29[%c0_166, %c768_167] : memref<16x1536xf32, #tpu.memory_space<vmem>>, vector<16x128xf32>
    %c0_168 = arith.constant 0 : index
    %c1280_169 = arith.constant 1280 : index
    %268 = vector.load %arg29[%c0_168, %c1280_169] : memref<16x1536xf32, #tpu.memory_space<vmem>>, vector<16x128xf32>
    %cst_170 = arith.constant dense<0.000000e+00> : vector<16x16xf32>
    %269 = tpu.matmul %266, %267, %cst_170 {dimension_numbers = #tpu.dot_dimension_numbers<[1], [1], [0], [0], [0, 0, 1, 0], [], []>} : vector<16x128xf32>, vector<16x128xf32>, vector<16x16xf32> -> vector<16x16xf32>
    %cst_171 = arith.constant 2.000000e-01 : f32
    %270 = vector.broadcast %cst_171 : f32 to vector<16x16xf32>
    %271 = arith.mulf %269, %270 : vector<16x16xf32>
    %cst_172 = arith.constant -1.000000e+30 : f32
    %272 = vector.broadcast %cst_172 : f32 to vector<16x16xf32>
    %273 = arith.select %9, %271, %272 : vector<16x16xi1>, vector<16x16xf32>
    %cst_173 = arith.constant dense<0xFF800000> : vector<16xf32>
    %274 = vector.multi_reduction <maximumf>, %273, %cst_173 [1] : vector<16x16xf32> to vector<16xf32>
    %275 = vector.shape_cast %274 : vector<16xf32> to vector<16x1xf32>
    %276 = vector.broadcast %275 : vector<16x1xf32> to vector<16x16xf32>
    %277 = arith.subf %273, %276 : vector<16x16xf32>
    %278 = math.exp %277 : vector<16x16xf32>
    %cst_174 = arith.constant dense<0.000000e+00> : vector<16xf32>
    %279 = vector.multi_reduction <add>, %278, %cst_174 [1] : vector<16x16xf32> to vector<16xf32>
    %280 = vector.shape_cast %279 : vector<16xf32> to vector<16x1xf32>
    %281 = tpu.reciprocal %280 {approx = true} : vector<16x1xf32> -> vector<16x1xf32>
    %282 = arith.mulf %280, %281 : vector<16x1xf32>
    %cst_175 = arith.constant 2.000000e+00 : f32
    %283 = vector.broadcast %cst_175 : f32 to vector<16x1xf32>
    %284 = arith.subf %283, %282 : vector<16x1xf32>
    %285 = arith.mulf %281, %284 : vector<16x1xf32>
    %286 = vector.broadcast %285 : vector<16x1xf32> to vector<16x16xf32>
    %287 = arith.mulf %278, %286 : vector<16x16xf32>
    %cst_176 = arith.constant dense<0.000000e+00> : vector<16x128xf32>
    %288 = tpu.matmul %287, %268, %cst_176 {dimension_numbers = #tpu.dot_dimension_numbers<[1], [0], [0], [1], [0, 0, 1, 1], [], []>} : vector<16x16xf32>, vector<16x128xf32>, vector<16x128xf32> -> vector<16x128xf32>
    %c0_177 = arith.constant 0 : index
    %c256_178 = arith.constant 256 : index
    %289 = vector.load %arg30[%c0_177, %c256_178] : memref<16x512xf32, #tpu.memory_space<vmem>>, vector<16x128xf32>
    tpu.vector_store %arg30[%c0_177, %c256_178], %288 {strides = array<i32>} : memref<16x512xf32, #tpu.memory_space<vmem>>, vector<16x128xf32>,
    %c0_179 = arith.constant 0 : index
    %c384_180 = arith.constant 384 : index
    %290 = vector.load %arg29[%c0_179, %c384_180] : memref<16x1536xf32, #tpu.memory_space<vmem>>, vector<16x128xf32>
    %c0_181 = arith.constant 0 : index
    %c896_182 = arith.constant 896 : index
    %291 = vector.load %arg29[%c0_181, %c896_182] : memref<16x1536xf32, #tpu.memory_space<vmem>>, vector<16x128xf32>
    %c0_183 = arith.constant 0 : index
    %c1408_184 = arith.constant 1408 : index
    %292 = vector.load %arg29[%c0_183, %c1408_184] : memref<16x1536xf32, #tpu.memory_space<vmem>>, vector<16x128xf32>
    %cst_185 = arith.constant dense<0.000000e+00> : vector<16x16xf32>
    %293 = tpu.matmul %290, %291, %cst_185 {dimension_numbers = #tpu.dot_dimension_numbers<[1], [1], [0], [0], [0, 0, 1, 0], [], []>} : vector<16x128xf32>, vector<16x128xf32>, vector<16x16xf32> -> vector<16x16xf32>
    %cst_186 = arith.constant 2.000000e-01 : f32
    %294 = vector.broadcast %cst_186 : f32 to vector<16x16xf32>
    %295 = arith.mulf %293, %294 : vector<16x16xf32>
    %cst_187 = arith.constant -1.000000e+30 : f32
    %296 = vector.broadcast %cst_187 : f32 to vector<16x16xf32>
    %297 = arith.select %9, %295, %296 : vector<16x16xi1>, vector<16x16xf32>
    %cst_188 = arith.constant dense<0xFF800000> : vector<16xf32>
    %298 = vector.multi_reduction <maximumf>, %297, %cst_188 [1] : vector<16x16xf32> to vector<16xf32>
    %299 = vector.shape_cast %298 : vector<16xf32> to vector<16x1xf32>
    %300 = vector.broadcast %299 : vector<16x1xf32> to vector<16x16xf32>
    %301 = arith.subf %297, %300 : vector<16x16xf32>
    %302 = math.exp %301 : vector<16x16xf32>
    %cst_189 = arith.constant dense<0.000000e+00> : vector<16xf32>
    %303 = vector.multi_reduction <add>, %302, %cst_189 [1] : vector<16x16xf32> to vector<16xf32>
    %304 = vector.shape_cast %303 : vector<16xf32> to vector<16x1xf32>
    %305 = tpu.reciprocal %304 {approx = true} : vector<16x1xf32> -> vector<16x1xf32>
    %306 = arith.mulf %304, %305 : vector<16x1xf32>
    %cst_190 = arith.constant 2.000000e+00 : f32
    %307 = vector.broadcast %cst_190 : f32 to vector<16x1xf32>
    %308 = arith.subf %307, %306 : vector<16x1xf32>
    %309 = arith.mulf %305, %308 : vector<16x1xf32>
    %310 = vector.broadcast %309 : vector<16x1xf32> to vector<16x16xf32>
    %311 = arith.mulf %302, %310 : vector<16x16xf32>
    %cst_191 = arith.constant dense<0.000000e+00> : vector<16x128xf32>
    %312 = tpu.matmul %311, %292, %cst_191 {dimension_numbers = #tpu.dot_dimension_numbers<[1], [0], [0], [1], [0, 0, 1, 1], [], []>} : vector<16x16xf32>, vector<16x128xf32>, vector<16x128xf32> -> vector<16x128xf32>
    %c0_192 = arith.constant 0 : index
    %c384_193 = arith.constant 384 : index
    %313 = vector.load %arg30[%c0_192, %c384_193] : memref<16x512xf32, #tpu.memory_space<vmem>>, vector<16x128xf32>
    tpu.vector_store %arg30[%c0_192, %c384_193], %312 {strides = array<i32>} : memref<16x512xf32, #tpu.memory_space<vmem>>, vector<16x128xf32>,
    %c0_194 = arith.constant 0 : index
    %c0_195 = arith.constant 0 : index
    %314 = vector.load %arg30[%c0_194, %c0_195] : memref<16x512xf32, #tpu.memory_space<vmem>>, vector<16x512xf32>
    %c0_196 = arith.constant 0 : index
    %c0_197 = arith.constant 0 : index
    %315 = vector.load %arg18[%c0_196, %c0_197] : memref<512x128xf32, #tpu.memory_space<vmem>>, vector<512x128xf32>
    %cst_198 = arith.constant dense<0.000000e+00> : vector<16x128xf32>
    %316 = tpu.matmul %314, %315, %cst_198 {dimension_numbers = #tpu.dot_dimension_numbers<[1], [0], [0], [1], [0, 0, 1, 1], [], []>} : vector<16x512xf32>, vector<512x128xf32>, vector<16x128xf32> -> vector<16x128xf32>
    %c0_199 = arith.constant 0 : index
    %c0_200 = arith.constant 0 : index
    %317 = vector.load %arg19[%c0_199, %c0_200] : memref<1x128xf32, #tpu.memory_space<vmem>>, vector<1x128xf32>
    %318 = vector.broadcast %317 : vector<1x128xf32> to vector<16x128xf32>
    %319 = arith.addf %316, %318 : vector<16x128xf32>
    %320 = arith.addf %211, %319 : vector<16x128xf32>
    %c0_201 = arith.constant 0 : index
    %c0_202 = arith.constant 0 : index
    %321 = vector.load %arg24[%c0_201, %c0_202] : memref<1x128xf32, #tpu.memory_space<vmem>>, vector<1x128xf32>
    %c0_203 = arith.constant 0 : index
    %c0_204 = arith.constant 0 : index
    %322 = vector.load %arg25[%c0_203, %c0_204] : memref<1x128xf32, #tpu.memory_space<vmem>>, vector<1x128xf32>
    %cst_205 = arith.constant dense<0.000000e+00> : vector<16xf32>
    %323 = vector.multi_reduction <add>, %320, %cst_205 [1] : vector<16x128xf32> to vector<16xf32>
    %324 = vector.shape_cast %323 : vector<16xf32> to vector<16x1xf32>
    %cst_206 = arith.constant 0.00999999977 : f32
    %325 = vector.broadcast %cst_206 : f32 to vector<16x1xf32>
    %326 = arith.mulf %324, %325 : vector<16x1xf32>
    %327 = arith.mulf %320, %320 : vector<16x128xf32>
    %cst_207 = arith.constant dense<0.000000e+00> : vector<16xf32>
    %328 = vector.multi_reduction <add>, %327, %cst_207 [1] : vector<16x128xf32> to vector<16xf32>
    %329 = vector.shape_cast %328 : vector<16xf32> to vector<16x1xf32>
    %cst_208 = arith.constant 0.00999999977 : f32
    %330 = vector.broadcast %cst_208 : f32 to vector<16x1xf32>
    %331 = arith.mulf %329, %330 : vector<16x1xf32>
    %332 = arith.mulf %326, %326 : vector<16x1xf32>
    %333 = arith.subf %331, %332 : vector<16x1xf32>
    %334 = vector.broadcast %326 : vector<16x1xf32> to vector<16x128xf32>
    %335 = arith.subf %320, %334 : vector<16x128xf32>
    %cst_209 = arith.constant 9.99999974E-6 : f32
    %336 = vector.broadcast %cst_209 : f32 to vector<16x1xf32>
    %337 = arith.addf %333, %336 : vector<16x1xf32>
    %338 = math.rsqrt %337 : vector<16x1xf32>
    %339 = vector.broadcast %338 : vector<16x1xf32> to vector<16x128xf32>
    %340 = arith.mulf %335, %339 : vector<16x128xf32>
    %341 = vector.broadcast %321 : vector<1x128xf32> to vector<16x128xf32>
    %342 = arith.mulf %340, %341 : vector<16x128xf32>
    %343 = vector.broadcast %322 : vector<1x128xf32> to vector<16x128xf32>
    %344 = arith.addf %342, %343 : vector<16x128xf32>
    %cst_210 = arith.constant 0.000000e+00 : f32
    %345 = vector.broadcast %cst_210 : f32 to vector<16x128xf32>
    %c0_211 = arith.constant 0 : index
    %c0_212 = arith.constant 0 : index
    %346 = vector.load %arg20[%c0_211, %c0_212] : memref<128x2048xf32, #tpu.memory_space<vmem>>, vector<128x512xf32>
    %cst_213 = arith.constant dense<0.000000e+00> : vector<16x512xf32>
    %347 = tpu.matmul %344, %346, %cst_213 {dimension_numbers = #tpu.dot_dimension_numbers<[1], [0], [0], [1], [0, 0, 1, 1], [], []>} : vector<16x128xf32>, vector<128x512xf32>, vector<16x512xf32> -> vector<16x512xf32>
    %c0_214 = arith.constant 0 : index
    %c0_215 = arith.constant 0 : index
    %348 = vector.load %arg21[%c0_214, %c0_215] : memref<1x2048xf32, #tpu.memory_space<vmem>>, vector<1x512xf32>
    %349 = vector.broadcast %348 : vector<1x512xf32> to vector<16x512xf32>
    %350 = arith.addf %347, %349 : vector<16x512xf32>
    %cst_216 = arith.constant 0.000000e+00 : f32
    %351 = vector.broadcast %cst_216 : f32 to vector<16x512xf32>
    %352 = arith.maximumf %350, %351 : vector<16x512xf32>
    %c0_217 = arith.constant 0 : index
    %c0_218 = arith.constant 0 : index
    %353 = vector.load %arg22[%c0_217, %c0_218] : memref<2048x128xf32, #tpu.memory_space<vmem>>, vector<512x128xf32>
    %cst_219 = arith.constant dense<0.000000e+00> : vector<16x128xf32>
    %354 = tpu.matmul %352, %353, %cst_219 {dimension_numbers = #tpu.dot_dimension_numbers<[1], [0], [0], [1], [0, 0, 1, 1], [], []>} : vector<16x512xf32>, vector<512x128xf32>, vector<16x128xf32> -> vector<16x128xf32>
    %355 = arith.addf %345, %354 : vector<16x128xf32>
    %c0_220 = arith.constant 0 : index
    %c512_221 = arith.constant 512 : index
    %356 = vector.load %arg20[%c0_220, %c512_221] : memref<128x2048xf32, #tpu.memory_space<vmem>>, vector<128x512xf32>
    %cst_222 = arith.constant dense<0.000000e+00> : vector<16x512xf32>
    %357 = tpu.matmul %344, %356, %cst_222 {dimension_numbers = #tpu.dot_dimension_numbers<[1], [0], [0], [1], [0, 0, 1, 1], [], []>} : vector<16x128xf32>, vector<128x512xf32>, vector<16x512xf32> -> vector<16x512xf32>
    %c0_223 = arith.constant 0 : index
    %c512_224 = arith.constant 512 : index
    %358 = vector.load %arg21[%c0_223, %c512_224] : memref<1x2048xf32, #tpu.memory_space<vmem>>, vector<1x512xf32>
    %359 = vector.broadcast %358 : vector<1x512xf32> to vector<16x512xf32>
    %360 = arith.addf %357, %359 : vector<16x512xf32>
    %cst_225 = arith.constant 0.000000e+00 : f32
    %361 = vector.broadcast %cst_225 : f32 to vector<16x512xf32>
    %362 = arith.maximumf %360, %361 : vector<16x512xf32>
    %c512_226 = arith.constant 512 : index
    %c0_227 = arith.constant 0 : index
    %363 = vector.load %arg22[%c512_226, %c0_227] : memref<2048x128xf32, #tpu.memory_space<vmem>>, vector<512x128xf32>
    %cst_228 = arith.constant dense<0.000000e+00> : vector<16x128xf32>
    %364 = tpu.matmul %362, %363, %cst_228 {dimension_numbers = #tpu.dot_dimension_numbers<[1], [0], [0], [1], [0, 0, 1, 1], [], []>} : vector<16x512xf32>, vector<512x128xf32>, vector<16x128xf32> -> vector<16x128xf32>
    %365 = arith.addf %355, %364 : vector<16x128xf32>
    %c0_229 = arith.constant 0 : index
    %c1024_230 = arith.constant 1024 : index
    %366 = vector.load %arg20[%c0_229, %c1024_230] : memref<128x2048xf32, #tpu.memory_space<vmem>>, vector<128x512xf32>
    %cst_231 = arith.constant dense<0.000000e+00> : vector<16x512xf32>
    %367 = tpu.matmul %344, %366, %cst_231 {dimension_numbers = #tpu.dot_dimension_numbers<[1], [0], [0], [1], [0, 0, 1, 1], [], []>} : vector<16x128xf32>, vector<128x512xf32>, vector<16x512xf32> -> vector<16x512xf32>
    %c0_232 = arith.constant 0 : index
    %c1024_233 = arith.constant 1024 : index
    %368 = vector.load %arg21[%c0_232, %c1024_233] : memref<1x2048xf32, #tpu.memory_space<vmem>>, vector<1x512xf32>
    %369 = vector.broadcast %368 : vector<1x512xf32> to vector<16x512xf32>
    %370 = arith.addf %367, %369 : vector<16x512xf32>
    %cst_234 = arith.constant 0.000000e+00 : f32
    %371 = vector.broadcast %cst_234 : f32 to vector<16x512xf32>
    %372 = arith.maximumf %370, %371 : vector<16x512xf32>
    %c1024_235 = arith.constant 1024 : index
    %c0_236 = arith.constant 0 : index
    %373 = vector.load %arg22[%c1024_235, %c0_236] : memref<2048x128xf32, #tpu.memory_space<vmem>>, vector<512x128xf32>
    %cst_237 = arith.constant dense<0.000000e+00> : vector<16x128xf32>
    %374 = tpu.matmul %372, %373, %cst_237 {dimension_numbers = #tpu.dot_dimension_numbers<[1], [0], [0], [1], [0, 0, 1, 1], [], []>} : vector<16x512xf32>, vector<512x128xf32>, vector<16x128xf32> -> vector<16x128xf32>
    %375 = arith.addf %365, %374 : vector<16x128xf32>
    %c0_238 = arith.constant 0 : index
    %c1536_239 = arith.constant 1536 : index
    %376 = vector.load %arg20[%c0_238, %c1536_239] : memref<128x2048xf32, #tpu.memory_space<vmem>>, vector<128x512xf32>
    %cst_240 = arith.constant dense<0.000000e+00> : vector<16x512xf32>
    %377 = tpu.matmul %344, %376, %cst_240 {dimension_numbers = #tpu.dot_dimension_numbers<[1], [0], [0], [1], [0, 0, 1, 1], [], []>} : vector<16x128xf32>, vector<128x512xf32>, vector<16x512xf32> -> vector<16x512xf32>
    %c0_241 = arith.constant 0 : index
    %c1536_242 = arith.constant 1536 : index
    %378 = vector.load %arg21[%c0_241, %c1536_242] : memref<1x2048xf32, #tpu.memory_space<vmem>>, vector<1x512xf32>
    %379 = vector.broadcast %378 : vector<1x512xf32> to vector<16x512xf32>
    %380 = arith.addf %377, %379 : vector<16x512xf32>
    %cst_243 = arith.constant 0.000000e+00 : f32
    %381 = vector.broadcast %cst_243 : f32 to vector<16x512xf32>
    %382 = arith.maximumf %380, %381 : vector<16x512xf32>
    %c1536_244 = arith.constant 1536 : index
    %c0_245 = arith.constant 0 : index
    %383 = vector.load %arg22[%c1536_244, %c0_245] : memref<2048x128xf32, #tpu.memory_space<vmem>>, vector<512x128xf32>
    %cst_246 = arith.constant dense<0.000000e+00> : vector<16x128xf32>
    %384 = tpu.matmul %382, %383, %cst_246 {dimension_numbers = #tpu.dot_dimension_numbers<[1], [0], [0], [1], [0, 0, 1, 1], [], []>} : vector<16x512xf32>, vector<512x128xf32>, vector<16x128xf32> -> vector<16x128xf32>
    %385 = arith.addf %375, %384 : vector<16x128xf32>
    %c0_247 = arith.constant 0 : index
    %c0_248 = arith.constant 0 : index
    %386 = vector.load %arg23[%c0_247, %c0_248] : memref<1x128xf32, #tpu.memory_space<vmem>>, vector<1x128xf32>
    %387 = vector.broadcast %386 : vector<1x128xf32> to vector<16x128xf32>
    %388 = arith.addf %385, %387 : vector<16x128xf32>
    %389 = arith.addf %344, %388 : vector<16x128xf32>
    %c0_249 = arith.constant 0 : index
    %c0_250 = arith.constant 0 : index
    %390 = vector.load %arg26[%c0_249, %c0_250] : memref<1x128xf32, #tpu.memory_space<vmem>>, vector<1x128xf32>
    %c0_251 = arith.constant 0 : index
    %c0_252 = arith.constant 0 : index
    %391 = vector.load %arg27[%c0_251, %c0_252] : memref<1x128xf32, #tpu.memory_space<vmem>>, vector<1x128xf32>
    %cst_253 = arith.constant dense<0.000000e+00> : vector<16xf32>
    %392 = vector.multi_reduction <add>, %389, %cst_253 [1] : vector<16x128xf32> to vector<16xf32>
    %393 = vector.shape_cast %392 : vector<16xf32> to vector<16x1xf32>
    %cst_254 = arith.constant 0.00999999977 : f32
    %394 = vector.broadcast %cst_254 : f32 to vector<16x1xf32>
    %395 = arith.mulf %393, %394 : vector<16x1xf32>
    %396 = arith.mulf %389, %389 : vector<16x128xf32>
    %cst_255 = arith.constant dense<0.000000e+00> : vector<16xf32>
    %397 = vector.multi_reduction <add>, %396, %cst_255 [1] : vector<16x128xf32> to vector<16xf32>
    %398 = vector.shape_cast %397 : vector<16xf32> to vector<16x1xf32>
    %cst_256 = arith.constant 0.00999999977 : f32
    %399 = vector.broadcast %cst_256 : f32 to vector<16x1xf32>
    %400 = arith.mulf %398, %399 : vector<16x1xf32>
    %401 = arith.mulf %395, %395 : vector<16x1xf32>
    %402 = arith.subf %400, %401 : vector<16x1xf32>
    %403 = vector.broadcast %395 : vector<16x1xf32> to vector<16x128xf32>
    %404 = arith.subf %389, %403 : vector<16x128xf32>
    %cst_257 = arith.constant 9.99999974E-6 : f32
    %405 = vector.broadcast %cst_257 : f32 to vector<16x1xf32>
    %406 = arith.addf %402, %405 : vector<16x1xf32>
    %407 = math.rsqrt %406 : vector<16x1xf32>
    %408 = vector.broadcast %407 : vector<16x1xf32> to vector<16x128xf32>
    %409 = arith.mulf %404, %408 : vector<16x128xf32>
    %410 = vector.broadcast %390 : vector<1x128xf32> to vector<16x128xf32>
    %411 = arith.mulf %409, %410 : vector<16x128xf32>
    %412 = vector.broadcast %391 : vector<1x128xf32> to vector<16x128xf32>
    %413 = arith.addf %411, %412 : vector<16x128xf32>
    %414 = vector.extract_strided_slice %413 {offsets = [8, 0], sizes = [1, 128], strides = [1, 1]} : vector<16x128xf32> to vector<1x128xf32>
    %c0_258 = arith.constant 0 : index
    %c0_259 = arith.constant 0 : index
    %415 = vector.load %arg28[%c0_258, %c0_259] : memref<1x128xf32, #tpu.memory_space<vmem>>, vector<1x128xf32>
    tpu.vector_store %arg28[%c0_258, %c0_259], %414 {strides = array<i32>} : memref<1x128xf32, #tpu.memory_space<vmem>>, vector<1x128xf32>,
    return
  }
}

</mosaic_0001>

<llo_original>
// kernel: model_forward_pallas.1
$region0: #{model_forward_pallas.1}
  #allocation0 [shape = 'u32[]', space=smem, size = 0x4, offset = 0x4, fixed_abs, tag = 'smem constant byte address 0x4 - core index']
  #allocation1 [shape = 'u32[72,128]{1,0:T(1,128)}', space=vmem, size = 0x9000, scoped, tag = 'internal scratch']
  #allocation2 [shape = 'f32[16,1536]{1,0:T(8,128)}', space=vmem, size = 0x18000, scoped, tag = 'scratch operand']
  #allocation3 [shape = 'f32[16,512]{1,0:T(8,128)}', space=vmem, size = 0x8000, scoped, tag = 'scratch operand']
  %s0 = inlined_call_operand.hbm [shape: f32[8,100], index: 0, kind: input, shape index: {}]
  %s1 = inlined_call_operand.hbm [shape: f32[100,128], index: 1, kind: input, shape index: {}]
  %s2 = inlined_call_operand.vmem [shape: f32[16,8], index: 2, kind: input, shape index: {}]
  %s3 = inlined_call_operand.vmem [shape: f32[16,128], index: 3, kind: input, shape index: {}]
  %s4 = inlined_call_operand.hbm [shape: f32[128,1536], index: 4, kind: input, shape index: {}]
  %s5 = inlined_call_operand.hbm [shape: f32[1,1536], index: 5, kind: input, shape index: {}]
  %s6 = inlined_call_operand.hbm [shape: f32[512,128], index: 6, kind: input, shape index: {}]
  %s7 = inlined_call_operand.hbm [shape: f32[1,128], index: 7, kind: input, shape index: {}]
  %s8 = inlined_call_operand.hbm [shape: f32[128,2048], index: 8, kind: input, shape index: {}]
  %s9 = inlined_call_operand.vmem [shape: f32[1,2048], index: 9, kind: input, shape index: {}]
  %s10 = inlined_call_operand.hbm [shape: f32[2048,128], index: 10, kind: input, shape index: {}]
  %s11 = inlined_call_operand.vmem [shape: f32[1,128], index: 11, kind: input, shape index: {}]
  %s12 = inlined_call_operand.vmem [shape: f32[1,128], index: 12, kind: input, shape index: {}]
  %s13 = inlined_call_operand.vmem [shape: f32[1,128], index: 13, kind: input, shape index: {}]
  %s14 = inlined_call_operand.vmem [shape: f32[1,128], index: 14, kind: input, shape index: {}]
  %s15 = inlined_call_operand.vmem [shape: f32[1,128], index: 15, kind: input, shape index: {}]
  %s16 = inlined_call_operand.hbm [shape: f32[128,1536], index: 16, kind: input, shape index: {}]
  %s17 = inlined_call_operand.hbm [shape: f32[1,1536], index: 17, kind: input, shape index: {}]
  %s18 = inlined_call_operand.hbm [shape: f32[512,128], index: 18, kind: input, shape index: {}]
  %s19 = inlined_call_operand.vmem [shape: f32[1,128], index: 19, kind: input, shape index: {}]
  %s20 = inlined_call_operand.hbm [shape: f32[128,2048], index: 20, kind: input, shape index: {}]
  %s21 = inlined_call_operand.hbm [shape: f32[1,2048], index: 21, kind: input, shape index: {}]
  %s22 = inlined_call_operand.hbm [shape: f32[2048,128], index: 22, kind: input, shape index: {}]
  %s23 = inlined_call_operand.vmem [shape: f32[1,128], index: 23, kind: input, shape index: {}]
  %s24 = inlined_call_operand.vmem [shape: f32[1,128], index: 24, kind: input, shape index: {}]
  %s25 = inlined_call_operand.vmem [shape: f32[1,128], index: 25, kind: input, shape index: {}]
  %s26 = inlined_call_operand.vmem [shape: f32[1,128], index: 26, kind: input, shape index: {}]
  %s27 = inlined_call_operand.vmem [shape: f32[1,128], index: 27, kind: input, shape index: {}]
  %s28 = inlined_call_operand.hbm [shape: f32[1,128], index: 28, kind: output, shape index: {}]
  %s29 = sld [smem:[#allocation0]]
  $region178: #{model_forward_pallas.1} parent=0
    _
  %s31 = ssub.s32 1, %s29
  %s32 = scalar_select 0, %s31, %s29
  $region1: #{model_forward_pallas.1} parent=0
    #allocation4 [shape = 'u8[4096]{0}', space=vmem, size = 0x1000, scoped, tag = 'input window, operand 0, single buffered']
    #allocation5 [shape = 's32[1]{0}', space=sflag, size = 0x4, scoped, tag = 'scoped memory for model_forward_pallas.1']
    #allocation6 [shape = 's32[1]{0}', space=sflag, size = 0x4, scoped, tag = 'scoped memory for model_forward_pallas.1']
    #allocation7 [shape = 'u8[53248]{0}', space=vmem, size = 0xd000, scoped, tag = 'input window, operand 1, single buffered']
    #allocation8 [shape = 's32[1]{0}', space=sflag, size = 0x4, scoped, tag = 'scoped memory for model_forward_pallas.1']
    #allocation9 [shape = 'u8[786432]{0}', space=vmem, size = 0xc0000, scoped, tag = 'input window, operand 4, single buffered']
    #allocation10 [shape = 'u8[6144]{0}', space=vmem, size = 0x1800, scoped, tag = 'input window, operand 5, single buffered']
    #allocation11 [shape = 's32[1]{0}', space=sflag, size = 0x4, scoped, tag = 'scoped memory for model_forward_pallas.1']
    #allocation12 [shape = 'u8[262144]{0}', space=vmem, size = 0x40000, scoped, tag = 'input window, operand 6, single buffered']
    #allocation13 [shape = 'u8[512]{0}', space=vmem, size = 0x400, scoped, tag = 'input window, operand 7, single buffered']
    #allocation14 [shape = 's32[1]{0}', space=sflag, size = 0x4, scoped, tag = 'scoped memory for model_forward_pallas.1']
    #allocation15 [shape = 'u8[1048576]{0}', space=vmem, size = 0x100000, scoped, tag = 'input window, operand 8, single buffered']
    #allocation16 [shape = 'u8[1048576]{0}', space=vmem, size = 0x100000, scoped, tag = 'input window, operand 10, single buffered']
    #allocation17 [shape = 's32[1]{0}', space=sflag, size = 0x4, scoped, tag = 'scoped memory for model_forward_pallas.1']
    #allocation18 [shape = 'u8[786432]{0}', space=vmem, size = 0xc0000, scoped, tag = 'input window, operand 16, single buffered']
    #allocation19 [shape = 'u8[6144]{0}', space=vmem, size = 0x1800, scoped, tag = 'input window, operand 17, single buffered']
    #allocation20 [shape = 's32[1]{0}', space=sflag, size = 0x4, scoped, tag = 'scoped memory for model_forward_pallas.1']
    #allocation21 [shape = 'u8[262144]{0}', space=vmem, size = 0x40000, scoped, tag = 'input window, operand 18, single buffered']
    #allocation22 [shape = 'u8[1048576]{0}', space=vmem, size = 0x100000, scoped, tag = 'input window, operand 20, single buffered']
    #allocation23 [shape = 's32[1]{0}', space=sflag, size = 0x4, scoped, tag = 'scoped memory for model_forward_pallas.1']
    #allocation24 [shape = 'u8[8192]{0}', space=vmem, size = 0x2000, scoped, tag = 'input window, operand 21, single buffered']
    #allocation25 [shape = 'u8[1048576]{0}', space=vmem, size = 0x100000, scoped, tag = 'input window, operand 22, single buffered']
    #allocation26 [shape = 's32[1]{0}', space=sflag, size = 0x4, scoped, tag = 'scoped memory for model_forward_pallas.1']
    #allocation27 [shape = 'u8[512]{0}', space=vmem, size = 0x400, scoped, tag = 'output window, operand 0, single buffered']
    %33 = vsyncpa [#allocation5], 0
    %34 = vsyncpa [#allocation8], 0
    %35 = vsyncpa [#allocation11], 0
    %36 = vsyncpa [#allocation14], 0
    %37 = vsyncpa [#allocation17], 0
    %38 = vsyncpa [#allocation20], 0
    %39 = vsyncpa [#allocation23], 0
    %40 = vsyncpa [#allocation26], 0
    %41 = vsyncpa [#allocation6], 0
    // Predicated region
    $region2: #{model_forward_pallas.1} parent=1 // pred_check
      _
    $region3: #{model_forward_pallas.1} parent=1 // pred_check_branch
      %43 = sbr.rel (0) target = $region5
    $region4: #{model_forward_pallas.1} parent=1 // pred_region
      %45 = vsyncadd [#allocation5], 0
      %s47 = sshll.u32 %s0, 4
      %s48 = int_to_ptr.hbm [resolvable:$true] %s47
      %s49 = sshll.u32 [#allocation4], 4
      %s50 = int_to_ptr.vmem [resolvable:$true] %s49
      %52 = dma.hbm_to_vmem [thread:$0]  %s48, 128, %s50, [#allocation5]
    $region5: #{model_forward_pallas.1} parent=1 // pred_fallthru
      _
    // Predicated region
    $region6: #{model_forward_pallas.1} parent=1 // pred_check
      _
    $region7: #{model_forward_pallas.1} parent=1 // pred_check_branch
      %54 = sbr.rel (0) target = $region9
    $region8: #{model_forward_pallas.1} parent=1 // pred_region
      %56 = vsyncadd [#allocation8], 0
      %s57 = sshll.u32 %s1, 4
      %s58 = int_to_ptr.hbm [resolvable:$true] %s57
      %s59 = sshll.u32 [#allocation7], 4
      %s60 = int_to_ptr.vmem [resolvable:$true] %s59
      %65 = dma.hbm_to_vmem [thread:$0]  %s58, 1664, %s60, [#allocation8], 128, 128, 8
    $region9: #{model_forward_pallas.1} parent=1 // pred_fallthru
      _
    // Predicated region
    $region10: #{model_forward_pallas.1} parent=1 // pred_check
      _
    $region11: #{model_forward_pallas.1} parent=1 // pred_check_branch
      %67 = sbr.rel (0) target = $region13
    $region12: #{model_forward_pallas.1} parent=1 // pred_region
      _
    $region13: #{model_forward_pallas.1} parent=1 // pred_fallthru
      _
    // Predicated region
    $region14: #{model_forward_pallas.1} parent=1 // pred_check
      _
    $region15: #{model_forward_pallas.1} parent=1 // pred_check_branch
      %69 = sbr.rel (0) target = $region17
    $region16: #{model_forward_pallas.1} parent=1 // pred_region
      _
    $region17: #{model_forward_pallas.1} parent=1 // pred_fallthru
      _
    // Predicated region
    $region18: #{model_forward_pallas.1} parent=1 // pred_check
      _
    $region19: #{model_forward_pallas.1} parent=1 // pred_check_branch
      %71 = sbr.rel (0) target = $region21
    $region20: #{model_forward_pallas.1} parent=1 // pred_region
      %73 = vsyncadd [#allocation8], 0
      %s74 = sshll.u32 %s4, 4
      %s75 = int_to_ptr.hbm [resolvable:$true] %s74
      %s76 = sshll.u32 [#allocation9], 4
      %s77 = int_to_ptr.vmem [resolvable:$true] %s76
      %82 = dma.hbm_to_vmem [thread:$0]  %s75, 24576, %s77, [#allocation8], 1536, 1536, 96
    $region21: #{model_forward_pallas.1} parent=1 // pred_fallthru
      _
    // Predicated region
    $region22: #{model_forward_pallas.1} parent=1 // pred_check
      _
    $region23: #{model_forward_pallas.1} parent=1 // pred_check_branch
      %84 = sbr.rel (0) target = $region25
    $region24: #{model_forward_pallas.1} parent=1 // pred_region
      %86 = vsyncadd [#allocation11], 0
      %s88 = sshll.u32 %s5, 4
      %s89 = int_to_ptr.hbm [resolvable:$true] %s88
      %s90 = sshll.u32 [#allocation10], 4
      %s91 = int_to_ptr.vmem [resolvable:$true] %s90
      %93 = dma.hbm_to_vmem [thread:$0]  %s89, 192, %s91, [#allocation11]
    $region25: #{model_forward_pallas.1} parent=1 // pred_fallthru
      _
    // Predicated region
    $region26: #{model_forward_pallas.1} parent=1 // pred_check
      _
    $region27: #{model_forward_pallas.1} parent=1 // pred_check_branch
      %95 = sbr.rel (0) target = $region29
    $region28: #{model_forward_pallas.1} parent=1 // pred_region
      %97 = vsyncadd [#allocation11], 0
      %s98 = sshll.u32 %s6, 4
      %s99 = int_to_ptr.hbm [resolvable:$true] %s98
      %s100 = sshll.u32 [#allocation12], 4
      %s101 = int_to_ptr.vmem [resolvable:$true] %s100
      %106 = dma.hbm_to_vmem [thread:$0]  %s99, 8192, %s101, [#allocation11], 128, 128, 8
    $region29: #{model_forward_pallas.1} parent=1 // pred_fallthru
      _
    // Predicated region
    $region30: #{model_forward_pallas.1} parent=1 // pred_check
      _
    $region31: #{model_forward_pallas.1} parent=1 // pred_check_branch
      %108 = sbr.rel (0) target = $region33
    $region32: #{model_forward_pallas.1} parent=1 // pred_region
      %110 = vsyncadd [#allocation14], 0
      %s112 = sshll.u32 %s7, 4
      %s113 = int_to_ptr.hbm [resolvable:$true] %s112
      %s114 = sshll.u32 [#allocation13], 4
      %s115 = int_to_ptr.vmem [resolvable:$true] %s114
      %117 = dma.hbm_to_vmem [thread:$0]  %s113, 16, %s115, [#allocation14]
    $region33: #{model_forward_pallas.1} parent=1 // pred_fallthru
      _
    // Predicated region
    $region34: #{model_forward_pallas.1} parent=1 // pred_check
      _
    $region35: #{model_forward_pallas.1} parent=1 // pred_check_branch
      %119 = sbr.rel (0) target = $region37
    $region36: #{model_forward_pallas.1} parent=1 // pred_region
      %121 = vsyncadd [#allocation14], 0
      %s122 = sshll.u32 %s8, 4
      %s123 = int_to_ptr.hbm [resolvable:$true] %s122
      %s124 = sshll.u32 [#allocation15], 4
      %s125 = int_to_ptr.vmem [resolvable:$true] %s124
      %130 = dma.hbm_to_vmem [thread:$0]  %s123, 32768, %s125, [#allocation14], 2048, 2048, 128
    $region37: #{model_forward_pallas.1} parent=1 // pred_fallthru
      _
    // Predicated region
    $region38: #{model_forward_pallas.1} parent=1 // pred_check
      _
    $region39: #{model_forward_pallas.1} parent=1 // pred_check_branch
      %132 = sbr.rel (0) target = $region41
    $region40: #{model_forward_pallas.1} parent=1 // pred_region
      _
    $region41: #{model_forward_pallas.1} parent=1 // pred_fallthru
      _
    // Predicated region
    $region42: #{model_forward_pallas.1} parent=1 // pred_check
      _
    $region43: #{model_forward_pallas.1} parent=1 // pred_check_branch
      %134 = sbr.rel (0) target = $region45
    $region44: #{model_forward_pallas.1} parent=1 // pred_region
      %136 = vsyncadd [#allocation17], 0
      %s137 = sshll.u32 %s10, 4
      %s138 = int_to_ptr.hbm [resolvable:$true] %s137
      %s139 = sshll.u32 [#allocation16], 4
      %s140 = int_to_ptr.vmem [resolvable:$true] %s139
      %145 = dma.hbm_to_vmem [thread:$0]  %s138, 32768, %s140, [#allocation17], 128, 128, 8
    $region45: #{model_forward_pallas.1} parent=1 // pred_fallthru
      _
    // Predicated region
    $region46: #{model_forward_pallas.1} parent=1 // pred_check
      _
    $region47: #{model_forward_pallas.1} parent=1 // pred_check_branch
      %147 = sbr.rel (0) target = $region49
    $region48: #{model_forward_pallas.1} parent=1 // pred_region
      _
    $region49: #{model_forward_pallas.1} parent=1 // pred_fallthru
      _
    // Predicated region
    $region50: #{model_forward_pallas.1} parent=1 // pred_check
      _
    $region51: #{model_forward_pallas.1} parent=1 // pred_check_branch
      %149 = sbr.rel (0) target = $region53
    $region52: #{model_forward_pallas.1} parent=1 // pred_region
      _
    $region53: #{model_forward_pallas.1} parent=1 // pred_fallthru
      _
    // Predicated region
    $region54: #{model_forward_pallas.1} parent=1 // pred_check
      _
    $region55: #{model_forward_pallas.1} parent=1 // pred_check_branch
      %151 = sbr.rel (0) target = $region57
    $region56: #{model_forward_pallas.1} parent=1 // pred_region
      _
    $region57: #{model_forward_pallas.1} parent=1 // pred_fallthru
      _
    // Predicated region
    $region58: #{model_forward_pallas.1} parent=1 // pred_check
      _
    $region59: #{model_forward_pallas.1} parent=1 // pred_check_branch
      %153 = sbr.rel (0) target = $region61
    $region60: #{model_forward_pallas.1} parent=1 // pred_region
      _
    $region61: #{model_forward_pallas.1} parent=1 // pred_fallthru
      _
    // Predicated region
    $region62: #{model_forward_pallas.1} parent=1 // pred_check
      _
    $region63: #{model_forward_pallas.1} parent=1 // pred_check_branch
      %155 = sbr.rel (0) target = $region65
    $region64: #{model_forward_pallas.1} parent=1 // pred_region
      _
    $region65: #{model_forward_pallas.1} parent=1 // pred_fallthru
      _
    // Predicated region
    $region66: #{model_forward_pallas.1} parent=1 // pred_check
      _
    $region67: #{model_forward_pallas.1} parent=1 // pred_check_branch
      %157 = sbr.rel (0) target = $region69
    $region68: #{model_forward_pallas.1} parent=1 // pred_region
      %159 = vsyncadd [#allocation17], 0
      %s160 = sshll.u32 %s16, 4
      %s161 = int_to_ptr.hbm [resolvable:$true] %s160
      %s162 = sshll.u32 [#allocation18], 4
      %s163 = int_to_ptr.vmem [resolvable:$true] %s162
      %168 = dma.hbm_to_vmem [thread:$0]  %s161, 24576, %s163, [#allocation17], 1536, 1536, 96
    $region69: #{model_forward_pallas.1} parent=1 // pred_fallthru
      _
    // Predicated region
    $region70: #{model_forward_pallas.1} parent=1 // pred_check
      _
    $region71: #{model_forward_pallas.1} parent=1 // pred_check_branch
      %170 = sbr.rel (0) target = $region73
    $region72: #{model_forward_pallas.1} parent=1 // pred_region
      %172 = vsyncadd [#allocation20], 0
      %s174 = sshll.u32 %s17, 4
      %s175 = int_to_ptr.hbm [resolvable:$true] %s174
      %s176 = sshll.u32 [#allocation19], 4
      %s177 = int_to_ptr.vmem [resolvable:$true] %s176
      %179 = dma.hbm_to_vmem [thread:$0]  %s175, 192, %s177, [#allocation20]
    $region73: #{model_forward_pallas.1} parent=1 // pred_fallthru
      _
    // Predicated region
    $region74: #{model_forward_pallas.1} parent=1 // pred_check
      _
    $region75: #{model_forward_pallas.1} parent=1 // pred_check_branch
      %181 = sbr.rel (0) target = $region77
    $region76: #{model_forward_pallas.1} parent=1 // pred_region
      %183 = vsyncadd [#allocation20], 0
      %s184 = sshll.u32 %s18, 4
      %s185 = int_to_ptr.hbm [resolvable:$true] %s184
      %s186 = sshll.u32 [#allocation21], 4
      %s187 = int_to_ptr.vmem [resolvable:$true] %s186
      %192 = dma.hbm_to_vmem [thread:$0]  %s185, 8192, %s187, [#allocation20], 128, 128, 8
    $region77: #{model_forward_pallas.1} parent=1 // pred_fallthru
      _
    // Predicated region
    $region78: #{model_forward_pallas.1} parent=1 // pred_check
      _
    $region79: #{model_forward_pallas.1} parent=1 // pred_check_branch
      %194 = sbr.rel (0) target = $region81
    $region80: #{model_forward_pallas.1} parent=1 // pred_region
      _
    $region81: #{model_forward_pallas.1} parent=1 // pred_fallthru
      _
    // Predicated region
    $region82: #{model_forward_pallas.1} parent=1 // pred_check
      _
    $region83: #{model_forward_pallas.1} parent=1 // pred_check_branch
      %196 = sbr.rel (0) target = $region85
    $region84: #{model_forward_pallas.1} parent=1 // pred_region
      %198 = vsyncadd [#allocation23], 0
      %s199 = sshll.u32 %s20, 4
      %s200 = int_to_ptr.hbm [resolvable:$true] %s199
      %s201 = sshll.u32 [#allocation22], 4
      %s202 = int_to_ptr.vmem [resolvable:$true] %s201
      %207 = dma.hbm_to_vmem [thread:$0]  %s200, 32768, %s202, [#allocation23], 2048, 2048, 128
    $region85: #{model_forward_pallas.1} parent=1 // pred_fallthru
      _
    // Predicated region
    $region86: #{model_forward_pallas.1} parent=1 // pred_check
      _
    $region87: #{model_forward_pallas.1} parent=1 // pred_check_branch
      %209 = sbr.rel (0) target = $region89
    $region88: #{model_forward_pallas.1} parent=1 // pred_region
      %211 = vsyncadd [#allocation23], 0
      %s213 = sshll.u32 %s21, 4
      %s214 = int_to_ptr.hbm [resolvable:$true] %s213
      %s215 = sshll.u32 [#allocation24], 4
      %s216 = int_to_ptr.vmem [resolvable:$true] %s215
      %218 = dma.hbm_to_vmem [thread:$0]  %s214, 256, %s216, [#allocation23]
    $region89: #{model_forward_pallas.1} parent=1 // pred_fallthru
      _
    // Predicated region
    $region90: #{model_forward_pallas.1} parent=1 // pred_check
      _
    $region91: #{model_forward_pallas.1} parent=1 // pred_check_branch
      %220 = sbr.rel (0) target = $region93
    $region92: #{model_forward_pallas.1} parent=1 // pred_region
      %222 = vsyncadd [#allocation26], 0
      %s223 = sshll.u32 %s22, 4
      %s224 = int_to_ptr.hbm [resolvable:$true] %s223
      %s225 = sshll.u32 [#allocation25], 4
      %s226 = int_to_ptr.vmem [resolvable:$true] %s225
      %231 = dma.hbm_to_vmem [thread:$0]  %s224, 32768, %s226, [#allocation26], 128, 128, 8
    $region93: #{model_forward_pallas.1} parent=1 // pred_fallthru
      _
    // Predicated region
    $region94: #{model_forward_pallas.1} parent=1 // pred_check
      _
    $region95: #{model_forward_pallas.1} parent=1 // pred_check_branch
      %233 = sbr.rel (0) target = $region97
    $region96: #{model_forward_pallas.1} parent=1 // pred_region
      _
    $region97: #{model_forward_pallas.1} parent=1 // pred_fallthru
      _
    // Predicated region
    $region98: #{model_forward_pallas.1} parent=1 // pred_check
      _
    $region99: #{model_forward_pallas.1} parent=1 // pred_check_branch
      %235 = sbr.rel (0) target = $region101
    $region100: #{model_forward_pallas.1} parent=1 // pred_region
      _
    $region101: #{model_forward_pallas.1} parent=1 // pred_fallthru
      _
    // Predicated region
    $region102: #{model_forward_pallas.1} parent=1 // pred_check
      _
    $region103: #{model_forward_pallas.1} parent=1 // pred_check_branch
      %237 = sbr.rel (0) target = $region105
    $region104: #{model_forward_pallas.1} parent=1 // pred_region
      _
    $region105: #{model_forward_pallas.1} parent=1 // pred_fallthru
      _
    // Predicated region
    $region106: #{model_forward_pallas.1} parent=1 // pred_check
      _
    $region107: #{model_forward_pallas.1} parent=1 // pred_check_branch
      %239 = sbr.rel (0) target = $region109
    $region108: #{model_forward_pallas.1} parent=1 // pred_region
      _
    $region109: #{model_forward_pallas.1} parent=1 // pred_fallthru
      _
    // Predicated region
    $region110: #{model_forward_pallas.1} parent=1 // pred_check
      _
    $region111: #{model_forward_pallas.1} parent=1 // pred_check_branch
      %241 = sbr.rel (0) target = $region113
    $region112: #{model_forward_pallas.1} parent=1 // pred_region
      _
    $region113: #{model_forward_pallas.1} parent=1 // pred_fallthru
      _
    // Predicated region
    $region114: #{model_forward_pallas.1} parent=1 // pred_check
      _
    $region115: #{model_forward_pallas.1} parent=1 // pred_check_branch
      %243 = sbr.rel (0) target = $region117
    $region116: #{model_forward_pallas.1} parent=1 // pred_region
      %245 = dma.done [#allocation5], 128
    $region117: #{model_forward_pallas.1} parent=1 // pred_fallthru
      _
    // Predicated region
    $region118: #{model_forward_pallas.1} parent=1 // pred_check
      _
    $region119: #{model_forward_pallas.1} parent=1 // pred_check_branch
      %247 = sbr.rel (0) target = $region121
    $region120: #{model_forward_pallas.1} parent=1 // pred_region
      %249 = dma.done [#allocation8], 1664
    $region121: #{model_forward_pallas.1} parent=1 // pred_fallthru
      _
    // Predicated region
    $region122: #{model_forward_pallas.1} parent=1 // pred_check
      _
    $region123: #{model_forward_pallas.1} parent=1 // pred_check_branch
      %251 = sbr.rel (0) target = $region125
    $region124: #{model_forward_pallas.1} parent=1 // pred_region
      %253 = dma.done [#allocation8], 24576
    $region125: #{model_forward_pallas.1} parent=1 // pred_fallthru
      _
    // Predicated region
    $region126: #{model_forward_pallas.1} parent=1 // pred_check
      _
    $region127: #{model_forward_pallas.1} parent=1 // pred_check_branch
      %255 = sbr.rel (0) target = $region129
    $region128: #{model_forward_pallas.1} parent=1 // pred_region
      %257 = dma.done [#allocation11], 192
    $region129: #{model_forward_pallas.1} parent=1 // pred_fallthru
      _
    // Predicated region
    $region130: #{model_forward_pallas.1} parent=1 // pred_check
      _
    $region131: #{model_forward_pallas.1} parent=1 // pred_check_branch
      %259 = sbr.rel (0) target = $region133
    $region132: #{model_forward_pallas.1} parent=1 // pred_region
      %261 = dma.done [#allocation11], 8192
    $region133: #{model_forward_pallas.1} parent=1 // pred_fallthru
      _
    // Predicated region
    $region134: #{model_forward_pallas.1} parent=1 // pred_check
      _
    $region135: #{model_forward_pallas.1} parent=1 // pred_check_branch
      %263 = sbr.rel (0) target = $region137
    $region136: #{model_forward_pallas.1} parent=1 // pred_region
      %265 = dma.done [#allocation14], 16
    $region137: #{model_forward_pallas.1} parent=1 // pred_fallthru
      _
    // Predicated region
    $region138: #{model_forward_pallas.1} parent=1 // pred_check
      _
    $region139: #{model_forward_pallas.1} parent=1 // pred_check_branch
      %267 = sbr.rel (0) target = $region141
    $region140: #{model_forward_pallas.1} parent=1 // pred_region
      %269 = dma.done [#allocation14], 32768
    $region141: #{model_forward_pallas.1} parent=1 // pred_fallthru
      _
    // Predicated region
    $region142: #{model_forward_pallas.1} parent=1 // pred_check
      _
    $region143: #{model_forward_pallas.1} parent=1 // pred_check_branch
      %271 = sbr.rel (0) target = $region145
    $region144: #{model_forward_pallas.1} parent=1 // pred_region
      %273 = dma.done [#allocation17], 32768
    $region145: #{model_forward_pallas.1} parent=1 // pred_fallthru
      _
    // Predicated region
    $region146: #{model_forward_pallas.1} parent=1 // pred_check
      _
    $region147: #{model_forward_pallas.1} parent=1 // pred_check_branch
      %275 = sbr.rel (0) target = $region149
    $region148: #{model_forward_pallas.1} parent=1 // pred_region
      %277 = dma.done [#allocation17], 24576
    $region149: #{model_forward_pallas.1} parent=1 // pred_fallthru
      _
    // Predicated region
    $region150: #{model_forward_pallas.1} parent=1 // pred_check
      _
    $region151: #{model_forward_pallas.1} parent=1 // pred_check_branch
      %279 = sbr.rel (0) target = $region153
    $region152: #{model_forward_pallas.1} parent=1 // pred_region
      %281 = dma.done [#allocation20], 192
    $region153: #{model_forward_pallas.1} parent=1 // pred_fallthru
      _
    // Predicated region
    $region154: #{model_forward_pallas.1} parent=1 // pred_check
      _
    $region155: #{model_forward_pallas.1} parent=1 // pred_check_branch
      %283 = sbr.rel (0) target = $region157
    $region156: #{model_forward_pallas.1} parent=1 // pred_region
      %285 = dma.done [#allocation20], 8192
    $region157: #{model_forward_pallas.1} parent=1 // pred_fallthru
      _
    // Predicated region
    $region158: #{model_forward_pallas.1} parent=1 // pred_check
      _
    $region159: #{model_forward_pallas.1} parent=1 // pred_check_branch
      %287 = sbr.rel (0) target = $region161
    $region160: #{model_forward_pallas.1} parent=1 // pred_region
      %289 = dma.done [#allocation23], 32768
    $region161: #{model_forward_pallas.1} parent=1 // pred_fallthru
      _
    // Predicated region
    $region162: #{model_forward_pallas.1} parent=1 // pred_check
      _
    $region163: #{model_forward_pallas.1} parent=1 // pred_check_branch
      %291 = sbr.rel (0) target = $region165
    $region164: #{model_forward_pallas.1} parent=1 // pred_region
      %293 = dma.done [#allocation23], 256
    $region165: #{model_forward_pallas.1} parent=1 // pred_fallthru
      _
    // Predicated region
    $region166: #{model_forward_pallas.1} parent=1 // pred_check
      _
    $region167: #{model_forward_pallas.1} parent=1 // pred_check_branch
      %295 = sbr.rel (0) target = $region169
    $region168: #{model_forward_pallas.1} parent=1 // pred_region
      %297 = dma.done [#allocation26], 32768
    $region169: #{model_forward_pallas.1} parent=1 // pred_fallthru
      _
    %v298 = vld [vmem:[#allocation4] sm:$0xff]
    %v299 = vld [vmem:[#allocation7] sm:$0xff]
    %v300 = vld [vmem:[#allocation7 + $0x8] sm:$0xff]
    %v301 = vld [vmem:[#allocation7 + $0x10] sm:$0xff]
    %v302 = vld [vmem:[#allocation7 + $0x18] sm:$0xff]
    %v303 = vld [vmem:[#allocation7 + $0x20] sm:$0xff]
    %v304 = vld [vmem:[#allocation7 + $0x28] sm:$0xff]
    %v305 = vld [vmem:[#allocation7 + $0x30] sm:$0xff]
    %v306 = vld [vmem:[#allocation7 + $0x38] sm:$0xff]
    %v307 = vld [vmem:[#allocation7 + $0x40] sm:$0xff]
    %v308 = vld [vmem:[#allocation7 + $0x48] sm:$0xff]
    %v309 = vld [vmem:[#allocation7 + $0x50] sm:$0xff]
    %v310 = vld [vmem:[#allocation7 + $0x58] sm:$0xff]
    %v311 = vld [vmem:[#allocation7 + $0x60] sm:$0xf]
    %vm312 = vcmask 818176
    %v314 = vsel %vm312, %v298, 0
    %vm316 = vcmask 1043456
    %v318 = vsel %vm316, %v311, 0
    %320 = vmatpush.msra.mxu0 0.0
    %321 = vmatpush.msra.mxu0 0.0
    %322 = vmatpush.msra.mxu0 0.0
    %323 = vmatpush.msra.mxu0 %v318
    %324 = vmatpush.msra.mxu0 %v310
    %325 = vmatpush.msra.mxu0 %v309
    %326 = vmatpush.msra.mxu0 %v308
    %327 = vmatpush.msra.mxu0 %v307
    %328 = vmatpush.msra.mxu0 %v306
    %329 = vmatpush.msra.mxu0 %v305
    %330 = vmatpush.msra.mxu0 %v304
    %331 = vmatpush.msra.mxu0 %v303
    %332 = vmatpush.msra.mxu0 %v302
    %333 = vmatpush.msra.mxu0 %v301
    %334 = vmatpush.msra.mxu0 %v300
    %335 = vmatpush.msra.mxu0 %v299
    %336 = vmatmul.f32.gmra.mxu0 %v314
    %v337 = vpop.f32.mrf.mxu0
    %v338 = vadd.f32 0.0, %v337
    %339 = vdwg.mxu0
    %v340 = vld [vmem:[%s2] sm:$0xff]
    %v341 = vld [vmem:[%s2 + $0x8] sm:$0xff]
    %v342 = vld [vmem:[%s3] sm:$0xff]
    %v343 = vld [vmem:[%s3 + $0x8] sm:$0xff]
    %vm344 = vcmask 64512
    %v346 = vsel %vm344, %v340, 0
    %v349 = vsel %vm344, %v341, 0
    %351 = vmatpush.msra.mxu0 0.0
    %352 = vmatpush.msra.mxu0 0.0
    %353 = vmatpush.msra.mxu0 0.0
    %354 = vmatpush.msra.mxu0 0.0
    %355 = vmatpush.msra.mxu0 0.0
    %356 = vmatpush.msra.mxu0 0.0
    %357 = vmatpush.msra.mxu0 0.0
    %358 = vmatpush.msra.mxu0 0.0
    %359 = vmatpush.msra.mxu0 0.0
    %360 = vmatpush.msra.mxu0 0.0
    %361 = vmatpush.msra.mxu0 0.0
    %362 = vmatpush.msra.mxu0 0.0
    %363 = vmatpush.msra.mxu0 0.0
    %364 = vmatpush.msra.mxu0 0.0
    %365 = vmatpush.msra.mxu0 0.0
    %366 = vmatpush.msra.mxu0 %v338
    %367 = vmatmul.f32.gmra.mxu0 %v346
    %v368 = vpop.f32.mrf.mxu0
    %v369 = vadd.f32 %v342, %v368
    %370 = vmatmul.f32.gmra.mxu0 %v349
    %v371 = vpop.f32.mrf.mxu0
    %v372 = vadd.f32 %v343, %v371
    %373 = vdwg.mxu0
    %v374 = vlaneseq
    %v375 = vand.u32 %v374, 127
    %vm376 = vcmp.lt.s32.totalorder %v375, 9
    %v377 = vld [vmem:[#allocation9] sm:$0xff]
    %v378 = vld [vmem:[#allocation9 + $0x8] sm:$0xff]
    %v379 = vld [vmem:[#allocation9 + $0x10] sm:$0xff]
    %v380 = vld [vmem:[#allocation9 + $0x18] sm:$0xff]
    %v381 = vld [vmem:[#allocation9 + $0x20] sm:$0xff]
    %v382 = vld [vmem:[#allocation9 + $0x28] sm:$0xff]
    %v383 = vld [vmem:[#allocation9 + $0x30] sm:$0xff]
    %v384 = vld [vmem:[#allocation9 + $0x38] sm:$0xff]
    %v385 = vld [vmem:[#allocation9 + $0x40] sm:$0xff]
    %v386 = vld [vmem:[#allocation9 + $0x48] sm:$0xff]
    %v387 = vld [vmem:[#allocation9 + $0x50] sm:$0xff]
    %v388 = vld [vmem:[#allocation9 + $0x58] sm:$0xff]
    %v389 = vld [vmem:[#allocation9 + $0x60] sm:$0xff]
    %v390 = vld [vmem:[#allocation9 + $0x68] sm:$0xff]
    %v391 = vld [vmem:[#allocation9 + $0x70] sm:$0xff]
    %v392 = vld [vmem:[#allocation9 + $0x78] sm:$0xff]
    %v393 = vld [vmem:[#allocation9 + $0x80] sm:$0xff]
    %v394 = vld [vmem:[#allocation9 + $0x88] sm:$0xff]
    %v395 = vld [vmem:[#allocation9 + $0x90] sm:$0xff]
    %v396 = vld [vmem:[#allocation9 + $0x98] sm:$0xff]
    %v397 = vld [vmem:[#allocation9 + $0xa0] sm:$0xff]
    %v398 = vld [vmem:[#allocation9 + $0xa8] sm:$0xff]
    %v399 = vld [vmem:[#allocation9 + $0xb0] sm:$0xff]
    %v400 = vld [vmem:[#allocation9 + $0xb8] sm:$0xff]
    %v401 = vld [vmem:[#allocation9 + $0xc0] sm:$0xff]
    %v402 = vld [vmem:[#allocation9 + $0xc8] sm:$0xff]
    %v403 = vld [vmem:[#allocation9 + $0xd0] sm:$0xff]
    %v404 = vld [vmem:[#allocation9 + $0xd8] sm:$0xff]
    %v405 = vld [vmem:[#allocation9 + $0xe0] sm:$0xff]
    %v406 = vld [vmem:[#allocation9 + $0xe8] sm:$0xff]
    %v407 = vld [vmem:[#allocation9 + $0xf0] sm:$0xff]
    %v408 = vld [vmem:[#allocation9 + $0xf8] sm:$0xff]
    %v409 = vld [vmem:[#allocation9 + $0x100] sm:$0xff]
    %v410 = vld [vmem:[#allocation9 + $0x108] sm:$0xff]
    %v411 = vld [vmem:[#allocation9 + $0x110] sm:$0xff]
    %v412 = vld [vmem:[#allocation9 + $0x118] sm:$0xff]
    %v413 = vld [vmem:[#allocation9 + $0x120] sm:$0xff]
    %v414 = vld [vmem:[#allocation9 + $0x128] sm:$0xff]
    %v415 = vld [vmem:[#allocation9 + $0x130] sm:$0xff]
    %v416 = vld [vmem:[#allocation9 + $0x138] sm:$0xff]
    %v417 = vld [vmem:[#allocation9 + $0x140] sm:$0xff]
    %v418 = vld [vmem:[#allocation9 + $0x148] sm:$0xff]
    %v419 = vld [vmem:[#allocation9 + $0x150] sm:$0xff]
    %v420 = vld [vmem:[#allocation9 + $0x158] sm:$0xff]
    %v421 = vld [vmem:[#allocation9 + $0x160] sm:$0xff]
    %v422 = vld [vmem:[#allocation9 + $0x168] sm:$0xff]
    %v423 = vld [vmem:[#allocation9 + $0x170] sm:$0xff]
    %v424 = vld [vmem:[#allocation9 + $0x178] sm:$0xff]
    %v425 = vld [vmem:[#allocation9 + $0x180] sm:$0xff]
    %v426 = vld [vmem:[#allocation9 + $0x188] sm:$0xff]
    %v427 = vld [vmem:[#allocation9 + $0x190] sm:$0xff]
    %v428 = vld [vmem:[#allocation9 + $0x198] sm:$0xff]
    %v429 = vld [vmem:[#allocation9 + $0x1a0] sm:$0xff]
    %v430 = vld [vmem:[#allocation9 + $0x1a8] sm:$0xff]
    %v431 = vld [vmem:[#allocation9 + $0x1b0] sm:$0xff]
    %v432 = vld [vmem:[#allocation9 + $0x1b8] sm:$0xff]
    %v433 = vld [vmem:[#allocation9 + $0x1c0] sm:$0xff]
    %v434 = vld [vmem:[#allocation9 + $0x1c8] sm:$0xff]
    %v435 = vld [vmem:[#allocation9 + $0x1d0] sm:$0xff]
    %v436 = vld [vmem:[#allocation9 + $0x1d8] sm:$0xff]
    %v437 = vld [vmem:[#allocation9 + $0x1e0] sm:$0xff]
    %v438 = vld [vmem:[#allocation9 + $0x1e8] sm:$0xff]
    %v439 = vld [vmem:[#allocation9 + $0x1f0] sm:$0xff]
    %v440 = vld [vmem:[#allocation9 + $0x1f8] sm:$0xff]
    %v441 = vld [vmem:[#allocation9 + $0x200] sm:$0xff]
    %v442 = vld [vmem:[#allocation9 + $0x208] sm:$0xff]
    %v443 = vld [vmem:[#allocation9 + $0x210] sm:$0xff]
    %v444 = vld [vmem:[#allocation9 + $0x218] sm:$0xff]
    %v445 = vld [vmem:[#allocation9 + $0x220] sm:$0xff]
    %v446 = vld [vmem:[#allocation9 + $0x228] sm:$0xff]
    %v447 = vld [vmem:[#allocation9 + $0x230] sm:$0xff]
    %v448 = vld [vmem:[#allocation9 + $0x238] sm:$0xff]
    %v449 = vld [vmem:[#allocation9 + $0x240] sm:$0xff]
    %v450 = vld [vmem:[#allocation9 + $0x248] sm:$0xff]
    %v451 = vld [vmem:[#allocation9 + $0x250] sm:$0xff]
    %v452 = vld [vmem:[#allocation9 + $0x258] sm:$0xff]
    %v453 = vld [vmem:[#allocation9 + $0x260] sm:$0xff]
    %v454 = vld [vmem:[#allocation9 + $0x268] sm:$0xff]
    %v455 = vld [vmem:[#allocation9 + $0x270] sm:$0xff]
    %v456 = vld [vmem:[#allocation9 + $0x278] sm:$0xff]
    %v457 = vld [vmem:[#allocation9 + $0x280] sm:$0xff]
    %v458 = vld [vmem:[#allocation9 + $0x288] sm:$0xff]
    %v459 = vld [vmem:[#allocation9 + $0x290] sm:$0xff]
    %v460 = vld [vmem:[#allocation9 + $0x298] sm:$0xff]
    %v461 = vld [vmem:[#allocation9 + $0x2a0] sm:$0xff]
    %v462 = vld [vmem:[#allocation9 + $0x2a8] sm:$0xff]
    %v463 = vld [vmem:[#allocation9 + $0x2b0] sm:$0xff]
    %v464 = vld [vmem:[#allocation9 + $0x2b8] sm:$0xff]
    %v465 = vld [vmem:[#allocation9 + $0x2c0] sm:$0xff]
    %v466 = vld [vmem:[#allocation9 + $0x2c8] sm:$0xff]
    %v467 = vld [vmem:[#allocation9 + $0x2d0] sm:$0xff]
    %v468 = vld [vmem:[#allocation9 + $0x2d8] sm:$0xff]
    %v469 = vld [vmem:[#allocation9 + $0x2e0] sm:$0xff]
    %v470 = vld [vmem:[#allocation9 + $0x2e8] sm:$0xff]
    %v471 = vld [vmem:[#allocation9 + $0x2f0] sm:$0xff]
    %v472 = vld [vmem:[#allocation9 + $0x2f8] sm:$0xff]
    %v473 = vld [vmem:[#allocation9 + $0x300] sm:$0xff]
    %v474 = vld [vmem:[#allocation9 + $0x308] sm:$0xff]
    %v475 = vld [vmem:[#allocation9 + $0x310] sm:$0xff]
    %v476 = vld [vmem:[#allocation9 + $0x318] sm:$0xff]
    %v477 = vld [vmem:[#allocation9 + $0x320] sm:$0xff]
    %v478 = vld [vmem:[#allocation9 + $0x328] sm:$0xff]
    %v479 = vld [vmem:[#allocation9 + $0x330] sm:$0xff]
    %v480 = vld [vmem:[#allocation9 + $0x338] sm:$0xff]
    %v481 = vld [vmem:[#allocation9 + $0x340] sm:$0xff]
    %v482 = vld [vmem:[#allocation9 + $0x348] sm:$0xff]
    %v483 = vld [vmem:[#allocation9 + $0x350] sm:$0xff]
    %v484 = vld [vmem:[#allocation9 + $0x358] sm:$0xff]
    %v485 = vld [vmem:[#allocation9 + $0x360] sm:$0xff]
    %v486 = vld [vmem:[#allocation9 + $0x368] sm:$0xff]
    %v487 = vld [vmem:[#allocation9 + $0x370] sm:$0xff]
    %v488 = vld [vmem:[#allocation9 + $0x378] sm:$0xff]
    %v489 = vld [vmem:[#allocation9 + $0x380] sm:$0xff]
    %v490 = vld [vmem:[#allocation9 + $0x388] sm:$0xff]
    %v491 = vld [vmem:[#allocation9 + $0x390] sm:$0xff]
    %v492 = vld [vmem:[#allocation9 + $0x398] sm:$0xff]
    %v493 = vld [vmem:[#allocation9 + $0x3a0] sm:$0xff]
    %v494 = vld [vmem:[#allocation9 + $0x3a8] sm:$0xff]
    %v495 = vld [vmem:[#allocation9 + $0x3b0] sm:$0xff]
    %v496 = vld [vmem:[#allocation9 + $0x3b8] sm:$0xff]
    %v497 = vld [vmem:[#allocation9 + $0x3c0] sm:$0xff]
    %v498 = vld [vmem:[#allocation9 + $0x3c8] sm:$0xff]
    %v499 = vld [vmem:[#allocation9 + $0x3d0] sm:$0xff]
    %v500 = vld [vmem:[#allocation9 + $0x3d8] sm:$0xff]
    %v501 = vld [vmem:[#allocation9 + $0x3e0] sm:$0xff]
    %v502 = vld [vmem:[#allocation9 + $0x3e8] sm:$0xff]
    %v503 = vld [vmem:[#allocation9 + $0x3f0] sm:$0xff]
    %v504 = vld [vmem:[#allocation9 + $0x3f8] sm:$0xff]
    %v505 = vld [vmem:[#allocation9 + $0x400] sm:$0xff]
    %v506 = vld [vmem:[#allocation9 + $0x408] sm:$0xff]
    %v507 = vld [vmem:[#allocation9 + $0x410] sm:$0xff]
    %v508 = vld [vmem:[#allocation9 + $0x418] sm:$0xff]
    %v509 = vld [vmem:[#allocation9 + $0x420] sm:$0xff]
    %v510 = vld [vmem:[#allocation9 + $0x428] sm:$0xff]
    %v511 = vld [vmem:[#allocation9 + $0x430] sm:$0xff]
    %v512 = vld [vmem:[#allocation9 + $0x438] sm:$0xff]
    %v513 = vld [vmem:[#allocation9 + $0x440] sm:$0xff]
    %v514 = vld [vmem:[#allocation9 + $0x448] sm:$0xff]
    %v515 = vld [vmem:[#allocation9 + $0x450] sm:$0xff]
    %v516 = vld [vmem:[#allocation9 + $0x458] sm:$0xff]
    %v517 = vld [vmem:[#allocation9 + $0x460] sm:$0xff]
    %v518 = vld [vmem:[#allocation9 + $0x468] sm:$0xff]
    %v519 = vld [vmem:[#allocation9 + $0x470] sm:$0xff]
    %v520 = vld [vmem:[#allocation9 + $0x478] sm:$0xff]
    %v521 = vld [vmem:[#allocation9 + $0x480] sm:$0xff]
    %v522 = vld [vmem:[#allocation9 + $0x488] sm:$0xff]
    %v523 = vld [vmem:[#allocation9 + $0x490] sm:$0xff]
    %v524 = vld [vmem:[#allocation9 + $0x498] sm:$0xff]
    %v525 = vld [vmem:[#allocation9 + $0x4a0] sm:$0xff]
    %v526 = vld [vmem:[#allocation9 + $0x4a8] sm:$0xff]
    %v527 = vld [vmem:[#allocation9 + $0x4b0] sm:$0xff]
    %v528 = vld [vmem:[#allocation9 + $0x4b8] sm:$0xff]
    %v529 = vld [vmem:[#allocation9 + $0x4c0] sm:$0xff]
    %v530 = vld [vmem:[#allocation9 + $0x4c8] sm:$0xff]
    %v531 = vld [vmem:[#allocation9 + $0x4d0] sm:$0xff]
    %v532 = vld [vmem:[#allocation9 + $0x4d8] sm:$0xff]
    %v533 = vld [vmem:[#allocation9 + $0x4e0] sm:$0xff]
    %v534 = vld [vmem:[#allocation9 + $0x4e8] sm:$0xff]
    %v535 = vld [vmem:[#allocation9 + $0x4f0] sm:$0xff]
    %v536 = vld [vmem:[#allocation9 + $0x4f8] sm:$0xff]
    %v537 = vld [vmem:[#allocation9 + $0x500] sm:$0xff]
    %v538 = vld [vmem:[#allocation9 + $0x508] sm:$0xff]
    %v539 = vld [vmem:[#allocation9 + $0x510] sm:$0xff]
    %v540 = vld [vmem:[#allocation9 + $0x518] sm:$0xff]
    %v541 = vld [vmem:[#allocation9 + $0x520] sm:$0xff]
    %v542 = vld [vmem:[#allocation9 + $0x528] sm:$0xff]
    %v543 = vld [vmem:[#allocation9 + $0x530] sm:$0xff]
    %v544 = vld [vmem:[#allocation9 + $0x538] sm:$0xff]
    %v545 = vld [vmem:[#allocation9 + $0x540] sm:$0xff]
    %v546 = vld [vmem:[#allocation9 + $0x548] sm:$0xff]
    %v547 = vld [vmem:[#allocation9 + $0x550] sm:$0xff]
    %v548 = vld [vmem:[#allocation9 + $0x558] sm:$0xff]
    %v549 = vld [vmem:[#allocation9 + $0x560] sm:$0xff]
    %v550 = vld [vmem:[#allocation9 + $0x568] sm:$0xff]
    %v551 = vld [vmem:[#allocation9 + $0x570] sm:$0xff]
    %v552 = vld [vmem:[#allocation9 + $0x578] sm:$0xff]
    %v553 = vld [vmem:[#allocation9 + $0x580] sm:$0xff]
    %v554 = vld [vmem:[#allocation9 + $0x588] sm:$0xff]
    %v555 = vld [vmem:[#allocation9 + $0x590] sm:$0xff]
    %v556 = vld [vmem:[#allocation9 + $0x598] sm:$0xff]
    %v557 = vld [vmem:[#allocation9 + $0x5a0] sm:$0xff]
    %v558 = vld [vmem:[#allocation9 + $0x5a8] sm:$0xff]
    %v559 = vld [vmem:[#allocation9 + $0x5b0] sm:$0xff]
    %v560 = vld [vmem:[#allocation9 + $0x5b8] sm:$0xff]
    %v561 = vld [vmem:[#allocation9 + $0x5c0] sm:$0xff]
    %v562 = vld [vmem:[#allocation9 + $0x5c8] sm:$0xff]
    %v563 = vld [vmem:[#allocation9 + $0x5d0] sm:$0xff]
    %v564 = vld [vmem:[#allocation9 + $0x5d8] sm:$0xff]
    %v565 = vld [vmem:[#allocation9 + $0x5e0] sm:$0xff]
    %v566 = vld [vmem:[#allocation9 + $0x5e8] sm:$0xff]
    %v567 = vld [vmem:[#allocation9 + $0x5f0] sm:$0xff]
    %v568 = vld [vmem:[#allocation9 + $0x5f8] sm:$0xff]
    %v569 = vld [vmem:[#allocation10] sm:$0xff]
    %v570 = vld [vmem:[#allocation10 + $0x8] sm:$0xf]
    %v573 = vperm.slane %v569, 0
    %v574 = vperm.slane %v569, 1
    %v575 = vperm.slane %v569, 2
    %v576 = vperm.slane %v569, 3
    %v577 = vperm.slane %v569, 4
    %v578 = vperm.slane %v569, 5
    %v579 = vperm.slane %v569, 6
    %v580 = vperm.slane %v569, 7
    %v581 = vperm.slane %v570, 0
    %v582 = vperm.slane %v570, 1
    %v583 = vperm.slane %v570, 2
    %v584 = vperm.slane %v570, 3
    %597 = vmatpush.msra.mxu0 %v557
    %598 = vmatpush.msra.mxu0 %v545
    %599 = vmatpush.msra.mxu0 %v533
    %600 = vmatpush.msra.mxu0 %v521
    %601 = vmatpush.msra.mxu0 %v509
    %602 = vmatpush.msra.mxu0 %v497
    %603 = vmatpush.msra.mxu0 %v485
    %604 = vmatpush.msra.mxu0 %v473
    %605 = vmatpush.msra.mxu0 %v461
    %606 = vmatpush.msra.mxu0 %v449
    %607 = vmatpush.msra.mxu0 %v437
    %608 = vmatpush.msra.mxu0 %v425
    %609 = vmatpush.msra.mxu0 %v413
    %610 = vmatpush.msra.mxu0 %v401
    %611 = vmatpush.msra.mxu0 %v389
    %612 = vmatpush.msra.mxu0 %v377
    %613 = vmatmul.f32.gmra.mxu0 %v369
    %v614 = vpop.f32.mrf.mxu0
    %v615 = vadd.f32 %v573, %v614
    %616 = vmatmul.f32.gmra.mxu0 %v372
    %v617 = vpop.f32.mrf.mxu0
    %v618 = vadd.f32 %v573, %v617
    %619 = vdwg.mxu0
    %620 = vmatpush.msra.mxu0 %v558
    %621 = vmatpush.msra.mxu0 %v546
    %622 = vmatpush.msra.mxu0 %v534
    %623 = vmatpush.msra.mxu0 %v522
    %624 = vmatpush.msra.mxu0 %v510
    %625 = vmatpush.msra.mxu0 %v498
    %626 = vmatpush.msra.mxu0 %v486
    %627 = vmatpush.msra.mxu0 %v474
    %628 = vmatpush.msra.mxu0 %v462
    %629 = vmatpush.msra.mxu0 %v450
    %630 = vmatpush.msra.mxu0 %v438
    %631 = vmatpush.msra.mxu0 %v426
    %632 = vmatpush.msra.mxu0 %v414
    %633 = vmatpush.msra.mxu0 %v402
    %634 = vmatpush.msra.mxu0 %v390
    %635 = vmatpush.msra.mxu0 %v378
    %636 = vmatmul.f32.gmra.mxu0 %v369
    %v637 = vpop.f32.mrf.mxu0
    %v638 = vadd.f32 %v574, %v637
    %639 = vmatmul.f32.gmra.mxu0 %v372
    %v640 = vpop.f32.mrf.mxu0
    %v641 = vadd.f32 %v574, %v640
    %642 = vdwg.mxu0
    %643 = vmatpush.msra.mxu0 %v559
    %644 = vmatpush.msra.mxu0 %v547
    %645 = vmatpush.msra.mxu0 %v535
    %646 = vmatpush.msra.mxu0 %v523
    %647 = vmatpush.msra.mxu0 %v511
    %648 = vmatpush.msra.mxu0 %v499
    %649 = vmatpush.msra.mxu0 %v487
    %650 = vmatpush.msra.mxu0 %v475
    %651 = vmatpush.msra.mxu0 %v463
    %652 = vmatpush.msra.mxu0 %v451
    %653 = vmatpush.msra.mxu0 %v439
    %654 = vmatpush.msra.mxu0 %v427
    %655 = vmatpush.msra.mxu0 %v415
    %656 = vmatpush.msra.mxu0 %v403
    %657 = vmatpush.msra.mxu0 %v391
    %658 = vmatpush.msra.mxu0 %v379
    %659 = vmatmul.f32.gmra.mxu0 %v369
    %v660 = vpop.f32.mrf.mxu0
    %v661 = vadd.f32 %v575, %v660
    %662 = vmatmul.f32.gmra.mxu0 %v372
    %v663 = vpop.f32.mrf.mxu0
    %v664 = vadd.f32 %v575, %v663
    %665 = vdwg.mxu0
    %666 = vmatpush.msra.mxu0 %v560
    %667 = vmatpush.msra.mxu0 %v548
    %668 = vmatpush.msra.mxu0 %v536
    %669 = vmatpush.msra.mxu0 %v524
    %670 = vmatpush.msra.mxu0 %v512
    %671 = vmatpush.msra.mxu0 %v500
    %672 = vmatpush.msra.mxu0 %v488
    %673 = vmatpush.msra.mxu0 %v476
    %674 = vmatpush.msra.mxu0 %v464
    %675 = vmatpush.msra.mxu0 %v452
    %676 = vmatpush.msra.mxu0 %v440
    %677 = vmatpush.msra.mxu0 %v428
    %678 = vmatpush.msra.mxu0 %v416
    %679 = vmatpush.msra.mxu0 %v404
    %680 = vmatpush.msra.mxu0 %v392
    %681 = vmatpush.msra.mxu0 %v380
    %682 = vmatmul.f32.gmra.mxu0 %v369
    %v683 = vpop.f32.mrf.mxu0
    %v684 = vadd.f32 %v576, %v683
    %685 = vmatmul.f32.gmra.mxu0 %v372
    %v686 = vpop.f32.mrf.mxu0
    %v687 = vadd.f32 %v576, %v686
    %688 = vdwg.mxu0
    %689 = vmatpush.msra.mxu0 %v561
    %690 = vmatpush.msra.mxu0 %v549
    %691 = vmatpush.msra.mxu0 %v537
    %692 = vmatpush.msra.mxu0 %v525
    %693 = vmatpush.msra.mxu0 %v513
    %694 = vmatpush.msra.mxu0 %v501
    %695 = vmatpush.msra.mxu0 %v489
    %696 = vmatpush.msra.mxu0 %v477
    %697 = vmatpush.msra.mxu0 %v465
    %698 = vmatpush.msra.mxu0 %v453
    %699 = vmatpush.msra.mxu0 %v441
    %700 = vmatpush.msra.mxu0 %v429
    %701 = vmatpush.msra.mxu0 %v417
    %702 = vmatpush.msra.mxu0 %v405
    %703 = vmatpush.msra.mxu0 %v393
    %704 = vmatpush.msra.mxu0 %v381
    %705 = vmatmul.f32.gmra.mxu0 %v369
    %v706 = vpop.f32.mrf.mxu0
    %v707 = vadd.f32 %v577, %v706
    %708 = vmatmul.f32.gmra.mxu0 %v372
    %v709 = vpop.f32.mrf.mxu0
    %v710 = vadd.f32 %v577, %v709
    %711 = vdwg.mxu0
    %712 = vmatpush.msra.mxu0 %v562
    %713 = vmatpush.msra.mxu0 %v550
    %714 = vmatpush.msra.mxu0 %v538
    %715 = vmatpush.msra.mxu0 %v526
    %716 = vmatpush.msra.mxu0 %v514
    %717 = vmatpush.msra.mxu0 %v502
    %718 = vmatpush.msra.mxu0 %v490
    %719 = vmatpush.msra.mxu0 %v478
    %720 = vmatpush.msra.mxu0 %v466
    %721 = vmatpush.msra.mxu0 %v454
    %722 = vmatpush.msra.mxu0 %v442
    %723 = vmatpush.msra.mxu0 %v430
    %724 = vmatpush.msra.mxu0 %v418
    %725 = vmatpush.msra.mxu0 %v406
    %726 = vmatpush.msra.mxu0 %v394
    %727 = vmatpush.msra.mxu0 %v382
    %728 = vmatmul.f32.gmra.mxu0 %v369
    %v729 = vpop.f32.mrf.mxu0
    %v730 = vadd.f32 %v578, %v729
    %731 = vmatmul.f32.gmra.mxu0 %v372
    %v732 = vpop.f32.mrf.mxu0
    %v733 = vadd.f32 %v578, %v732
    %734 = vdwg.mxu0
    %735 = vmatpush.msra.mxu0 %v563
    %736 = vmatpush.msra.mxu0 %v551
    %737 = vmatpush.msra.mxu0 %v539
    %738 = vmatpush.msra.mxu0 %v527
    %739 = vmatpush.msra.mxu0 %v515
    %740 = vmatpush.msra.mxu0 %v503
    %741 = vmatpush.msra.mxu0 %v491
    %742 = vmatpush.msra.mxu0 %v479
    %743 = vmatpush.msra.mxu0 %v467
    %744 = vmatpush.msra.mxu0 %v455
    %745 = vmatpush.msra.mxu0 %v443
    %746 = vmatpush.msra.mxu0 %v431
    %747 = vmatpush.msra.mxu0 %v419
    %748 = vmatpush.msra.mxu0 %v407
    %749 = vmatpush.msra.mxu0 %v395
    %750 = vmatpush.msra.mxu0 %v383
    %751 = vmatmul.f32.gmra.mxu0 %v369
    %v752 = vpop.f32.mrf.mxu0
    %v753 = vadd.f32 %v579, %v752
    %754 = vmatmul.f32.gmra.mxu0 %v372
    %v755 = vpop.f32.mrf.mxu0
    %v756 = vadd.f32 %v579, %v755
    %757 = vdwg.mxu0
    %758 = vmatpush.msra.mxu0 %v564
    %759 = vmatpush.msra.mxu0 %v552
    %760 = vmatpush.msra.mxu0 %v540
    %761 = vmatpush.msra.mxu0 %v528
    %762 = vmatpush.msra.mxu0 %v516
    %763 = vmatpush.msra.mxu0 %v504
    %764 = vmatpush.msra.mxu0 %v492
    %765 = vmatpush.msra.mxu0 %v480
    %766 = vmatpush.msra.mxu0 %v468
    %767 = vmatpush.msra.mxu0 %v456
    %768 = vmatpush.msra.mxu0 %v444
    %769 = vmatpush.msra.mxu0 %v432
    %770 = vmatpush.msra.mxu0 %v420
    %771 = vmatpush.msra.mxu0 %v408
    %772 = vmatpush.msra.mxu0 %v396
    %773 = vmatpush.msra.mxu0 %v384
    %774 = vmatmul.f32.gmra.mxu0 %v369
    %v775 = vpop.f32.mrf.mxu0
    %v776 = vadd.f32 %v580, %v775
    %777 = vmatmul.f32.gmra.mxu0 %v372
    %v778 = vpop.f32.mrf.mxu0
    %v779 = vadd.f32 %v580, %v778
    %780 = vdwg.mxu0
    %781 = vmatpush.msra.mxu0 %v565
    %782 = vmatpush.msra.mxu0 %v553
    %783 = vmatpush.msra.mxu0 %v541
    %784 = vmatpush.msra.mxu0 %v529
    %785 = vmatpush.msra.mxu0 %v517
    %786 = vmatpush.msra.mxu0 %v505
    %787 = vmatpush.msra.mxu0 %v493
    %788 = vmatpush.msra.mxu0 %v481
    %789 = vmatpush.msra.mxu0 %v469
    %790 = vmatpush.msra.mxu0 %v457
    %791 = vmatpush.msra.mxu0 %v445
    %792 = vmatpush.msra.mxu0 %v433
    %793 = vmatpush.msra.mxu0 %v421
    %794 = vmatpush.msra.mxu0 %v409
    %795 = vmatpush.msra.mxu0 %v397
    %796 = vmatpush.msra.mxu0 %v385
    %797 = vmatmul.f32.gmra.mxu0 %v369
    %v798 = vpop.f32.mrf.mxu0
    %v799 = vadd.f32 %v581, %v798
    %800 = vmatmul.f32.gmra.mxu0 %v372
    %v801 = vpop.f32.mrf.mxu0
    %v802 = vadd.f32 %v581, %v801
    %803 = vdwg.mxu0
    %804 = vmatpush.msra.mxu0 %v566
    %805 = vmatpush.msra.mxu0 %v554
    %806 = vmatpush.msra.mxu0 %v542
    %807 = vmatpush.msra.mxu0 %v530
    %808 = vmatpush.msra.mxu0 %v518
    %809 = vmatpush.msra.mxu0 %v506
    %810 = vmatpush.msra.mxu0 %v494
    %811 = vmatpush.msra.mxu0 %v482
    %812 = vmatpush.msra.mxu0 %v470
    %813 = vmatpush.msra.mxu0 %v458
    %814 = vmatpush.msra.mxu0 %v446
    %815 = vmatpush.msra.mxu0 %v434
    %816 = vmatpush.msra.mxu0 %v422
    %817 = vmatpush.msra.mxu0 %v410
    %818 = vmatpush.msra.mxu0 %v398
    %819 = vmatpush.msra.mxu0 %v386
    %820 = vmatmul.f32.gmra.mxu0 %v369
    %v821 = vpop.f32.mrf.mxu0
    %v822 = vadd.f32 %v582, %v821
    %823 = vmatmul.f32.gmra.mxu0 %v372
    %v824 = vpop.f32.mrf.mxu0
    %v825 = vadd.f32 %v582, %v824
    %826 = vdwg.mxu0
    %827 = vmatpush.msra.mxu0 %v567
    %828 = vmatpush.msra.mxu0 %v555
    %829 = vmatpush.msra.mxu0 %v543
    %830 = vmatpush.msra.mxu0 %v531
    %831 = vmatpush.msra.mxu0 %v519
    %832 = vmatpush.msra.mxu0 %v507
    %833 = vmatpush.msra.mxu0 %v495
    %834 = vmatpush.msra.mxu0 %v483
    %835 = vmatpush.msra.mxu0 %v471
    %836 = vmatpush.msra.mxu0 %v459
    %837 = vmatpush.msra.mxu0 %v447
    %838 = vmatpush.msra.mxu0 %v435
    %839 = vmatpush.msra.mxu0 %v423
    %840 = vmatpush.msra.mxu0 %v411
    %841 = vmatpush.msra.mxu0 %v399
    %842 = vmatpush.msra.mxu0 %v387
    %843 = vmatmul.f32.gmra.mxu0 %v369
    %v844 = vpop.f32.mrf.mxu0
    %v845 = vadd.f32 %v583, %v844
    %846 = vmatmul.f32.gmra.mxu0 %v372
    %v847 = vpop.f32.mrf.mxu0
    %v848 = vadd.f32 %v583, %v847
    %849 = vdwg.mxu0
    %850 = vmatpush.msra.mxu0 %v568
    %851 = vmatpush.msra.mxu0 %v556
    %852 = vmatpush.msra.mxu0 %v544
    %853 = vmatpush.msra.mxu0 %v532
    %854 = vmatpush.msra.mxu0 %v520
    %855 = vmatpush.msra.mxu0 %v508
    %856 = vmatpush.msra.mxu0 %v496
    %857 = vmatpush.msra.mxu0 %v484
    %858 = vmatpush.msra.mxu0 %v472
    %859 = vmatpush.msra.mxu0 %v460
    %860 = vmatpush.msra.mxu0 %v448
    %861 = vmatpush.msra.mxu0 %v436
    %862 = vmatpush.msra.mxu0 %v424
    %863 = vmatpush.msra.mxu0 %v412
    %864 = vmatpush.msra.mxu0 %v400
    %865 = vmatpush.msra.mxu0 %v388
    %866 = vmatmul.f32.gmra.mxu0 %v369
    %v867 = vpop.f32.mrf.mxu0
    %v868 = vadd.f32 %v584, %v867
    %869 = vmatmul.f32.gmra.mxu0 %v372
    %v870 = vpop.f32.mrf.mxu0
    %v871 = vadd.f32 %v584, %v870
    %872 = vdwg.mxu0
    %873 = vst [vmem:[#allocation2] sm:$0xff] %v615
    %874 = vst [vmem:[#allocation2 + $0x8] sm:$0xff] %v638
    %875 = vst [vmem:[#allocation2 + $0x10] sm:$0xff] %v661
    %876 = vst [vmem:[#allocation2 + $0x18] sm:$0xff] %v684
    %877 = vst [vmem:[#allocation2 + $0x20] sm:$0xff] %v707
    %878 = vst [vmem:[#allocation2 + $0x28] sm:$0xff] %v730
    %879 = vst [vmem:[#allocation2 + $0x30] sm:$0xff] %v753
    %880 = vst [vmem:[#allocation2 + $0x38] sm:$0xff] %v776
    %881 = vst [vmem:[#allocation2 + $0x40] sm:$0xff] %v799
    %882 = vst [vmem:[#allocation2 + $0x48] sm:$0xff] %v822
    %883 = vst [vmem:[#allocation2 + $0x50] sm:$0xff] %v845
    %884 = vst [vmem:[#allocation2 + $0x58] sm:$0xff] %v868
    %885 = vst [vmem:[#allocation2 + $0x60] sm:$0xff] %v618
    %886 = vst [vmem:[#allocation2 + $0x68] sm:$0xff] %v641
    %887 = vst [vmem:[#allocation2 + $0x70] sm:$0xff] %v664
    %888 = vst [vmem:[#allocation2 + $0x78] sm:$0xff] %v687
    %889 = vst [vmem:[#allocation2 + $0x80] sm:$0xff] %v710
    %890 = vst [vmem:[#allocation2 + $0x88] sm:$0xff] %v733
    %891 = vst [vmem:[#allocation2 + $0x90] sm:$0xff] %v756
    %892 = vst [vmem:[#allocation2 + $0x98] sm:$0xff] %v779
    %893 = vst [vmem:[#allocation2 + $0xa0] sm:$0xff] %v802
    %894 = vst [vmem:[#allocation2 + $0xa8] sm:$0xff] %v825
    %895 = vst [vmem:[#allocation2 + $0xb0] sm:$0xff] %v848
    %896 = vst [vmem:[#allocation2 + $0xb8] sm:$0xff] %v871
    %v897 = vld [vmem:[#allocation2] sm:$0xff]
    %v898 = vld [vmem:[#allocation2 + $0x60] sm:$0xff]
    %v899 = vld [vmem:[#allocation2 + $0x20] sm:$0xff]
    %v900 = vld [vmem:[#allocation2 + $0x80] sm:$0xff]
    %v901 = vld [vmem:[#allocation2 + $0x40] sm:$0xff]
    %v902 = vld [vmem:[#allocation2 + $0xa0] sm:$0xff]
    %903 = vmatpush.xpose.msra.mxu0 0.0
    %904 = vmatpush.xpose.msra.mxu0 0.0
    %905 = vmatpush.xpose.msra.mxu0 0.0
    %906 = vmatpush.xpose.msra.mxu0 0.0
    %907 = vmatpush.xpose.msra.mxu0 0.0
    %908 = vmatpush.xpose.msra.mxu0 0.0
    %909 = vmatpush.xpose.msra.mxu0 0.0
    %910 = vmatpush.xpose.msra.mxu0 0.0
    %911 = vmatpush.xpose.msra.mxu0 0.0
    %912 = vmatpush.xpose.msra.mxu0 0.0
    %913 = vmatpush.xpose.msra.mxu0 0.0
    %914 = vmatpush.xpose.msra.mxu0 0.0
    %915 = vmatpush.xpose.msra.mxu0 0.0
    %916 = vmatpush.xpose.msra.mxu0 0.0
    %917 = vmatpush.xpose.msra.mxu0 %v900
    %918 = vmatpush.xpose.msra.mxu0 %v899
    %919 = vmatmul.f32.gmra.mxu0 %v897
    %v920 = vpop.f32.mrf.mxu0
    %v921 = vadd.f32 0.0, %v920
    %922 = vmatmul.f32.gmra.mxu0 %v898
    %v923 = vpop.f32.mrf.mxu0
    %v924 = vadd.f32 0.0, %v923
    %925 = vdwg.mxu0
    %v926 = vmul.f32 %v921, 0.2
    %v927 = vmul.f32 %v924, 0.2
    %v928 = vsel %vm376, %v926, -1e+30
    %v929 = vsel %vm376, %v927, -1e+30
    %vm930 = vcmask 130048
    %v931 = vsel %vm930, %v928, -inf
    %932 = vmax.xlane.f32.xlu0 %v931
    %v933 = vpop.xlane.xlu0 %932
    %v934 = vsel %vm930, %v929, -inf
    %935 = vmax.xlane.f32.xlu0 %v934
    %v936 = vpop.xlane.xlu0 %935
    %v937 = vsub.f32 %v928, %v933
    %v938 = vsub.f32 %v929, %v936
    %v939 = vmul.f32 %v937, 1.442695
    %v940 = vpow.pop %v939
    %v941 = vmul.f32 %v938, 1.442695
    %v942 = vpow.pop %v941
    %v943 = vsel %vm930, %v940, 0.0
    %944 = vadd.xlane.f32.xlu0 %v943
    %v945 = vpop.xlane.xlu0 %944
    %v946 = vsel %vm930, %v942, 0.0
    %947 = vadd.xlane.f32.xlu0 %v946
    %v948 = vpop.xlane.xlu0 %947
    %v949 = vrcp.pop %v945
    %v950 = vrcp.pop %v948
    %v951 = vmul.f32 %v945, %v949
    %v952 = vmul.f32 %v948, %v950
    %v953 = vsub.f32 2.0, %v951
    %v954 = vsub.f32 2.0, %v952
    %v955 = vmul.f32 %v949, %v953
    %v956 = vmul.f32 %v950, %v954
    %v957 = vmul.f32 %v940, %v955
    %v958 = vmul.f32 %v942, %v956
    %v960 = vsel %vm930, %v957, 0
    %v963 = vsel %vm930, %v958, 0
    %965 = vmatpush.msra.mxu0 0.0
    %966 = vmatpush.msra.mxu0 0.0
    %967 = vmatpush.msra.mxu0 0.0
    %968 = vmatpush.msra.mxu0 0.0
    %969 = vmatpush.msra.mxu0 0.0
    %970 = vmatpush.msra.mxu0 0.0
    %971 = vmatpush.msra.mxu0 0.0
    %972 = vmatpush.msra.mxu0 0.0
    %973 = vmatpush.msra.mxu0 0.0
    %974 = vmatpush.msra.mxu0 0.0
    %975 = vmatpush.msra.mxu0 0.0
    %976 = vmatpush.msra.mxu0 0.0
    %977 = vmatpush.msra.mxu0 0.0
    %978 = vmatpush.msra.mxu0 0.0
    %979 = vmatpush.msra.mxu0 %v902
    %980 = vmatpush.msra.mxu0 %v901
    %981 = vmatmul.f32.gmra.mxu0 %v960
    %v982 = vpop.f32.mrf.mxu0
    %v983 = vadd.f32 0.0, %v982
    %984 = vmatmul.f32.gmra.mxu0 %v963
    %v985 = vpop.f32.mrf.mxu0
    %v986 = vadd.f32 0.0, %v985
    %987 = vdwg.mxu0
    %988 = vst [vmem:[#allocation3] sm:$0xff] %v983
    %989 = vst [vmem:[#allocation3 + $0x20] sm:$0xff] %v986
    %v990 = vld [vmem:[#allocation2 + $0x8] sm:$0xff]
    %v991 = vld [vmem:[#allocation2 + $0x68] sm:$0xff]
    %v992 = vld [vmem:[#allocation2 + $0x28] sm:$0xff]
    %v993 = vld [vmem:[#allocation2 + $0x88] sm:$0xff]
    %v994 = vld [vmem:[#allocation2 + $0x48] sm:$0xff]
    %v995 = vld [vmem:[#allocation2 + $0xa8] sm:$0xff]
    %996 = vmatpush.xpose.msra.mxu0 0.0
    %997 = vmatpush.xpose.msra.mxu0 0.0
    %998 = vmatpush.xpose.msra.mxu0 0.0
    %999 = vmatpush.xpose.msra.mxu0 0.0
    %1000 = vmatpush.xpose.msra.mxu0 0.0
    %1001 = vmatpush.xpose.msra.mxu0 0.0
    %1002 = vmatpush.xpose.msra.mxu0 0.0
    %1003 = vmatpush.xpose.msra.mxu0 0.0
    %1004 = vmatpush.xpose.msra.mxu0 0.0
    %1005 = vmatpush.xpose.msra.mxu0 0.0
    %1006 = vmatpush.xpose.msra.mxu0 0.0
    %1007 = vmatpush.xpose.msra.mxu0 0.0
    %1008 = vmatpush.xpose.msra.mxu0 0.0
    %1009 = vmatpush.xpose.msra.mxu0 0.0
    %1010 = vmatpush.xpose.msra.mxu0 %v993
    %1011 = vmatpush.xpose.msra.mxu0 %v992
    %1012 = vmatmul.f32.gmra.mxu0 %v990
    %v1013 = vpop.f32.mrf.mxu0
    %v1014 = vadd.f32 0.0, %v1013
    %1015 = vmatmul.f32.gmra.mxu0 %v991
    %v1016 = vpop.f32.mrf.mxu0
    %v1017 = vadd.f32 0.0, %v1016
    %1018 = vdwg.mxu0
    %v1019 = vmul.f32 %v1014, 0.2
    %v1020 = vmul.f32 %v1017, 0.2
    %v1021 = vsel %vm376, %v1019, -1e+30
    %v1022 = vsel %vm376, %v1020, -1e+30
    %v1023 = vsel %vm930, %v1021, -inf
    %1024 = vmax.xlane.f32.xlu0 %v1023
    %v1025 = vpop.xlane.xlu0 %1024
    %v1026 = vsel %vm930, %v1022, -inf
    %1027 = vmax.xlane.f32.xlu0 %v1026
    %v1028 = vpop.xlane.xlu0 %1027
    %v1029 = vsub.f32 %v1021, %v1025
    %v1030 = vsub.f32 %v1022, %v1028
    %v1031 = vmul.f32 %v1029, 1.442695
    %v1032 = vpow.pop %v1031
    %v1033 = vmul.f32 %v1030, 1.442695
    %v1034 = vpow.pop %v1033
    %v1035 = vsel %vm930, %v1032, 0.0
    %1036 = vadd.xlane.f32.xlu0 %v1035
    %v1037 = vpop.xlane.xlu0 %1036
    %v1038 = vsel %vm930, %v1034, 0.0
    %1039 = vadd.xlane.f32.xlu0 %v1038
    %v1040 = vpop.xlane.xlu0 %1039
    %v1041 = vrcp.pop %v1037
    %v1042 = vrcp.pop %v1040
    %v1043 = vmul.f32 %v1037, %v1041
    %v1044 = vmul.f32 %v1040, %v1042
    %v1045 = vsub.f32 2.0, %v1043
    %v1046 = vsub.f32 2.0, %v1044
    %v1047 = vmul.f32 %v1041, %v1045
    %v1048 = vmul.f32 %v1042, %v1046
    %v1049 = vmul.f32 %v1032, %v1047
    %v1050 = vmul.f32 %v1034, %v1048
    %v1052 = vsel %vm930, %v1049, 0
    %v1055 = vsel %vm930, %v1050, 0
    %1057 = vmatpush.msra.mxu0 0.0
    %1058 = vmatpush.msra.mxu0 0.0
    %1059 = vmatpush.msra.mxu0 0.0
    %1060 = vmatpush.msra.mxu0 0.0
    %1061 = vmatpush.msra.mxu0 0.0
    %1062 = vmatpush.msra.mxu0 0.0
    %1063 = vmatpush.msra.mxu0 0.0
    %1064 = vmatpush.msra.mxu0 0.0
    %1065 = vmatpush.msra.mxu0 0.0
    %1066 = vmatpush.msra.mxu0 0.0
    %1067 = vmatpush.msra.mxu0 0.0
    %1068 = vmatpush.msra.mxu0 0.0
    %1069 = vmatpush.msra.mxu0 0.0
    %1070 = vmatpush.msra.mxu0 0.0
    %1071 = vmatpush.msra.mxu0 %v995
    %1072 = vmatpush.msra.mxu0 %v994
    %1073 = vmatmul.f32.gmra.mxu0 %v1052
    %v1074 = vpop.f32.mrf.mxu0
    %v1075 = vadd.f32 0.0, %v1074
    %1076 = vmatmul.f32.gmra.mxu0 %v1055
    %v1077 = vpop.f32.mrf.mxu0
    %v1078 = vadd.f32 0.0, %v1077
    %1079 = vdwg.mxu0
    %1080 = vst [vmem:[#allocation3 + $0x8] sm:$0xff] %v1075
    %1081 = vst [vmem:[#allocation3 + $0x28] sm:$0xff] %v1078
    %v1082 = vld [vmem:[#allocation2 + $0x10] sm:$0xff]
    %v1083 = vld [vmem:[#allocation2 + $0x70] sm:$0xff]
    %v1084 = vld [vmem:[#allocation2 + $0x30] sm:$0xff]
    %v1085 = vld [vmem:[#allocation2 + $0x90] sm:$0xff]
    %v1086 = vld [vmem:[#allocation2 + $0x50] sm:$0xff]
    %v1087 = vld [vmem:[#allocation2 + $0xb0] sm:$0xff]
    %1088 = vmatpush.xpose.msra.mxu0 0.0
    %1089 = vmatpush.xpose.msra.mxu0 0.0
    %1090 = vmatpush.xpose.msra.mxu0 0.0
    %1091 = vmatpush.xpose.msra.mxu0 0.0
    %1092 = vmatpush.xpose.msra.mxu0 0.0
    %1093 = vmatpush.xpose.msra.mxu0 0.0
    %1094 = vmatpush.xpose.msra.mxu0 0.0
    %1095 = vmatpush.xpose.msra.mxu0 0.0
    %1096 = vmatpush.xpose.msra.mxu0 0.0
    %1097 = vmatpush.xpose.msra.mxu0 0.0
    %1098 = vmatpush.xpose.msra.mxu0 0.0
    %1099 = vmatpush.xpose.msra.mxu0 0.0
    %1100 = vmatpush.xpose.msra.mxu0 0.0
    %1101 = vmatpush.xpose.msra.mxu0 0.0
    %1102 = vmatpush.xpose.msra.mxu0 %v1085
    %1103 = vmatpush.xpose.msra.mxu0 %v1084
    %1104 = vmatmul.f32.gmra.mxu0 %v1082
    %v1105 = vpop.f32.mrf.mxu0
    %v1106 = vadd.f32 0.0, %v1105
    %1107 = vmatmul.f32.gmra.mxu0 %v1083
    %v1108 = vpop.f32.mrf.mxu0
    %v1109 = vadd.f32 0.0, %v1108
    %1110 = vdwg.mxu0
    %v1111 = vmul.f32 %v1106, 0.2
    %v1112 = vmul.f32 %v1109, 0.2
    %v1113 = vsel %vm376, %v1111, -1e+30
    %v1114 = vsel %vm376, %v1112, -1e+30
    %v1115 = vsel %vm930, %v1113, -inf
    %1116 = vmax.xlane.f32.xlu0 %v1115
    %v1117 = vpop.xlane.xlu0 %1116
    %v1118 = vsel %vm930, %v1114, -inf
    %1119 = vmax.xlane.f32.xlu0 %v1118
    %v1120 = vpop.xlane.xlu0 %1119
    %v1121 = vsub.f32 %v1113, %v1117
    %v1122 = vsub.f32 %v1114, %v1120
    %v1123 = vmul.f32 %v1121, 1.442695
    %v1124 = vpow.pop %v1123
    %v1125 = vmul.f32 %v1122, 1.442695
    %v1126 = vpow.pop %v1125
    %v1127 = vsel %vm930, %v1124, 0.0
    %1128 = vadd.xlane.f32.xlu0 %v1127
    %v1129 = vpop.xlane.xlu0 %1128
    %v1130 = vsel %vm930, %v1126, 0.0
    %1131 = vadd.xlane.f32.xlu0 %v1130
    %v1132 = vpop.xlane.xlu0 %1131
    %v1133 = vrcp.pop %v1129
    %v1134 = vrcp.pop %v1132
    %v1135 = vmul.f32 %v1129, %v1133
    %v1136 = vmul.f32 %v1132, %v1134
    %v1137 = vsub.f32 2.0, %v1135
    %v1138 = vsub.f32 2.0, %v1136
    %v1139 = vmul.f32 %v1133, %v1137
    %v1140 = vmul.f32 %v1134, %v1138
    %v1141 = vmul.f32 %v1124, %v1139
    %v1142 = vmul.f32 %v1126, %v1140
    %v1144 = vsel %vm930, %v1141, 0
    %v1147 = vsel %vm930, %v1142, 0
    %1149 = vmatpush.msra.mxu0 0.0
    %1150 = vmatpush.msra.mxu0 0.0
    %1151 = vmatpush.msra.mxu0 0.0
    %1152 = vmatpush.msra.mxu0 0.0
    %1153 = vmatpush.msra.mxu0 0.0
    %1154 = vmatpush.msra.mxu0 0.0
    %1155 = vmatpush.msra.mxu0 0.0
    %1156 = vmatpush.msra.mxu0 0.0
    %1157 = vmatpush.msra.mxu0 0.0
    %1158 = vmatpush.msra.mxu0 0.0
    %1159 = vmatpush.msra.mxu0 0.0
    %1160 = vmatpush.msra.mxu0 0.0
    %1161 = vmatpush.msra.mxu0 0.0
    %1162 = vmatpush.msra.mxu0 0.0
    %1163 = vmatpush.msra.mxu0 %v1087
    %1164 = vmatpush.msra.mxu0 %v1086
    %1165 = vmatmul.f32.gmra.mxu0 %v1144
    %v1166 = vpop.f32.mrf.mxu0
    %v1167 = vadd.f32 0.0, %v1166
    %1168 = vmatmul.f32.gmra.mxu0 %v1147
    %v1169 = vpop.f32.mrf.mxu0
    %v1170 = vadd.f32 0.0, %v1169
    %1171 = vdwg.mxu0
    %1172 = vst [vmem:[#allocation3 + $0x10] sm:$0xff] %v1167
    %1173 = vst [vmem:[#allocation3 + $0x30] sm:$0xff] %v1170
    %v1174 = vld [vmem:[#allocation2 + $0x18] sm:$0xff]
    %v1175 = vld [vmem:[#allocation2 + $0x78] sm:$0xff]
    %v1176 = vld [vmem:[#allocation2 + $0x38] sm:$0xff]
    %v1177 = vld [vmem:[#allocation2 + $0x98] sm:$0xff]
    %v1178 = vld [vmem:[#allocation2 + $0x58] sm:$0xff]
    %v1179 = vld [vmem:[#allocation2 + $0xb8] sm:$0xff]
    %1180 = vmatpush.xpose.msra.mxu0 0.0
    %1181 = vmatpush.xpose.msra.mxu0 0.0
    %1182 = vmatpush.xpose.msra.mxu0 0.0
    %1183 = vmatpush.xpose.msra.mxu0 0.0
    %1184 = vmatpush.xpose.msra.mxu0 0.0
    %1185 = vmatpush.xpose.msra.mxu0 0.0
    %1186 = vmatpush.xpose.msra.mxu0 0.0
    %1187 = vmatpush.xpose.msra.mxu0 0.0
    %1188 = vmatpush.xpose.msra.mxu0 0.0
    %1189 = vmatpush.xpose.msra.mxu0 0.0
    %1190 = vmatpush.xpose.msra.mxu0 0.0
    %1191 = vmatpush.xpose.msra.mxu0 0.0
    %1192 = vmatpush.xpose.msra.mxu0 0.0
    %1193 = vmatpush.xpose.msra.mxu0 0.0
    %1194 = vmatpush.xpose.msra.mxu0 %v1177
    %1195 = vmatpush.xpose.msra.mxu0 %v1176
    %1196 = vmatmul.f32.gmra.mxu0 %v1174
    %v1197 = vpop.f32.mrf.mxu0
    %v1198 = vadd.f32 0.0, %v1197
    %1199 = vmatmul.f32.gmra.mxu0 %v1175
    %v1200 = vpop.f32.mrf.mxu0
    %v1201 = vadd.f32 0.0, %v1200
    %1202 = vdwg.mxu0
    %v1203 = vmul.f32 %v1198, 0.2
    %v1204 = vmul.f32 %v1201, 0.2
    %v1205 = vsel %vm376, %v1203, -1e+30
    %v1206 = vsel %vm376, %v1204, -1e+30
    %v1207 = vsel %vm930, %v1205, -inf
    %1208 = vmax.xlane.f32.xlu0 %v1207
    %v1209 = vpop.xlane.xlu0 %1208
    %v1210 = vsel %vm930, %v1206, -inf
    %1211 = vmax.xlane.f32.xlu0 %v1210
    %v1212 = vpop.xlane.xlu0 %1211
    %v1213 = vsub.f32 %v1205, %v1209
    %v1214 = vsub.f32 %v1206, %v1212
    %v1215 = vmul.f32 %v1213, 1.442695
    %v1216 = vpow.pop %v1215
    %v1217 = vmul.f32 %v1214, 1.442695
    %v1218 = vpow.pop %v1217
    %v1219 = vsel %vm930, %v1216, 0.0
    %1220 = vadd.xlane.f32.xlu0 %v1219
    %v1221 = vpop.xlane.xlu0 %1220
    %v1222 = vsel %vm930, %v1218, 0.0
    %1223 = vadd.xlane.f32.xlu0 %v1222
    %v1224 = vpop.xlane.xlu0 %1223
    %v1225 = vrcp.pop %v1221
    %v1226 = vrcp.pop %v1224
    %v1227 = vmul.f32 %v1221, %v1225
    %v1228 = vmul.f32 %v1224, %v1226
    %v1229 = vsub.f32 2.0, %v1227
    %v1230 = vsub.f32 2.0, %v1228
    %v1231 = vmul.f32 %v1225, %v1229
    %v1232 = vmul.f32 %v1226, %v1230
    %v1233 = vmul.f32 %v1216, %v1231
    %v1234 = vmul.f32 %v1218, %v1232
    %v1236 = vsel %vm930, %v1233, 0
    %v1239 = vsel %vm930, %v1234, 0
    %1241 = vmatpush.msra.mxu0 0.0
    %1242 = vmatpush.msra.mxu0 0.0
    %1243 = vmatpush.msra.mxu0 0.0
    %1244 = vmatpush.msra.mxu0 0.0
    %1245 = vmatpush.msra.mxu0 0.0
    %1246 = vmatpush.msra.mxu0 0.0
    %1247 = vmatpush.msra.mxu0 0.0
    %1248 = vmatpush.msra.mxu0 0.0
    %1249 = vmatpush.msra.mxu0 0.0
    %1250 = vmatpush.msra.mxu0 0.0
    %1251 = vmatpush.msra.mxu0 0.0
    %1252 = vmatpush.msra.mxu0 0.0
    %1253 = vmatpush.msra.mxu0 0.0
    %1254 = vmatpush.msra.mxu0 0.0
    %1255 = vmatpush.msra.mxu0 %v1179
    %1256 = vmatpush.msra.mxu0 %v1178
    %1257 = vmatmul.f32.gmra.mxu0 %v1236
    %v1258 = vpop.f32.mrf.mxu0
    %v1259 = vadd.f32 0.0, %v1258
    %1260 = vmatmul.f32.gmra.mxu0 %v1239
    %v1261 = vpop.f32.mrf.mxu0
    %v1262 = vadd.f32 0.0, %v1261
    %1263 = vdwg.mxu0
    %1264 = vst [vmem:[#allocation3 + $0x18] sm:$0xff] %v1259
    %1265 = vst [vmem:[#allocation3 + $0x38] sm:$0xff] %v1262
    %v1266 = vld [vmem:[#allocation3] sm:$0xff]
    %v1267 = vld [vmem:[#allocation3 + $0x8] sm:$0xff]
    %v1268 = vld [vmem:[#allocation3 + $0x10] sm:$0xff]
    %v1269 = vld [vmem:[#allocation3 + $0x18] sm:$0xff]
    %v1270 = vld [vmem:[#allocation3 + $0x20] sm:$0xff]
    %v1271 = vld [vmem:[#allocation3 + $0x28] sm:$0xff]
    %v1272 = vld [vmem:[#allocation3 + $0x30] sm:$0xff]
    %v1273 = vld [vmem:[#allocation3 + $0x38] sm:$0xff]
    %v1274 = vld [vmem:[#allocation12] sm:$0xff]
    %v1275 = vld [vmem:[#allocation12 + $0x8] sm:$0xff]
    %v1276 = vld [vmem:[#allocation12 + $0x10] sm:$0xff]
    %v1277 = vld [vmem:[#allocation12 + $0x18] sm:$0xff]
    %v1278 = vld [vmem:[#allocation12 + $0x20] sm:$0xff]
    %v1279 = vld [vmem:[#allocation12 + $0x28] sm:$0xff]
    %v1280 = vld [vmem:[#allocation12 + $0x30] sm:$0xff]
    %v1281 = vld [vmem:[#allocation12 + $0x38] sm:$0xff]
    %v1282 = vld [vmem:[#allocation12 + $0x40] sm:$0xff]
    %v1283 = vld [vmem:[#allocation12 + $0x48] sm:$0xff]
    %v1284 = vld [vmem:[#allocation12 + $0x50] sm:$0xff]
    %v1285 = vld [vmem:[#allocation12 + $0x58] sm:$0xff]
    %v1286 = vld [vmem:[#allocation12 + $0x60] sm:$0xff]
    %v1287 = vld [vmem:[#allocation12 + $0x68] sm:$0xff]
    %v1288 = vld [vmem:[#allocation12 + $0x70] sm:$0xff]
    %v1289 = vld [vmem:[#allocation12 + $0x78] sm:$0xff]
    %v1290 = vld [vmem:[#allocation12 + $0x80] sm:$0xff]
    %v1291 = vld [vmem:[#allocation12 + $0x88] sm:$0xff]
    %v1292 = vld [vmem:[#allocation12 + $0x90] sm:$0xff]
    %v1293 = vld [vmem:[#allocation12 + $0x98] sm:$0xff]
    %v1294 = vld [vmem:[#allocation12 + $0xa0] sm:$0xff]
    %v1295 = vld [vmem:[#allocation12 + $0xa8] sm:$0xff]
    %v1296 = vld [vmem:[#allocation12 + $0xb0] sm:$0xff]
    %v1297 = vld [vmem:[#allocation12 + $0xb8] sm:$0xff]
    %v1298 = vld [vmem:[#allocation12 + $0xc0] sm:$0xff]
    %v1299 = vld [vmem:[#allocation12 + $0xc8] sm:$0xff]
    %v1300 = vld [vmem:[#allocation12 + $0xd0] sm:$0xff]
    %v1301 = vld [vmem:[#allocation12 + $0xd8] sm:$0xff]
    %v1302 = vld [vmem:[#allocation12 + $0xe0] sm:$0xff]
    %v1303 = vld [vmem:[#allocation12 + $0xe8] sm:$0xff]
    %v1304 = vld [vmem:[#allocation12 + $0xf0] sm:$0xff]
    %v1305 = vld [vmem:[#allocation12 + $0xf8] sm:$0xff]
    %v1306 = vld [vmem:[#allocation12 + $0x100] sm:$0xff]
    %v1307 = vld [vmem:[#allocation12 + $0x108] sm:$0xff]
    %v1308 = vld [vmem:[#allocation12 + $0x110] sm:$0xff]
    %v1309 = vld [vmem:[#allocation12 + $0x118] sm:$0xff]
    %v1310 = vld [vmem:[#allocation12 + $0x120] sm:$0xff]
    %v1311 = vld [vmem:[#allocation12 + $0x128] sm:$0xff]
    %v1312 = vld [vmem:[#allocation12 + $0x130] sm:$0xff]
    %v1313 = vld [vmem:[#allocation12 + $0x138] sm:$0xff]
    %v1314 = vld [vmem:[#allocation12 + $0x140] sm:$0xff]
    %v1315 = vld [vmem:[#allocation12 + $0x148] sm:$0xff]
    %v1316 = vld [vmem:[#allocation12 + $0x150] sm:$0xff]
    %v1317 = vld [vmem:[#allocation12 + $0x158] sm:$0xff]
    %v1318 = vld [vmem:[#allocation12 + $0x160] sm:$0xff]
    %v1319 = vld [vmem:[#allocation12 + $0x168] sm:$0xff]
    %v1320 = vld [vmem:[#allocation12 + $0x170] sm:$0xff]
    %v1321 = vld [vmem:[#allocation12 + $0x178] sm:$0xff]
    %v1322 = vld [vmem:[#allocation12 + $0x180] sm:$0xff]
    %v1323 = vld [vmem:[#allocation12 + $0x188] sm:$0xff]
    %v1324 = vld [vmem:[#allocation12 + $0x190] sm:$0xff]
    %v1325 = vld [vmem:[#allocation12 + $0x198] sm:$0xff]
    %v1326 = vld [vmem:[#allocation12 + $0x1a0] sm:$0xff]
    %v1327 = vld [vmem:[#allocation12 + $0x1a8] sm:$0xff]
    %v1328 = vld [vmem:[#allocation12 + $0x1b0] sm:$0xff]
    %v1329 = vld [vmem:[#allocation12 + $0x1b8] sm:$0xff]
    %v1330 = vld [vmem:[#allocation12 + $0x1c0] sm:$0xff]
    %v1331 = vld [vmem:[#allocation12 + $0x1c8] sm:$0xff]
    %v1332 = vld [vmem:[#allocation12 + $0x1d0] sm:$0xff]
    %v1333 = vld [vmem:[#allocation12 + $0x1d8] sm:$0xff]
    %v1334 = vld [vmem:[#allocation12 + $0x1e0] sm:$0xff]
    %v1335 = vld [vmem:[#allocation12 + $0x1e8] sm:$0xff]
    %v1336 = vld [vmem:[#allocation12 + $0x1f0] sm:$0xff]
    %v1337 = vld [vmem:[#allocation12 + $0x1f8] sm:$0xff]
    %v1338 = vld [vmem:[#allocation13] sm:$0x1]
    %v1340 = vperm.slane %v1338, 0
    %1342 = vmatpush.msra.mxu0 %v1289
    %1343 = vmatpush.msra.mxu0 %v1288
    %1344 = vmatpush.msra.mxu0 %v1287
    %1345 = vmatpush.msra.mxu0 %v1286
    %1346 = vmatpush.msra.mxu0 %v1285
    %1347 = vmatpush.msra.mxu0 %v1284
    %1348 = vmatpush.msra.mxu0 %v1283
    %1349 = vmatpush.msra.mxu0 %v1282
    %1350 = vmatpush.msra.mxu0 %v1281
    %1351 = vmatpush.msra.mxu0 %v1280
    %1352 = vmatpush.msra.mxu0 %v1279
    %1353 = vmatpush.msra.mxu0 %v1278
    %1354 = vmatpush.msra.mxu0 %v1277
    %1355 = vmatpush.msra.mxu0 %v1276
    %1356 = vmatpush.msra.mxu0 %v1275
    %1357 = vmatpush.msra.mxu0 %v1274
    %1358 = vmatmul.f32.gmra.mxu0 %v1266
    %v1359 = vpop.f32.mrf.mxu0
    %v1360 = vadd.f32 %v1340, %v1359
    %1361 = vmatmul.f32.gmra.mxu0 %v1270
    %v1362 = vpop.f32.mrf.mxu0
    %v1363 = vadd.f32 %v1340, %v1362
    %1364 = vdwg.mxu0
    %1365 = vmatpush.msra.mxu0 %v1305
    %1366 = vmatpush.msra.mxu0 %v1304
    %1367 = vmatpush.msra.mxu0 %v1303
    %1368 = vmatpush.msra.mxu0 %v1302
    %1369 = vmatpush.msra.mxu0 %v1301
    %1370 = vmatpush.msra.mxu0 %v1300
    %1371 = vmatpush.msra.mxu0 %v1299
    %1372 = vmatpush.msra.mxu0 %v1298
    %1373 = vmatpush.msra.mxu0 %v1297
    %1374 = vmatpush.msra.mxu0 %v1296
    %1375 = vmatpush.msra.mxu0 %v1295
    %1376 = vmatpush.msra.mxu0 %v1294
    %1377 = vmatpush.msra.mxu0 %v1293
    %1378 = vmatpush.msra.mxu0 %v1292
    %1379 = vmatpush.msra.mxu0 %v1291
    %1380 = vmatpush.msra.mxu0 %v1290
    %1381 = vmatmul.f32.gmra.mxu0 %v1267
    %v1382 = vpop.f32.mrf.mxu0
    %v1383 = vadd.f32 %v1360, %v1382
    %1384 = vmatmul.f32.gmra.mxu0 %v1271
    %v1385 = vpop.f32.mrf.mxu0
    %v1386 = vadd.f32 %v1363, %v1385
    %1387 = vdwg.mxu0
    %1388 = vmatpush.msra.mxu0 %v1321
    %1389 = vmatpush.msra.mxu0 %v1320
    %1390 = vmatpush.msra.mxu0 %v1319
    %1391 = vmatpush.msra.mxu0 %v1318
    %1392 = vmatpush.msra.mxu0 %v1317
    %1393 = vmatpush.msra.mxu0 %v1316
    %1394 = vmatpush.msra.mxu0 %v1315
    %1395 = vmatpush.msra.mxu0 %v1314
    %1396 = vmatpush.msra.mxu0 %v1313
    %1397 = vmatpush.msra.mxu0 %v1312
    %1398 = vmatpush.msra.mxu0 %v1311
    %1399 = vmatpush.msra.mxu0 %v1310
    %1400 = vmatpush.msra.mxu0 %v1309
    %1401 = vmatpush.msra.mxu0 %v1308
    %1402 = vmatpush.msra.mxu0 %v1307
    %1403 = vmatpush.msra.mxu0 %v1306
    %1404 = vmatmul.f32.gmra.mxu0 %v1268
    %v1405 = vpop.f32.mrf.mxu0
    %v1406 = vadd.f32 %v1383, %v1405
    %1407 = vmatmul.f32.gmra.mxu0 %v1272
    %v1408 = vpop.f32.mrf.mxu0
    %v1409 = vadd.f32 %v1386, %v1408
    %1410 = vdwg.mxu0
    %1411 = vmatpush.msra.mxu0 %v1337
    %1412 = vmatpush.msra.mxu0 %v1336
    %1413 = vmatpush.msra.mxu0 %v1335
    %1414 = vmatpush.msra.mxu0 %v1334
    %1415 = vmatpush.msra.mxu0 %v1333
    %1416 = vmatpush.msra.mxu0 %v1332
    %1417 = vmatpush.msra.mxu0 %v1331
    %1418 = vmatpush.msra.mxu0 %v1330
    %1419 = vmatpush.msra.mxu0 %v1329
    %1420 = vmatpush.msra.mxu0 %v1328
    %1421 = vmatpush.msra.mxu0 %v1327
    %1422 = vmatpush.msra.mxu0 %v1326
    %1423 = vmatpush.msra.mxu0 %v1325
    %1424 = vmatpush.msra.mxu0 %v1324
    %1425 = vmatpush.msra.mxu0 %v1323
    %1426 = vmatpush.msra.mxu0 %v1322
    %1427 = vmatmul.f32.gmra.mxu0 %v1269
    %v1428 = vpop.f32.mrf.mxu0
    %v1429 = vadd.f32 %v1406, %v1428
    %1430 = vmatmul.f32.gmra.mxu0 %v1273
    %v1431 = vpop.f32.mrf.mxu0
    %v1432 = vadd.f32 %v1409, %v1431
    %1433 = vdwg.mxu0
    %v1434 = vadd.f32 %v369, %v1429
    %v1435 = vadd.f32 %v372, %v1432
    %v1436 = vld [vmem:[%s12] sm:$0x1]
    %v1437 = vld [vmem:[%s13] sm:$0x1]
    %1438 = vadd.xlane.f32.xlu0 %v1434
    %v1439 = vpop.xlane.xlu0 %1438
    %1440 = vadd.xlane.f32.xlu0 %v1435
    %v1441 = vpop.xlane.xlu0 %1440
    %v1442 = vmul.f32 %v1439, 0.01
    %v1443 = vmul.f32 %v1441, 0.01
    %v1444 = vmul.f32 %v1434, %v1434
    %v1445 = vmul.f32 %v1435, %v1435
    %1446 = vadd.xlane.f32.xlu0 %v1444
    %v1447 = vpop.xlane.xlu0 %1446
    %1448 = vadd.xlane.f32.xlu0 %v1445
    %v1449 = vpop.xlane.xlu0 %1448
    %v1450 = vmul.f32 %v1447, 0.01
    %v1451 = vmul.f32 %v1449, 0.01
    %v1452 = vmul.f32 %v1442, %v1442
    %v1453 = vmul.f32 %v1443, %v1443
    %v1454 = vsub.f32 %v1450, %v1452
    %v1455 = vsub.f32 %v1451, %v1453
    %v1456 = vsub.f32 %v1434, %v1442
    %v1457 = vsub.f32 %v1435, %v1443
    %v1458 = vadd.f32 %v1454, 1e-05
    %v1459 = vadd.f32 %v1455, 1e-05
    %v1460 = vrsqrt.pop %v1458
    %v1461 = vmul.f32 %v1460, %v1458
    %v1462 = vmul.f32 %v1461, %v1460
    %v1463 = vmul.f32 0.5, %v1462
    %v1464 = vsub.f32 1.5, %v1463
    %v1465 = vmul.f32 %v1460, %v1464
    %vm1466 = vweird.f32 %v1458
    %vm1467 = vweird.f32 %v1460
    %vm1468 = vmor %vm1466, %vm1467
    %v1469 = vsel %vm1468, %v1460, %v1465
    %v1470 = vrsqrt.pop %v1459
    %v1471 = vmul.f32 %v1470, %v1459
    %v1472 = vmul.f32 %v1471, %v1470
    %v1473 = vmul.f32 0.5, %v1472
    %v1474 = vsub.f32 1.5, %v1473
    %v1475 = vmul.f32 %v1470, %v1474
    %vm1476 = vweird.f32 %v1459
    %vm1477 = vweird.f32 %v1470
    %vm1478 = vmor %vm1476, %vm1477
    %v1479 = vsel %vm1478, %v1470, %v1475
    %v1480 = vmul.f32 %v1456, %v1469
    %v1481 = vmul.f32 %v1457, %v1479
    %v1483 = vperm.slane %v1436, 0
    %v1485 = vmul.f32 %v1480, %v1483
    %v1486 = vmul.f32 %v1481, %v1483
    %v1488 = vperm.slane %v1437, 0
    %v1490 = vadd.f32 %v1485, %v1488
    %v1491 = vadd.f32 %v1486, %v1488
    %v1492 = vld [vmem:[#allocation15] sm:$0xff]
    %v1493 = vld [vmem:[#allocation15 + $0x8] sm:$0xff]
    %v1494 = vld [vmem:[#allocation15 + $0x10] sm:$0xff]
    %v1495 = vld [vmem:[#allocation15 + $0x18] sm:$0xff]
    %v1496 = vld [vmem:[#allocation15 + $0x80] sm:$0xff]
    %v1497 = vld [vmem:[#allocation15 + $0x88] sm:$0xff]
    %v1498 = vld [vmem:[#allocation15 + $0x90] sm:$0xff]
    %v1499 = vld [vmem:[#allocation15 + $0x98] sm:$0xff]
    %v1500 = vld [vmem:[#allocation15 + $0x100] sm:$0xff]
    %v1501 = vld [vmem:[#allocation15 + $0x108] sm:$0xff]
    %v1502 = vld [vmem:[#allocation15 + $0x110] sm:$0xff]
    %v1503 = vld [vmem:[#allocation15 + $0x118] sm:$0xff]
    %v1504 = vld [vmem:[#allocation15 + $0x180] sm:$0xff]
    %v1505 = vld [vmem:[#allocation15 + $0x188] sm:$0xff]
    %v1506 = vld [vmem:[#allocation15 + $0x190] sm:$0xff]
    %v1507 = vld [vmem:[#allocation15 + $0x198] sm:$0xff]
    %v1508 = vld [vmem:[#allocation15 + $0x200] sm:$0xff]
    %v1509 = vld [vmem:[#allocation15 + $0x208] sm:$0xff]
    %v1510 = vld [vmem:[#allocation15 + $0x210] sm:$0xff]
    %v1511 = vld [vmem:[#allocation15 + $0x218] sm:$0xff]
    %v1512 = vld [vmem:[#allocation15 + $0x280] sm:$0xff]
    %v1513 = vld [vmem:[#allocation15 + $0x288] sm:$0xff]
    %v1514 = vld [vmem:[#allocation15 + $0x290] sm:$0xff]
    %v1515 = vld [vmem:[#allocation15 + $0x298] sm:$0xff]
    %v1516 = vld [vmem:[#allocation15 + $0x300] sm:$0xff]
    %v1517 = vld [vmem:[#allocation15 + $0x308] sm:$0xff]
    %v1518 = vld [vmem:[#allocation15 + $0x310] sm:$0xff]
    %v1519 = vld [vmem:[#allocation15 + $0x318] sm:$0xff]
    %v1520 = vld [vmem:[#allocation15 + $0x380] sm:$0xff]
    %v1521 = vld [vmem:[#allocation15 + $0x388] sm:$0xff]
    %v1522 = vld [vmem:[#allocation15 + $0x390] sm:$0xff]
    %v1523 = vld [vmem:[#allocation15 + $0x398] sm:$0xff]
    %v1524 = vld [vmem:[#allocation15 + $0x400] sm:$0xff]
    %v1525 = vld [vmem:[#allocation15 + $0x408] sm:$0xff]
    %v1526 = vld [vmem:[#allocation15 + $0x410] sm:$0xff]
    %v1527 = vld [vmem:[#allocation15 + $0x418] sm:$0xff]
    %v1528 = vld [vmem:[#allocation15 + $0x480] sm:$0xff]
    %v1529 = vld [vmem:[#allocation15 + $0x488] sm:$0xff]
    %v1530 = vld [vmem:[#allocation15 + $0x490] sm:$0xff]
    %v1531 = vld [vmem:[#allocation15 + $0x498] sm:$0xff]
    %v1532 = vld [vmem:[#allocation15 + $0x500] sm:$0xff]
    %v1533 = vld [vmem:[#allocation15 + $0x508] sm:$0xff]
    %v1534 = vld [vmem:[#allocation15 + $0x510] sm:$0xff]
    %v1535 = vld [vmem:[#allocation15 + $0x518] sm:$0xff]
    %v1536 = vld [vmem:[#allocation15 + $0x580] sm:$0xff]
    %v1537 = vld [vmem:[#allocation15 + $0x588] sm:$0xff]
    %v1538 = vld [vmem:[#allocation15 + $0x590] sm:$0xff]
    %v1539 = vld [vmem:[#allocation15 + $0x598] sm:$0xff]
    %v1540 = vld [vmem:[#allocation15 + $0x600] sm:$0xff]
    %v1541 = vld [vmem:[#allocation15 + $0x608] sm:$0xff]
    %v1542 = vld [vmem:[#allocation15 + $0x610] sm:$0xff]
    %v1543 = vld [vmem:[#allocation15 + $0x618] sm:$0xff]
    %v1544 = vld [vmem:[#allocation15 + $0x680] sm:$0xff]
    %v1545 = vld [vmem:[#allocation15 + $0x688] sm:$0xff]
    %v1546 = vld [vmem:[#allocation15 + $0x690] sm:$0xff]
    %v1547 = vld [vmem:[#allocation15 + $0x698] sm:$0xff]
    %v1548 = vld [vmem:[#allocation15 + $0x700] sm:$0xff]
    %v1549 = vld [vmem:[#allocation15 + $0x708] sm:$0xff]
    %v1550 = vld [vmem:[#allocation15 + $0x710] sm:$0xff]
    %v1551 = vld [vmem:[#allocation15 + $0x718] sm:$0xff]
    %v1552 = vld [vmem:[#allocation15 + $0x780] sm:$0xff]
    %v1553 = vld [vmem:[#allocation15 + $0x788] sm:$0xff]
    %v1554 = vld [vmem:[#allocation15 + $0x790] sm:$0xff]
    %v1555 = vld [vmem:[#allocation15 + $0x798] sm:$0xff]
    %v1556 = vld [vmem:[%s9] sm:$0xf]
    %v1558 = vperm.slane %v1556, 0
    %v1559 = vperm.slane %v1556, 1
    %v1560 = vperm.slane %v1556, 2
    %v1561 = vperm.slane %v1556, 3
    %1566 = vmatpush.msra.mxu0 %v1552
    %1567 = vmatpush.msra.mxu0 %v1548
    %1568 = vmatpush.msra.mxu0 %v1544
    %1569 = vmatpush.msra.mxu0 %v1540
    %1570 = vmatpush.msra.mxu0 %v1536
    %1571 = vmatpush.msra.mxu0 %v1532
    %1572 = vmatpush.msra.mxu0 %v1528
    %1573 = vmatpush.msra.mxu0 %v1524
    %1574 = vmatpush.msra.mxu0 %v1520
    %1575 = vmatpush.msra.mxu0 %v1516
    %1576 = vmatpush.msra.mxu0 %v1512
    %1577 = vmatpush.msra.mxu0 %v1508
    %1578 = vmatpush.msra.mxu0 %v1504
    %1579 = vmatpush.msra.mxu0 %v1500
    %1580 = vmatpush.msra.mxu0 %v1496
    %1581 = vmatpush.msra.mxu0 %v1492
    %1582 = vmatmul.f32.gmra.mxu0 %v1490
    %v1583 = vpop.f32.mrf.mxu0
    %v1584 = vadd.f32 %v1558, %v1583
    %1585 = vmatmul.f32.gmra.mxu0 %v1491
    %v1586 = vpop.f32.mrf.mxu0
    %v1587 = vadd.f32 %v1558, %v1586
    %1588 = vdwg.mxu0
    %1589 = vmatpush.msra.mxu0 %v1553
    %1590 = vmatpush.msra.mxu0 %v1549
    %1591 = vmatpush.msra.mxu0 %v1545
    %1592 = vmatpush.msra.mxu0 %v1541
    %1593 = vmatpush.msra.mxu0 %v1537
    %1594 = vmatpush.msra.mxu0 %v1533
    %1595 = vmatpush.msra.mxu0 %v1529
    %1596 = vmatpush.msra.mxu0 %v1525
    %1597 = vmatpush.msra.mxu0 %v1521
    %1598 = vmatpush.msra.mxu0 %v1517
    %1599 = vmatpush.msra.mxu0 %v1513
    %1600 = vmatpush.msra.mxu0 %v1509
    %1601 = vmatpush.msra.mxu0 %v1505
    %1602 = vmatpush.msra.mxu0 %v1501
    %1603 = vmatpush.msra.mxu0 %v1497
    %1604 = vmatpush.msra.mxu0 %v1493
    %1605 = vmatmul.f32.gmra.mxu0 %v1490
    %v1606 = vpop.f32.mrf.mxu0
    %v1607 = vadd.f32 %v1559, %v1606
    %1608 = vmatmul.f32.gmra.mxu0 %v1491
    %v1609 = vpop.f32.mrf.mxu0
    %v1610 = vadd.f32 %v1559, %v1609
    %1611 = vdwg.mxu0
    %1612 = vmatpush.msra.mxu0 %v1554
    %1613 = vmatpush.msra.mxu0 %v1550
    %1614 = vmatpush.msra.mxu0 %v1546
    %1615 = vmatpush.msra.mxu0 %v1542
    %1616 = vmatpush.msra.mxu0 %v1538
    %1617 = vmatpush.msra.mxu0 %v1534
    %1618 = vmatpush.msra.mxu0 %v1530
    %1619 = vmatpush.msra.mxu0 %v1526
    %1620 = vmatpush.msra.mxu0 %v1522
    %1621 = vmatpush.msra.mxu0 %v1518
    %1622 = vmatpush.msra.mxu0 %v1514
    %1623 = vmatpush.msra.mxu0 %v1510
    %1624 = vmatpush.msra.mxu0 %v1506
    %1625 = vmatpush.msra.mxu0 %v1502
    %1626 = vmatpush.msra.mxu0 %v1498
    %1627 = vmatpush.msra.mxu0 %v1494
    %1628 = vmatmul.f32.gmra.mxu0 %v1490
    %v1629 = vpop.f32.mrf.mxu0
    %v1630 = vadd.f32 %v1560, %v1629
    %1631 = vmatmul.f32.gmra.mxu0 %v1491
    %v1632 = vpop.f32.mrf.mxu0
    %v1633 = vadd.f32 %v1560, %v1632
    %1634 = vdwg.mxu0
    %1635 = vmatpush.msra.mxu0 %v1555
    %1636 = vmatpush.msra.mxu0 %v1551
    %1637 = vmatpush.msra.mxu0 %v1547
    %1638 = vmatpush.msra.mxu0 %v1543
    %1639 = vmatpush.msra.mxu0 %v1539
    %1640 = vmatpush.msra.mxu0 %v1535
    %1641 = vmatpush.msra.mxu0 %v1531
    %1642 = vmatpush.msra.mxu0 %v1527
    %1643 = vmatpush.msra.mxu0 %v1523
    %1644 = vmatpush.msra.mxu0 %v1519
    %1645 = vmatpush.msra.mxu0 %v1515
    %1646 = vmatpush.msra.mxu0 %v1511
    %1647 = vmatpush.msra.mxu0 %v1507
    %1648 = vmatpush.msra.mxu0 %v1503
    %1649 = vmatpush.msra.mxu0 %v1499
    %1650 = vmatpush.msra.mxu0 %v1495
    %1651 = vmatmul.f32.gmra.mxu0 %v1490
    %v1652 = vpop.f32.mrf.mxu0
    %v1653 = vadd.f32 %v1561, %v1652
    %1654 = vmatmul.f32.gmra.mxu0 %v1491
    %v1655 = vpop.f32.mrf.mxu0
    %v1656 = vadd.f32 %v1561, %v1655
    %1657 = vdwg.mxu0
    %v1658 = vmax.f32 %v1584, 0.0
    %v1659 = vmax.f32 %v1607, 0.0
    %v1660 = vmax.f32 %v1630, 0.0
    %v1661 = vmax.f32 %v1653, 0.0
    %v1662 = vmax.f32 %v1587, 0.0
    %v1663 = vmax.f32 %v1610, 0.0
    %v1664 = vmax.f32 %v1633, 0.0
    %v1665 = vmax.f32 %v1656, 0.0
    %v1666 = vld [vmem:[#allocation16] sm:$0xff]
    %v1667 = vld [vmem:[#allocation16 + $0x8] sm:$0xff]
    %v1668 = vld [vmem:[#allocation16 + $0x10] sm:$0xff]
    %v1669 = vld [vmem:[#allocation16 + $0x18] sm:$0xff]
    %v1670 = vld [vmem:[#allocation16 + $0x20] sm:$0xff]
    %v1671 = vld [vmem:[#allocation16 + $0x28] sm:$0xff]
    %v1672 = vld [vmem:[#allocation16 + $0x30] sm:$0xff]
    %v1673 = vld [vmem:[#allocation16 + $0x38] sm:$0xff]
    %v1674 = vld [vmem:[#allocation16 + $0x40] sm:$0xff]
    %v1675 = vld [vmem:[#allocation16 + $0x48] sm:$0xff]
    %v1676 = vld [vmem:[#allocation16 + $0x50] sm:$0xff]
    %v1677 = vld [vmem:[#allocation16 + $0x58] sm:$0xff]
    %v1678 = vld [vmem:[#allocation16 + $0x60] sm:$0xff]
    %v1679 = vld [vmem:[#allocation16 + $0x68] sm:$0xff]
    %v1680 = vld [vmem:[#allocation16 + $0x70] sm:$0xff]
    %v1681 = vld [vmem:[#allocation16 + $0x78] sm:$0xff]
    %v1682 = vld [vmem:[#allocation16 + $0x80] sm:$0xff]
    %v1683 = vld [vmem:[#allocation16 + $0x88] sm:$0xff]
    %v1684 = vld [vmem:[#allocation16 + $0x90] sm:$0xff]
    %v1685 = vld [vmem:[#allocation16 + $0x98] sm:$0xff]
    %v1686 = vld [vmem:[#allocation16 + $0xa0] sm:$0xff]
    %v1687 = vld [vmem:[#allocation16 + $0xa8] sm:$0xff]
    %v1688 = vld [vmem:[#allocation16 + $0xb0] sm:$0xff]
    %v1689 = vld [vmem:[#allocation16 + $0xb8] sm:$0xff]
    %v1690 = vld [vmem:[#allocation16 + $0xc0] sm:$0xff]
    %v1691 = vld [vmem:[#allocation16 + $0xc8] sm:$0xff]
    %v1692 = vld [vmem:[#allocation16 + $0xd0] sm:$0xff]
    %v1693 = vld [vmem:[#allocation16 + $0xd8] sm:$0xff]
    %v1694 = vld [vmem:[#allocation16 + $0xe0] sm:$0xff]
    %v1695 = vld [vmem:[#allocation16 + $0xe8] sm:$0xff]
    %v1696 = vld [vmem:[#allocation16 + $0xf0] sm:$0xff]
    %v1697 = vld [vmem:[#allocation16 + $0xf8] sm:$0xff]
    %v1698 = vld [vmem:[#allocation16 + $0x100] sm:$0xff]
    %v1699 = vld [vmem:[#allocation16 + $0x108] sm:$0xff]
    %v1700 = vld [vmem:[#allocation16 + $0x110] sm:$0xff]
    %v1701 = vld [vmem:[#allocation16 + $0x118] sm:$0xff]
    %v1702 = vld [vmem:[#allocation16 + $0x120] sm:$0xff]
    %v1703 = vld [vmem:[#allocation16 + $0x128] sm:$0xff]
    %v1704 = vld [vmem:[#allocation16 + $0x130] sm:$0xff]
    %v1705 = vld [vmem:[#allocation16 + $0x138] sm:$0xff]
    %v1706 = vld [vmem:[#allocation16 + $0x140] sm:$0xff]
    %v1707 = vld [vmem:[#allocation16 + $0x148] sm:$0xff]
    %v1708 = vld [vmem:[#allocation16 + $0x150] sm:$0xff]
    %v1709 = vld [vmem:[#allocation16 + $0x158] sm:$0xff]
    %v1710 = vld [vmem:[#allocation16 + $0x160] sm:$0xff]
    %v1711 = vld [vmem:[#allocation16 + $0x168] sm:$0xff]
    %v1712 = vld [vmem:[#allocation16 + $0x170] sm:$0xff]
    %v1713 = vld [vmem:[#allocation16 + $0x178] sm:$0xff]
    %v1714 = vld [vmem:[#allocation16 + $0x180] sm:$0xff]
    %v1715 = vld [vmem:[#allocation16 + $0x188] sm:$0xff]
    %v1716 = vld [vmem:[#allocation16 + $0x190] sm:$0xff]
    %v1717 = vld [vmem:[#allocation16 + $0x198] sm:$0xff]
    %v1718 = vld [vmem:[#allocation16 + $0x1a0] sm:$0xff]
    %v1719 = vld [vmem:[#allocation16 + $0x1a8] sm:$0xff]
    %v1720 = vld [vmem:[#allocation16 + $0x1b0] sm:$0xff]
    %v1721 = vld [vmem:[#allocation16 + $0x1b8] sm:$0xff]
    %v1722 = vld [vmem:[#allocation16 + $0x1c0] sm:$0xff]
    %v1723 = vld [vmem:[#allocation16 + $0x1c8] sm:$0xff]
    %v1724 = vld [vmem:[#allocation16 + $0x1d0] sm:$0xff]
    %v1725 = vld [vmem:[#allocation16 + $0x1d8] sm:$0xff]
    %v1726 = vld [vmem:[#allocation16 + $0x1e0] sm:$0xff]
    %v1727 = vld [vmem:[#allocation16 + $0x1e8] sm:$0xff]
    %v1728 = vld [vmem:[#allocation16 + $0x1f0] sm:$0xff]
    %v1729 = vld [vmem:[#allocation16 + $0x1f8] sm:$0xff]
    %v1730 = vld [vmem:[#allocation15 + $0x20] sm:$0xff]
    %v1731 = vld [vmem:[#allocation15 + $0x28] sm:$0xff]
    %v1732 = vld [vmem:[#allocation15 + $0x30] sm:$0xff]
    %v1733 = vld [vmem:[#allocation15 + $0x38] sm:$0xff]
    %v1734 = vld [vmem:[#allocation15 + $0xa0] sm:$0xff]
    %v1735 = vld [vmem:[#allocation15 + $0xa8] sm:$0xff]
    %v1736 = vld [vmem:[#allocation15 + $0xb0] sm:$0xff]
    %v1737 = vld [vmem:[#allocation15 + $0xb8] sm:$0xff]
    %v1738 = vld [vmem:[#allocation15 + $0x120] sm:$0xff]
    %v1739 = vld [vmem:[#allocation15 + $0x128] sm:$0xff]
    %v1740 = vld [vmem:[#allocation15 + $0x130] sm:$0xff]
    %v1741 = vld [vmem:[#allocation15 + $0x138] sm:$0xff]
    %v1742 = vld [vmem:[#allocation15 + $0x1a0] sm:$0xff]
    %v1743 = vld [vmem:[#allocation15 + $0x1a8] sm:$0xff]
    %v1744 = vld [vmem:[#allocation15 + $0x1b0] sm:$0xff]
    %v1745 = vld [vmem:[#allocation15 + $0x1b8] sm:$0xff]
    %v1746 = vld [vmem:[#allocation15 + $0x220] sm:$0xff]
    %v1747 = vld [vmem:[#allocation15 + $0x228] sm:$0xff]
    %v1748 = vld [vmem:[#allocation15 + $0x230] sm:$0xff]
    %v1749 = vld [vmem:[#allocation15 + $0x238] sm:$0xff]
    %v1750 = vld [vmem:[#allocation15 + $0x2a0] sm:$0xff]
    %v1751 = vld [vmem:[#allocation15 + $0x2a8] sm:$0xff]
    %v1752 = vld [vmem:[#allocation15 + $0x2b0] sm:$0xff]
    %v1753 = vld [vmem:[#allocation15 + $0x2b8] sm:$0xff]
    %v1754 = vld [vmem:[#allocation15 + $0x320] sm:$0xff]
    %v1755 = vld [vmem:[#allocation15 + $0x328] sm:$0xff]
    %v1756 = vld [vmem:[#allocation15 + $0x330] sm:$0xff]
    %v1757 = vld [vmem:[#allocation15 + $0x338] sm:$0xff]
    %v1758 = vld [vmem:[#allocation15 + $0x3a0] sm:$0xff]
    %v1759 = vld [vmem:[#allocation15 + $0x3a8] sm:$0xff]
    %v1760 = vld [vmem:[#allocation15 + $0x3b0] sm:$0xff]
    %v1761 = vld [vmem:[#allocation15 + $0x3b8] sm:$0xff]
    %v1762 = vld [vmem:[#allocation15 + $0x420] sm:$0xff]
    %v1763 = vld [vmem:[#allocation15 + $0x428] sm:$0xff]
    %v1764 = vld [vmem:[#allocation15 + $0x430] sm:$0xff]
    %v1765 = vld [vmem:[#allocation15 + $0x438] sm:$0xff]
    %v1766 = vld [vmem:[#allocation15 + $0x4a0] sm:$0xff]
    %v1767 = vld [vmem:[#allocation15 + $0x4a8] sm:$0xff]
    %v1768 = vld [vmem:[#allocation15 + $0x4b0] sm:$0xff]
    %v1769 = vld [vmem:[#allocation15 + $0x4b8] sm:$0xff]
    %v1770 = vld [vmem:[#allocation15 + $0x520] sm:$0xff]
    %v1771 = vld [vmem:[#allocation15 + $0x528] sm:$0xff]
    %v1772 = vld [vmem:[#allocation15 + $0x530] sm:$0xff]
    %v1773 = vld [vmem:[#allocation15 + $0x538] sm:$0xff]
    %v1774 = vld [vmem:[#allocation15 + $0x5a0] sm:$0xff]
    %v1775 = vld [vmem:[#allocation15 + $0x5a8] sm:$0xff]
    %v1776 = vld [vmem:[#allocation15 + $0x5b0] sm:$0xff]
    %v1777 = vld [vmem:[#allocation15 + $0x5b8] sm:$0xff]
    %v1778 = vld [vmem:[#allocation15 + $0x620] sm:$0xff]
    %v1779 = vld [vmem:[#allocation15 + $0x628] sm:$0xff]
    %v1780 = vld [vmem:[#allocation15 + $0x630] sm:$0xff]
    %v1781 = vld [vmem:[#allocation15 + $0x638] sm:$0xff]
    %v1782 = vld [vmem:[#allocation15 + $0x6a0] sm:$0xff]
    %v1783 = vld [vmem:[#allocation15 + $0x6a8] sm:$0xff]
    %v1784 = vld [vmem:[#allocation15 + $0x6b0] sm:$0xff]
    %v1785 = vld [vmem:[#allocation15 + $0x6b8] sm:$0xff]
    %v1786 = vld [vmem:[#allocation15 + $0x720] sm:$0xff]
    %v1787 = vld [vmem:[#allocation15 + $0x728] sm:$0xff]
    %v1788 = vld [vmem:[#allocation15 + $0x730] sm:$0xff]
    %v1789 = vld [vmem:[#allocation15 + $0x738] sm:$0xff]
    %v1790 = vld [vmem:[#allocation15 + $0x7a0] sm:$0xff]
    %v1791 = vld [vmem:[#allocation15 + $0x7a8] sm:$0xff]
    %v1792 = vld [vmem:[#allocation15 + $0x7b0] sm:$0xff]
    %v1793 = vld [vmem:[#allocation15 + $0x7b8] sm:$0xff]
    %v1794 = vld [vmem:[%s9 + $0x4] sm:$0xf]
    %v1796 = vperm.slane %v1794, 0
    %v1797 = vperm.slane %v1794, 1
    %v1798 = vperm.slane %v1794, 2
    %v1799 = vperm.slane %v1794, 3
    %1804 = vmatpush.msra.mxu0 %v1790
    %1805 = vmatpush.msra.mxu0 %v1786
    %1806 = vmatpush.msra.mxu0 %v1782
    %1807 = vmatpush.msra.mxu0 %v1778
    %1808 = vmatpush.msra.mxu0 %v1774
    %1809 = vmatpush.msra.mxu0 %v1770
    %1810 = vmatpush.msra.mxu0 %v1766
    %1811 = vmatpush.msra.mxu0 %v1762
    %1812 = vmatpush.msra.mxu0 %v1758
    %1813 = vmatpush.msra.mxu0 %v1754
    %1814 = vmatpush.msra.mxu0 %v1750
    %1815 = vmatpush.msra.mxu0 %v1746
    %1816 = vmatpush.msra.mxu0 %v1742
    %1817 = vmatpush.msra.mxu0 %v1738
    %1818 = vmatpush.msra.mxu0 %v1734
    %1819 = vmatpush.msra.mxu0 %v1730
    %1820 = vmatmul.f32.gmra.mxu0 %v1490
    %v1821 = vpop.f32.mrf.mxu0
    %v1822 = vadd.f32 %v1796, %v1821
    %1823 = vmatmul.f32.gmra.mxu0 %v1491
    %v1824 = vpop.f32.mrf.mxu0
    %v1825 = vadd.f32 %v1796, %v1824
    %1826 = vdwg.mxu0
    %1827 = vmatpush.msra.mxu0 %v1791
    %1828 = vmatpush.msra.mxu0 %v1787
    %1829 = vmatpush.msra.mxu0 %v1783
    %1830 = vmatpush.msra.mxu0 %v1779
    %1831 = vmatpush.msra.mxu0 %v1775
    %1832 = vmatpush.msra.mxu0 %v1771
    %1833 = vmatpush.msra.mxu0 %v1767
    %1834 = vmatpush.msra.mxu0 %v1763
    %1835 = vmatpush.msra.mxu0 %v1759
    %1836 = vmatpush.msra.mxu0 %v1755
    %1837 = vmatpush.msra.mxu0 %v1751
    %1838 = vmatpush.msra.mxu0 %v1747
    %1839 = vmatpush.msra.mxu0 %v1743
    %1840 = vmatpush.msra.mxu0 %v1739
    %1841 = vmatpush.msra.mxu0 %v1735
    %1842 = vmatpush.msra.mxu0 %v1731
    %1843 = vmatmul.f32.gmra.mxu0 %v1490
    %v1844 = vpop.f32.mrf.mxu0
    %v1845 = vadd.f32 %v1797, %v1844
    %1846 = vmatmul.f32.gmra.mxu0 %v1491
    %v1847 = vpop.f32.mrf.mxu0
    %v1848 = vadd.f32 %v1797, %v1847
    %1849 = vdwg.mxu0
    %1850 = vmatpush.msra.mxu0 %v1792
    %1851 = vmatpush.msra.mxu0 %v1788
    %1852 = vmatpush.msra.mxu0 %v1784
    %1853 = vmatpush.msra.mxu0 %v1780
    %1854 = vmatpush.msra.mxu0 %v1776
    %1855 = vmatpush.msra.mxu0 %v1772
    %1856 = vmatpush.msra.mxu0 %v1768
    %1857 = vmatpush.msra.mxu0 %v1764
    %1858 = vmatpush.msra.mxu0 %v1760
    %1859 = vmatpush.msra.mxu0 %v1756
    %1860 = vmatpush.msra.mxu0 %v1752
    %1861 = vmatpush.msra.mxu0 %v1748
    %1862 = vmatpush.msra.mxu0 %v1744
    %1863 = vmatpush.msra.mxu0 %v1740
    %1864 = vmatpush.msra.mxu0 %v1736
    %1865 = vmatpush.msra.mxu0 %v1732
    %1866 = vmatmul.f32.gmra.mxu0 %v1490
    %v1867 = vpop.f32.mrf.mxu0
    %v1868 = vadd.f32 %v1798, %v1867
    %1869 = vmatmul.f32.gmra.mxu0 %v1491
    %v1870 = vpop.f32.mrf.mxu0
    %v1871 = vadd.f32 %v1798, %v1870
    %1872 = vdwg.mxu0
    %1873 = vmatpush.msra.mxu0 %v1793
    %1874 = vmatpush.msra.mxu0 %v1789
    %1875 = vmatpush.msra.mxu0 %v1785
    %1876 = vmatpush.msra.mxu0 %v1781
    %1877 = vmatpush.msra.mxu0 %v1777
    %1878 = vmatpush.msra.mxu0 %v1773
    %1879 = vmatpush.msra.mxu0 %v1769
    %1880 = vmatpush.msra.mxu0 %v1765
    %1881 = vmatpush.msra.mxu0 %v1761
    %1882 = vmatpush.msra.mxu0 %v1757
    %1883 = vmatpush.msra.mxu0 %v1753
    %1884 = vmatpush.msra.mxu0 %v1749
    %1885 = vmatpush.msra.mxu0 %v1745
    %1886 = vmatpush.msra.mxu0 %v1741
    %1887 = vmatpush.msra.mxu0 %v1737
    %1888 = vmatpush.msra.mxu0 %v1733
    %1889 = vmatmul.f32.gmra.mxu0 %v1490
    %v1890 = vpop.f32.mrf.mxu0
    %v1891 = vadd.f32 %v1799, %v1890
    %1892 = vmatmul.f32.gmra.mxu0 %v1491
    %v1893 = vpop.f32.mrf.mxu0
    %v1894 = vadd.f32 %v1799, %v1893
    %1895 = vdwg.mxu0
    %v1896 = vmax.f32 %v1822, 0.0
    %v1897 = vmax.f32 %v1845, 0.0
    %v1898 = vmax.f32 %v1868, 0.0
    %v1899 = vmax.f32 %v1891, 0.0
    %v1900 = vmax.f32 %v1825, 0.0
    %v1901 = vmax.f32 %v1848, 0.0
    %v1902 = vmax.f32 %v1871, 0.0
    %v1903 = vmax.f32 %v1894, 0.0
    %v1904 = vld [vmem:[#allocation16 + $0x200] sm:$0xff]
    %v1905 = vld [vmem:[#allocation16 + $0x208] sm:$0xff]
    %v1906 = vld [vmem:[#allocation16 + $0x210] sm:$0xff]
    %v1907 = vld [vmem:[#allocation16 + $0x218] sm:$0xff]
    %v1908 = vld [vmem:[#allocation16 + $0x220] sm:$0xff]
    %v1909 = vld [vmem:[#allocation16 + $0x228] sm:$0xff]
    %v1910 = vld [vmem:[#allocation16 + $0x230] sm:$0xff]
    %v1911 = vld [vmem:[#allocation16 + $0x238] sm:$0xff]
    %v1912 = vld [vmem:[#allocation16 + $0x240] sm:$0xff]
    %v1913 = vld [vmem:[#allocation16 + $0x248] sm:$0xff]
    %v1914 = vld [vmem:[#allocation16 + $0x250] sm:$0xff]
    %v1915 = vld [vmem:[#allocation16 + $0x258] sm:$0xff]
    %v1916 = vld [vmem:[#allocation16 + $0x260] sm:$0xff]
    %v1917 = vld [vmem:[#allocation16 + $0x268] sm:$0xff]
    %v1918 = vld [vmem:[#allocation16 + $0x270] sm:$0xff]
    %v1919 = vld [vmem:[#allocation16 + $0x278] sm:$0xff]
    %v1920 = vld [vmem:[#allocation16 + $0x280] sm:$0xff]
    %v1921 = vld [vmem:[#allocation16 + $0x288] sm:$0xff]
    %v1922 = vld [vmem:[#allocation16 + $0x290] sm:$0xff]
    %v1923 = vld [vmem:[#allocation16 + $0x298] sm:$0xff]
    %v1924 = vld [vmem:[#allocation16 + $0x2a0] sm:$0xff]
    %v1925 = vld [vmem:[#allocation16 + $0x2a8] sm:$0xff]
    %v1926 = vld [vmem:[#allocation16 + $0x2b0] sm:$0xff]
    %v1927 = vld [vmem:[#allocation16 + $0x2b8] sm:$0xff]
    %v1928 = vld [vmem:[#allocation16 + $0x2c0] sm:$0xff]
    %v1929 = vld [vmem:[#allocation16 + $0x2c8] sm:$0xff]
    %v1930 = vld [vmem:[#allocation16 + $0x2d0] sm:$0xff]
    %v1931 = vld [vmem:[#allocation16 + $0x2d8] sm:$0xff]
    %v1932 = vld [vmem:[#allocation16 + $0x2e0] sm:$0xff]
    %v1933 = vld [vmem:[#allocation16 + $0x2e8] sm:$0xff]
    %v1934 = vld [vmem:[#allocation16 + $0x2f0] sm:$0xff]
    %v1935 = vld [vmem:[#allocation16 + $0x2f8] sm:$0xff]
    %v1936 = vld [vmem:[#allocation16 + $0x300] sm:$0xff]
    %v1937 = vld [vmem:[#allocation16 + $0x308] sm:$0xff]
    %v1938 = vld [vmem:[#allocation16 + $0x310] sm:$0xff]
    %v1939 = vld [vmem:[#allocation16 + $0x318] sm:$0xff]
    %v1940 = vld [vmem:[#allocation16 + $0x320] sm:$0xff]
    %v1941 = vld [vmem:[#allocation16 + $0x328] sm:$0xff]
    %v1942 = vld [vmem:[#allocation16 + $0x330] sm:$0xff]
    %v1943 = vld [vmem:[#allocation16 + $0x338] sm:$0xff]
    %v1944 = vld [vmem:[#allocation16 + $0x340] sm:$0xff]
    %v1945 = vld [vmem:[#allocation16 + $0x348] sm:$0xff]
    %v1946 = vld [vmem:[#allocation16 + $0x350] sm:$0xff]
    %v1947 = vld [vmem:[#allocation16 + $0x358] sm:$0xff]
    %v1948 = vld [vmem:[#allocation16 + $0x360] sm:$0xff]
    %v1949 = vld [vmem:[#allocation16 + $0x368] sm:$0xff]
    %v1950 = vld [vmem:[#allocation16 + $0x370] sm:$0xff]
    %v1951 = vld [vmem:[#allocation16 + $0x378] sm:$0xff]
    %v1952 = vld [vmem:[#allocation16 + $0x380] sm:$0xff]
    %v1953 = vld [vmem:[#allocation16 + $0x388] sm:$0xff]
    %v1954 = vld [vmem:[#allocation16 + $0x390] sm:$0xff]
    %v1955 = vld [vmem:[#allocation16 + $0x398] sm:$0xff]
    %v1956 = vld [vmem:[#allocation16 + $0x3a0] sm:$0xff]
    %v1957 = vld [vmem:[#allocation16 + $0x3a8] sm:$0xff]
    %v1958 = vld [vmem:[#allocation16 + $0x3b0] sm:$0xff]
    %v1959 = vld [vmem:[#allocation16 + $0x3b8] sm:$0xff]
    %v1960 = vld [vmem:[#allocation16 + $0x3c0] sm:$0xff]
    %v1961 = vld [vmem:[#allocation16 + $0x3c8] sm:$0xff]
    %v1962 = vld [vmem:[#allocation16 + $0x3d0] sm:$0xff]
    %v1963 = vld [vmem:[#allocation16 + $0x3d8] sm:$0xff]
    %v1964 = vld [vmem:[#allocation16 + $0x3e0] sm:$0xff]
    %v1965 = vld [vmem:[#allocation16 + $0x3e8] sm:$0xff]
    %v1966 = vld [vmem:[#allocation16 + $0x3f0] sm:$0xff]
    %v1967 = vld [vmem:[#allocation16 + $0x3f8] sm:$0xff]
    %1968 = vmatpush.msra.mxu0 %v1919
    %1969 = vmatpush.msra.mxu0 %v1918
    %1970 = vmatpush.msra.mxu0 %v1917
    %1971 = vmatpush.msra.mxu0 %v1916
    %1972 = vmatpush.msra.mxu0 %v1915
    %1973 = vmatpush.msra.mxu0 %v1914
    %1974 = vmatpush.msra.mxu0 %v1913
    %1975 = vmatpush.msra.mxu0 %v1912
    %1976 = vmatpush.msra.mxu0 %v1911
    %1977 = vmatpush.msra.mxu0 %v1910
    %1978 = vmatpush.msra.mxu0 %v1909
    %1979 = vmatpush.msra.mxu0 %v1908
    %1980 = vmatpush.msra.mxu0 %v1907
    %1981 = vmatpush.msra.mxu0 %v1906
    %1982 = vmatpush.msra.mxu0 %v1905
    %1983 = vmatpush.msra.mxu0 %v1904
    %1984 = vmatmul.f32.gmra.mxu0 %v1896
    %v1985 = vpop.f32.mrf.mxu0
    %v1986 = vadd.f32 0.0, %v1985
    %1987 = vmatmul.f32.gmra.mxu0 %v1900
    %v1988 = vpop.f32.mrf.mxu0
    %v1989 = vadd.f32 0.0, %v1988
    %1990 = vdwg.mxu0
    %1991 = vmatpush.msra.mxu0 %v1935
    %1992 = vmatpush.msra.mxu0 %v1934
    %1993 = vmatpush.msra.mxu0 %v1933
    %1994 = vmatpush.msra.mxu0 %v1932
    %1995 = vmatpush.msra.mxu0 %v1931
    %1996 = vmatpush.msra.mxu0 %v1930
    %1997 = vmatpush.msra.mxu0 %v1929
    %1998 = vmatpush.msra.mxu0 %v1928
    %1999 = vmatpush.msra.mxu0 %v1927
    %2000 = vmatpush.msra.mxu0 %v1926
    %2001 = vmatpush.msra.mxu0 %v1925
    %2002 = vmatpush.msra.mxu0 %v1924
    %2003 = vmatpush.msra.mxu0 %v1923
    %2004 = vmatpush.msra.mxu0 %v1922
    %2005 = vmatpush.msra.mxu0 %v1921
    %2006 = vmatpush.msra.mxu0 %v1920
    %2007 = vmatmul.f32.gmra.mxu0 %v1897
    %v2008 = vpop.f32.mrf.mxu0
    %v2009 = vadd.f32 %v1986, %v2008
    %2010 = vmatmul.f32.gmra.mxu0 %v1901
    %v2011 = vpop.f32.mrf.mxu0
    %v2012 = vadd.f32 %v1989, %v2011
    %2013 = vdwg.mxu0
    %2014 = vmatpush.msra.mxu0 %v1951
    %2015 = vmatpush.msra.mxu0 %v1950
    %2016 = vmatpush.msra.mxu0 %v1949
    %2017 = vmatpush.msra.mxu0 %v1948
    %2018 = vmatpush.msra.mxu0 %v1947
    %2019 = vmatpush.msra.mxu0 %v1946
    %2020 = vmatpush.msra.mxu0 %v1945
    %2021 = vmatpush.msra.mxu0 %v1944
    %2022 = vmatpush.msra.mxu0 %v1943
    %2023 = vmatpush.msra.mxu0 %v1942
    %2024 = vmatpush.msra.mxu0 %v1941
    %2025 = vmatpush.msra.mxu0 %v1940
    %2026 = vmatpush.msra.mxu0 %v1939
    %2027 = vmatpush.msra.mxu0 %v1938
    %2028 = vmatpush.msra.mxu0 %v1937
    %2029 = vmatpush.msra.mxu0 %v1936
    %2030 = vmatmul.f32.gmra.mxu0 %v1898
    %v2031 = vpop.f32.mrf.mxu0
    %v2032 = vadd.f32 %v2009, %v2031
    %2033 = vmatmul.f32.gmra.mxu0 %v1902
    %v2034 = vpop.f32.mrf.mxu0
    %v2035 = vadd.f32 %v2012, %v2034
    %2036 = vdwg.mxu0
    %2037 = vmatpush.msra.mxu0 %v1967
    %2038 = vmatpush.msra.mxu0 %v1966
    %2039 = vmatpush.msra.mxu0 %v1965
    %2040 = vmatpush.msra.mxu0 %v1964
    %2041 = vmatpush.msra.mxu0 %v1963
    %2042 = vmatpush.msra.mxu0 %v1962
    %2043 = vmatpush.msra.mxu0 %v1961
    %2044 = vmatpush.msra.mxu0 %v1960
    %2045 = vmatpush.msra.mxu0 %v1959
    %2046 = vmatpush.msra.mxu0 %v1958
    %2047 = vmatpush.msra.mxu0 %v1957
    %2048 = vmatpush.msra.mxu0 %v1956
    %2049 = vmatpush.msra.mxu0 %v1955
    %2050 = vmatpush.msra.mxu0 %v1954
    %2051 = vmatpush.msra.mxu0 %v1953
    %2052 = vmatpush.msra.mxu0 %v1952
    %2053 = vmatmul.f32.gmra.mxu0 %v1899
    %v2054 = vpop.f32.mrf.mxu0
    %v2055 = vadd.f32 %v2032, %v2054
    %2056 = vmatmul.f32.gmra.mxu0 %v1903
    %v2057 = vpop.f32.mrf.mxu0
    %v2058 = vadd.f32 %v2035, %v2057
    %2059 = vdwg.mxu0
    %2060 = vmatpush.msra.mxu0 %v1681
    %2061 = vmatpush.msra.mxu0 %v1680
    %2062 = vmatpush.msra.mxu0 %v1679
    %2063 = vmatpush.msra.mxu0 %v1678
    %2064 = vmatpush.msra.mxu0 %v1677
    %2065 = vmatpush.msra.mxu0 %v1676
    %2066 = vmatpush.msra.mxu0 %v1675
    %2067 = vmatpush.msra.mxu0 %v1674
    %2068 = vmatpush.msra.mxu0 %v1673
    %2069 = vmatpush.msra.mxu0 %v1672
    %2070 = vmatpush.msra.mxu0 %v1671
    %2071 = vmatpush.msra.mxu0 %v1670
    %2072 = vmatpush.msra.mxu0 %v1669
    %2073 = vmatpush.msra.mxu0 %v1668
    %2074 = vmatpush.msra.mxu0 %v1667
    %2075 = vmatpush.msra.mxu0 %v1666
    %2076 = vmatmul.f32.gmra.mxu0 %v1658
    %v2077 = vpop.f32.mrf.mxu0
    %v2078 = vadd.f32 %v2055, %v2077
    %2079 = vmatmul.f32.gmra.mxu0 %v1662
    %v2080 = vpop.f32.mrf.mxu0
    %v2081 = vadd.f32 %v2058, %v2080
    %2082 = vdwg.mxu0
    %2083 = vmatpush.msra.mxu0 %v1697
    %2084 = vmatpush.msra.mxu0 %v1696
    %2085 = vmatpush.msra.mxu0 %v1695
    %2086 = vmatpush.msra.mxu0 %v1694
    %2087 = vmatpush.msra.mxu0 %v1693
    %2088 = vmatpush.msra.mxu0 %v1692
    %2089 = vmatpush.msra.mxu0 %v1691
    %2090 = vmatpush.msra.mxu0 %v1690
    %2091 = vmatpush.msra.mxu0 %v1689
    %2092 = vmatpush.msra.mxu0 %v1688
    %2093 = vmatpush.msra.mxu0 %v1687
    %2094 = vmatpush.msra.mxu0 %v1686
    %2095 = vmatpush.msra.mxu0 %v1685
    %2096 = vmatpush.msra.mxu0 %v1684
    %2097 = vmatpush.msra.mxu0 %v1683
    %2098 = vmatpush.msra.mxu0 %v1682
    %2099 = vmatmul.f32.gmra.mxu0 %v1659
    %v2100 = vpop.f32.mrf.mxu0
    %v2101 = vadd.f32 %v2078, %v2100
    %2102 = vmatmul.f32.gmra.mxu0 %v1663
    %v2103 = vpop.f32.mrf.mxu0
    %v2104 = vadd.f32 %v2081, %v2103
    %2105 = vdwg.mxu0
    %2106 = vmatpush.msra.mxu0 %v1713
    %2107 = vmatpush.msra.mxu0 %v1712
    %2108 = vmatpush.msra.mxu0 %v1711
    %2109 = vmatpush.msra.mxu0 %v1710
    %2110 = vmatpush.msra.mxu0 %v1709
    %2111 = vmatpush.msra.mxu0 %v1708
    %2112 = vmatpush.msra.mxu0 %v1707
    %2113 = vmatpush.msra.mxu0 %v1706
    %2114 = vmatpush.msra.mxu0 %v1705
    %2115 = vmatpush.msra.mxu0 %v1704
    %2116 = vmatpush.msra.mxu0 %v1703
    %2117 = vmatpush.msra.mxu0 %v1702
    %2118 = vmatpush.msra.mxu0 %v1701
    %2119 = vmatpush.msra.mxu0 %v1700
    %2120 = vmatpush.msra.mxu0 %v1699
    %2121 = vmatpush.msra.mxu0 %v1698
    %2122 = vmatmul.f32.gmra.mxu0 %v1660
    %v2123 = vpop.f32.mrf.mxu0
    %v2124 = vadd.f32 %v2101, %v2123
    %2125 = vmatmul.f32.gmra.mxu0 %v1664
    %v2126 = vpop.f32.mrf.mxu0
    %v2127 = vadd.f32 %v2104, %v2126
    %2128 = vdwg.mxu0
    %2129 = vmatpush.msra.mxu0 %v1729
    %2130 = vmatpush.msra.mxu0 %v1728
    %2131 = vmatpush.msra.mxu0 %v1727
    %2132 = vmatpush.msra.mxu0 %v1726
    %2133 = vmatpush.msra.mxu0 %v1725
    %2134 = vmatpush.msra.mxu0 %v1724
    %2135 = vmatpush.msra.mxu0 %v1723
    %2136 = vmatpush.msra.mxu0 %v1722
    %2137 = vmatpush.msra.mxu0 %v1721
    %2138 = vmatpush.msra.mxu0 %v1720
    %2139 = vmatpush.msra.mxu0 %v1719
    %2140 = vmatpush.msra.mxu0 %v1718
    %2141 = vmatpush.msra.mxu0 %v1717
    %2142 = vmatpush.msra.mxu0 %v1716
    %2143 = vmatpush.msra.mxu0 %v1715
    %2144 = vmatpush.msra.mxu0 %v1714
    %2145 = vmatmul.f32.gmra.mxu0 %v1661
    %v2146 = vpop.f32.mrf.mxu0
    %v2147 = vadd.f32 %v2124, %v2146
    %2148 = vmatmul.f32.gmra.mxu0 %v1665
    %v2149 = vpop.f32.mrf.mxu0
    %v2150 = vadd.f32 %v2127, %v2149
    %2151 = vdwg.mxu0
    %v2152 = vld [vmem:[#allocation15 + $0x40] sm:$0xff]
    %v2153 = vld [vmem:[#allocation15 + $0x48] sm:$0xff]
    %v2154 = vld [vmem:[#allocation15 + $0x50] sm:$0xff]
    %v2155 = vld [vmem:[#allocation15 + $0x58] sm:$0xff]
    %v2156 = vld [vmem:[#allocation15 + $0xc0] sm:$0xff]
    %v2157 = vld [vmem:[#allocation15 + $0xc8] sm:$0xff]
    %v2158 = vld [vmem:[#allocation15 + $0xd0] sm:$0xff]
    %v2159 = vld [vmem:[#allocation15 + $0xd8] sm:$0xff]
    %v2160 = vld [vmem:[#allocation15 + $0x140] sm:$0xff]
    %v2161 = vld [vmem:[#allocation15 + $0x148] sm:$0xff]
    %v2162 = vld [vmem:[#allocation15 + $0x150] sm:$0xff]
    %v2163 = vld [vmem:[#allocation15 + $0x158] sm:$0xff]
    %v2164 = vld [vmem:[#allocation15 + $0x1c0] sm:$0xff]
    %v2165 = vld [vmem:[#allocation15 + $0x1c8] sm:$0xff]
    %v2166 = vld [vmem:[#allocation15 + $0x1d0] sm:$0xff]
    %v2167 = vld [vmem:[#allocation15 + $0x1d8] sm:$0xff]
    %v2168 = vld [vmem:[#allocation15 + $0x240] sm:$0xff]
    %v2169 = vld [vmem:[#allocation15 + $0x248] sm:$0xff]
    %v2170 = vld [vmem:[#allocation15 + $0x250] sm:$0xff]
    %v2171 = vld [vmem:[#allocation15 + $0x258] sm:$0xff]
    %v2172 = vld [vmem:[#allocation15 + $0x2c0] sm:$0xff]
    %v2173 = vld [vmem:[#allocation15 + $0x2c8] sm:$0xff]
    %v2174 = vld [vmem:[#allocation15 + $0x2d0] sm:$0xff]
    %v2175 = vld [vmem:[#allocation15 + $0x2d8] sm:$0xff]
    %v2176 = vld [vmem:[#allocation15 + $0x340] sm:$0xff]
    %v2177 = vld [vmem:[#allocation15 + $0x348] sm:$0xff]
    %v2178 = vld [vmem:[#allocation15 + $0x350] sm:$0xff]
    %v2179 = vld [vmem:[#allocation15 + $0x358] sm:$0xff]
    %v2180 = vld [vmem:[#allocation15 + $0x3c0] sm:$0xff]
    %v2181 = vld [vmem:[#allocation15 + $0x3c8] sm:$0xff]
    %v2182 = vld [vmem:[#allocation15 + $0x3d0] sm:$0xff]
    %v2183 = vld [vmem:[#allocation15 + $0x3d8] sm:$0xff]
    %v2184 = vld [vmem:[#allocation15 + $0x440] sm:$0xff]
    %v2185 = vld [vmem:[#allocation15 + $0x448] sm:$0xff]
    %v2186 = vld [vmem:[#allocation15 + $0x450] sm:$0xff]
    %v2187 = vld [vmem:[#allocation15 + $0x458] sm:$0xff]
    %v2188 = vld [vmem:[#allocation15 + $0x4c0] sm:$0xff]
    %v2189 = vld [vmem:[#allocation15 + $0x4c8] sm:$0xff]
    %v2190 = vld [vmem:[#allocation15 + $0x4d0] sm:$0xff]
    %v2191 = vld [vmem:[#allocation15 + $0x4d8] sm:$0xff]
    %v2192 = vld [vmem:[#allocation15 + $0x540] sm:$0xff]
    %v2193 = vld [vmem:[#allocation15 + $0x548] sm:$0xff]
    %v2194 = vld [vmem:[#allocation15 + $0x550] sm:$0xff]
    %v2195 = vld [vmem:[#allocation15 + $0x558] sm:$0xff]
    %v2196 = vld [vmem:[#allocation15 + $0x5c0] sm:$0xff]
    %v2197 = vld [vmem:[#allocation15 + $0x5c8] sm:$0xff]
    %v2198 = vld [vmem:[#allocation15 + $0x5d0] sm:$0xff]
    %v2199 = vld [vmem:[#allocation15 + $0x5d8] sm:$0xff]
    %v2200 = vld [vmem:[#allocation15 + $0x640] sm:$0xff]
    %v2201 = vld [vmem:[#allocation15 + $0x648] sm:$0xff]
    %v2202 = vld [vmem:[#allocation15 + $0x650] sm:$0xff]
    %v2203 = vld [vmem:[#allocation15 + $0x658] sm:$0xff]
    %v2204 = vld [vmem:[#allocation15 + $0x6c0] sm:$0xff]
    %v2205 = vld [vmem:[#allocation15 + $0x6c8] sm:$0xff]
    %v2206 = vld [vmem:[#allocation15 + $0x6d0] sm:$0xff]
    %v2207 = vld [vmem:[#allocation15 + $0x6d8] sm:$0xff]
    %v2208 = vld [vmem:[#allocation15 + $0x740] sm:$0xff]
    %v2209 = vld [vmem:[#allocation15 + $0x748] sm:$0xff]
    %v2210 = vld [vmem:[#allocation15 + $0x750] sm:$0xff]
    %v2211 = vld [vmem:[#allocation15 + $0x758] sm:$0xff]
    %v2212 = vld [vmem:[#allocation15 + $0x7c0] sm:$0xff]
    %v2213 = vld [vmem:[#allocation15 + $0x7c8] sm:$0xff]
    %v2214 = vld [vmem:[#allocation15 + $0x7d0] sm:$0xff]
    %v2215 = vld [vmem:[#allocation15 + $0x7d8] sm:$0xff]
    %v2216 = vld [vmem:[%s9 + $0x8] sm:$0xf]
    %v2218 = vperm.slane %v2216, 0
    %v2219 = vperm.slane %v2216, 1
    %v2220 = vperm.slane %v2216, 2
    %v2221 = vperm.slane %v2216, 3
    %2226 = vmatpush.msra.mxu0 %v2212
    %2227 = vmatpush.msra.mxu0 %v2208
    %2228 = vmatpush.msra.mxu0 %v2204
    %2229 = vmatpush.msra.mxu0 %v2200
    %2230 = vmatpush.msra.mxu0 %v2196
    %2231 = vmatpush.msra.mxu0 %v2192
    %2232 = vmatpush.msra.mxu0 %v2188
    %2233 = vmatpush.msra.mxu0 %v2184
    %2234 = vmatpush.msra.mxu0 %v2180
    %2235 = vmatpush.msra.mxu0 %v2176
    %2236 = vmatpush.msra.mxu0 %v2172
    %2237 = vmatpush.msra.mxu0 %v2168
    %2238 = vmatpush.msra.mxu0 %v2164
    %2239 = vmatpush.msra.mxu0 %v2160
    %2240 = vmatpush.msra.mxu0 %v2156
    %2241 = vmatpush.msra.mxu0 %v2152
    %2242 = vmatmul.f32.gmra.mxu0 %v1490
    %v2243 = vpop.f32.mrf.mxu0
    %v2244 = vadd.f32 %v2218, %v2243
    %2245 = vmatmul.f32.gmra.mxu0 %v1491
    %v2246 = vpop.f32.mrf.mxu0
    %v2247 = vadd.f32 %v2218, %v2246
    %2248 = vdwg.mxu0
    %2249 = vmatpush.msra.mxu0 %v2213
    %2250 = vmatpush.msra.mxu0 %v2209
    %2251 = vmatpush.msra.mxu0 %v2205
    %2252 = vmatpush.msra.mxu0 %v2201
    %2253 = vmatpush.msra.mxu0 %v2197
    %2254 = vmatpush.msra.mxu0 %v2193
    %2255 = vmatpush.msra.mxu0 %v2189
    %2256 = vmatpush.msra.mxu0 %v2185
    %2257 = vmatpush.msra.mxu0 %v2181
    %2258 = vmatpush.msra.mxu0 %v2177
    %2259 = vmatpush.msra.mxu0 %v2173
    %2260 = vmatpush.msra.mxu0 %v2169
    %2261 = vmatpush.msra.mxu0 %v2165
    %2262 = vmatpush.msra.mxu0 %v2161
    %2263 = vmatpush.msra.mxu0 %v2157
    %2264 = vmatpush.msra.mxu0 %v2153
    %2265 = vmatmul.f32.gmra.mxu0 %v1490
    %v2266 = vpop.f32.mrf.mxu0
    %v2267 = vadd.f32 %v2219, %v2266
    %2268 = vmatmul.f32.gmra.mxu0 %v1491
    %v2269 = vpop.f32.mrf.mxu0
    %v2270 = vadd.f32 %v2219, %v2269
    %2271 = vdwg.mxu0
    %2272 = vmatpush.msra.mxu0 %v2214
    %2273 = vmatpush.msra.mxu0 %v2210
    %2274 = vmatpush.msra.mxu0 %v2206
    %2275 = vmatpush.msra.mxu0 %v2202
    %2276 = vmatpush.msra.mxu0 %v2198
    %2277 = vmatpush.msra.mxu0 %v2194
    %2278 = vmatpush.msra.mxu0 %v2190
    %2279 = vmatpush.msra.mxu0 %v2186
    %2280 = vmatpush.msra.mxu0 %v2182
    %2281 = vmatpush.msra.mxu0 %v2178
    %2282 = vmatpush.msra.mxu0 %v2174
    %2283 = vmatpush.msra.mxu0 %v2170
    %2284 = vmatpush.msra.mxu0 %v2166
    %2285 = vmatpush.msra.mxu0 %v2162
    %2286 = vmatpush.msra.mxu0 %v2158
    %2287 = vmatpush.msra.mxu0 %v2154
    %2288 = vmatmul.f32.gmra.mxu0 %v1490
    %v2289 = vpop.f32.mrf.mxu0
    %v2290 = vadd.f32 %v2220, %v2289
    %2291 = vmatmul.f32.gmra.mxu0 %v1491
    %v2292 = vpop.f32.mrf.mxu0
    %v2293 = vadd.f32 %v2220, %v2292
    %2294 = vdwg.mxu0
    %2295 = vmatpush.msra.mxu0 %v2215
    %2296 = vmatpush.msra.mxu0 %v2211
    %2297 = vmatpush.msra.mxu0 %v2207
    %2298 = vmatpush.msra.mxu0 %v2203
    %2299 = vmatpush.msra.mxu0 %v2199
    %2300 = vmatpush.msra.mxu0 %v2195
    %2301 = vmatpush.msra.mxu0 %v2191
    %2302 = vmatpush.msra.mxu0 %v2187
    %2303 = vmatpush.msra.mxu0 %v2183
    %2304 = vmatpush.msra.mxu0 %v2179
    %2305 = vmatpush.msra.mxu0 %v2175
    %2306 = vmatpush.msra.mxu0 %v2171
    %2307 = vmatpush.msra.mxu0 %v2167
    %2308 = vmatpush.msra.mxu0 %v2163
    %2309 = vmatpush.msra.mxu0 %v2159
    %2310 = vmatpush.msra.mxu0 %v2155
    %2311 = vmatmul.f32.gmra.mxu0 %v1490
    %v2312 = vpop.f32.mrf.mxu0
    %v2313 = vadd.f32 %v2221, %v2312
    %2314 = vmatmul.f32.gmra.mxu0 %v1491
    %v2315 = vpop.f32.mrf.mxu0
    %v2316 = vadd.f32 %v2221, %v2315
    %2317 = vdwg.mxu0
    %v2318 = vmax.f32 %v2244, 0.0
    %v2319 = vmax.f32 %v2267, 0.0
    %v2320 = vmax.f32 %v2290, 0.0
    %v2321 = vmax.f32 %v2313, 0.0
    %v2322 = vmax.f32 %v2247, 0.0
    %v2323 = vmax.f32 %v2270, 0.0
    %v2324 = vmax.f32 %v2293, 0.0
    %v2325 = vmax.f32 %v2316, 0.0
    %v2326 = vld [vmem:[#allocation16 + $0x400] sm:$0xff]
    %v2327 = vld [vmem:[#allocation16 + $0x408] sm:$0xff]
    %v2328 = vld [vmem:[#allocation16 + $0x410] sm:$0xff]
    %v2329 = vld [vmem:[#allocation16 + $0x418] sm:$0xff]
    %v2330 = vld [vmem:[#allocation16 + $0x420] sm:$0xff]
    %v2331 = vld [vmem:[#allocation16 + $0x428] sm:$0xff]
    %v2332 = vld [vmem:[#allocation16 + $0x430] sm:$0xff]
    %v2333 = vld [vmem:[#allocation16 + $0x438] sm:$0xff]
    %v2334 = vld [vmem:[#allocation16 + $0x440] sm:$0xff]
    %v2335 = vld [vmem:[#allocation16 + $0x448] sm:$0xff]
    %v2336 = vld [vmem:[#allocation16 + $0x450] sm:$0xff]
    %v2337 = vld [vmem:[#allocation16 + $0x458] sm:$0xff]
    %v2338 = vld [vmem:[#allocation16 + $0x460] sm:$0xff]
    %v2339 = vld [vmem:[#allocation16 + $0x468] sm:$0xff]
    %v2340 = vld [vmem:[#allocation16 + $0x470] sm:$0xff]
    %v2341 = vld [vmem:[#allocation16 + $0x478] sm:$0xff]
    %v2342 = vld [vmem:[#allocation16 + $0x480] sm:$0xff]
    %v2343 = vld [vmem:[#allocation16 + $0x488] sm:$0xff]
    %v2344 = vld [vmem:[#allocation16 + $0x490] sm:$0xff]
    %v2345 = vld [vmem:[#allocation16 + $0x498] sm:$0xff]
    %v2346 = vld [vmem:[#allocation16 + $0x4a0] sm:$0xff]
    %v2347 = vld [vmem:[#allocation16 + $0x4a8] sm:$0xff]
    %v2348 = vld [vmem:[#allocation16 + $0x4b0] sm:$0xff]
    %v2349 = vld [vmem:[#allocation16 + $0x4b8] sm:$0xff]
    %v2350 = vld [vmem:[#allocation16 + $0x4c0] sm:$0xff]
    %v2351 = vld [vmem:[#allocation16 + $0x4c8] sm:$0xff]
    %v2352 = vld [vmem:[#allocation16 + $0x4d0] sm:$0xff]
    %v2353 = vld [vmem:[#allocation16 + $0x4d8] sm:$0xff]
    %v2354 = vld [vmem:[#allocation16 + $0x4e0] sm:$0xff]
    %v2355 = vld [vmem:[#allocation16 + $0x4e8] sm:$0xff]
    %v2356 = vld [vmem:[#allocation16 + $0x4f0] sm:$0xff]
    %v2357 = vld [vmem:[#allocation16 + $0x4f8] sm:$0xff]
    %v2358 = vld [vmem:[#allocation16 + $0x500] sm:$0xff]
    %v2359 = vld [vmem:[#allocation16 + $0x508] sm:$0xff]
    %v2360 = vld [vmem:[#allocation16 + $0x510] sm:$0xff]
    %v2361 = vld [vmem:[#allocation16 + $0x518] sm:$0xff]
    %v2362 = vld [vmem:[#allocation16 + $0x520] sm:$0xff]
    %v2363 = vld [vmem:[#allocation16 + $0x528] sm:$0xff]
    %v2364 = vld [vmem:[#allocation16 + $0x530] sm:$0xff]
    %v2365 = vld [vmem:[#allocation16 + $0x538] sm:$0xff]
    %v2366 = vld [vmem:[#allocation16 + $0x540] sm:$0xff]
    %v2367 = vld [vmem:[#allocation16 + $0x548] sm:$0xff]
    %v2368 = vld [vmem:[#allocation16 + $0x550] sm:$0xff]
    %v2369 = vld [vmem:[#allocation16 + $0x558] sm:$0xff]
    %v2370 = vld [vmem:[#allocation16 + $0x560] sm:$0xff]
    %v2371 = vld [vmem:[#allocation16 + $0x568] sm:$0xff]
    %v2372 = vld [vmem:[#allocation16 + $0x570] sm:$0xff]
    %v2373 = vld [vmem:[#allocation16 + $0x578] sm:$0xff]
    %v2374 = vld [vmem:[#allocation16 + $0x580] sm:$0xff]
    %v2375 = vld [vmem:[#allocation16 + $0x588] sm:$0xff]
    %v2376 = vld [vmem:[#allocation16 + $0x590] sm:$0xff]
    %v2377 = vld [vmem:[#allocation16 + $0x598] sm:$0xff]
    %v2378 = vld [vmem:[#allocation16 + $0x5a0] sm:$0xff]
    %v2379 = vld [vmem:[#allocation16 + $0x5a8] sm:$0xff]
    %v2380 = vld [vmem:[#allocation16 + $0x5b0] sm:$0xff]
    %v2381 = vld [vmem:[#allocation16 + $0x5b8] sm:$0xff]
    %v2382 = vld [vmem:[#allocation16 + $0x5c0] sm:$0xff]
    %v2383 = vld [vmem:[#allocation16 + $0x5c8] sm:$0xff]
    %v2384 = vld [vmem:[#allocation16 + $0x5d0] sm:$0xff]
    %v2385 = vld [vmem:[#allocation16 + $0x5d8] sm:$0xff]
    %v2386 = vld [vmem:[#allocation16 + $0x5e0] sm:$0xff]
    %v2387 = vld [vmem:[#allocation16 + $0x5e8] sm:$0xff]
    %v2388 = vld [vmem:[#allocation16 + $0x5f0] sm:$0xff]
    %v2389 = vld [vmem:[#allocation16 + $0x5f8] sm:$0xff]
    %2390 = vmatpush.msra.mxu0 %v2341
    %2391 = vmatpush.msra.mxu0 %v2340
    %2392 = vmatpush.msra.mxu0 %v2339
    %2393 = vmatpush.msra.mxu0 %v2338
    %2394 = vmatpush.msra.mxu0 %v2337
    %2395 = vmatpush.msra.mxu0 %v2336
    %2396 = vmatpush.msra.mxu0 %v2335
    %2397 = vmatpush.msra.mxu0 %v2334
    %2398 = vmatpush.msra.mxu0 %v2333
    %2399 = vmatpush.msra.mxu0 %v2332
    %2400 = vmatpush.msra.mxu0 %v2331
    %2401 = vmatpush.msra.mxu0 %v2330
    %2402 = vmatpush.msra.mxu0 %v2329
    %2403 = vmatpush.msra.mxu0 %v2328
    %2404 = vmatpush.msra.mxu0 %v2327
    %2405 = vmatpush.msra.mxu0 %v2326
    %2406 = vmatmul.f32.gmra.mxu0 %v2318
    %v2407 = vpop.f32.mrf.mxu0
    %v2408 = vadd.f32 0.0, %v2407
    %2409 = vmatmul.f32.gmra.mxu0 %v2322
    %v2410 = vpop.f32.mrf.mxu0
    %v2411 = vadd.f32 0.0, %v2410
    %2412 = vdwg.mxu0
    %2413 = vmatpush.msra.mxu0 %v2357
    %2414 = vmatpush.msra.mxu0 %v2356
    %2415 = vmatpush.msra.mxu0 %v2355
    %2416 = vmatpush.msra.mxu0 %v2354
    %2417 = vmatpush.msra.mxu0 %v2353
    %2418 = vmatpush.msra.mxu0 %v2352
    %2419 = vmatpush.msra.mxu0 %v2351
    %2420 = vmatpush.msra.mxu0 %v2350
    %2421 = vmatpush.msra.mxu0 %v2349
    %2422 = vmatpush.msra.mxu0 %v2348
    %2423 = vmatpush.msra.mxu0 %v2347
    %2424 = vmatpush.msra.mxu0 %v2346
    %2425 = vmatpush.msra.mxu0 %v2345
    %2426 = vmatpush.msra.mxu0 %v2344
    %2427 = vmatpush.msra.mxu0 %v2343
    %2428 = vmatpush.msra.mxu0 %v2342
    %2429 = vmatmul.f32.gmra.mxu0 %v2319
    %v2430 = vpop.f32.mrf.mxu0
    %v2431 = vadd.f32 %v2408, %v2430
    %2432 = vmatmul.f32.gmra.mxu0 %v2323
    %v2433 = vpop.f32.mrf.mxu0
    %v2434 = vadd.f32 %v2411, %v2433
    %2435 = vdwg.mxu0
    %2436 = vmatpush.msra.mxu0 %v2373
    %2437 = vmatpush.msra.mxu0 %v2372
    %2438 = vmatpush.msra.mxu0 %v2371
    %2439 = vmatpush.msra.mxu0 %v2370
    %2440 = vmatpush.msra.mxu0 %v2369
    %2441 = vmatpush.msra.mxu0 %v2368
    %2442 = vmatpush.msra.mxu0 %v2367
    %2443 = vmatpush.msra.mxu0 %v2366
    %2444 = vmatpush.msra.mxu0 %v2365
    %2445 = vmatpush.msra.mxu0 %v2364
    %2446 = vmatpush.msra.mxu0 %v2363
    %2447 = vmatpush.msra.mxu0 %v2362
    %2448 = vmatpush.msra.mxu0 %v2361
    %2449 = vmatpush.msra.mxu0 %v2360
    %2450 = vmatpush.msra.mxu0 %v2359
    %2451 = vmatpush.msra.mxu0 %v2358
    %2452 = vmatmul.f32.gmra.mxu0 %v2320
    %v2453 = vpop.f32.mrf.mxu0
    %v2454 = vadd.f32 %v2431, %v2453
    %2455 = vmatmul.f32.gmra.mxu0 %v2324
    %v2456 = vpop.f32.mrf.mxu0
    %v2457 = vadd.f32 %v2434, %v2456
    %2458 = vdwg.mxu0
    %2459 = vmatpush.msra.mxu0 %v2389
    %2460 = vmatpush.msra.mxu0 %v2388
    %2461 = vmatpush.msra.mxu0 %v2387
    %2462 = vmatpush.msra.mxu0 %v2386
    %2463 = vmatpush.msra.mxu0 %v2385
    %2464 = vmatpush.msra.mxu0 %v2384
    %2465 = vmatpush.msra.mxu0 %v2383
    %2466 = vmatpush.msra.mxu0 %v2382
    %2467 = vmatpush.msra.mxu0 %v2381
    %2468 = vmatpush.msra.mxu0 %v2380
    %2469 = vmatpush.msra.mxu0 %v2379
    %2470 = vmatpush.msra.mxu0 %v2378
    %2471 = vmatpush.msra.mxu0 %v2377
    %2472 = vmatpush.msra.mxu0 %v2376
    %2473 = vmatpush.msra.mxu0 %v2375
    %2474 = vmatpush.msra.mxu0 %v2374
    %2475 = vmatmul.f32.gmra.mxu0 %v2321
    %v2476 = vpop.f32.mrf.mxu0
    %v2477 = vadd.f32 %v2454, %v2476
    %2478 = vmatmul.f32.gmra.mxu0 %v2325
    %v2479 = vpop.f32.mrf.mxu0
    %v2480 = vadd.f32 %v2457, %v2479
    %2481 = vdwg.mxu0
    %v2482 = vadd.f32 %v2147, %v2477
    %v2483 = vadd.f32 %v2150, %v2480
    %v2484 = vld [vmem:[#allocation15 + $0x60] sm:$0xff]
    %v2485 = vld [vmem:[#allocation15 + $0x68] sm:$0xff]
    %v2486 = vld [vmem:[#allocation15 + $0x70] sm:$0xff]
    %v2487 = vld [vmem:[#allocation15 + $0x78] sm:$0xff]
    %v2488 = vld [vmem:[#allocation15 + $0xe0] sm:$0xff]
    %v2489 = vld [vmem:[#allocation15 + $0xe8] sm:$0xff]
    %v2490 = vld [vmem:[#allocation15 + $0xf0] sm:$0xff]
    %v2491 = vld [vmem:[#allocation15 + $0xf8] sm:$0xff]
    %v2492 = vld [vmem:[#allocation15 + $0x160] sm:$0xff]
    %v2493 = vld [vmem:[#allocation15 + $0x168] sm:$0xff]
    %v2494 = vld [vmem:[#allocation15 + $0x170] sm:$0xff]
    %v2495 = vld [vmem:[#allocation15 + $0x178] sm:$0xff]
    %v2496 = vld [vmem:[#allocation15 + $0x1e0] sm:$0xff]
    %v2497 = vld [vmem:[#allocation15 + $0x1e8] sm:$0xff]
    %v2498 = vld [vmem:[#allocation15 + $0x1f0] sm:$0xff]
    %v2499 = vld [vmem:[#allocation15 + $0x1f8] sm:$0xff]
    %v2500 = vld [vmem:[#allocation15 + $0x260] sm:$0xff]
    %v2501 = vld [vmem:[#allocation15 + $0x268] sm:$0xff]
    %v2502 = vld [vmem:[#allocation15 + $0x270] sm:$0xff]
    %v2503 = vld [vmem:[#allocation15 + $0x278] sm:$0xff]
    %v2504 = vld [vmem:[#allocation15 + $0x2e0] sm:$0xff]
    %v2505 = vld [vmem:[#allocation15 + $0x2e8] sm:$0xff]
    %v2506 = vld [vmem:[#allocation15 + $0x2f0] sm:$0xff]
    %v2507 = vld [vmem:[#allocation15 + $0x2f8] sm:$0xff]
    %v2508 = vld [vmem:[#allocation15 + $0x360] sm:$0xff]
    %v2509 = vld [vmem:[#allocation15 + $0x368] sm:$0xff]
    %v2510 = vld [vmem:[#allocation15 + $0x370] sm:$0xff]
    %v2511 = vld [vmem:[#allocation15 + $0x378] sm:$0xff]
    %v2512 = vld [vmem:[#allocation15 + $0x3e0] sm:$0xff]
    %v2513 = vld [vmem:[#allocation15 + $0x3e8] sm:$0xff]
    %v2514 = vld [vmem:[#allocation15 + $0x3f0] sm:$0xff]
    %v2515 = vld [vmem:[#allocation15 + $0x3f8] sm:$0xff]
    %v2516 = vld [vmem:[#allocation15 + $0x460] sm:$0xff]
    %v2517 = vld [vmem:[#allocation15 + $0x468] sm:$0xff]
    %v2518 = vld [vmem:[#allocation15 + $0x470] sm:$0xff]
    %v2519 = vld [vmem:[#allocation15 + $0x478] sm:$0xff]
    %v2520 = vld [vmem:[#allocation15 + $0x4e0] sm:$0xff]
    %v2521 = vld [vmem:[#allocation15 + $0x4e8] sm:$0xff]
    %v2522 = vld [vmem:[#allocation15 + $0x4f0] sm:$0xff]
    %v2523 = vld [vmem:[#allocation15 + $0x4f8] sm:$0xff]
    %v2524 = vld [vmem:[#allocation15 + $0x560] sm:$0xff]
    %v2525 = vld [vmem:[#allocation15 + $0x568] sm:$0xff]
    %v2526 = vld [vmem:[#allocation15 + $0x570] sm:$0xff]
    %v2527 = vld [vmem:[#allocation15 + $0x578] sm:$0xff]
    %v2528 = vld [vmem:[#allocation15 + $0x5e0] sm:$0xff]
    %v2529 = vld [vmem:[#allocation15 + $0x5e8] sm:$0xff]
    %v2530 = vld [vmem:[#allocation15 + $0x5f0] sm:$0xff]
    %v2531 = vld [vmem:[#allocation15 + $0x5f8] sm:$0xff]
    %v2532 = vld [vmem:[#allocation15 + $0x660] sm:$0xff]
    %v2533 = vld [vmem:[#allocation15 + $0x668] sm:$0xff]
    %v2534 = vld [vmem:[#allocation15 + $0x670] sm:$0xff]
    %v2535 = vld [vmem:[#allocation15 + $0x678] sm:$0xff]
    %v2536 = vld [vmem:[#allocation15 + $0x6e0] sm:$0xff]
    %v2537 = vld [vmem:[#allocation15 + $0x6e8] sm:$0xff]
    %v2538 = vld [vmem:[#allocation15 + $0x6f0] sm:$0xff]
    %v2539 = vld [vmem:[#allocation15 + $0x6f8] sm:$0xff]
    %v2540 = vld [vmem:[#allocation15 + $0x760] sm:$0xff]
    %v2541 = vld [vmem:[#allocation15 + $0x768] sm:$0xff]
    %v2542 = vld [vmem:[#allocation15 + $0x770] sm:$0xff]
    %v2543 = vld [vmem:[#allocation15 + $0x778] sm:$0xff]
    %v2544 = vld [vmem:[#allocation15 + $0x7e0] sm:$0xff]
    %v2545 = vld [vmem:[#allocation15 + $0x7e8] sm:$0xff]
    %v2546 = vld [vmem:[#allocation15 + $0x7f0] sm:$0xff]
    %v2547 = vld [vmem:[#allocation15 + $0x7f8] sm:$0xff]
    %v2548 = vld [vmem:[%s9 + $0xc] sm:$0xf]
    %v2550 = vperm.slane %v2548, 0
    %v2551 = vperm.slane %v2548, 1
    %v2552 = vperm.slane %v2548, 2
    %v2553 = vperm.slane %v2548, 3
    %2558 = vmatpush.msra.mxu0 %v2544
    %2559 = vmatpush.msra.mxu0 %v2540
    %2560 = vmatpush.msra.mxu0 %v2536
    %2561 = vmatpush.msra.mxu0 %v2532
    %2562 = vmatpush.msra.mxu0 %v2528
    %2563 = vmatpush.msra.mxu0 %v2524
    %2564 = vmatpush.msra.mxu0 %v2520
    %2565 = vmatpush.msra.mxu0 %v2516
    %2566 = vmatpush.msra.mxu0 %v2512
    %2567 = vmatpush.msra.mxu0 %v2508
    %2568 = vmatpush.msra.mxu0 %v2504
    %2569 = vmatpush.msra.mxu0 %v2500
    %2570 = vmatpush.msra.mxu0 %v2496
    %2571 = vmatpush.msra.mxu0 %v2492
    %2572 = vmatpush.msra.mxu0 %v2488
    %2573 = vmatpush.msra.mxu0 %v2484
    %2574 = vmatmul.f32.gmra.mxu0 %v1490
    %v2575 = vpop.f32.mrf.mxu0
    %v2576 = vadd.f32 %v2550, %v2575
    %2577 = vmatmul.f32.gmra.mxu0 %v1491
    %v2578 = vpop.f32.mrf.mxu0
    %v2579 = vadd.f32 %v2550, %v2578
    %2580 = vdwg.mxu0
    %2581 = vmatpush.msra.mxu0 %v2545
    %2582 = vmatpush.msra.mxu0 %v2541
    %2583 = vmatpush.msra.mxu0 %v2537
    %2584 = vmatpush.msra.mxu0 %v2533
    %2585 = vmatpush.msra.mxu0 %v2529
    %2586 = vmatpush.msra.mxu0 %v2525
    %2587 = vmatpush.msra.mxu0 %v2521
    %2588 = vmatpush.msra.mxu0 %v2517
    %2589 = vmatpush.msra.mxu0 %v2513
    %2590 = vmatpush.msra.mxu0 %v2509
    %2591 = vmatpush.msra.mxu0 %v2505
    %2592 = vmatpush.msra.mxu0 %v2501
    %2593 = vmatpush.msra.mxu0 %v2497
    %2594 = vmatpush.msra.mxu0 %v2493
    %2595 = vmatpush.msra.mxu0 %v2489
    %2596 = vmatpush.msra.mxu0 %v2485
    %2597 = vmatmul.f32.gmra.mxu0 %v1490
    %v2598 = vpop.f32.mrf.mxu0
    %v2599 = vadd.f32 %v2551, %v2598
    %2600 = vmatmul.f32.gmra.mxu0 %v1491
    %v2601 = vpop.f32.mrf.mxu0
    %v2602 = vadd.f32 %v2551, %v2601
    %2603 = vdwg.mxu0
    %2604 = vmatpush.msra.mxu0 %v2546
    %2605 = vmatpush.msra.mxu0 %v2542
    %2606 = vmatpush.msra.mxu0 %v2538
    %2607 = vmatpush.msra.mxu0 %v2534
    %2608 = vmatpush.msra.mxu0 %v2530
    %2609 = vmatpush.msra.mxu0 %v2526
    %2610 = vmatpush.msra.mxu0 %v2522
    %2611 = vmatpush.msra.mxu0 %v2518
    %2612 = vmatpush.msra.mxu0 %v2514
    %2613 = vmatpush.msra.mxu0 %v2510
    %2614 = vmatpush.msra.mxu0 %v2506
    %2615 = vmatpush.msra.mxu0 %v2502
    %2616 = vmatpush.msra.mxu0 %v2498
    %2617 = vmatpush.msra.mxu0 %v2494
    %2618 = vmatpush.msra.mxu0 %v2490
    %2619 = vmatpush.msra.mxu0 %v2486
    %2620 = vmatmul.f32.gmra.mxu0 %v1490
    %v2621 = vpop.f32.mrf.mxu0
    %v2622 = vadd.f32 %v2552, %v2621
    %2623 = vmatmul.f32.gmra.mxu0 %v1491
    %v2624 = vpop.f32.mrf.mxu0
    %v2625 = vadd.f32 %v2552, %v2624
    %2626 = vdwg.mxu0
    %2627 = vmatpush.msra.mxu0 %v2547
    %2628 = vmatpush.msra.mxu0 %v2543
    %2629 = vmatpush.msra.mxu0 %v2539
    %2630 = vmatpush.msra.mxu0 %v2535
    %2631 = vmatpush.msra.mxu0 %v2531
    %2632 = vmatpush.msra.mxu0 %v2527
    %2633 = vmatpush.msra.mxu0 %v2523
    %2634 = vmatpush.msra.mxu0 %v2519
    %2635 = vmatpush.msra.mxu0 %v2515
    %2636 = vmatpush.msra.mxu0 %v2511
    %2637 = vmatpush.msra.mxu0 %v2507
    %2638 = vmatpush.msra.mxu0 %v2503
    %2639 = vmatpush.msra.mxu0 %v2499
    %2640 = vmatpush.msra.mxu0 %v2495
    %2641 = vmatpush.msra.mxu0 %v2491
    %2642 = vmatpush.msra.mxu0 %v2487
    %2643 = vmatmul.f32.gmra.mxu0 %v1490
    %v2644 = vpop.f32.mrf.mxu0
    %v2645 = vadd.f32 %v2553, %v2644
    %2646 = vmatmul.f32.gmra.mxu0 %v1491
    %v2647 = vpop.f32.mrf.mxu0
    %v2648 = vadd.f32 %v2553, %v2647
    %2649 = vdwg.mxu0
    %v2650 = vmax.f32 %v2576, 0.0
    %v2651 = vmax.f32 %v2599, 0.0
    %v2652 = vmax.f32 %v2622, 0.0
    %v2653 = vmax.f32 %v2645, 0.0
    %v2654 = vmax.f32 %v2579, 0.0
    %v2655 = vmax.f32 %v2602, 0.0
    %v2656 = vmax.f32 %v2625, 0.0
    %v2657 = vmax.f32 %v2648, 0.0
    %v2658 = vld [vmem:[#allocation16 + $0x600] sm:$0xff]
    %v2659 = vld [vmem:[#allocation16 + $0x608] sm:$0xff]
    %v2660 = vld [vmem:[#allocation16 + $0x610] sm:$0xff]
    %v2661 = vld [vmem:[#allocation16 + $0x618] sm:$0xff]
    %v2662 = vld [vmem:[#allocation16 + $0x620] sm:$0xff]
    %v2663 = vld [vmem:[#allocation16 + $0x628] sm:$0xff]
    %v2664 = vld [vmem:[#allocation16 + $0x630] sm:$0xff]
    %v2665 = vld [vmem:[#allocation16 + $0x638] sm:$0xff]
    %v2666 = vld [vmem:[#allocation16 + $0x640] sm:$0xff]
    %v2667 = vld [vmem:[#allocation16 + $0x648] sm:$0xff]
    %v2668 = vld [vmem:[#allocation16 + $0x650] sm:$0xff]
    %v2669 = vld [vmem:[#allocation16 + $0x658] sm:$0xff]
    %v2670 = vld [vmem:[#allocation16 + $0x660] sm:$0xff]
    %v2671 = vld [vmem:[#allocation16 + $0x668] sm:$0xff]
    %v2672 = vld [vmem:[#allocation16 + $0x670] sm:$0xff]
    %v2673 = vld [vmem:[#allocation16 + $0x678] sm:$0xff]
    %v2674 = vld [vmem:[#allocation16 + $0x680] sm:$0xff]
    %v2675 = vld [vmem:[#allocation16 + $0x688] sm:$0xff]
    %v2676 = vld [vmem:[#allocation16 + $0x690] sm:$0xff]
    %v2677 = vld [vmem:[#allocation16 + $0x698] sm:$0xff]
    %v2678 = vld [vmem:[#allocation16 + $0x6a0] sm:$0xff]
    %v2679 = vld [vmem:[#allocation16 + $0x6a8] sm:$0xff]
    %v2680 = vld [vmem:[#allocation16 + $0x6b0] sm:$0xff]
    %v2681 = vld [vmem:[#allocation16 + $0x6b8] sm:$0xff]
    %v2682 = vld [vmem:[#allocation16 + $0x6c0] sm:$0xff]
    %v2683 = vld [vmem:[#allocation16 + $0x6c8] sm:$0xff]
    %v2684 = vld [vmem:[#allocation16 + $0x6d0] sm:$0xff]
    %v2685 = vld [vmem:[#allocation16 + $0x6d8] sm:$0xff]
    %v2686 = vld [vmem:[#allocation16 + $0x6e0] sm:$0xff]
    %v2687 = vld [vmem:[#allocation16 + $0x6e8] sm:$0xff]
    %v2688 = vld [vmem:[#allocation16 + $0x6f0] sm:$0xff]
    %v2689 = vld [vmem:[#allocation16 + $0x6f8] sm:$0xff]
    %v2690 = vld [vmem:[#allocation16 + $0x700] sm:$0xff]
    %v2691 = vld [vmem:[#allocation16 + $0x708] sm:$0xff]
    %v2692 = vld [vmem:[#allocation16 + $0x710] sm:$0xff]
    %v2693 = vld [vmem:[#allocation16 + $0x718] sm:$0xff]
    %v2694 = vld [vmem:[#allocation16 + $0x720] sm:$0xff]
    %v2695 = vld [vmem:[#allocation16 + $0x728] sm:$0xff]
    %v2696 = vld [vmem:[#allocation16 + $0x730] sm:$0xff]
    %v2697 = vld [vmem:[#allocation16 + $0x738] sm:$0xff]
    %v2698 = vld [vmem:[#allocation16 + $0x740] sm:$0xff]
    %v2699 = vld [vmem:[#allocation16 + $0x748] sm:$0xff]
    %v2700 = vld [vmem:[#allocation16 + $0x750] sm:$0xff]
    %v2701 = vld [vmem:[#allocation16 + $0x758] sm:$0xff]
    %v2702 = vld [vmem:[#allocation16 + $0x760] sm:$0xff]
    %v2703 = vld [vmem:[#allocation16 + $0x768] sm:$0xff]
    %v2704 = vld [vmem:[#allocation16 + $0x770] sm:$0xff]
    %v2705 = vld [vmem:[#allocation16 + $0x778] sm:$0xff]
    %v2706 = vld [vmem:[#allocation16 + $0x780] sm:$0xff]
    %v2707 = vld [vmem:[#allocation16 + $0x788] sm:$0xff]
    %v2708 = vld [vmem:[#allocation16 + $0x790] sm:$0xff]
    %v2709 = vld [vmem:[#allocation16 + $0x798] sm:$0xff]
    %v2710 = vld [vmem:[#allocation16 + $0x7a0] sm:$0xff]
    %v2711 = vld [vmem:[#allocation16 + $0x7a8] sm:$0xff]
    %v2712 = vld [vmem:[#allocation16 + $0x7b0] sm:$0xff]
    %v2713 = vld [vmem:[#allocation16 + $0x7b8] sm:$0xff]
    %v2714 = vld [vmem:[#allocation16 + $0x7c0] sm:$0xff]
    %v2715 = vld [vmem:[#allocation16 + $0x7c8] sm:$0xff]
    %v2716 = vld [vmem:[#allocation16 + $0x7d0] sm:$0xff]
    %v2717 = vld [vmem:[#allocation16 + $0x7d8] sm:$0xff]
    %v2718 = vld [vmem:[#allocation16 + $0x7e0] sm:$0xff]
    %v2719 = vld [vmem:[#allocation16 + $0x7e8] sm:$0xff]
    %v2720 = vld [vmem:[#allocation16 + $0x7f0] sm:$0xff]
    %v2721 = vld [vmem:[#allocation16 + $0x7f8] sm:$0xff]
    %2722 = vmatpush.msra.mxu0 %v2673
    %2723 = vmatpush.msra.mxu0 %v2672
    %2724 = vmatpush.msra.mxu0 %v2671
    %2725 = vmatpush.msra.mxu0 %v2670
    %2726 = vmatpush.msra.mxu0 %v2669
    %2727 = vmatpush.msra.mxu0 %v2668
    %2728 = vmatpush.msra.mxu0 %v2667
    %2729 = vmatpush.msra.mxu0 %v2666
    %2730 = vmatpush.msra.mxu0 %v2665
    %2731 = vmatpush.msra.mxu0 %v2664
    %2732 = vmatpush.msra.mxu0 %v2663
    %2733 = vmatpush.msra.mxu0 %v2662
    %2734 = vmatpush.msra.mxu0 %v2661
    %2735 = vmatpush.msra.mxu0 %v2660
    %2736 = vmatpush.msra.mxu0 %v2659
    %2737 = vmatpush.msra.mxu0 %v2658
    %2738 = vmatmul.f32.gmra.mxu0 %v2650
    %v2739 = vpop.f32.mrf.mxu0
    %v2740 = vadd.f32 0.0, %v2739
    %2741 = vmatmul.f32.gmra.mxu0 %v2654
    %v2742 = vpop.f32.mrf.mxu0
    %v2743 = vadd.f32 0.0, %v2742
    %2744 = vdwg.mxu0
    %2745 = vmatpush.msra.mxu0 %v2689
    %2746 = vmatpush.msra.mxu0 %v2688
    %2747 = vmatpush.msra.mxu0 %v2687
    %2748 = vmatpush.msra.mxu0 %v2686
    %2749 = vmatpush.msra.mxu0 %v2685
    %2750 = vmatpush.msra.mxu0 %v2684
    %2751 = vmatpush.msra.mxu0 %v2683
    %2752 = vmatpush.msra.mxu0 %v2682
    %2753 = vmatpush.msra.mxu0 %v2681
    %2754 = vmatpush.msra.mxu0 %v2680
    %2755 = vmatpush.msra.mxu0 %v2679
    %2756 = vmatpush.msra.mxu0 %v2678
    %2757 = vmatpush.msra.mxu0 %v2677
    %2758 = vmatpush.msra.mxu0 %v2676
    %2759 = vmatpush.msra.mxu0 %v2675
    %2760 = vmatpush.msra.mxu0 %v2674
    %2761 = vmatmul.f32.gmra.mxu0 %v2651
    %v2762 = vpop.f32.mrf.mxu0
    %v2763 = vadd.f32 %v2740, %v2762
    %2764 = vmatmul.f32.gmra.mxu0 %v2655
    %v2765 = vpop.f32.mrf.mxu0
    %v2766 = vadd.f32 %v2743, %v2765
    %2767 = vdwg.mxu0
    %2768 = vmatpush.msra.mxu0 %v2705
    %2769 = vmatpush.msra.mxu0 %v2704
    %2770 = vmatpush.msra.mxu0 %v2703
    %2771 = vmatpush.msra.mxu0 %v2702
    %2772 = vmatpush.msra.mxu0 %v2701
    %2773 = vmatpush.msra.mxu0 %v2700
    %2774 = vmatpush.msra.mxu0 %v2699
    %2775 = vmatpush.msra.mxu0 %v2698
    %2776 = vmatpush.msra.mxu0 %v2697
    %2777 = vmatpush.msra.mxu0 %v2696
    %2778 = vmatpush.msra.mxu0 %v2695
    %2779 = vmatpush.msra.mxu0 %v2694
    %2780 = vmatpush.msra.mxu0 %v2693
    %2781 = vmatpush.msra.mxu0 %v2692
    %2782 = vmatpush.msra.mxu0 %v2691
    %2783 = vmatpush.msra.mxu0 %v2690
    %2784 = vmatmul.f32.gmra.mxu0 %v2652
    %v2785 = vpop.f32.mrf.mxu0
    %v2786 = vadd.f32 %v2763, %v2785
    %2787 = vmatmul.f32.gmra.mxu0 %v2656
    %v2788 = vpop.f32.mrf.mxu0
    %v2789 = vadd.f32 %v2766, %v2788
    %2790 = vdwg.mxu0
    %2791 = vmatpush.msra.mxu0 %v2721
    %2792 = vmatpush.msra.mxu0 %v2720
    %2793 = vmatpush.msra.mxu0 %v2719
    %2794 = vmatpush.msra.mxu0 %v2718
    %2795 = vmatpush.msra.mxu0 %v2717
    %2796 = vmatpush.msra.mxu0 %v2716
    %2797 = vmatpush.msra.mxu0 %v2715
    %2798 = vmatpush.msra.mxu0 %v2714
    %2799 = vmatpush.msra.mxu0 %v2713
    %2800 = vmatpush.msra.mxu0 %v2712
    %2801 = vmatpush.msra.mxu0 %v2711
    %2802 = vmatpush.msra.mxu0 %v2710
    %2803 = vmatpush.msra.mxu0 %v2709
    %2804 = vmatpush.msra.mxu0 %v2708
    %2805 = vmatpush.msra.mxu0 %v2707
    %2806 = vmatpush.msra.mxu0 %v2706
    %2807 = vmatmul.f32.gmra.mxu0 %v2653
    %v2808 = vpop.f32.mrf.mxu0
    %v2809 = vadd.f32 %v2786, %v2808
    %2810 = vmatmul.f32.gmra.mxu0 %v2657
    %v2811 = vpop.f32.mrf.mxu0
    %v2812 = vadd.f32 %v2789, %v2811
    %2813 = vdwg.mxu0
    %v2814 = vadd.f32 %v2482, %v2809
    %v2815 = vadd.f32 %v2483, %v2812
    %v2816 = vld [vmem:[%s11] sm:$0x1]
    %v2818 = vperm.slane %v2816, 0
    %v2820 = vadd.f32 %v2814, %v2818
    %v2821 = vadd.f32 %v2815, %v2818
    %v2822 = vadd.f32 %v1490, %v2820
    %v2823 = vadd.f32 %v1491, %v2821
    %v2824 = vld [vmem:[%s14] sm:$0x1]
    %v2825 = vld [vmem:[%s15] sm:$0x1]
    %2826 = vadd.xlane.f32.xlu0 %v2822
    %v2827 = vpop.xlane.xlu0 %2826
    %2828 = vadd.xlane.f32.xlu0 %v2823
    %v2829 = vpop.xlane.xlu0 %2828
    %v2830 = vmul.f32 %v2827, 0.01
    %v2831 = vmul.f32 %v2829, 0.01
    %v2832 = vmul.f32 %v2822, %v2822
    %v2833 = vmul.f32 %v2823, %v2823
    %2834 = vadd.xlane.f32.xlu0 %v2832
    %v2835 = vpop.xlane.xlu0 %2834
    %2836 = vadd.xlane.f32.xlu0 %v2833
    %v2837 = vpop.xlane.xlu0 %2836
    %v2838 = vmul.f32 %v2835, 0.01
    %v2839 = vmul.f32 %v2837, 0.01
    %v2840 = vmul.f32 %v2830, %v2830
    %v2841 = vmul.f32 %v2831, %v2831
    %v2842 = vsub.f32 %v2838, %v2840
    %v2843 = vsub.f32 %v2839, %v2841
    %v2844 = vsub.f32 %v2822, %v2830
    %v2845 = vsub.f32 %v2823, %v2831
    %v2846 = vadd.f32 %v2842, 1e-05
    %v2847 = vadd.f32 %v2843, 1e-05
    %v2848 = vrsqrt.pop %v2846
    %v2849 = vmul.f32 %v2848, %v2846
    %v2850 = vmul.f32 %v2849, %v2848
    %v2851 = vmul.f32 0.5, %v2850
    %v2852 = vsub.f32 1.5, %v2851
    %v2853 = vmul.f32 %v2848, %v2852
    %vm2854 = vweird.f32 %v2846
    %vm2855 = vweird.f32 %v2848
    %vm2856 = vmor %vm2854, %vm2855
    %v2857 = vsel %vm2856, %v2848, %v2853
    %v2858 = vrsqrt.pop %v2847
    %v2859 = vmul.f32 %v2858, %v2847
    %v2860 = vmul.f32 %v2859, %v2858
    %v2861 = vmul.f32 0.5, %v2860
    %v2862 = vsub.f32 1.5, %v2861
    %v2863 = vmul.f32 %v2858, %v2862
    %vm2864 = vweird.f32 %v2847
    %vm2865 = vweird.f32 %v2858
    %vm2866 = vmor %vm2864, %vm2865
    %v2867 = vsel %vm2866, %v2858, %v2863
    %v2868 = vmul.f32 %v2844, %v2857
    %v2869 = vmul.f32 %v2845, %v2867
    %v2871 = vperm.slane %v2824, 0
    %v2873 = vmul.f32 %v2868, %v2871
    %v2874 = vmul.f32 %v2869, %v2871
    %v2876 = vperm.slane %v2825, 0
    %v2878 = vadd.f32 %v2873, %v2876
    %v2879 = vadd.f32 %v2874, %v2876
    %v2880 = vld [vmem:[#allocation18] sm:$0xff]
    %v2881 = vld [vmem:[#allocation18 + $0x8] sm:$0xff]
    %v2882 = vld [vmem:[#allocation18 + $0x10] sm:$0xff]
    %v2883 = vld [vmem:[#allocation18 + $0x18] sm:$0xff]
    %v2884 = vld [vmem:[#allocation18 + $0x20] sm:$0xff]
    %v2885 = vld [vmem:[#allocation18 + $0x28] sm:$0xff]
    %v2886 = vld [vmem:[#allocation18 + $0x30] sm:$0xff]
    %v2887 = vld [vmem:[#allocation18 + $0x38] sm:$0xff]
    %v2888 = vld [vmem:[#allocation18 + $0x40] sm:$0xff]
    %v2889 = vld [vmem:[#allocation18 + $0x48] sm:$0xff]
    %v2890 = vld [vmem:[#allocation18 + $0x50] sm:$0xff]
    %v2891 = vld [vmem:[#allocation18 + $0x58] sm:$0xff]
    %v2892 = vld [vmem:[#allocation18 + $0x60] sm:$0xff]
    %v2893 = vld [vmem:[#allocation18 + $0x68] sm:$0xff]
    %v2894 = vld [vmem:[#allocation18 + $0x70] sm:$0xff]
    %v2895 = vld [vmem:[#allocation18 + $0x78] sm:$0xff]
    %v2896 = vld [vmem:[#allocation18 + $0x80] sm:$0xff]
    %v2897 = vld [vmem:[#allocation18 + $0x88] sm:$0xff]
    %v2898 = vld [vmem:[#allocation18 + $0x90] sm:$0xff]
    %v2899 = vld [vmem:[#allocation18 + $0x98] sm:$0xff]
    %v2900 = vld [vmem:[#allocation18 + $0xa0] sm:$0xff]
    %v2901 = vld [vmem:[#allocation18 + $0xa8] sm:$0xff]
    %v2902 = vld [vmem:[#allocation18 + $0xb0] sm:$0xff]
    %v2903 = vld [vmem:[#allocation18 + $0xb8] sm:$0xff]
    %v2904 = vld [vmem:[#allocation18 + $0xc0] sm:$0xff]
    %v2905 = vld [vmem:[#allocation18 + $0xc8] sm:$0xff]
    %v2906 = vld [vmem:[#allocation18 + $0xd0] sm:$0xff]
    %v2907 = vld [vmem:[#allocation18 + $0xd8] sm:$0xff]
    %v2908 = vld [vmem:[#allocation18 + $0xe0] sm:$0xff]
    %v2909 = vld [vmem:[#allocation18 + $0xe8] sm:$0xff]
    %v2910 = vld [vmem:[#allocation18 + $0xf0] sm:$0xff]
    %v2911 = vld [vmem:[#allocation18 + $0xf8] sm:$0xff]
    %v2912 = vld [vmem:[#allocation18 + $0x100] sm:$0xff]
    %v2913 = vld [vmem:[#allocation18 + $0x108] sm:$0xff]
    %v2914 = vld [vmem:[#allocation18 + $0x110] sm:$0xff]
    %v2915 = vld [vmem:[#allocation18 + $0x118] sm:$0xff]
    %v2916 = vld [vmem:[#allocation18 + $0x120] sm:$0xff]
    %v2917 = vld [vmem:[#allocation18 + $0x128] sm:$0xff]
    %v2918 = vld [vmem:[#allocation18 + $0x130] sm:$0xff]
    %v2919 = vld [vmem:[#allocation18 + $0x138] sm:$0xff]
    %v2920 = vld [vmem:[#allocation18 + $0x140] sm:$0xff]
    %v2921 = vld [vmem:[#allocation18 + $0x148] sm:$0xff]
    %v2922 = vld [vmem:[#allocation18 + $0x150] sm:$0xff]
    %v2923 = vld [vmem:[#allocation18 + $0x158] sm:$0xff]
    %v2924 = vld [vmem:[#allocation18 + $0x160] sm:$0xff]
    %v2925 = vld [vmem:[#allocation18 + $0x168] sm:$0xff]
    %v2926 = vld [vmem:[#allocation18 + $0x170] sm:$0xff]
    %v2927 = vld [vmem:[#allocation18 + $0x178] sm:$0xff]
    %v2928 = vld [vmem:[#allocation18 + $0x180] sm:$0xff]
    %v2929 = vld [vmem:[#allocation18 + $0x188] sm:$0xff]
    %v2930 = vld [vmem:[#allocation18 + $0x190] sm:$0xff]
    %v2931 = vld [vmem:[#allocation18 + $0x198] sm:$0xff]
    %v2932 = vld [vmem:[#allocation18 + $0x1a0] sm:$0xff]
    %v2933 = vld [vmem:[#allocation18 + $0x1a8] sm:$0xff]
    %v2934 = vld [vmem:[#allocation18 + $0x1b0] sm:$0xff]
    %v2935 = vld [vmem:[#allocation18 + $0x1b8] sm:$0xff]
    %v2936 = vld [vmem:[#allocation18 + $0x1c0] sm:$0xff]
    %v2937 = vld [vmem:[#allocation18 + $0x1c8] sm:$0xff]
    %v2938 = vld [vmem:[#allocation18 + $0x1d0] sm:$0xff]
    %v2939 = vld [vmem:[#allocation18 + $0x1d8] sm:$0xff]
    %v2940 = vld [vmem:[#allocation18 + $0x1e0] sm:$0xff]
    %v2941 = vld [vmem:[#allocation18 + $0x1e8] sm:$0xff]
    %v2942 = vld [vmem:[#allocation18 + $0x1f0] sm:$0xff]
    %v2943 = vld [vmem:[#allocation18 + $0x1f8] sm:$0xff]
    %v2944 = vld [vmem:[#allocation18 + $0x200] sm:$0xff]
    %v2945 = vld [vmem:[#allocation18 + $0x208] sm:$0xff]
    %v2946 = vld [vmem:[#allocation18 + $0x210] sm:$0xff]
    %v2947 = vld [vmem:[#allocation18 + $0x218] sm:$0xff]
    %v2948 = vld [vmem:[#allocation18 + $0x220] sm:$0xff]
    %v2949 = vld [vmem:[#allocation18 + $0x228] sm:$0xff]
    %v2950 = vld [vmem:[#allocation18 + $0x230] sm:$0xff]
    %v2951 = vld [vmem:[#allocation18 + $0x238] sm:$0xff]
    %v2952 = vld [vmem:[#allocation18 + $0x240] sm:$0xff]
    %v2953 = vld [vmem:[#allocation18 + $0x248] sm:$0xff]
    %v2954 = vld [vmem:[#allocation18 + $0x250] sm:$0xff]
    %v2955 = vld [vmem:[#allocation18 + $0x258] sm:$0xff]
    %v2956 = vld [vmem:[#allocation18 + $0x260] sm:$0xff]
    %v2957 = vld [vmem:[#allocation18 + $0x268] sm:$0xff]
    %v2958 = vld [vmem:[#allocation18 + $0x270] sm:$0xff]
    %v2959 = vld [vmem:[#allocation18 + $0x278] sm:$0xff]
    %v2960 = vld [vmem:[#allocation18 + $0x280] sm:$0xff]
    %v2961 = vld [vmem:[#allocation18 + $0x288] sm:$0xff]
    %v2962 = vld [vmem:[#allocation18 + $0x290] sm:$0xff]
    %v2963 = vld [vmem:[#allocation18 + $0x298] sm:$0xff]
    %v2964 = vld [vmem:[#allocation18 + $0x2a0] sm:$0xff]
    %v2965 = vld [vmem:[#allocation18 + $0x2a8] sm:$0xff]
    %v2966 = vld [vmem:[#allocation18 + $0x2b0] sm:$0xff]
    %v2967 = vld [vmem:[#allocation18 + $0x2b8] sm:$0xff]
    %v2968 = vld [vmem:[#allocation18 + $0x2c0] sm:$0xff]
    %v2969 = vld [vmem:[#allocation18 + $0x2c8] sm:$0xff]
    %v2970 = vld [vmem:[#allocation18 + $0x2d0] sm:$0xff]
    %v2971 = vld [vmem:[#allocation18 + $0x2d8] sm:$0xff]
    %v2972 = vld [vmem:[#allocation18 + $0x2e0] sm:$0xff]
    %v2973 = vld [vmem:[#allocation18 + $0x2e8] sm:$0xff]
    %v2974 = vld [vmem:[#allocation18 + $0x2f0] sm:$0xff]
    %v2975 = vld [vmem:[#allocation18 + $0x2f8] sm:$0xff]
    %v2976 = vld [vmem:[#allocation18 + $0x300] sm:$0xff]
    %v2977 = vld [vmem:[#allocation18 + $0x308] sm:$0xff]
    %v2978 = vld [vmem:[#allocation18 + $0x310] sm:$0xff]
    %v2979 = vld [vmem:[#allocation18 + $0x318] sm:$0xff]
    %v2980 = vld [vmem:[#allocation18 + $0x320] sm:$0xff]
    %v2981 = vld [vmem:[#allocation18 + $0x328] sm:$0xff]
    %v2982 = vld [vmem:[#allocation18 + $0x330] sm:$0xff]
    %v2983 = vld [vmem:[#allocation18 + $0x338] sm:$0xff]
    %v2984 = vld [vmem:[#allocation18 + $0x340] sm:$0xff]
    %v2985 = vld [vmem:[#allocation18 + $0x348] sm:$0xff]
    %v2986 = vld [vmem:[#allocation18 + $0x350] sm:$0xff]
    %v2987 = vld [vmem:[#allocation18 + $0x358] sm:$0xff]
    %v2988 = vld [vmem:[#allocation18 + $0x360] sm:$0xff]
    %v2989 = vld [vmem:[#allocation18 + $0x368] sm:$0xff]
    %v2990 = vld [vmem:[#allocation18 + $0x370] sm:$0xff]
    %v2991 = vld [vmem:[#allocation18 + $0x378] sm:$0xff]
    %v2992 = vld [vmem:[#allocation18 + $0x380] sm:$0xff]
    %v2993 = vld [vmem:[#allocation18 + $0x388] sm:$0xff]
    %v2994 = vld [vmem:[#allocation18 + $0x390] sm:$0xff]
    %v2995 = vld [vmem:[#allocation18 + $0x398] sm:$0xff]
    %v2996 = vld [vmem:[#allocation18 + $0x3a0] sm:$0xff]
    %v2997 = vld [vmem:[#allocation18 + $0x3a8] sm:$0xff]
    %v2998 = vld [vmem:[#allocation18 + $0x3b0] sm:$0xff]
    %v2999 = vld [vmem:[#allocation18 + $0x3b8] sm:$0xff]
    %v3000 = vld [vmem:[#allocation18 + $0x3c0] sm:$0xff]
    %v3001 = vld [vmem:[#allocation18 + $0x3c8] sm:$0xff]
    %v3002 = vld [vmem:[#allocation18 + $0x3d0] sm:$0xff]
    %v3003 = vld [vmem:[#allocation18 + $0x3d8] sm:$0xff]
    %v3004 = vld [vmem:[#allocation18 + $0x3e0] sm:$0xff]
    %v3005 = vld [vmem:[#allocation18 + $0x3e8] sm:$0xff]
    %v3006 = vld [vmem:[#allocation18 + $0x3f0] sm:$0xff]
    %v3007 = vld [vmem:[#allocation18 + $0x3f8] sm:$0xff]
    %v3008 = vld [vmem:[#allocation18 + $0x400] sm:$0xff]
    %v3009 = vld [vmem:[#allocation18 + $0x408] sm:$0xff]
    %v3010 = vld [vmem:[#allocation18 + $0x410] sm:$0xff]
    %v3011 = vld [vmem:[#allocation18 + $0x418] sm:$0xff]
    %v3012 = vld [vmem:[#allocation18 + $0x420] sm:$0xff]
    %v3013 = vld [vmem:[#allocation18 + $0x428] sm:$0xff]
    %v3014 = vld [vmem:[#allocation18 + $0x430] sm:$0xff]
    %v3015 = vld [vmem:[#allocation18 + $0x438] sm:$0xff]
    %v3016 = vld [vmem:[#allocation18 + $0x440] sm:$0xff]
    %v3017 = vld [vmem:[#allocation18 + $0x448] sm:$0xff]
    %v3018 = vld [vmem:[#allocation18 + $0x450] sm:$0xff]
    %v3019 = vld [vmem:[#allocation18 + $0x458] sm:$0xff]
    %v3020 = vld [vmem:[#allocation18 + $0x460] sm:$0xff]
    %v3021 = vld [vmem:[#allocation18 + $0x468] sm:$0xff]
    %v3022 = vld [vmem:[#allocation18 + $0x470] sm:$0xff]
    %v3023 = vld [vmem:[#allocation18 + $0x478] sm:$0xff]
    %v3024 = vld [vmem:[#allocation18 + $0x480] sm:$0xff]
    %v3025 = vld [vmem:[#allocation18 + $0x488] sm:$0xff]
    %v3026 = vld [vmem:[#allocation18 + $0x490] sm:$0xff]
    %v3027 = vld [vmem:[#allocation18 + $0x498] sm:$0xff]
    %v3028 = vld [vmem:[#allocation18 + $0x4a0] sm:$0xff]
    %v3029 = vld [vmem:[#allocation18 + $0x4a8] sm:$0xff]
    %v3030 = vld [vmem:[#allocation18 + $0x4b0] sm:$0xff]
    %v3031 = vld [vmem:[#allocation18 + $0x4b8] sm:$0xff]
    %v3032 = vld [vmem:[#allocation18 + $0x4c0] sm:$0xff]
    %v3033 = vld [vmem:[#allocation18 + $0x4c8] sm:$0xff]
    %v3034 = vld [vmem:[#allocation18 + $0x4d0] sm:$0xff]
    %v3035 = vld [vmem:[#allocation18 + $0x4d8] sm:$0xff]
    %v3036 = vld [vmem:[#allocation18 + $0x4e0] sm:$0xff]
    %v3037 = vld [vmem:[#allocation18 + $0x4e8] sm:$0xff]
    %v3038 = vld [vmem:[#allocation18 + $0x4f0] sm:$0xff]
    %v3039 = vld [vmem:[#allocation18 + $0x4f8] sm:$0xff]
    %v3040 = vld [vmem:[#allocation18 + $0x500] sm:$0xff]
    %v3041 = vld [vmem:[#allocation18 + $0x508] sm:$0xff]
    %v3042 = vld [vmem:[#allocation18 + $0x510] sm:$0xff]
    %v3043 = vld [vmem:[#allocation18 + $0x518] sm:$0xff]
    %v3044 = vld [vmem:[#allocation18 + $0x520] sm:$0xff]
    %v3045 = vld [vmem:[#allocation18 + $0x528] sm:$0xff]
    %v3046 = vld [vmem:[#allocation18 + $0x530] sm:$0xff]
    %v3047 = vld [vmem:[#allocation18 + $0x538] sm:$0xff]
    %v3048 = vld [vmem:[#allocation18 + $0x540] sm:$0xff]
    %v3049 = vld [vmem:[#allocation18 + $0x548] sm:$0xff]
    %v3050 = vld [vmem:[#allocation18 + $0x550] sm:$0xff]
    %v3051 = vld [vmem:[#allocation18 + $0x558] sm:$0xff]
    %v3052 = vld [vmem:[#allocation18 + $0x560] sm:$0xff]
    %v3053 = vld [vmem:[#allocation18 + $0x568] sm:$0xff]
    %v3054 = vld [vmem:[#allocation18 + $0x570] sm:$0xff]
    %v3055 = vld [vmem:[#allocation18 + $0x578] sm:$0xff]
    %v3056 = vld [vmem:[#allocation18 + $0x580] sm:$0xff]
    %v3057 = vld [vmem:[#allocation18 + $0x588] sm:$0xff]
    %v3058 = vld [vmem:[#allocation18 + $0x590] sm:$0xff]
    %v3059 = vld [vmem:[#allocation18 + $0x598] sm:$0xff]
    %v3060 = vld [vmem:[#allocation18 + $0x5a0] sm:$0xff]
    %v3061 = vld [vmem:[#allocation18 + $0x5a8] sm:$0xff]
    %v3062 = vld [vmem:[#allocation18 + $0x5b0] sm:$0xff]
    %v3063 = vld [vmem:[#allocation18 + $0x5b8] sm:$0xff]
    %v3064 = vld [vmem:[#allocation18 + $0x5c0] sm:$0xff]
    %v3065 = vld [vmem:[#allocation18 + $0x5c8] sm:$0xff]
    %v3066 = vld [vmem:[#allocation18 + $0x5d0] sm:$0xff]
    %v3067 = vld [vmem:[#allocation18 + $0x5d8] sm:$0xff]
    %v3068 = vld [vmem:[#allocation18 + $0x5e0] sm:$0xff]
    %v3069 = vld [vmem:[#allocation18 + $0x5e8] sm:$0xff]
    %v3070 = vld [vmem:[#allocation18 + $0x5f0] sm:$0xff]
    %v3071 = vld [vmem:[#allocation18 + $0x5f8] sm:$0xff]
    %v3072 = vld [vmem:[#allocation19] sm:$0xff]
    %v3073 = vld [vmem:[#allocation19 + $0x8] sm:$0xf]
    %v3076 = vperm.slane %v3072, 0
    %v3077 = vperm.slane %v3072, 1
    %v3078 = vperm.slane %v3072, 2
    %v3079 = vperm.slane %v3072, 3
    %v3080 = vperm.slane %v3072, 4
    %v3081 = vperm.slane %v3072, 5
    %v3082 = vperm.slane %v3072, 6
    %v3083 = vperm.slane %v3072, 7
    %v3084 = vperm.slane %v3073, 0
    %v3085 = vperm.slane %v3073, 1
    %v3086 = vperm.slane %v3073, 2
    %v3087 = vperm.slane %v3073, 3
    %3100 = vmatpush.msra.mxu0 %v3060
    %3101 = vmatpush.msra.mxu0 %v3048
    %3102 = vmatpush.msra.mxu0 %v3036
    %3103 = vmatpush.msra.mxu0 %v3024
    %3104 = vmatpush.msra.mxu0 %v3012
    %3105 = vmatpush.msra.mxu0 %v3000
    %3106 = vmatpush.msra.mxu0 %v2988
    %3107 = vmatpush.msra.mxu0 %v2976
    %3108 = vmatpush.msra.mxu0 %v2964
    %3109 = vmatpush.msra.mxu0 %v2952
    %3110 = vmatpush.msra.mxu0 %v2940
    %3111 = vmatpush.msra.mxu0 %v2928
    %3112 = vmatpush.msra.mxu0 %v2916
    %3113 = vmatpush.msra.mxu0 %v2904
    %3114 = vmatpush.msra.mxu0 %v2892
    %3115 = vmatpush.msra.mxu0 %v2880
    %3116 = vmatmul.f32.gmra.mxu0 %v2878
    %v3117 = vpop.f32.mrf.mxu0
    %v3118 = vadd.f32 %v3076, %v3117
    %3119 = vmatmul.f32.gmra.mxu0 %v2879
    %v3120 = vpop.f32.mrf.mxu0
    %v3121 = vadd.f32 %v3076, %v3120
    %3122 = vdwg.mxu0
    %3123 = vmatpush.msra.mxu0 %v3061
    %3124 = vmatpush.msra.mxu0 %v3049
    %3125 = vmatpush.msra.mxu0 %v3037
    %3126 = vmatpush.msra.mxu0 %v3025
    %3127 = vmatpush.msra.mxu0 %v3013
    %3128 = vmatpush.msra.mxu0 %v3001
    %3129 = vmatpush.msra.mxu0 %v2989
    %3130 = vmatpush.msra.mxu0 %v2977
    %3131 = vmatpush.msra.mxu0 %v2965
    %3132 = vmatpush.msra.mxu0 %v2953
    %3133 = vmatpush.msra.mxu0 %v2941
    %3134 = vmatpush.msra.mxu0 %v2929
    %3135 = vmatpush.msra.mxu0 %v2917
    %3136 = vmatpush.msra.mxu0 %v2905
    %3137 = vmatpush.msra.mxu0 %v2893
    %3138 = vmatpush.msra.mxu0 %v2881
    %3139 = vmatmul.f32.gmra.mxu0 %v2878
    %v3140 = vpop.f32.mrf.mxu0
    %v3141 = vadd.f32 %v3077, %v3140
    %3142 = vmatmul.f32.gmra.mxu0 %v2879
    %v3143 = vpop.f32.mrf.mxu0
    %v3144 = vadd.f32 %v3077, %v3143
    %3145 = vdwg.mxu0
    %3146 = vmatpush.msra.mxu0 %v3062
    %3147 = vmatpush.msra.mxu0 %v3050
    %3148 = vmatpush.msra.mxu0 %v3038
    %3149 = vmatpush.msra.mxu0 %v3026
    %3150 = vmatpush.msra.mxu0 %v3014
    %3151 = vmatpush.msra.mxu0 %v3002
    %3152 = vmatpush.msra.mxu0 %v2990
    %3153 = vmatpush.msra.mxu0 %v2978
    %3154 = vmatpush.msra.mxu0 %v2966
    %3155 = vmatpush.msra.mxu0 %v2954
    %3156 = vmatpush.msra.mxu0 %v2942
    %3157 = vmatpush.msra.mxu0 %v2930
    %3158 = vmatpush.msra.mxu0 %v2918
    %3159 = vmatpush.msra.mxu0 %v2906
    %3160 = vmatpush.msra.mxu0 %v2894
    %3161 = vmatpush.msra.mxu0 %v2882
    %3162 = vmatmul.f32.gmra.mxu0 %v2878
    %v3163 = vpop.f32.mrf.mxu0
    %v3164 = vadd.f32 %v3078, %v3163
    %3165 = vmatmul.f32.gmra.mxu0 %v2879
    %v3166 = vpop.f32.mrf.mxu0
    %v3167 = vadd.f32 %v3078, %v3166
    %3168 = vdwg.mxu0
    %3169 = vmatpush.msra.mxu0 %v3063
    %3170 = vmatpush.msra.mxu0 %v3051
    %3171 = vmatpush.msra.mxu0 %v3039
    %3172 = vmatpush.msra.mxu0 %v3027
    %3173 = vmatpush.msra.mxu0 %v3015
    %3174 = vmatpush.msra.mxu0 %v3003
    %3175 = vmatpush.msra.mxu0 %v2991
    %3176 = vmatpush.msra.mxu0 %v2979
    %3177 = vmatpush.msra.mxu0 %v2967
    %3178 = vmatpush.msra.mxu0 %v2955
    %3179 = vmatpush.msra.mxu0 %v2943
    %3180 = vmatpush.msra.mxu0 %v2931
    %3181 = vmatpush.msra.mxu0 %v2919
    %3182 = vmatpush.msra.mxu0 %v2907
    %3183 = vmatpush.msra.mxu0 %v2895
    %3184 = vmatpush.msra.mxu0 %v2883
    %3185 = vmatmul.f32.gmra.mxu0 %v2878
    %v3186 = vpop.f32.mrf.mxu0
    %v3187 = vadd.f32 %v3079, %v3186
    %3188 = vmatmul.f32.gmra.mxu0 %v2879
    %v3189 = vpop.f32.mrf.mxu0
    %v3190 = vadd.f32 %v3079, %v3189
    %3191 = vdwg.mxu0
    %3192 = vmatpush.msra.mxu0 %v3064
    %3193 = vmatpush.msra.mxu0 %v3052
    %3194 = vmatpush.msra.mxu0 %v3040
    %3195 = vmatpush.msra.mxu0 %v3028
    %3196 = vmatpush.msra.mxu0 %v3016
    %3197 = vmatpush.msra.mxu0 %v3004
    %3198 = vmatpush.msra.mxu0 %v2992
    %3199 = vmatpush.msra.mxu0 %v2980
    %3200 = vmatpush.msra.mxu0 %v2968
    %3201 = vmatpush.msra.mxu0 %v2956
    %3202 = vmatpush.msra.mxu0 %v2944
    %3203 = vmatpush.msra.mxu0 %v2932
    %3204 = vmatpush.msra.mxu0 %v2920
    %3205 = vmatpush.msra.mxu0 %v2908
    %3206 = vmatpush.msra.mxu0 %v2896
    %3207 = vmatpush.msra.mxu0 %v2884
    %3208 = vmatmul.f32.gmra.mxu0 %v2878
    %v3209 = vpop.f32.mrf.mxu0
    %v3210 = vadd.f32 %v3080, %v3209
    %3211 = vmatmul.f32.gmra.mxu0 %v2879
    %v3212 = vpop.f32.mrf.mxu0
    %v3213 = vadd.f32 %v3080, %v3212
    %3214 = vdwg.mxu0
    %3215 = vmatpush.msra.mxu0 %v3065
    %3216 = vmatpush.msra.mxu0 %v3053
    %3217 = vmatpush.msra.mxu0 %v3041
    %3218 = vmatpush.msra.mxu0 %v3029
    %3219 = vmatpush.msra.mxu0 %v3017
    %3220 = vmatpush.msra.mxu0 %v3005
    %3221 = vmatpush.msra.mxu0 %v2993
    %3222 = vmatpush.msra.mxu0 %v2981
    %3223 = vmatpush.msra.mxu0 %v2969
    %3224 = vmatpush.msra.mxu0 %v2957
    %3225 = vmatpush.msra.mxu0 %v2945
    %3226 = vmatpush.msra.mxu0 %v2933
    %3227 = vmatpush.msra.mxu0 %v2921
    %3228 = vmatpush.msra.mxu0 %v2909
    %3229 = vmatpush.msra.mxu0 %v2897
    %3230 = vmatpush.msra.mxu0 %v2885
    %3231 = vmatmul.f32.gmra.mxu0 %v2878
    %v3232 = vpop.f32.mrf.mxu0
    %v3233 = vadd.f32 %v3081, %v3232
    %3234 = vmatmul.f32.gmra.mxu0 %v2879
    %v3235 = vpop.f32.mrf.mxu0
    %v3236 = vadd.f32 %v3081, %v3235
    %3237 = vdwg.mxu0
    %3238 = vmatpush.msra.mxu0 %v3066
    %3239 = vmatpush.msra.mxu0 %v3054
    %3240 = vmatpush.msra.mxu0 %v3042
    %3241 = vmatpush.msra.mxu0 %v3030
    %3242 = vmatpush.msra.mxu0 %v3018
    %3243 = vmatpush.msra.mxu0 %v3006
    %3244 = vmatpush.msra.mxu0 %v2994
    %3245 = vmatpush.msra.mxu0 %v2982
    %3246 = vmatpush.msra.mxu0 %v2970
    %3247 = vmatpush.msra.mxu0 %v2958
    %3248 = vmatpush.msra.mxu0 %v2946
    %3249 = vmatpush.msra.mxu0 %v2934
    %3250 = vmatpush.msra.mxu0 %v2922
    %3251 = vmatpush.msra.mxu0 %v2910
    %3252 = vmatpush.msra.mxu0 %v2898
    %3253 = vmatpush.msra.mxu0 %v2886
    %3254 = vmatmul.f32.gmra.mxu0 %v2878
    %v3255 = vpop.f32.mrf.mxu0
    %v3256 = vadd.f32 %v3082, %v3255
    %3257 = vmatmul.f32.gmra.mxu0 %v2879
    %v3258 = vpop.f32.mrf.mxu0
    %v3259 = vadd.f32 %v3082, %v3258
    %3260 = vdwg.mxu0
    %3261 = vmatpush.msra.mxu0 %v3067
    %3262 = vmatpush.msra.mxu0 %v3055
    %3263 = vmatpush.msra.mxu0 %v3043
    %3264 = vmatpush.msra.mxu0 %v3031
    %3265 = vmatpush.msra.mxu0 %v3019
    %3266 = vmatpush.msra.mxu0 %v3007
    %3267 = vmatpush.msra.mxu0 %v2995
    %3268 = vmatpush.msra.mxu0 %v2983
    %3269 = vmatpush.msra.mxu0 %v2971
    %3270 = vmatpush.msra.mxu0 %v2959
    %3271 = vmatpush.msra.mxu0 %v2947
    %3272 = vmatpush.msra.mxu0 %v2935
    %3273 = vmatpush.msra.mxu0 %v2923
    %3274 = vmatpush.msra.mxu0 %v2911
    %3275 = vmatpush.msra.mxu0 %v2899
    %3276 = vmatpush.msra.mxu0 %v2887
    %3277 = vmatmul.f32.gmra.mxu0 %v2878
    %v3278 = vpop.f32.mrf.mxu0
    %v3279 = vadd.f32 %v3083, %v3278
    %3280 = vmatmul.f32.gmra.mxu0 %v2879
    %v3281 = vpop.f32.mrf.mxu0
    %v3282 = vadd.f32 %v3083, %v3281
    %3283 = vdwg.mxu0
    %3284 = vmatpush.msra.mxu0 %v3068
    %3285 = vmatpush.msra.mxu0 %v3056
    %3286 = vmatpush.msra.mxu0 %v3044
    %3287 = vmatpush.msra.mxu0 %v3032
    %3288 = vmatpush.msra.mxu0 %v3020
    %3289 = vmatpush.msra.mxu0 %v3008
    %3290 = vmatpush.msra.mxu0 %v2996
    %3291 = vmatpush.msra.mxu0 %v2984
    %3292 = vmatpush.msra.mxu0 %v2972
    %3293 = vmatpush.msra.mxu0 %v2960
    %3294 = vmatpush.msra.mxu0 %v2948
    %3295 = vmatpush.msra.mxu0 %v2936
    %3296 = vmatpush.msra.mxu0 %v2924
    %3297 = vmatpush.msra.mxu0 %v2912
    %3298 = vmatpush.msra.mxu0 %v2900
    %3299 = vmatpush.msra.mxu0 %v2888
    %3300 = vmatmul.f32.gmra.mxu0 %v2878
    %v3301 = vpop.f32.mrf.mxu0
    %v3302 = vadd.f32 %v3084, %v3301
    %3303 = vmatmul.f32.gmra.mxu0 %v2879
    %v3304 = vpop.f32.mrf.mxu0
    %v3305 = vadd.f32 %v3084, %v3304
    %3306 = vdwg.mxu0
    %3307 = vmatpush.msra.mxu0 %v3069
    %3308 = vmatpush.msra.mxu0 %v3057
    %3309 = vmatpush.msra.mxu0 %v3045
    %3310 = vmatpush.msra.mxu0 %v3033
    %3311 = vmatpush.msra.mxu0 %v3021
    %3312 = vmatpush.msra.mxu0 %v3009
    %3313 = vmatpush.msra.mxu0 %v2997
    %3314 = vmatpush.msra.mxu0 %v2985
    %3315 = vmatpush.msra.mxu0 %v2973
    %3316 = vmatpush.msra.mxu0 %v2961
    %3317 = vmatpush.msra.mxu0 %v2949
    %3318 = vmatpush.msra.mxu0 %v2937
    %3319 = vmatpush.msra.mxu0 %v2925
    %3320 = vmatpush.msra.mxu0 %v2913
    %3321 = vmatpush.msra.mxu0 %v2901
    %3322 = vmatpush.msra.mxu0 %v2889
    %3323 = vmatmul.f32.gmra.mxu0 %v2878
    %v3324 = vpop.f32.mrf.mxu0
    %v3325 = vadd.f32 %v3085, %v3324
    %3326 = vmatmul.f32.gmra.mxu0 %v2879
    %v3327 = vpop.f32.mrf.mxu0
    %v3328 = vadd.f32 %v3085, %v3327
    %3329 = vdwg.mxu0
    %3330 = vmatpush.msra.mxu0 %v3070
    %3331 = vmatpush.msra.mxu0 %v3058
    %3332 = vmatpush.msra.mxu0 %v3046
    %3333 = vmatpush.msra.mxu0 %v3034
    %3334 = vmatpush.msra.mxu0 %v3022
    %3335 = vmatpush.msra.mxu0 %v3010
    %3336 = vmatpush.msra.mxu0 %v2998
    %3337 = vmatpush.msra.mxu0 %v2986
    %3338 = vmatpush.msra.mxu0 %v2974
    %3339 = vmatpush.msra.mxu0 %v2962
    %3340 = vmatpush.msra.mxu0 %v2950
    %3341 = vmatpush.msra.mxu0 %v2938
    %3342 = vmatpush.msra.mxu0 %v2926
    %3343 = vmatpush.msra.mxu0 %v2914
    %3344 = vmatpush.msra.mxu0 %v2902
    %3345 = vmatpush.msra.mxu0 %v2890
    %3346 = vmatmul.f32.gmra.mxu0 %v2878
    %v3347 = vpop.f32.mrf.mxu0
    %v3348 = vadd.f32 %v3086, %v3347
    %3349 = vmatmul.f32.gmra.mxu0 %v2879
    %v3350 = vpop.f32.mrf.mxu0
    %v3351 = vadd.f32 %v3086, %v3350
    %3352 = vdwg.mxu0
    %3353 = vmatpush.msra.mxu0 %v3071
    %3354 = vmatpush.msra.mxu0 %v3059
    %3355 = vmatpush.msra.mxu0 %v3047
    %3356 = vmatpush.msra.mxu0 %v3035
    %3357 = vmatpush.msra.mxu0 %v3023
    %3358 = vmatpush.msra.mxu0 %v3011
    %3359 = vmatpush.msra.mxu0 %v2999
    %3360 = vmatpush.msra.mxu0 %v2987
    %3361 = vmatpush.msra.mxu0 %v2975
    %3362 = vmatpush.msra.mxu0 %v2963
    %3363 = vmatpush.msra.mxu0 %v2951
    %3364 = vmatpush.msra.mxu0 %v2939
    %3365 = vmatpush.msra.mxu0 %v2927
    %3366 = vmatpush.msra.mxu0 %v2915
    %3367 = vmatpush.msra.mxu0 %v2903
    %3368 = vmatpush.msra.mxu0 %v2891
    %3369 = vmatmul.f32.gmra.mxu0 %v2878
    %v3370 = vpop.f32.mrf.mxu0
    %v3371 = vadd.f32 %v3087, %v3370
    %3372 = vmatmul.f32.gmra.mxu0 %v2879
    %v3373 = vpop.f32.mrf.mxu0
    %v3374 = vadd.f32 %v3087, %v3373
    %3375 = vdwg.mxu0
    %3376 = vst [vmem:[#allocation2] sm:$0xff] %v3118
    %3377 = vst [vmem:[#allocation2 + $0x8] sm:$0xff] %v3141
    %3378 = vst [vmem:[#allocation2 + $0x10] sm:$0xff] %v3164
    %3379 = vst [vmem:[#allocation2 + $0x18] sm:$0xff] %v3187
    %3380 = vst [vmem:[#allocation2 + $0x20] sm:$0xff] %v3210
    %3381 = vst [vmem:[#allocation2 + $0x28] sm:$0xff] %v3233
    %3382 = vst [vmem:[#allocation2 + $0x30] sm:$0xff] %v3256
    %3383 = vst [vmem:[#allocation2 + $0x38] sm:$0xff] %v3279
    %3384 = vst [vmem:[#allocation2 + $0x40] sm:$0xff] %v3302
    %3385 = vst [vmem:[#allocation2 + $0x48] sm:$0xff] %v3325
    %3386 = vst [vmem:[#allocation2 + $0x50] sm:$0xff] %v3348
    %3387 = vst [vmem:[#allocation2 + $0x58] sm:$0xff] %v3371
    %3388 = vst [vmem:[#allocation2 + $0x60] sm:$0xff] %v3121
    %3389 = vst [vmem:[#allocation2 + $0x68] sm:$0xff] %v3144
    %3390 = vst [vmem:[#allocation2 + $0x70] sm:$0xff] %v3167
    %3391 = vst [vmem:[#allocation2 + $0x78] sm:$0xff] %v3190
    %3392 = vst [vmem:[#allocation2 + $0x80] sm:$0xff] %v3213
    %3393 = vst [vmem:[#allocation2 + $0x88] sm:$0xff] %v3236
    %3394 = vst [vmem:[#allocation2 + $0x90] sm:$0xff] %v3259
    %3395 = vst [vmem:[#allocation2 + $0x98] sm:$0xff] %v3282
    %3396 = vst [vmem:[#allocation2 + $0xa0] sm:$0xff] %v3305
    %3397 = vst [vmem:[#allocation2 + $0xa8] sm:$0xff] %v3328
    %3398 = vst [vmem:[#allocation2 + $0xb0] sm:$0xff] %v3351
    %3399 = vst [vmem:[#allocation2 + $0xb8] sm:$0xff] %v3374
    %v3400 = vld [vmem:[#allocation2] sm:$0xff]
    %v3401 = vld [vmem:[#allocation2 + $0x60] sm:$0xff]
    %v3402 = vld [vmem:[#allocation2 + $0x20] sm:$0xff]
    %v3403 = vld [vmem:[#allocation2 + $0x80] sm:$0xff]
    %v3404 = vld [vmem:[#allocation2 + $0x40] sm:$0xff]
    %v3405 = vld [vmem:[#allocation2 + $0xa0] sm:$0xff]
    %3406 = vmatpush.xpose.msra.mxu0 0.0
    %3407 = vmatpush.xpose.msra.mxu0 0.0
    %3408 = vmatpush.xpose.msra.mxu0 0.0
    %3409 = vmatpush.xpose.msra.mxu0 0.0
    %3410 = vmatpush.xpose.msra.mxu0 0.0
    %3411 = vmatpush.xpose.msra.mxu0 0.0
    %3412 = vmatpush.xpose.msra.mxu0 0.0
    %3413 = vmatpush.xpose.msra.mxu0 0.0
    %3414 = vmatpush.xpose.msra.mxu0 0.0
    %3415 = vmatpush.xpose.msra.mxu0 0.0
    %3416 = vmatpush.xpose.msra.mxu0 0.0
    %3417 = vmatpush.xpose.msra.mxu0 0.0
    %3418 = vmatpush.xpose.msra.mxu0 0.0
    %3419 = vmatpush.xpose.msra.mxu0 0.0
    %3420 = vmatpush.xpose.msra.mxu0 %v3403
    %3421 = vmatpush.xpose.msra.mxu0 %v3402
    %3422 = vmatmul.f32.gmra.mxu0 %v3400
    %v3423 = vpop.f32.mrf.mxu0
    %v3424 = vadd.f32 0.0, %v3423
    %3425 = vmatmul.f32.gmra.mxu0 %v3401
    %v3426 = vpop.f32.mrf.mxu0
    %v3427 = vadd.f32 0.0, %v3426
    %3428 = vdwg.mxu0
    %v3429 = vmul.f32 %v3424, 0.2
    %v3430 = vmul.f32 %v3427, 0.2
    %v3431 = vsel %vm376, %v3429, -1e+30
    %v3432 = vsel %vm376, %v3430, -1e+30
    %v3433 = vsel %vm930, %v3431, -inf
    %3434 = vmax.xlane.f32.xlu0 %v3433
    %v3435 = vpop.xlane.xlu0 %3434
    %v3436 = vsel %vm930, %v3432, -inf
    %3437 = vmax.xlane.f32.xlu0 %v3436
    %v3438 = vpop.xlane.xlu0 %3437
    %v3439 = vsub.f32 %v3431, %v3435
    %v3440 = vsub.f32 %v3432, %v3438
    %v3441 = vmul.f32 %v3439, 1.442695
    %v3442 = vpow.pop %v3441
    %v3443 = vmul.f32 %v3440, 1.442695
    %v3444 = vpow.pop %v3443
    %v3445 = vsel %vm930, %v3442, 0.0
    %3446 = vadd.xlane.f32.xlu0 %v3445
    %v3447 = vpop.xlane.xlu0 %3446
    %v3448 = vsel %vm930, %v3444, 0.0
    %3449 = vadd.xlane.f32.xlu0 %v3448
    %v3450 = vpop.xlane.xlu0 %3449
    %v3451 = vrcp.pop %v3447
    %v3452 = vrcp.pop %v3450
    %v3453 = vmul.f32 %v3447, %v3451
    %v3454 = vmul.f32 %v3450, %v3452
    %v3455 = vsub.f32 2.0, %v3453
    %v3456 = vsub.f32 2.0, %v3454
    %v3457 = vmul.f32 %v3451, %v3455
    %v3458 = vmul.f32 %v3452, %v3456
    %v3459 = vmul.f32 %v3442, %v3457
    %v3460 = vmul.f32 %v3444, %v3458
    %v3462 = vsel %vm930, %v3459, 0
    %v3465 = vsel %vm930, %v3460, 0
    %3467 = vmatpush.msra.mxu0 0.0
    %3468 = vmatpush.msra.mxu0 0.0
    %3469 = vmatpush.msra.mxu0 0.0
    %3470 = vmatpush.msra.mxu0 0.0
    %3471 = vmatpush.msra.mxu0 0.0
    %3472 = vmatpush.msra.mxu0 0.0
    %3473 = vmatpush.msra.mxu0 0.0
    %3474 = vmatpush.msra.mxu0 0.0
    %3475 = vmatpush.msra.mxu0 0.0
    %3476 = vmatpush.msra.mxu0 0.0
    %3477 = vmatpush.msra.mxu0 0.0
    %3478 = vmatpush.msra.mxu0 0.0
    %3479 = vmatpush.msra.mxu0 0.0
    %3480 = vmatpush.msra.mxu0 0.0
    %3481 = vmatpush.msra.mxu0 %v3405
    %3482 = vmatpush.msra.mxu0 %v3404
    %3483 = vmatmul.f32.gmra.mxu0 %v3462
    %v3484 = vpop.f32.mrf.mxu0
    %v3485 = vadd.f32 0.0, %v3484
    %3486 = vmatmul.f32.gmra.mxu0 %v3465
    %v3487 = vpop.f32.mrf.mxu0
    %v3488 = vadd.f32 0.0, %v3487
    %3489 = vdwg.mxu0
    %3490 = vst [vmem:[#allocation3] sm:$0xff] %v3485
    %3491 = vst [vmem:[#allocation3 + $0x20] sm:$0xff] %v3488
    %v3492 = vld [vmem:[#allocation2 + $0x8] sm:$0xff]
    %v3493 = vld [vmem:[#allocation2 + $0x68] sm:$0xff]
    %v3494 = vld [vmem:[#allocation2 + $0x28] sm:$0xff]
    %v3495 = vld [vmem:[#allocation2 + $0x88] sm:$0xff]
    %v3496 = vld [vmem:[#allocation2 + $0x48] sm:$0xff]
    %v3497 = vld [vmem:[#allocation2 + $0xa8] sm:$0xff]
    %3498 = vmatpush.xpose.msra.mxu0 0.0
    %3499 = vmatpush.xpose.msra.mxu0 0.0
    %3500 = vmatpush.xpose.msra.mxu0 0.0
    %3501 = vmatpush.xpose.msra.mxu0 0.0
    %3502 = vmatpush.xpose.msra.mxu0 0.0
    %3503 = vmatpush.xpose.msra.mxu0 0.0
    %3504 = vmatpush.xpose.msra.mxu0 0.0
    %3505 = vmatpush.xpose.msra.mxu0 0.0
    %3506 = vmatpush.xpose.msra.mxu0 0.0
    %3507 = vmatpush.xpose.msra.mxu0 0.0
    %3508 = vmatpush.xpose.msra.mxu0 0.0
    %3509 = vmatpush.xpose.msra.mxu0 0.0
    %3510 = vmatpush.xpose.msra.mxu0 0.0
    %3511 = vmatpush.xpose.msra.mxu0 0.0
    %3512 = vmatpush.xpose.msra.mxu0 %v3495
    %3513 = vmatpush.xpose.msra.mxu0 %v3494
    %3514 = vmatmul.f32.gmra.mxu0 %v3492
    %v3515 = vpop.f32.mrf.mxu0
    %v3516 = vadd.f32 0.0, %v3515
    %3517 = vmatmul.f32.gmra.mxu0 %v3493
    %v3518 = vpop.f32.mrf.mxu0
    %v3519 = vadd.f32 0.0, %v3518
    %3520 = vdwg.mxu0
    %v3521 = vmul.f32 %v3516, 0.2
    %v3522 = vmul.f32 %v3519, 0.2
    %v3523 = vsel %vm376, %v3521, -1e+30
    %v3524 = vsel %vm376, %v3522, -1e+30
    %v3525 = vsel %vm930, %v3523, -inf
    %3526 = vmax.xlane.f32.xlu0 %v3525
    %v3527 = vpop.xlane.xlu0 %3526
    %v3528 = vsel %vm930, %v3524, -inf
    %3529 = vmax.xlane.f32.xlu0 %v3528
    %v3530 = vpop.xlane.xlu0 %3529
    %v3531 = vsub.f32 %v3523, %v3527
    %v3532 = vsub.f32 %v3524, %v3530
    %v3533 = vmul.f32 %v3531, 1.442695
    %v3534 = vpow.pop %v3533
    %v3535 = vmul.f32 %v3532, 1.442695
    %v3536 = vpow.pop %v3535
    %v3537 = vsel %vm930, %v3534, 0.0
    %3538 = vadd.xlane.f32.xlu0 %v3537
    %v3539 = vpop.xlane.xlu0 %3538
    %v3540 = vsel %vm930, %v3536, 0.0
    %3541 = vadd.xlane.f32.xlu0 %v3540
    %v3542 = vpop.xlane.xlu0 %3541
    %v3543 = vrcp.pop %v3539
    %v3544 = vrcp.pop %v3542
    %v3545 = vmul.f32 %v3539, %v3543
    %v3546 = vmul.f32 %v3542, %v3544
    %v3547 = vsub.f32 2.0, %v3545
    %v3548 = vsub.f32 2.0, %v3546
    %v3549 = vmul.f32 %v3543, %v3547
    %v3550 = vmul.f32 %v3544, %v3548
    %v3551 = vmul.f32 %v3534, %v3549
    %v3552 = vmul.f32 %v3536, %v3550
    %v3554 = vsel %vm930, %v3551, 0
    %v3557 = vsel %vm930, %v3552, 0
    %3559 = vmatpush.msra.mxu0 0.0
    %3560 = vmatpush.msra.mxu0 0.0
    %3561 = vmatpush.msra.mxu0 0.0
    %3562 = vmatpush.msra.mxu0 0.0
    %3563 = vmatpush.msra.mxu0 0.0
    %3564 = vmatpush.msra.mxu0 0.0
    %3565 = vmatpush.msra.mxu0 0.0
    %3566 = vmatpush.msra.mxu0 0.0
    %3567 = vmatpush.msra.mxu0 0.0
    %3568 = vmatpush.msra.mxu0 0.0
    %3569 = vmatpush.msra.mxu0 0.0
    %3570 = vmatpush.msra.mxu0 0.0
    %3571 = vmatpush.msra.mxu0 0.0
    %3572 = vmatpush.msra.mxu0 0.0
    %3573 = vmatpush.msra.mxu0 %v3497
    %3574 = vmatpush.msra.mxu0 %v3496
    %3575 = vmatmul.f32.gmra.mxu0 %v3554
    %v3576 = vpop.f32.mrf.mxu0
    %v3577 = vadd.f32 0.0, %v3576
    %3578 = vmatmul.f32.gmra.mxu0 %v3557
    %v3579 = vpop.f32.mrf.mxu0
    %v3580 = vadd.f32 0.0, %v3579
    %3581 = vdwg.mxu0
    %3582 = vst [vmem:[#allocation3 + $0x8] sm:$0xff] %v3577
    %3583 = vst [vmem:[#allocation3 + $0x28] sm:$0xff] %v3580
    %v3584 = vld [vmem:[#allocation2 + $0x10] sm:$0xff]
    %v3585 = vld [vmem:[#allocation2 + $0x70] sm:$0xff]
    %v3586 = vld [vmem:[#allocation2 + $0x30] sm:$0xff]
    %v3587 = vld [vmem:[#allocation2 + $0x90] sm:$0xff]
    %v3588 = vld [vmem:[#allocation2 + $0x50] sm:$0xff]
    %v3589 = vld [vmem:[#allocation2 + $0xb0] sm:$0xff]
    %3590 = vmatpush.xpose.msra.mxu0 0.0
    %3591 = vmatpush.xpose.msra.mxu0 0.0
    %3592 = vmatpush.xpose.msra.mxu0 0.0
    %3593 = vmatpush.xpose.msra.mxu0 0.0
    %3594 = vmatpush.xpose.msra.mxu0 0.0
    %3595 = vmatpush.xpose.msra.mxu0 0.0
    %3596 = vmatpush.xpose.msra.mxu0 0.0
    %3597 = vmatpush.xpose.msra.mxu0 0.0
    %3598 = vmatpush.xpose.msra.mxu0 0.0
    %3599 = vmatpush.xpose.msra.mxu0 0.0
    %3600 = vmatpush.xpose.msra.mxu0 0.0
    %3601 = vmatpush.xpose.msra.mxu0 0.0
    %3602 = vmatpush.xpose.msra.mxu0 0.0
    %3603 = vmatpush.xpose.msra.mxu0 0.0
    %3604 = vmatpush.xpose.msra.mxu0 %v3587
    %3605 = vmatpush.xpose.msra.mxu0 %v3586
    %3606 = vmatmul.f32.gmra.mxu0 %v3584
    %v3607 = vpop.f32.mrf.mxu0
    %v3608 = vadd.f32 0.0, %v3607
    %3609 = vmatmul.f32.gmra.mxu0 %v3585
    %v3610 = vpop.f32.mrf.mxu0
    %v3611 = vadd.f32 0.0, %v3610
    %3612 = vdwg.mxu0
    %v3613 = vmul.f32 %v3608, 0.2
    %v3614 = vmul.f32 %v3611, 0.2
    %v3615 = vsel %vm376, %v3613, -1e+30
    %v3616 = vsel %vm376, %v3614, -1e+30
    %v3617 = vsel %vm930, %v3615, -inf
    %3618 = vmax.xlane.f32.xlu0 %v3617
    %v3619 = vpop.xlane.xlu0 %3618
    %v3620 = vsel %vm930, %v3616, -inf
    %3621 = vmax.xlane.f32.xlu0 %v3620
    %v3622 = vpop.xlane.xlu0 %3621
    %v3623 = vsub.f32 %v3615, %v3619
    %v3624 = vsub.f32 %v3616, %v3622
    %v3625 = vmul.f32 %v3623, 1.442695
    %v3626 = vpow.pop %v3625
    %v3627 = vmul.f32 %v3624, 1.442695
    %v3628 = vpow.pop %v3627
    %v3629 = vsel %vm930, %v3626, 0.0
    %3630 = vadd.xlane.f32.xlu0 %v3629
    %v3631 = vpop.xlane.xlu0 %3630
    %v3632 = vsel %vm930, %v3628, 0.0
    %3633 = vadd.xlane.f32.xlu0 %v3632
    %v3634 = vpop.xlane.xlu0 %3633
    %v3635 = vrcp.pop %v3631
    %v3636 = vrcp.pop %v3634
    %v3637 = vmul.f32 %v3631, %v3635
    %v3638 = vmul.f32 %v3634, %v3636
    %v3639 = vsub.f32 2.0, %v3637
    %v3640 = vsub.f32 2.0, %v3638
    %v3641 = vmul.f32 %v3635, %v3639
    %v3642 = vmul.f32 %v3636, %v3640
    %v3643 = vmul.f32 %v3626, %v3641
    %v3644 = vmul.f32 %v3628, %v3642
    %v3646 = vsel %vm930, %v3643, 0
    %v3649 = vsel %vm930, %v3644, 0
    %3651 = vmatpush.msra.mxu0 0.0
    %3652 = vmatpush.msra.mxu0 0.0
    %3653 = vmatpush.msra.mxu0 0.0
    %3654 = vmatpush.msra.mxu0 0.0
    %3655 = vmatpush.msra.mxu0 0.0
    %3656 = vmatpush.msra.mxu0 0.0
    %3657 = vmatpush.msra.mxu0 0.0
    %3658 = vmatpush.msra.mxu0 0.0
    %3659 = vmatpush.msra.mxu0 0.0
    %3660 = vmatpush.msra.mxu0 0.0
    %3661 = vmatpush.msra.mxu0 0.0
    %3662 = vmatpush.msra.mxu0 0.0
    %3663 = vmatpush.msra.mxu0 0.0
    %3664 = vmatpush.msra.mxu0 0.0
    %3665 = vmatpush.msra.mxu0 %v3589
    %3666 = vmatpush.msra.mxu0 %v3588
    %3667 = vmatmul.f32.gmra.mxu0 %v3646
    %v3668 = vpop.f32.mrf.mxu0
    %v3669 = vadd.f32 0.0, %v3668
    %3670 = vmatmul.f32.gmra.mxu0 %v3649
    %v3671 = vpop.f32.mrf.mxu0
    %v3672 = vadd.f32 0.0, %v3671
    %3673 = vdwg.mxu0
    %3674 = vst [vmem:[#allocation3 + $0x10] sm:$0xff] %v3669
    %3675 = vst [vmem:[#allocation3 + $0x30] sm:$0xff] %v3672
    %v3676 = vld [vmem:[#allocation2 + $0x18] sm:$0xff]
    %v3677 = vld [vmem:[#allocation2 + $0x78] sm:$0xff]
    %v3678 = vld [vmem:[#allocation2 + $0x38] sm:$0xff]
    %v3679 = vld [vmem:[#allocation2 + $0x98] sm:$0xff]
    %v3680 = vld [vmem:[#allocation2 + $0x58] sm:$0xff]
    %v3681 = vld [vmem:[#allocation2 + $0xb8] sm:$0xff]
    %3682 = vmatpush.xpose.msra.mxu0 0.0
    %3683 = vmatpush.xpose.msra.mxu0 0.0
    %3684 = vmatpush.xpose.msra.mxu0 0.0
    %3685 = vmatpush.xpose.msra.mxu0 0.0
    %3686 = vmatpush.xpose.msra.mxu0 0.0
    %3687 = vmatpush.xpose.msra.mxu0 0.0
    %3688 = vmatpush.xpose.msra.mxu0 0.0
    %3689 = vmatpush.xpose.msra.mxu0 0.0
    %3690 = vmatpush.xpose.msra.mxu0 0.0
    %3691 = vmatpush.xpose.msra.mxu0 0.0
    %3692 = vmatpush.xpose.msra.mxu0 0.0
    %3693 = vmatpush.xpose.msra.mxu0 0.0
    %3694 = vmatpush.xpose.msra.mxu0 0.0
    %3695 = vmatpush.xpose.msra.mxu0 0.0
    %3696 = vmatpush.xpose.msra.mxu0 %v3679
    %3697 = vmatpush.xpose.msra.mxu0 %v3678
    %3698 = vmatmul.f32.gmra.mxu0 %v3676
    %v3699 = vpop.f32.mrf.mxu0
    %v3700 = vadd.f32 0.0, %v3699
    %3701 = vmatmul.f32.gmra.mxu0 %v3677
    %v3702 = vpop.f32.mrf.mxu0
    %v3703 = vadd.f32 0.0, %v3702
    %3704 = vdwg.mxu0
    %v3705 = vmul.f32 %v3700, 0.2
    %v3706 = vmul.f32 %v3703, 0.2
    %v3707 = vsel %vm376, %v3705, -1e+30
    %v3708 = vsel %vm376, %v3706, -1e+30
    %v3709 = vsel %vm930, %v3707, -inf
    %3710 = vmax.xlane.f32.xlu0 %v3709
    %v3711 = vpop.xlane.xlu0 %3710
    %v3712 = vsel %vm930, %v3708, -inf
    %3713 = vmax.xlane.f32.xlu0 %v3712
    %v3714 = vpop.xlane.xlu0 %3713
    %v3715 = vsub.f32 %v3707, %v3711
    %v3716 = vsub.f32 %v3708, %v3714
    %v3717 = vmul.f32 %v3715, 1.442695
    %v3718 = vpow.pop %v3717
    %v3719 = vmul.f32 %v3716, 1.442695
    %v3720 = vpow.pop %v3719
    %v3721 = vsel %vm930, %v3718, 0.0
    %3722 = vadd.xlane.f32.xlu0 %v3721
    %v3723 = vpop.xlane.xlu0 %3722
    %v3724 = vsel %vm930, %v3720, 0.0
    %3725 = vadd.xlane.f32.xlu0 %v3724
    %v3726 = vpop.xlane.xlu0 %3725
    %v3727 = vrcp.pop %v3723
    %v3728 = vrcp.pop %v3726
    %v3729 = vmul.f32 %v3723, %v3727
    %v3730 = vmul.f32 %v3726, %v3728
    %v3731 = vsub.f32 2.0, %v3729
    %v3732 = vsub.f32 2.0, %v3730
    %v3733 = vmul.f32 %v3727, %v3731
    %v3734 = vmul.f32 %v3728, %v3732
    %v3735 = vmul.f32 %v3718, %v3733
    %v3736 = vmul.f32 %v3720, %v3734
    %v3738 = vsel %vm930, %v3735, 0
    %v3741 = vsel %vm930, %v3736, 0
    %3743 = vmatpush.msra.mxu0 0.0
    %3744 = vmatpush.msra.mxu0 0.0
    %3745 = vmatpush.msra.mxu0 0.0
    %3746 = vmatpush.msra.mxu0 0.0
    %3747 = vmatpush.msra.mxu0 0.0
    %3748 = vmatpush.msra.mxu0 0.0
    %3749 = vmatpush.msra.mxu0 0.0
    %3750 = vmatpush.msra.mxu0 0.0
    %3751 = vmatpush.msra.mxu0 0.0
    %3752 = vmatpush.msra.mxu0 0.0
    %3753 = vmatpush.msra.mxu0 0.0
    %3754 = vmatpush.msra.mxu0 0.0
    %3755 = vmatpush.msra.mxu0 0.0
    %3756 = vmatpush.msra.mxu0 0.0
    %3757 = vmatpush.msra.mxu0 %v3681
    %3758 = vmatpush.msra.mxu0 %v3680
    %3759 = vmatmul.f32.gmra.mxu0 %v3738
    %v3760 = vpop.f32.mrf.mxu0
    %v3761 = vadd.f32 0.0, %v3760
    %3762 = vmatmul.f32.gmra.mxu0 %v3741
    %v3763 = vpop.f32.mrf.mxu0
    %v3764 = vadd.f32 0.0, %v3763
    %3765 = vdwg.mxu0
    %3766 = vst [vmem:[#allocation3 + $0x18] sm:$0xff] %v3761
    %3767 = vst [vmem:[#allocation3 + $0x38] sm:$0xff] %v3764
    %v3768 = vld [vmem:[#allocation3] sm:$0xff]
    %v3769 = vld [vmem:[#allocation3 + $0x8] sm:$0xff]
    %v3770 = vld [vmem:[#allocation3 + $0x10] sm:$0xff]
    %v3771 = vld [vmem:[#allocation3 + $0x18] sm:$0xff]
    %v3772 = vld [vmem:[#allocation3 + $0x20] sm:$0xff]
    %v3773 = vld [vmem:[#allocation3 + $0x28] sm:$0xff]
    %v3774 = vld [vmem:[#allocation3 + $0x30] sm:$0xff]
    %v3775 = vld [vmem:[#allocation3 + $0x38] sm:$0xff]
    %v3776 = vld [vmem:[#allocation21] sm:$0xff]
    %v3777 = vld [vmem:[#allocation21 + $0x8] sm:$0xff]
    %v3778 = vld [vmem:[#allocation21 + $0x10] sm:$0xff]
    %v3779 = vld [vmem:[#allocation21 + $0x18] sm:$0xff]
    %v3780 = vld [vmem:[#allocation21 + $0x20] sm:$0xff]
    %v3781 = vld [vmem:[#allocation21 + $0x28] sm:$0xff]
    %v3782 = vld [vmem:[#allocation21 + $0x30] sm:$0xff]
    %v3783 = vld [vmem:[#allocation21 + $0x38] sm:$0xff]
    %v3784 = vld [vmem:[#allocation21 + $0x40] sm:$0xff]
    %v3785 = vld [vmem:[#allocation21 + $0x48] sm:$0xff]
    %v3786 = vld [vmem:[#allocation21 + $0x50] sm:$0xff]
    %v3787 = vld [vmem:[#allocation21 + $0x58] sm:$0xff]
    %v3788 = vld [vmem:[#allocation21 + $0x60] sm:$0xff]
    %v3789 = vld [vmem:[#allocation21 + $0x68] sm:$0xff]
    %v3790 = vld [vmem:[#allocation21 + $0x70] sm:$0xff]
    %v3791 = vld [vmem:[#allocation21 + $0x78] sm:$0xff]
    %v3792 = vld [vmem:[#allocation21 + $0x80] sm:$0xff]
    %v3793 = vld [vmem:[#allocation21 + $0x88] sm:$0xff]
    %v3794 = vld [vmem:[#allocation21 + $0x90] sm:$0xff]
    %v3795 = vld [vmem:[#allocation21 + $0x98] sm:$0xff]
    %v3796 = vld [vmem:[#allocation21 + $0xa0] sm:$0xff]
    %v3797 = vld [vmem:[#allocation21 + $0xa8] sm:$0xff]
    %v3798 = vld [vmem:[#allocation21 + $0xb0] sm:$0xff]
    %v3799 = vld [vmem:[#allocation21 + $0xb8] sm:$0xff]
    %v3800 = vld [vmem:[#allocation21 + $0xc0] sm:$0xff]
    %v3801 = vld [vmem:[#allocation21 + $0xc8] sm:$0xff]
    %v3802 = vld [vmem:[#allocation21 + $0xd0] sm:$0xff]
    %v3803 = vld [vmem:[#allocation21 + $0xd8] sm:$0xff]
    %v3804 = vld [vmem:[#allocation21 + $0xe0] sm:$0xff]
    %v3805 = vld [vmem:[#allocation21 + $0xe8] sm:$0xff]
    %v3806 = vld [vmem:[#allocation21 + $0xf0] sm:$0xff]
    %v3807 = vld [vmem:[#allocation21 + $0xf8] sm:$0xff]
    %v3808 = vld [vmem:[#allocation21 + $0x100] sm:$0xff]
    %v3809 = vld [vmem:[#allocation21 + $0x108] sm:$0xff]
    %v3810 = vld [vmem:[#allocation21 + $0x110] sm:$0xff]
    %v3811 = vld [vmem:[#allocation21 + $0x118] sm:$0xff]
    %v3812 = vld [vmem:[#allocation21 + $0x120] sm:$0xff]
    %v3813 = vld [vmem:[#allocation21 + $0x128] sm:$0xff]
    %v3814 = vld [vmem:[#allocation21 + $0x130] sm:$0xff]
    %v3815 = vld [vmem:[#allocation21 + $0x138] sm:$0xff]
    %v3816 = vld [vmem:[#allocation21 + $0x140] sm:$0xff]
    %v3817 = vld [vmem:[#allocation21 + $0x148] sm:$0xff]
    %v3818 = vld [vmem:[#allocation21 + $0x150] sm:$0xff]
    %v3819 = vld [vmem:[#allocation21 + $0x158] sm:$0xff]
    %v3820 = vld [vmem:[#allocation21 + $0x160] sm:$0xff]
    %v3821 = vld [vmem:[#allocation21 + $0x168] sm:$0xff]
    %v3822 = vld [vmem:[#allocation21 + $0x170] sm:$0xff]
    %v3823 = vld [vmem:[#allocation21 + $0x178] sm:$0xff]
    %v3824 = vld [vmem:[#allocation21 + $0x180] sm:$0xff]
    %v3825 = vld [vmem:[#allocation21 + $0x188] sm:$0xff]
    %v3826 = vld [vmem:[#allocation21 + $0x190] sm:$0xff]
    %v3827 = vld [vmem:[#allocation21 + $0x198] sm:$0xff]
    %v3828 = vld [vmem:[#allocation21 + $0x1a0] sm:$0xff]
    %v3829 = vld [vmem:[#allocation21 + $0x1a8] sm:$0xff]
    %v3830 = vld [vmem:[#allocation21 + $0x1b0] sm:$0xff]
    %v3831 = vld [vmem:[#allocation21 + $0x1b8] sm:$0xff]
    %v3832 = vld [vmem:[#allocation21 + $0x1c0] sm:$0xff]
    %v3833 = vld [vmem:[#allocation21 + $0x1c8] sm:$0xff]
    %v3834 = vld [vmem:[#allocation21 + $0x1d0] sm:$0xff]
    %v3835 = vld [vmem:[#allocation21 + $0x1d8] sm:$0xff]
    %v3836 = vld [vmem:[#allocation21 + $0x1e0] sm:$0xff]
    %v3837 = vld [vmem:[#allocation21 + $0x1e8] sm:$0xff]
    %v3838 = vld [vmem:[#allocation21 + $0x1f0] sm:$0xff]
    %v3839 = vld [vmem:[#allocation21 + $0x1f8] sm:$0xff]
    %v3840 = vld [vmem:[%s19] sm:$0x1]
    %v3842 = vperm.slane %v3840, 0
    %3844 = vmatpush.msra.mxu0 %v3791
    %3845 = vmatpush.msra.mxu0 %v3790
    %3846 = vmatpush.msra.mxu0 %v3789
    %3847 = vmatpush.msra.mxu0 %v3788
    %3848 = vmatpush.msra.mxu0 %v3787
    %3849 = vmatpush.msra.mxu0 %v3786
    %3850 = vmatpush.msra.mxu0 %v3785
    %3851 = vmatpush.msra.mxu0 %v3784
    %3852 = vmatpush.msra.mxu0 %v3783
    %3853 = vmatpush.msra.mxu0 %v3782
    %3854 = vmatpush.msra.mxu0 %v3781
    %3855 = vmatpush.msra.mxu0 %v3780
    %3856 = vmatpush.msra.mxu0 %v3779
    %3857 = vmatpush.msra.mxu0 %v3778
    %3858 = vmatpush.msra.mxu0 %v3777
    %3859 = vmatpush.msra.mxu0 %v3776
    %3860 = vmatmul.f32.gmra.mxu0 %v3768
    %v3861 = vpop.f32.mrf.mxu0
    %v3862 = vadd.f32 %v3842, %v3861
    %3863 = vmatmul.f32.gmra.mxu0 %v3772
    %v3864 = vpop.f32.mrf.mxu0
    %v3865 = vadd.f32 %v3842, %v3864
    %3866 = vdwg.mxu0
    %3867 = vmatpush.msra.mxu0 %v3807
    %3868 = vmatpush.msra.mxu0 %v3806
    %3869 = vmatpush.msra.mxu0 %v3805
    %3870 = vmatpush.msra.mxu0 %v3804
    %3871 = vmatpush.msra.mxu0 %v3803
    %3872 = vmatpush.msra.mxu0 %v3802
    %3873 = vmatpush.msra.mxu0 %v3801
    %3874 = vmatpush.msra.mxu0 %v3800
    %3875 = vmatpush.msra.mxu0 %v3799
    %3876 = vmatpush.msra.mxu0 %v3798
    %3877 = vmatpush.msra.mxu0 %v3797
    %3878 = vmatpush.msra.mxu0 %v3796
    %3879 = vmatpush.msra.mxu0 %v3795
    %3880 = vmatpush.msra.mxu0 %v3794
    %3881 = vmatpush.msra.mxu0 %v3793
    %3882 = vmatpush.msra.mxu0 %v3792
    %3883 = vmatmul.f32.gmra.mxu0 %v3769
    %v3884 = vpop.f32.mrf.mxu0
    %v3885 = vadd.f32 %v3862, %v3884
    %3886 = vmatmul.f32.gmra.mxu0 %v3773
    %v3887 = vpop.f32.mrf.mxu0
    %v3888 = vadd.f32 %v3865, %v3887
    %3889 = vdwg.mxu0
    %3890 = vmatpush.msra.mxu0 %v3823
    %3891 = vmatpush.msra.mxu0 %v3822
    %3892 = vmatpush.msra.mxu0 %v3821
    %3893 = vmatpush.msra.mxu0 %v3820
    %3894 = vmatpush.msra.mxu0 %v3819
    %3895 = vmatpush.msra.mxu0 %v3818
    %3896 = vmatpush.msra.mxu0 %v3817
    %3897 = vmatpush.msra.mxu0 %v3816
    %3898 = vmatpush.msra.mxu0 %v3815
    %3899 = vmatpush.msra.mxu0 %v3814
    %3900 = vmatpush.msra.mxu0 %v3813
    %3901 = vmatpush.msra.mxu0 %v3812
    %3902 = vmatpush.msra.mxu0 %v3811
    %3903 = vmatpush.msra.mxu0 %v3810
    %3904 = vmatpush.msra.mxu0 %v3809
    %3905 = vmatpush.msra.mxu0 %v3808
    %3906 = vmatmul.f32.gmra.mxu0 %v3770
    %v3907 = vpop.f32.mrf.mxu0
    %v3908 = vadd.f32 %v3885, %v3907
    %3909 = vmatmul.f32.gmra.mxu0 %v3774
    %v3910 = vpop.f32.mrf.mxu0
    %v3911 = vadd.f32 %v3888, %v3910
    %3912 = vdwg.mxu0
    %3913 = vmatpush.msra.mxu0 %v3839
    %3914 = vmatpush.msra.mxu0 %v3838
    %3915 = vmatpush.msra.mxu0 %v3837
    %3916 = vmatpush.msra.mxu0 %v3836
    %3917 = vmatpush.msra.mxu0 %v3835
    %3918 = vmatpush.msra.mxu0 %v3834
    %3919 = vmatpush.msra.mxu0 %v3833
    %3920 = vmatpush.msra.mxu0 %v3832
    %3921 = vmatpush.msra.mxu0 %v3831
    %3922 = vmatpush.msra.mxu0 %v3830
    %3923 = vmatpush.msra.mxu0 %v3829
    %3924 = vmatpush.msra.mxu0 %v3828
    %3925 = vmatpush.msra.mxu0 %v3827
    %3926 = vmatpush.msra.mxu0 %v3826
    %3927 = vmatpush.msra.mxu0 %v3825
    %3928 = vmatpush.msra.mxu0 %v3824
    %3929 = vmatmul.f32.gmra.mxu0 %v3771
    %v3930 = vpop.f32.mrf.mxu0
    %v3931 = vadd.f32 %v3908, %v3930
    %3932 = vmatmul.f32.gmra.mxu0 %v3775
    %v3933 = vpop.f32.mrf.mxu0
    %v3934 = vadd.f32 %v3911, %v3933
    %3935 = vdwg.mxu0
    %v3936 = vadd.f32 %v2878, %v3931
    %v3937 = vadd.f32 %v2879, %v3934
    %v3938 = vld [vmem:[%s24] sm:$0x1]
    %v3939 = vld [vmem:[%s25] sm:$0x1]
    %3940 = vadd.xlane.f32.xlu0 %v3936
    %v3941 = vpop.xlane.xlu0 %3940
    %3942 = vadd.xlane.f32.xlu0 %v3937
    %v3943 = vpop.xlane.xlu0 %3942
    %v3944 = vmul.f32 %v3941, 0.01
    %v3945 = vmul.f32 %v3943, 0.01
    %v3946 = vmul.f32 %v3936, %v3936
    %v3947 = vmul.f32 %v3937, %v3937
    %3948 = vadd.xlane.f32.xlu0 %v3946
    %v3949 = vpop.xlane.xlu0 %3948
    %3950 = vadd.xlane.f32.xlu0 %v3947
    %v3951 = vpop.xlane.xlu0 %3950
    %v3952 = vmul.f32 %v3949, 0.01
    %v3953 = vmul.f32 %v3951, 0.01
    %v3954 = vmul.f32 %v3944, %v3944
    %v3955 = vmul.f32 %v3945, %v3945
    %v3956 = vsub.f32 %v3952, %v3954
    %v3957 = vsub.f32 %v3953, %v3955
    %v3958 = vsub.f32 %v3936, %v3944
    %v3959 = vsub.f32 %v3937, %v3945
    %v3960 = vadd.f32 %v3956, 1e-05
    %v3961 = vadd.f32 %v3957, 1e-05
    %v3962 = vrsqrt.pop %v3960
    %v3963 = vmul.f32 %v3962, %v3960
    %v3964 = vmul.f32 %v3963, %v3962
    %v3965 = vmul.f32 0.5, %v3964
    %v3966 = vsub.f32 1.5, %v3965
    %v3967 = vmul.f32 %v3962, %v3966
    %vm3968 = vweird.f32 %v3960
    %vm3969 = vweird.f32 %v3962
    %vm3970 = vmor %vm3968, %vm3969
    %v3971 = vsel %vm3970, %v3962, %v3967
    %v3972 = vrsqrt.pop %v3961
    %v3973 = vmul.f32 %v3972, %v3961
    %v3974 = vmul.f32 %v3973, %v3972
    %v3975 = vmul.f32 0.5, %v3974
    %v3976 = vsub.f32 1.5, %v3975
    %v3977 = vmul.f32 %v3972, %v3976
    %vm3978 = vweird.f32 %v3961
    %vm3979 = vweird.f32 %v3972
    %vm3980 = vmor %vm3978, %vm3979
    %v3981 = vsel %vm3980, %v3972, %v3977
    %v3982 = vmul.f32 %v3958, %v3971
    %v3983 = vmul.f32 %v3959, %v3981
    %v3985 = vperm.slane %v3938, 0
    %v3987 = vmul.f32 %v3982, %v3985
    %v3988 = vmul.f32 %v3983, %v3985
    %v3990 = vperm.slane %v3939, 0
    %v3992 = vadd.f32 %v3987, %v3990
    %v3993 = vadd.f32 %v3988, %v3990
    %v3994 = vld [vmem:[#allocation22] sm:$0xff]
    %v3995 = vld [vmem:[#allocation22 + $0x8] sm:$0xff]
    %v3996 = vld [vmem:[#allocation22 + $0x10] sm:$0xff]
    %v3997 = vld [vmem:[#allocation22 + $0x18] sm:$0xff]
    %v3998 = vld [vmem:[#allocation22 + $0x80] sm:$0xff]
    %v3999 = vld [vmem:[#allocation22 + $0x88] sm:$0xff]
    %v4000 = vld [vmem:[#allocation22 + $0x90] sm:$0xff]
    %v4001 = vld [vmem:[#allocation22 + $0x98] sm:$0xff]
    %v4002 = vld [vmem:[#allocation22 + $0x100] sm:$0xff]
    %v4003 = vld [vmem:[#allocation22 + $0x108] sm:$0xff]
    %v4004 = vld [vmem:[#allocation22 + $0x110] sm:$0xff]
    %v4005 = vld [vmem:[#allocation22 + $0x118] sm:$0xff]
    %v4006 = vld [vmem:[#allocation22 + $0x180] sm:$0xff]
    %v4007 = vld [vmem:[#allocation22 + $0x188] sm:$0xff]
    %v4008 = vld [vmem:[#allocation22 + $0x190] sm:$0xff]
    %v4009 = vld [vmem:[#allocation22 + $0x198] sm:$0xff]
    %v4010 = vld [vmem:[#allocation22 + $0x200] sm:$0xff]
    %v4011 = vld [vmem:[#allocation22 + $0x208] sm:$0xff]
    %v4012 = vld [vmem:[#allocation22 + $0x210] sm:$0xff]
    %v4013 = vld [vmem:[#allocation22 + $0x218] sm:$0xff]
    %v4014 = vld [vmem:[#allocation22 + $0x280] sm:$0xff]
    %v4015 = vld [vmem:[#allocation22 + $0x288] sm:$0xff]
    %v4016 = vld [vmem:[#allocation22 + $0x290] sm:$0xff]
    %v4017 = vld [vmem:[#allocation22 + $0x298] sm:$0xff]
    %v4018 = vld [vmem:[#allocation22 + $0x300] sm:$0xff]
    %v4019 = vld [vmem:[#allocation22 + $0x308] sm:$0xff]
    %v4020 = vld [vmem:[#allocation22 + $0x310] sm:$0xff]
    %v4021 = vld [vmem:[#allocation22 + $0x318] sm:$0xff]
    %v4022 = vld [vmem:[#allocation22 + $0x380] sm:$0xff]
    %v4023 = vld [vmem:[#allocation22 + $0x388] sm:$0xff]
    %v4024 = vld [vmem:[#allocation22 + $0x390] sm:$0xff]
    %v4025 = vld [vmem:[#allocation22 + $0x398] sm:$0xff]
    %v4026 = vld [vmem:[#allocation22 + $0x400] sm:$0xff]
    %v4027 = vld [vmem:[#allocation22 + $0x408] sm:$0xff]
    %v4028 = vld [vmem:[#allocation22 + $0x410] sm:$0xff]
    %v4029 = vld [vmem:[#allocation22 + $0x418] sm:$0xff]
    %v4030 = vld [vmem:[#allocation22 + $0x480] sm:$0xff]
    %v4031 = vld [vmem:[#allocation22 + $0x488] sm:$0xff]
    %v4032 = vld [vmem:[#allocation22 + $0x490] sm:$0xff]
    %v4033 = vld [vmem:[#allocation22 + $0x498] sm:$0xff]
    %v4034 = vld [vmem:[#allocation22 + $0x500] sm:$0xff]
    %v4035 = vld [vmem:[#allocation22 + $0x508] sm:$0xff]
    %v4036 = vld [vmem:[#allocation22 + $0x510] sm:$0xff]
    %v4037 = vld [vmem:[#allocation22 + $0x518] sm:$0xff]
    %v4038 = vld [vmem:[#allocation22 + $0x580] sm:$0xff]
    %v4039 = vld [vmem:[#allocation22 + $0x588] sm:$0xff]
    %v4040 = vld [vmem:[#allocation22 + $0x590] sm:$0xff]
    %v4041 = vld [vmem:[#allocation22 + $0x598] sm:$0xff]
    %v4042 = vld [vmem:[#allocation22 + $0x600] sm:$0xff]
    %v4043 = vld [vmem:[#allocation22 + $0x608] sm:$0xff]
    %v4044 = vld [vmem:[#allocation22 + $0x610] sm:$0xff]
    %v4045 = vld [vmem:[#allocation22 + $0x618] sm:$0xff]
    %v4046 = vld [vmem:[#allocation22 + $0x680] sm:$0xff]
    %v4047 = vld [vmem:[#allocation22 + $0x688] sm:$0xff]
    %v4048 = vld [vmem:[#allocation22 + $0x690] sm:$0xff]
    %v4049 = vld [vmem:[#allocation22 + $0x698] sm:$0xff]
    %v4050 = vld [vmem:[#allocation22 + $0x700] sm:$0xff]
    %v4051 = vld [vmem:[#allocation22 + $0x708] sm:$0xff]
    %v4052 = vld [vmem:[#allocation22 + $0x710] sm:$0xff]
    %v4053 = vld [vmem:[#allocation22 + $0x718] sm:$0xff]
    %v4054 = vld [vmem:[#allocation22 + $0x780] sm:$0xff]
    %v4055 = vld [vmem:[#allocation22 + $0x788] sm:$0xff]
    %v4056 = vld [vmem:[#allocation22 + $0x790] sm:$0xff]
    %v4057 = vld [vmem:[#allocation22 + $0x798] sm:$0xff]
    %v4058 = vld [vmem:[#allocation24] sm:$0xf]
    %v4060 = vperm.slane %v4058, 0
    %v4061 = vperm.slane %v4058, 1
    %v4062 = vperm.slane %v4058, 2
    %v4063 = vperm.slane %v4058, 3
    %4068 = vmatpush.msra.mxu0 %v4054
    %4069 = vmatpush.msra.mxu0 %v4050
    %4070 = vmatpush.msra.mxu0 %v4046
    %4071 = vmatpush.msra.mxu0 %v4042
    %4072 = vmatpush.msra.mxu0 %v4038
    %4073 = vmatpush.msra.mxu0 %v4034
    %4074 = vmatpush.msra.mxu0 %v4030
    %4075 = vmatpush.msra.mxu0 %v4026
    %4076 = vmatpush.msra.mxu0 %v4022
    %4077 = vmatpush.msra.mxu0 %v4018
    %4078 = vmatpush.msra.mxu0 %v4014
    %4079 = vmatpush.msra.mxu0 %v4010
    %4080 = vmatpush.msra.mxu0 %v4006
    %4081 = vmatpush.msra.mxu0 %v4002
    %4082 = vmatpush.msra.mxu0 %v3998
    %4083 = vmatpush.msra.mxu0 %v3994
    %4084 = vmatmul.f32.gmra.mxu0 %v3992
    %v4085 = vpop.f32.mrf.mxu0
    %v4086 = vadd.f32 %v4060, %v4085
    %4087 = vmatmul.f32.gmra.mxu0 %v3993
    %v4088 = vpop.f32.mrf.mxu0
    %v4089 = vadd.f32 %v4060, %v4088
    %4090 = vdwg.mxu0
    %4091 = vmatpush.msra.mxu0 %v4055
    %4092 = vmatpush.msra.mxu0 %v4051
    %4093 = vmatpush.msra.mxu0 %v4047
    %4094 = vmatpush.msra.mxu0 %v4043
    %4095 = vmatpush.msra.mxu0 %v4039
    %4096 = vmatpush.msra.mxu0 %v4035
    %4097 = vmatpush.msra.mxu0 %v4031
    %4098 = vmatpush.msra.mxu0 %v4027
    %4099 = vmatpush.msra.mxu0 %v4023
    %4100 = vmatpush.msra.mxu0 %v4019
    %4101 = vmatpush.msra.mxu0 %v4015
    %4102 = vmatpush.msra.mxu0 %v4011
    %4103 = vmatpush.msra.mxu0 %v4007
    %4104 = vmatpush.msra.mxu0 %v4003
    %4105 = vmatpush.msra.mxu0 %v3999
    %4106 = vmatpush.msra.mxu0 %v3995
    %4107 = vmatmul.f32.gmra.mxu0 %v3992
    %v4108 = vpop.f32.mrf.mxu0
    %v4109 = vadd.f32 %v4061, %v4108
    %4110 = vmatmul.f32.gmra.mxu0 %v3993
    %v4111 = vpop.f32.mrf.mxu0
    %v4112 = vadd.f32 %v4061, %v4111
    %4113 = vdwg.mxu0
    %4114 = vmatpush.msra.mxu0 %v4056
    %4115 = vmatpush.msra.mxu0 %v4052
    %4116 = vmatpush.msra.mxu0 %v4048
    %4117 = vmatpush.msra.mxu0 %v4044
    %4118 = vmatpush.msra.mxu0 %v4040
    %4119 = vmatpush.msra.mxu0 %v4036
    %4120 = vmatpush.msra.mxu0 %v4032
    %4121 = vmatpush.msra.mxu0 %v4028
    %4122 = vmatpush.msra.mxu0 %v4024
    %4123 = vmatpush.msra.mxu0 %v4020
    %4124 = vmatpush.msra.mxu0 %v4016
    %4125 = vmatpush.msra.mxu0 %v4012
    %4126 = vmatpush.msra.mxu0 %v4008
    %4127 = vmatpush.msra.mxu0 %v4004
    %4128 = vmatpush.msra.mxu0 %v4000
    %4129 = vmatpush.msra.mxu0 %v3996
    %4130 = vmatmul.f32.gmra.mxu0 %v3992
    %v4131 = vpop.f32.mrf.mxu0
    %v4132 = vadd.f32 %v4062, %v4131
    %4133 = vmatmul.f32.gmra.mxu0 %v3993
    %v4134 = vpop.f32.mrf.mxu0
    %v4135 = vadd.f32 %v4062, %v4134
    %4136 = vdwg.mxu0
    %4137 = vmatpush.msra.mxu0 %v4057
    %4138 = vmatpush.msra.mxu0 %v4053
    %4139 = vmatpush.msra.mxu0 %v4049
    %4140 = vmatpush.msra.mxu0 %v4045
    %4141 = vmatpush.msra.mxu0 %v4041
    %4142 = vmatpush.msra.mxu0 %v4037
    %4143 = vmatpush.msra.mxu0 %v4033
    %4144 = vmatpush.msra.mxu0 %v4029
    %4145 = vmatpush.msra.mxu0 %v4025
    %4146 = vmatpush.msra.mxu0 %v4021
    %4147 = vmatpush.msra.mxu0 %v4017
    %4148 = vmatpush.msra.mxu0 %v4013
    %4149 = vmatpush.msra.mxu0 %v4009
    %4150 = vmatpush.msra.mxu0 %v4005
    %4151 = vmatpush.msra.mxu0 %v4001
    %4152 = vmatpush.msra.mxu0 %v3997
    %4153 = vmatmul.f32.gmra.mxu0 %v3992
    %v4154 = vpop.f32.mrf.mxu0
    %v4155 = vadd.f32 %v4063, %v4154
    %4156 = vmatmul.f32.gmra.mxu0 %v3993
    %v4157 = vpop.f32.mrf.mxu0
    %v4158 = vadd.f32 %v4063, %v4157
    %4159 = vdwg.mxu0
    %v4160 = vmax.f32 %v4086, 0.0
    %v4161 = vmax.f32 %v4109, 0.0
    %v4162 = vmax.f32 %v4132, 0.0
    %v4163 = vmax.f32 %v4155, 0.0
    %v4164 = vmax.f32 %v4089, 0.0
    %v4165 = vmax.f32 %v4112, 0.0
    %v4166 = vmax.f32 %v4135, 0.0
    %v4167 = vmax.f32 %v4158, 0.0
    %v4168 = vld [vmem:[#allocation25] sm:$0xff]
    %v4169 = vld [vmem:[#allocation25 + $0x8] sm:$0xff]
    %v4170 = vld [vmem:[#allocation25 + $0x10] sm:$0xff]
    %v4171 = vld [vmem:[#allocation25 + $0x18] sm:$0xff]
    %v4172 = vld [vmem:[#allocation25 + $0x20] sm:$0xff]
    %v4173 = vld [vmem:[#allocation25 + $0x28] sm:$0xff]
    %v4174 = vld [vmem:[#allocation25 + $0x30] sm:$0xff]
    %v4175 = vld [vmem:[#allocation25 + $0x38] sm:$0xff]
    %v4176 = vld [vmem:[#allocation25 + $0x40] sm:$0xff]
    %v4177 = vld [vmem:[#allocation25 + $0x48] sm:$0xff]
    %v4178 = vld [vmem:[#allocation25 + $0x50] sm:$0xff]
    %v4179 = vld [vmem:[#allocation25 + $0x58] sm:$0xff]
    %v4180 = vld [vmem:[#allocation25 + $0x60] sm:$0xff]
    %v4181 = vld [vmem:[#allocation25 + $0x68] sm:$0xff]
    %v4182 = vld [vmem:[#allocation25 + $0x70] sm:$0xff]
    %v4183 = vld [vmem:[#allocation25 + $0x78] sm:$0xff]
    %v4184 = vld [vmem:[#allocation25 + $0x80] sm:$0xff]
    %v4185 = vld [vmem:[#allocation25 + $0x88] sm:$0xff]
    %v4186 = vld [vmem:[#allocation25 + $0x90] sm:$0xff]
    %v4187 = vld [vmem:[#allocation25 + $0x98] sm:$0xff]
    %v4188 = vld [vmem:[#allocation25 + $0xa0] sm:$0xff]
    %v4189 = vld [vmem:[#allocation25 + $0xa8] sm:$0xff]
    %v4190 = vld [vmem:[#allocation25 + $0xb0] sm:$0xff]
    %v4191 = vld [vmem:[#allocation25 + $0xb8] sm:$0xff]
    %v4192 = vld [vmem:[#allocation25 + $0xc0] sm:$0xff]
    %v4193 = vld [vmem:[#allocation25 + $0xc8] sm:$0xff]
    %v4194 = vld [vmem:[#allocation25 + $0xd0] sm:$0xff]
    %v4195 = vld [vmem:[#allocation25 + $0xd8] sm:$0xff]
    %v4196 = vld [vmem:[#allocation25 + $0xe0] sm:$0xff]
    %v4197 = vld [vmem:[#allocation25 + $0xe8] sm:$0xff]
    %v4198 = vld [vmem:[#allocation25 + $0xf0] sm:$0xff]
    %v4199 = vld [vmem:[#allocation25 + $0xf8] sm:$0xff]
    %v4200 = vld [vmem:[#allocation25 + $0x100] sm:$0xff]
    %v4201 = vld [vmem:[#allocation25 + $0x108] sm:$0xff]
    %v4202 = vld [vmem:[#allocation25 + $0x110] sm:$0xff]
    %v4203 = vld [vmem:[#allocation25 + $0x118] sm:$0xff]
    %v4204 = vld [vmem:[#allocation25 + $0x120] sm:$0xff]
    %v4205 = vld [vmem:[#allocation25 + $0x128] sm:$0xff]
    %v4206 = vld [vmem:[#allocation25 + $0x130] sm:$0xff]
    %v4207 = vld [vmem:[#allocation25 + $0x138] sm:$0xff]
    %v4208 = vld [vmem:[#allocation25 + $0x140] sm:$0xff]
    %v4209 = vld [vmem:[#allocation25 + $0x148] sm:$0xff]
    %v4210 = vld [vmem:[#allocation25 + $0x150] sm:$0xff]
    %v4211 = vld [vmem:[#allocation25 + $0x158] sm:$0xff]
    %v4212 = vld [vmem:[#allocation25 + $0x160] sm:$0xff]
    %v4213 = vld [vmem:[#allocation25 + $0x168] sm:$0xff]
    %v4214 = vld [vmem:[#allocation25 + $0x170] sm:$0xff]
    %v4215 = vld [vmem:[#allocation25 + $0x178] sm:$0xff]
    %v4216 = vld [vmem:[#allocation25 + $0x180] sm:$0xff]
    %v4217 = vld [vmem:[#allocation25 + $0x188] sm:$0xff]
    %v4218 = vld [vmem:[#allocation25 + $0x190] sm:$0xff]
    %v4219 = vld [vmem:[#allocation25 + $0x198] sm:$0xff]
    %v4220 = vld [vmem:[#allocation25 + $0x1a0] sm:$0xff]
    %v4221 = vld [vmem:[#allocation25 + $0x1a8] sm:$0xff]
    %v4222 = vld [vmem:[#allocation25 + $0x1b0] sm:$0xff]
    %v4223 = vld [vmem:[#allocation25 + $0x1b8] sm:$0xff]
    %v4224 = vld [vmem:[#allocation25 + $0x1c0] sm:$0xff]
    %v4225 = vld [vmem:[#allocation25 + $0x1c8] sm:$0xff]
    %v4226 = vld [vmem:[#allocation25 + $0x1d0] sm:$0xff]
    %v4227 = vld [vmem:[#allocation25 + $0x1d8] sm:$0xff]
    %v4228 = vld [vmem:[#allocation25 + $0x1e0] sm:$0xff]
    %v4229 = vld [vmem:[#allocation25 + $0x1e8] sm:$0xff]
    %v4230 = vld [vmem:[#allocation25 + $0x1f0] sm:$0xff]
    %v4231 = vld [vmem:[#allocation25 + $0x1f8] sm:$0xff]
    %v4232 = vld [vmem:[#allocation22 + $0x20] sm:$0xff]
    %v4233 = vld [vmem:[#allocation22 + $0x28] sm:$0xff]
    %v4234 = vld [vmem:[#allocation22 + $0x30] sm:$0xff]
    %v4235 = vld [vmem:[#allocation22 + $0x38] sm:$0xff]
    %v4236 = vld [vmem:[#allocation22 + $0xa0] sm:$0xff]
    %v4237 = vld [vmem:[#allocation22 + $0xa8] sm:$0xff]
    %v4238 = vld [vmem:[#allocation22 + $0xb0] sm:$0xff]
    %v4239 = vld [vmem:[#allocation22 + $0xb8] sm:$0xff]
    %v4240 = vld [vmem:[#allocation22 + $0x120] sm:$0xff]
    %v4241 = vld [vmem:[#allocation22 + $0x128] sm:$0xff]
    %v4242 = vld [vmem:[#allocation22 + $0x130] sm:$0xff]
    %v4243 = vld [vmem:[#allocation22 + $0x138] sm:$0xff]
    %v4244 = vld [vmem:[#allocation22 + $0x1a0] sm:$0xff]
    %v4245 = vld [vmem:[#allocation22 + $0x1a8] sm:$0xff]
    %v4246 = vld [vmem:[#allocation22 + $0x1b0] sm:$0xff]
    %v4247 = vld [vmem:[#allocation22 + $0x1b8] sm:$0xff]
    %v4248 = vld [vmem:[#allocation22 + $0x220] sm:$0xff]
    %v4249 = vld [vmem:[#allocation22 + $0x228] sm:$0xff]
    %v4250 = vld [vmem:[#allocation22 + $0x230] sm:$0xff]
    %v4251 = vld [vmem:[#allocation22 + $0x238] sm:$0xff]
    %v4252 = vld [vmem:[#allocation22 + $0x2a0] sm:$0xff]
    %v4253 = vld [vmem:[#allocation22 + $0x2a8] sm:$0xff]
    %v4254 = vld [vmem:[#allocation22 + $0x2b0] sm:$0xff]
    %v4255 = vld [vmem:[#allocation22 + $0x2b8] sm:$0xff]
    %v4256 = vld [vmem:[#allocation22 + $0x320] sm:$0xff]
    %v4257 = vld [vmem:[#allocation22 + $0x328] sm:$0xff]
    %v4258 = vld [vmem:[#allocation22 + $0x330] sm:$0xff]
    %v4259 = vld [vmem:[#allocation22 + $0x338] sm:$0xff]
    %v4260 = vld [vmem:[#allocation22 + $0x3a0] sm:$0xff]
    %v4261 = vld [vmem:[#allocation22 + $0x3a8] sm:$0xff]
    %v4262 = vld [vmem:[#allocation22 + $0x3b0] sm:$0xff]
    %v4263 = vld [vmem:[#allocation22 + $0x3b8] sm:$0xff]
    %v4264 = vld [vmem:[#allocation22 + $0x420] sm:$0xff]
    %v4265 = vld [vmem:[#allocation22 + $0x428] sm:$0xff]
    %v4266 = vld [vmem:[#allocation22 + $0x430] sm:$0xff]
    %v4267 = vld [vmem:[#allocation22 + $0x438] sm:$0xff]
    %v4268 = vld [vmem:[#allocation22 + $0x4a0] sm:$0xff]
    %v4269 = vld [vmem:[#allocation22 + $0x4a8] sm:$0xff]
    %v4270 = vld [vmem:[#allocation22 + $0x4b0] sm:$0xff]
    %v4271 = vld [vmem:[#allocation22 + $0x4b8] sm:$0xff]
    %v4272 = vld [vmem:[#allocation22 + $0x520] sm:$0xff]
    %v4273 = vld [vmem:[#allocation22 + $0x528] sm:$0xff]
    %v4274 = vld [vmem:[#allocation22 + $0x530] sm:$0xff]
    %v4275 = vld [vmem:[#allocation22 + $0x538] sm:$0xff]
    %v4276 = vld [vmem:[#allocation22 + $0x5a0] sm:$0xff]
    %v4277 = vld [vmem:[#allocation22 + $0x5a8] sm:$0xff]
    %v4278 = vld [vmem:[#allocation22 + $0x5b0] sm:$0xff]
    %v4279 = vld [vmem:[#allocation22 + $0x5b8] sm:$0xff]
    %v4280 = vld [vmem:[#allocation22 + $0x620] sm:$0xff]
    %v4281 = vld [vmem:[#allocation22 + $0x628] sm:$0xff]
    %v4282 = vld [vmem:[#allocation22 + $0x630] sm:$0xff]
    %v4283 = vld [vmem:[#allocation22 + $0x638] sm:$0xff]
    %v4284 = vld [vmem:[#allocation22 + $0x6a0] sm:$0xff]
    %v4285 = vld [vmem:[#allocation22 + $0x6a8] sm:$0xff]
    %v4286 = vld [vmem:[#allocation22 + $0x6b0] sm:$0xff]
    %v4287 = vld [vmem:[#allocation22 + $0x6b8] sm:$0xff]
    %v4288 = vld [vmem:[#allocation22 + $0x720] sm:$0xff]
    %v4289 = vld [vmem:[#allocation22 + $0x728] sm:$0xff]
    %v4290 = vld [vmem:[#allocation22 + $0x730] sm:$0xff]
    %v4291 = vld [vmem:[#allocation22 + $0x738] sm:$0xff]
    %v4292 = vld [vmem:[#allocation22 + $0x7a0] sm:$0xff]
    %v4293 = vld [vmem:[#allocation22 + $0x7a8] sm:$0xff]
    %v4294 = vld [vmem:[#allocation22 + $0x7b0] sm:$0xff]
    %v4295 = vld [vmem:[#allocation22 + $0x7b8] sm:$0xff]
    %v4296 = vld [vmem:[#allocation24 + $0x4] sm:$0xf]
    %v4298 = vperm.slane %v4296, 0
    %v4299 = vperm.slane %v4296, 1
    %v4300 = vperm.slane %v4296, 2
    %v4301 = vperm.slane %v4296, 3
    %4306 = vmatpush.msra.mxu0 %v4292
    %4307 = vmatpush.msra.mxu0 %v4288
    %4308 = vmatpush.msra.mxu0 %v4284
    %4309 = vmatpush.msra.mxu0 %v4280
    %4310 = vmatpush.msra.mxu0 %v4276
    %4311 = vmatpush.msra.mxu0 %v4272
    %4312 = vmatpush.msra.mxu0 %v4268
    %4313 = vmatpush.msra.mxu0 %v4264
    %4314 = vmatpush.msra.mxu0 %v4260
    %4315 = vmatpush.msra.mxu0 %v4256
    %4316 = vmatpush.msra.mxu0 %v4252
    %4317 = vmatpush.msra.mxu0 %v4248
    %4318 = vmatpush.msra.mxu0 %v4244
    %4319 = vmatpush.msra.mxu0 %v4240
    %4320 = vmatpush.msra.mxu0 %v4236
    %4321 = vmatpush.msra.mxu0 %v4232
    %4322 = vmatmul.f32.gmra.mxu0 %v3992
    %v4323 = vpop.f32.mrf.mxu0
    %v4324 = vadd.f32 %v4298, %v4323
    %4325 = vmatmul.f32.gmra.mxu0 %v3993
    %v4326 = vpop.f32.mrf.mxu0
    %v4327 = vadd.f32 %v4298, %v4326
    %4328 = vdwg.mxu0
    %4329 = vmatpush.msra.mxu0 %v4293
    %4330 = vmatpush.msra.mxu0 %v4289
    %4331 = vmatpush.msra.mxu0 %v4285
    %4332 = vmatpush.msra.mxu0 %v4281
    %4333 = vmatpush.msra.mxu0 %v4277
    %4334 = vmatpush.msra.mxu0 %v4273
    %4335 = vmatpush.msra.mxu0 %v4269
    %4336 = vmatpush.msra.mxu0 %v4265
    %4337 = vmatpush.msra.mxu0 %v4261
    %4338 = vmatpush.msra.mxu0 %v4257
    %4339 = vmatpush.msra.mxu0 %v4253
    %4340 = vmatpush.msra.mxu0 %v4249
    %4341 = vmatpush.msra.mxu0 %v4245
    %4342 = vmatpush.msra.mxu0 %v4241
    %4343 = vmatpush.msra.mxu0 %v4237
    %4344 = vmatpush.msra.mxu0 %v4233
    %4345 = vmatmul.f32.gmra.mxu0 %v3992
    %v4346 = vpop.f32.mrf.mxu0
    %v4347 = vadd.f32 %v4299, %v4346
    %4348 = vmatmul.f32.gmra.mxu0 %v3993
    %v4349 = vpop.f32.mrf.mxu0
    %v4350 = vadd.f32 %v4299, %v4349
    %4351 = vdwg.mxu0
    %4352 = vmatpush.msra.mxu0 %v4294
    %4353 = vmatpush.msra.mxu0 %v4290
    %4354 = vmatpush.msra.mxu0 %v4286
    %4355 = vmatpush.msra.mxu0 %v4282
    %4356 = vmatpush.msra.mxu0 %v4278
    %4357 = vmatpush.msra.mxu0 %v4274
    %4358 = vmatpush.msra.mxu0 %v4270
    %4359 = vmatpush.msra.mxu0 %v4266
    %4360 = vmatpush.msra.mxu0 %v4262
    %4361 = vmatpush.msra.mxu0 %v4258
    %4362 = vmatpush.msra.mxu0 %v4254
    %4363 = vmatpush.msra.mxu0 %v4250
    %4364 = vmatpush.msra.mxu0 %v4246
    %4365 = vmatpush.msra.mxu0 %v4242
    %4366 = vmatpush.msra.mxu0 %v4238
    %4367 = vmatpush.msra.mxu0 %v4234
    %4368 = vmatmul.f32.gmra.mxu0 %v3992
    %v4369 = vpop.f32.mrf.mxu0
    %v4370 = vadd.f32 %v4300, %v4369
    %4371 = vmatmul.f32.gmra.mxu0 %v3993
    %v4372 = vpop.f32.mrf.mxu0
    %v4373 = vadd.f32 %v4300, %v4372
    %4374 = vdwg.mxu0
    %4375 = vmatpush.msra.mxu0 %v4295
    %4376 = vmatpush.msra.mxu0 %v4291
    %4377 = vmatpush.msra.mxu0 %v4287
    %4378 = vmatpush.msra.mxu0 %v4283
    %4379 = vmatpush.msra.mxu0 %v4279
    %4380 = vmatpush.msra.mxu0 %v4275
    %4381 = vmatpush.msra.mxu0 %v4271
    %4382 = vmatpush.msra.mxu0 %v4267
    %4383 = vmatpush.msra.mxu0 %v4263
    %4384 = vmatpush.msra.mxu0 %v4259
    %4385 = vmatpush.msra.mxu0 %v4255
    %4386 = vmatpush.msra.mxu0 %v4251
    %4387 = vmatpush.msra.mxu0 %v4247
    %4388 = vmatpush.msra.mxu0 %v4243
    %4389 = vmatpush.msra.mxu0 %v4239
    %4390 = vmatpush.msra.mxu0 %v4235
    %4391 = vmatmul.f32.gmra.mxu0 %v3992
    %v4392 = vpop.f32.mrf.mxu0
    %v4393 = vadd.f32 %v4301, %v4392
    %4394 = vmatmul.f32.gmra.mxu0 %v3993
    %v4395 = vpop.f32.mrf.mxu0
    %v4396 = vadd.f32 %v4301, %v4395
    %4397 = vdwg.mxu0
    %v4398 = vmax.f32 %v4324, 0.0
    %v4399 = vmax.f32 %v4347, 0.0
    %v4400 = vmax.f32 %v4370, 0.0
    %v4401 = vmax.f32 %v4393, 0.0
    %v4402 = vmax.f32 %v4327, 0.0
    %v4403 = vmax.f32 %v4350, 0.0
    %v4404 = vmax.f32 %v4373, 0.0
    %v4405 = vmax.f32 %v4396, 0.0
    %v4406 = vld [vmem:[#allocation25 + $0x200] sm:$0xff]
    %v4407 = vld [vmem:[#allocation25 + $0x208] sm:$0xff]
    %v4408 = vld [vmem:[#allocation25 + $0x210] sm:$0xff]
    %v4409 = vld [vmem:[#allocation25 + $0x218] sm:$0xff]
    %v4410 = vld [vmem:[#allocation25 + $0x220] sm:$0xff]
    %v4411 = vld [vmem:[#allocation25 + $0x228] sm:$0xff]
    %v4412 = vld [vmem:[#allocation25 + $0x230] sm:$0xff]
    %v4413 = vld [vmem:[#allocation25 + $0x238] sm:$0xff]
    %v4414 = vld [vmem:[#allocation25 + $0x240] sm:$0xff]
    %v4415 = vld [vmem:[#allocation25 + $0x248] sm:$0xff]
    %v4416 = vld [vmem:[#allocation25 + $0x250] sm:$0xff]
    %v4417 = vld [vmem:[#allocation25 + $0x258] sm:$0xff]
    %v4418 = vld [vmem:[#allocation25 + $0x260] sm:$0xff]
    %v4419 = vld [vmem:[#allocation25 + $0x268] sm:$0xff]
    %v4420 = vld [vmem:[#allocation25 + $0x270] sm:$0xff]
    %v4421 = vld [vmem:[#allocation25 + $0x278] sm:$0xff]
    %v4422 = vld [vmem:[#allocation25 + $0x280] sm:$0xff]
    %v4423 = vld [vmem:[#allocation25 + $0x288] sm:$0xff]
    %v4424 = vld [vmem:[#allocation25 + $0x290] sm:$0xff]
    %v4425 = vld [vmem:[#allocation25 + $0x298] sm:$0xff]
    %v4426 = vld [vmem:[#allocation25 + $0x2a0] sm:$0xff]
    %v4427 = vld [vmem:[#allocation25 + $0x2a8] sm:$0xff]
    %v4428 = vld [vmem:[#allocation25 + $0x2b0] sm:$0xff]
    %v4429 = vld [vmem:[#allocation25 + $0x2b8] sm:$0xff]
    %v4430 = vld [vmem:[#allocation25 + $0x2c0] sm:$0xff]
    %v4431 = vld [vmem:[#allocation25 + $0x2c8] sm:$0xff]
    %v4432 = vld [vmem:[#allocation25 + $0x2d0] sm:$0xff]
    %v4433 = vld [vmem:[#allocation25 + $0x2d8] sm:$0xff]
    %v4434 = vld [vmem:[#allocation25 + $0x2e0] sm:$0xff]
    %v4435 = vld [vmem:[#allocation25 + $0x2e8] sm:$0xff]
    %v4436 = vld [vmem:[#allocation25 + $0x2f0] sm:$0xff]
    %v4437 = vld [vmem:[#allocation25 + $0x2f8] sm:$0xff]
    %v4438 = vld [vmem:[#allocation25 + $0x300] sm:$0xff]
    %v4439 = vld [vmem:[#allocation25 + $0x308] sm:$0xff]
    %v4440 = vld [vmem:[#allocation25 + $0x310] sm:$0xff]
    %v4441 = vld [vmem:[#allocation25 + $0x318] sm:$0xff]
    %v4442 = vld [vmem:[#allocation25 + $0x320] sm:$0xff]
    %v4443 = vld [vmem:[#allocation25 + $0x328] sm:$0xff]
    %v4444 = vld [vmem:[#allocation25 + $0x330] sm:$0xff]
    %v4445 = vld [vmem:[#allocation25 + $0x338] sm:$0xff]
    %v4446 = vld [vmem:[#allocation25 + $0x340] sm:$0xff]
    %v4447 = vld [vmem:[#allocation25 + $0x348] sm:$0xff]
    %v4448 = vld [vmem:[#allocation25 + $0x350] sm:$0xff]
    %v4449 = vld [vmem:[#allocation25 + $0x358] sm:$0xff]
    %v4450 = vld [vmem:[#allocation25 + $0x360] sm:$0xff]
    %v4451 = vld [vmem:[#allocation25 + $0x368] sm:$0xff]
    %v4452 = vld [vmem:[#allocation25 + $0x370] sm:$0xff]
    %v4453 = vld [vmem:[#allocation25 + $0x378] sm:$0xff]
    %v4454 = vld [vmem:[#allocation25 + $0x380] sm:$0xff]
    %v4455 = vld [vmem:[#allocation25 + $0x388] sm:$0xff]
    %v4456 = vld [vmem:[#allocation25 + $0x390] sm:$0xff]
    %v4457 = vld [vmem:[#allocation25 + $0x398] sm:$0xff]
    %v4458 = vld [vmem:[#allocation25 + $0x3a0] sm:$0xff]
    %v4459 = vld [vmem:[#allocation25 + $0x3a8] sm:$0xff]
    %v4460 = vld [vmem:[#allocation25 + $0x3b0] sm:$0xff]
    %v4461 = vld [vmem:[#allocation25 + $0x3b8] sm:$0xff]
    %v4462 = vld [vmem:[#allocation25 + $0x3c0] sm:$0xff]
    %v4463 = vld [vmem:[#allocation25 + $0x3c8] sm:$0xff]
    %v4464 = vld [vmem:[#allocation25 + $0x3d0] sm:$0xff]
    %v4465 = vld [vmem:[#allocation25 + $0x3d8] sm:$0xff]
    %v4466 = vld [vmem:[#allocation25 + $0x3e0] sm:$0xff]
    %v4467 = vld [vmem:[#allocation25 + $0x3e8] sm:$0xff]
    %v4468 = vld [vmem:[#allocation25 + $0x3f0] sm:$0xff]
    %v4469 = vld [vmem:[#allocation25 + $0x3f8] sm:$0xff]
    %4470 = vmatpush.msra.mxu0 %v4421
    %4471 = vmatpush.msra.mxu0 %v4420
    %4472 = vmatpush.msra.mxu0 %v4419
    %4473 = vmatpush.msra.mxu0 %v4418
    %4474 = vmatpush.msra.mxu0 %v4417
    %4475 = vmatpush.msra.mxu0 %v4416
    %4476 = vmatpush.msra.mxu0 %v4415
    %4477 = vmatpush.msra.mxu0 %v4414
    %4478 = vmatpush.msra.mxu0 %v4413
    %4479 = vmatpush.msra.mxu0 %v4412
    %4480 = vmatpush.msra.mxu0 %v4411
    %4481 = vmatpush.msra.mxu0 %v4410
    %4482 = vmatpush.msra.mxu0 %v4409
    %4483 = vmatpush.msra.mxu0 %v4408
    %4484 = vmatpush.msra.mxu0 %v4407
    %4485 = vmatpush.msra.mxu0 %v4406
    %4486 = vmatmul.f32.gmra.mxu0 %v4398
    %v4487 = vpop.f32.mrf.mxu0
    %4488 = vmatmul.f32.gmra.mxu0 %v4402
    %v4489 = vpop.f32.mrf.mxu0
    %v4490 = vadd.f32 0.0, %v4489
    %4491 = vdwg.mxu0
    %4492 = vmatpush.msra.mxu0 %v4437
    %4493 = vmatpush.msra.mxu0 %v4436
    %4494 = vmatpush.msra.mxu0 %v4435
    %4495 = vmatpush.msra.mxu0 %v4434
    %4496 = vmatpush.msra.mxu0 %v4433
    %4497 = vmatpush.msra.mxu0 %v4432
    %4498 = vmatpush.msra.mxu0 %v4431
    %4499 = vmatpush.msra.mxu0 %v4430
    %4500 = vmatpush.msra.mxu0 %v4429
    %4501 = vmatpush.msra.mxu0 %v4428
    %4502 = vmatpush.msra.mxu0 %v4427
    %4503 = vmatpush.msra.mxu0 %v4426
    %4504 = vmatpush.msra.mxu0 %v4425
    %4505 = vmatpush.msra.mxu0 %v4424
    %4506 = vmatpush.msra.mxu0 %v4423
    %4507 = vmatpush.msra.mxu0 %v4422
    %4508 = vmatmul.f32.gmra.mxu0 %v4399
    %v4509 = vpop.f32.mrf.mxu0
    %4510 = vmatmul.f32.gmra.mxu0 %v4403
    %v4511 = vpop.f32.mrf.mxu0
    %v4512 = vadd.f32 %v4490, %v4511
    %4513 = vdwg.mxu0
    %4514 = vmatpush.msra.mxu0 %v4453
    %4515 = vmatpush.msra.mxu0 %v4452
    %4516 = vmatpush.msra.mxu0 %v4451
    %4517 = vmatpush.msra.mxu0 %v4450
    %4518 = vmatpush.msra.mxu0 %v4449
    %4519 = vmatpush.msra.mxu0 %v4448
    %4520 = vmatpush.msra.mxu0 %v4447
    %4521 = vmatpush.msra.mxu0 %v4446
    %4522 = vmatpush.msra.mxu0 %v4445
    %4523 = vmatpush.msra.mxu0 %v4444
    %4524 = vmatpush.msra.mxu0 %v4443
    %4525 = vmatpush.msra.mxu0 %v4442
    %4526 = vmatpush.msra.mxu0 %v4441
    %4527 = vmatpush.msra.mxu0 %v4440
    %4528 = vmatpush.msra.mxu0 %v4439
    %4529 = vmatpush.msra.mxu0 %v4438
    %4530 = vmatmul.f32.gmra.mxu0 %v4400
    %v4531 = vpop.f32.mrf.mxu0
    %4532 = vmatmul.f32.gmra.mxu0 %v4404
    %v4533 = vpop.f32.mrf.mxu0
    %v4534 = vadd.f32 %v4512, %v4533
    %4535 = vdwg.mxu0
    %4536 = vmatpush.msra.mxu0 %v4469
    %4537 = vmatpush.msra.mxu0 %v4468
    %4538 = vmatpush.msra.mxu0 %v4467
    %4539 = vmatpush.msra.mxu0 %v4466
    %4540 = vmatpush.msra.mxu0 %v4465
    %4541 = vmatpush.msra.mxu0 %v4464
    %4542 = vmatpush.msra.mxu0 %v4463
    %4543 = vmatpush.msra.mxu0 %v4462
    %4544 = vmatpush.msra.mxu0 %v4461
    %4545 = vmatpush.msra.mxu0 %v4460
    %4546 = vmatpush.msra.mxu0 %v4459
    %4547 = vmatpush.msra.mxu0 %v4458
    %4548 = vmatpush.msra.mxu0 %v4457
    %4549 = vmatpush.msra.mxu0 %v4456
    %4550 = vmatpush.msra.mxu0 %v4455
    %4551 = vmatpush.msra.mxu0 %v4454
    %4552 = vmatmul.f32.gmra.mxu0 %v4401
    %v4553 = vpop.f32.mrf.mxu0
    %4554 = vmatmul.f32.gmra.mxu0 %v4405
    %v4555 = vpop.f32.mrf.mxu0
    %v4556 = vadd.f32 %v4534, %v4555
    %4557 = vdwg.mxu0
    %4558 = vmatpush.msra.mxu0 %v4183
    %4559 = vmatpush.msra.mxu0 %v4182
    %4560 = vmatpush.msra.mxu0 %v4181
    %4561 = vmatpush.msra.mxu0 %v4180
    %4562 = vmatpush.msra.mxu0 %v4179
    %4563 = vmatpush.msra.mxu0 %v4178
    %4564 = vmatpush.msra.mxu0 %v4177
    %4565 = vmatpush.msra.mxu0 %v4176
    %4566 = vmatpush.msra.mxu0 %v4175
    %4567 = vmatpush.msra.mxu0 %v4174
    %4568 = vmatpush.msra.mxu0 %v4173
    %4569 = vmatpush.msra.mxu0 %v4172
    %4570 = vmatpush.msra.mxu0 %v4171
    %4571 = vmatpush.msra.mxu0 %v4170
    %4572 = vmatpush.msra.mxu0 %v4169
    %4573 = vmatpush.msra.mxu0 %v4168
    %4574 = vmatmul.f32.gmra.mxu0 %v4160
    %v4575 = vpop.f32.mrf.mxu0
    %4576 = vmatmul.f32.gmra.mxu0 %v4164
    %v4577 = vpop.f32.mrf.mxu0
    %v4578 = vadd.f32 %v4556, %v4577
    %4579 = vdwg.mxu0
    %4580 = vmatpush.msra.mxu0 %v4199
    %4581 = vmatpush.msra.mxu0 %v4198
    %4582 = vmatpush.msra.mxu0 %v4197
    %4583 = vmatpush.msra.mxu0 %v4196
    %4584 = vmatpush.msra.mxu0 %v4195
    %4585 = vmatpush.msra.mxu0 %v4194
    %4586 = vmatpush.msra.mxu0 %v4193
    %4587 = vmatpush.msra.mxu0 %v4192
    %4588 = vmatpush.msra.mxu0 %v4191
    %4589 = vmatpush.msra.mxu0 %v4190
    %4590 = vmatpush.msra.mxu0 %v4189
    %4591 = vmatpush.msra.mxu0 %v4188
    %4592 = vmatpush.msra.mxu0 %v4187
    %4593 = vmatpush.msra.mxu0 %v4186
    %4594 = vmatpush.msra.mxu0 %v4185
    %4595 = vmatpush.msra.mxu0 %v4184
    %4596 = vmatmul.f32.gmra.mxu0 %v4161
    %v4597 = vpop.f32.mrf.mxu0
    %4598 = vmatmul.f32.gmra.mxu0 %v4165
    %v4599 = vpop.f32.mrf.mxu0
    %v4600 = vadd.f32 %v4578, %v4599
    %4601 = vdwg.mxu0
    %4602 = vmatpush.msra.mxu0 %v4215
    %4603 = vmatpush.msra.mxu0 %v4214
    %4604 = vmatpush.msra.mxu0 %v4213
    %4605 = vmatpush.msra.mxu0 %v4212
    %4606 = vmatpush.msra.mxu0 %v4211
    %4607 = vmatpush.msra.mxu0 %v4210
    %4608 = vmatpush.msra.mxu0 %v4209
    %4609 = vmatpush.msra.mxu0 %v4208
    %4610 = vmatpush.msra.mxu0 %v4207
    %4611 = vmatpush.msra.mxu0 %v4206
    %4612 = vmatpush.msra.mxu0 %v4205
    %4613 = vmatpush.msra.mxu0 %v4204
    %4614 = vmatpush.msra.mxu0 %v4203
    %4615 = vmatpush.msra.mxu0 %v4202
    %4616 = vmatpush.msra.mxu0 %v4201
    %4617 = vmatpush.msra.mxu0 %v4200
    %4618 = vmatmul.f32.gmra.mxu0 %v4162
    %v4619 = vpop.f32.mrf.mxu0
    %4620 = vmatmul.f32.gmra.mxu0 %v4166
    %v4621 = vpop.f32.mrf.mxu0
    %v4622 = vadd.f32 %v4600, %v4621
    %4623 = vdwg.mxu0
    %4624 = vmatpush.msra.mxu0 %v4231
    %4625 = vmatpush.msra.mxu0 %v4230
    %4626 = vmatpush.msra.mxu0 %v4229
    %4627 = vmatpush.msra.mxu0 %v4228
    %4628 = vmatpush.msra.mxu0 %v4227
    %4629 = vmatpush.msra.mxu0 %v4226
    %4630 = vmatpush.msra.mxu0 %v4225
    %4631 = vmatpush.msra.mxu0 %v4224
    %4632 = vmatpush.msra.mxu0 %v4223
    %4633 = vmatpush.msra.mxu0 %v4222
    %4634 = vmatpush.msra.mxu0 %v4221
    %4635 = vmatpush.msra.mxu0 %v4220
    %4636 = vmatpush.msra.mxu0 %v4219
    %4637 = vmatpush.msra.mxu0 %v4218
    %4638 = vmatpush.msra.mxu0 %v4217
    %4639 = vmatpush.msra.mxu0 %v4216
    %4640 = vmatmul.f32.gmra.mxu0 %v4163
    %v4641 = vpop.f32.mrf.mxu0
    %4642 = vmatmul.f32.gmra.mxu0 %v4167
    %v4643 = vpop.f32.mrf.mxu0
    %v4644 = vadd.f32 %v4622, %v4643
    %4645 = vdwg.mxu0
    %v4646 = vld [vmem:[#allocation22 + $0x40] sm:$0xff]
    %v4647 = vld [vmem:[#allocation22 + $0x48] sm:$0xff]
    %v4648 = vld [vmem:[#allocation22 + $0x50] sm:$0xff]
    %v4649 = vld [vmem:[#allocation22 + $0x58] sm:$0xff]
    %v4650 = vld [vmem:[#allocation22 + $0xc0] sm:$0xff]
    %v4651 = vld [vmem:[#allocation22 + $0xc8] sm:$0xff]
    %v4652 = vld [vmem:[#allocation22 + $0xd0] sm:$0xff]
    %v4653 = vld [vmem:[#allocation22 + $0xd8] sm:$0xff]
    %v4654 = vld [vmem:[#allocation22 + $0x140] sm:$0xff]
    %v4655 = vld [vmem:[#allocation22 + $0x148] sm:$0xff]
    %v4656 = vld [vmem:[#allocation22 + $0x150] sm:$0xff]
    %v4657 = vld [vmem:[#allocation22 + $0x158] sm:$0xff]
    %v4658 = vld [vmem:[#allocation22 + $0x1c0] sm:$0xff]
    %v4659 = vld [vmem:[#allocation22 + $0x1c8] sm:$0xff]
    %v4660 = vld [vmem:[#allocation22 + $0x1d0] sm:$0xff]
    %v4661 = vld [vmem:[#allocation22 + $0x1d8] sm:$0xff]
    %v4662 = vld [vmem:[#allocation22 + $0x240] sm:$0xff]
    %v4663 = vld [vmem:[#allocation22 + $0x248] sm:$0xff]
    %v4664 = vld [vmem:[#allocation22 + $0x250] sm:$0xff]
    %v4665 = vld [vmem:[#allocation22 + $0x258] sm:$0xff]
    %v4666 = vld [vmem:[#allocation22 + $0x2c0] sm:$0xff]
    %v4667 = vld [vmem:[#allocation22 + $0x2c8] sm:$0xff]
    %v4668 = vld [vmem:[#allocation22 + $0x2d0] sm:$0xff]
    %v4669 = vld [vmem:[#allocation22 + $0x2d8] sm:$0xff]
    %v4670 = vld [vmem:[#allocation22 + $0x340] sm:$0xff]
    %v4671 = vld [vmem:[#allocation22 + $0x348] sm:$0xff]
    %v4672 = vld [vmem:[#allocation22 + $0x350] sm:$0xff]
    %v4673 = vld [vmem:[#allocation22 + $0x358] sm:$0xff]
    %v4674 = vld [vmem:[#allocation22 + $0x3c0] sm:$0xff]
    %v4675 = vld [vmem:[#allocation22 + $0x3c8] sm:$0xff]
    %v4676 = vld [vmem:[#allocation22 + $0x3d0] sm:$0xff]
    %v4677 = vld [vmem:[#allocation22 + $0x3d8] sm:$0xff]
    %v4678 = vld [vmem:[#allocation22 + $0x440] sm:$0xff]
    %v4679 = vld [vmem:[#allocation22 + $0x448] sm:$0xff]
    %v4680 = vld [vmem:[#allocation22 + $0x450] sm:$0xff]
    %v4681 = vld [vmem:[#allocation22 + $0x458] sm:$0xff]
    %v4682 = vld [vmem:[#allocation22 + $0x4c0] sm:$0xff]
    %v4683 = vld [vmem:[#allocation22 + $0x4c8] sm:$0xff]
    %v4684 = vld [vmem:[#allocation22 + $0x4d0] sm:$0xff]
    %v4685 = vld [vmem:[#allocation22 + $0x4d8] sm:$0xff]
    %v4686 = vld [vmem:[#allocation22 + $0x540] sm:$0xff]
    %v4687 = vld [vmem:[#allocation22 + $0x548] sm:$0xff]
    %v4688 = vld [vmem:[#allocation22 + $0x550] sm:$0xff]
    %v4689 = vld [vmem:[#allocation22 + $0x558] sm:$0xff]
    %v4690 = vld [vmem:[#allocation22 + $0x5c0] sm:$0xff]
    %v4691 = vld [vmem:[#allocation22 + $0x5c8] sm:$0xff]
    %v4692 = vld [vmem:[#allocation22 + $0x5d0] sm:$0xff]
    %v4693 = vld [vmem:[#allocation22 + $0x5d8] sm:$0xff]
    %v4694 = vld [vmem:[#allocation22 + $0x640] sm:$0xff]
    %v4695 = vld [vmem:[#allocation22 + $0x648] sm:$0xff]
    %v4696 = vld [vmem:[#allocation22 + $0x650] sm:$0xff]
    %v4697 = vld [vmem:[#allocation22 + $0x658] sm:$0xff]
    %v4698 = vld [vmem:[#allocation22 + $0x6c0] sm:$0xff]
    %v4699 = vld [vmem:[#allocation22 + $0x6c8] sm:$0xff]
    %v4700 = vld [vmem:[#allocation22 + $0x6d0] sm:$0xff]
    %v4701 = vld [vmem:[#allocation22 + $0x6d8] sm:$0xff]
    %v4702 = vld [vmem:[#allocation22 + $0x740] sm:$0xff]
    %v4703 = vld [vmem:[#allocation22 + $0x748] sm:$0xff]
    %v4704 = vld [vmem:[#allocation22 + $0x750] sm:$0xff]
    %v4705 = vld [vmem:[#allocation22 + $0x758] sm:$0xff]
    %v4706 = vld [vmem:[#allocation22 + $0x7c0] sm:$0xff]
    %v4707 = vld [vmem:[#allocation22 + $0x7c8] sm:$0xff]
    %v4708 = vld [vmem:[#allocation22 + $0x7d0] sm:$0xff]
    %v4709 = vld [vmem:[#allocation22 + $0x7d8] sm:$0xff]
    %v4710 = vld [vmem:[#allocation24 + $0x8] sm:$0xf]
    %v4712 = vperm.slane %v4710, 0
    %v4713 = vperm.slane %v4710, 1
    %v4714 = vperm.slane %v4710, 2
    %v4715 = vperm.slane %v4710, 3
    %4720 = vmatpush.msra.mxu0 %v4706
    %4721 = vmatpush.msra.mxu0 %v4702
    %4722 = vmatpush.msra.mxu0 %v4698
    %4723 = vmatpush.msra.mxu0 %v4694
    %4724 = vmatpush.msra.mxu0 %v4690
    %4725 = vmatpush.msra.mxu0 %v4686
    %4726 = vmatpush.msra.mxu0 %v4682
    %4727 = vmatpush.msra.mxu0 %v4678
    %4728 = vmatpush.msra.mxu0 %v4674
    %4729 = vmatpush.msra.mxu0 %v4670
    %4730 = vmatpush.msra.mxu0 %v4666
    %4731 = vmatpush.msra.mxu0 %v4662
    %4732 = vmatpush.msra.mxu0 %v4658
    %4733 = vmatpush.msra.mxu0 %v4654
    %4734 = vmatpush.msra.mxu0 %v4650
    %4735 = vmatpush.msra.mxu0 %v4646
    %4736 = vmatmul.f32.gmra.mxu0 %v3992
    %v4737 = vpop.f32.mrf.mxu0
    %v4738 = vadd.f32 %v4712, %v4737
    %4739 = vmatmul.f32.gmra.mxu0 %v3993
    %v4740 = vpop.f32.mrf.mxu0
    %v4741 = vadd.f32 %v4712, %v4740
    %4742 = vdwg.mxu0
    %4743 = vmatpush.msra.mxu0 %v4707
    %4744 = vmatpush.msra.mxu0 %v4703
    %4745 = vmatpush.msra.mxu0 %v4699
    %4746 = vmatpush.msra.mxu0 %v4695
    %4747 = vmatpush.msra.mxu0 %v4691
    %4748 = vmatpush.msra.mxu0 %v4687
    %4749 = vmatpush.msra.mxu0 %v4683
    %4750 = vmatpush.msra.mxu0 %v4679
    %4751 = vmatpush.msra.mxu0 %v4675
    %4752 = vmatpush.msra.mxu0 %v4671
    %4753 = vmatpush.msra.mxu0 %v4667
    %4754 = vmatpush.msra.mxu0 %v4663
    %4755 = vmatpush.msra.mxu0 %v4659
    %4756 = vmatpush.msra.mxu0 %v4655
    %4757 = vmatpush.msra.mxu0 %v4651
    %4758 = vmatpush.msra.mxu0 %v4647
    %4759 = vmatmul.f32.gmra.mxu0 %v3992
    %v4760 = vpop.f32.mrf.mxu0
    %v4761 = vadd.f32 %v4713, %v4760
    %4762 = vmatmul.f32.gmra.mxu0 %v3993
    %v4763 = vpop.f32.mrf.mxu0
    %v4764 = vadd.f32 %v4713, %v4763
    %4765 = vdwg.mxu0
    %4766 = vmatpush.msra.mxu0 %v4708
    %4767 = vmatpush.msra.mxu0 %v4704
    %4768 = vmatpush.msra.mxu0 %v4700
    %4769 = vmatpush.msra.mxu0 %v4696
    %4770 = vmatpush.msra.mxu0 %v4692
    %4771 = vmatpush.msra.mxu0 %v4688
    %4772 = vmatpush.msra.mxu0 %v4684
    %4773 = vmatpush.msra.mxu0 %v4680
    %4774 = vmatpush.msra.mxu0 %v4676
    %4775 = vmatpush.msra.mxu0 %v4672
    %4776 = vmatpush.msra.mxu0 %v4668
    %4777 = vmatpush.msra.mxu0 %v4664
    %4778 = vmatpush.msra.mxu0 %v4660
    %4779 = vmatpush.msra.mxu0 %v4656
    %4780 = vmatpush.msra.mxu0 %v4652
    %4781 = vmatpush.msra.mxu0 %v4648
    %4782 = vmatmul.f32.gmra.mxu0 %v3992
    %v4783 = vpop.f32.mrf.mxu0
    %v4784 = vadd.f32 %v4714, %v4783
    %4785 = vmatmul.f32.gmra.mxu0 %v3993
    %v4786 = vpop.f32.mrf.mxu0
    %v4787 = vadd.f32 %v4714, %v4786
    %4788 = vdwg.mxu0
    %4789 = vmatpush.msra.mxu0 %v4709
    %4790 = vmatpush.msra.mxu0 %v4705
    %4791 = vmatpush.msra.mxu0 %v4701
    %4792 = vmatpush.msra.mxu0 %v4697
    %4793 = vmatpush.msra.mxu0 %v4693
    %4794 = vmatpush.msra.mxu0 %v4689
    %4795 = vmatpush.msra.mxu0 %v4685
    %4796 = vmatpush.msra.mxu0 %v4681
    %4797 = vmatpush.msra.mxu0 %v4677
    %4798 = vmatpush.msra.mxu0 %v4673
    %4799 = vmatpush.msra.mxu0 %v4669
    %4800 = vmatpush.msra.mxu0 %v4665
    %4801 = vmatpush.msra.mxu0 %v4661
    %4802 = vmatpush.msra.mxu0 %v4657
    %4803 = vmatpush.msra.mxu0 %v4653
    %4804 = vmatpush.msra.mxu0 %v4649
    %4805 = vmatmul.f32.gmra.mxu0 %v3992
    %v4806 = vpop.f32.mrf.mxu0
    %v4807 = vadd.f32 %v4715, %v4806
    %4808 = vmatmul.f32.gmra.mxu0 %v3993
    %v4809 = vpop.f32.mrf.mxu0
    %v4810 = vadd.f32 %v4715, %v4809
    %4811 = vdwg.mxu0
    %v4812 = vmax.f32 %v4738, 0.0
    %v4813 = vmax.f32 %v4761, 0.0
    %v4814 = vmax.f32 %v4784, 0.0
    %v4815 = vmax.f32 %v4807, 0.0
    %v4816 = vmax.f32 %v4741, 0.0
    %v4817 = vmax.f32 %v4764, 0.0
    %v4818 = vmax.f32 %v4787, 0.0
    %v4819 = vmax.f32 %v4810, 0.0
    %v4820 = vld [vmem:[#allocation25 + $0x400] sm:$0xff]
    %v4821 = vld [vmem:[#allocation25 + $0x408] sm:$0xff]
    %v4822 = vld [vmem:[#allocation25 + $0x410] sm:$0xff]
    %v4823 = vld [vmem:[#allocation25 + $0x418] sm:$0xff]
    %v4824 = vld [vmem:[#allocation25 + $0x420] sm:$0xff]
    %v4825 = vld [vmem:[#allocation25 + $0x428] sm:$0xff]
    %v4826 = vld [vmem:[#allocation25 + $0x430] sm:$0xff]
    %v4827 = vld [vmem:[#allocation25 + $0x438] sm:$0xff]
    %v4828 = vld [vmem:[#allocation25 + $0x440] sm:$0xff]
    %v4829 = vld [vmem:[#allocation25 + $0x448] sm:$0xff]
    %v4830 = vld [vmem:[#allocation25 + $0x450] sm:$0xff]
    %v4831 = vld [vmem:[#allocation25 + $0x458] sm:$0xff]
    %v4832 = vld [vmem:[#allocation25 + $0x460] sm:$0xff]
    %v4833 = vld [vmem:[#allocation25 + $0x468] sm:$0xff]
    %v4834 = vld [vmem:[#allocation25 + $0x470] sm:$0xff]
    %v4835 = vld [vmem:[#allocation25 + $0x478] sm:$0xff]
    %v4836 = vld [vmem:[#allocation25 + $0x480] sm:$0xff]
    %v4837 = vld [vmem:[#allocation25 + $0x488] sm:$0xff]
    %v4838 = vld [vmem:[#allocation25 + $0x490] sm:$0xff]
    %v4839 = vld [vmem:[#allocation25 + $0x498] sm:$0xff]
    %v4840 = vld [vmem:[#allocation25 + $0x4a0] sm:$0xff]
    %v4841 = vld [vmem:[#allocation25 + $0x4a8] sm:$0xff]
    %v4842 = vld [vmem:[#allocation25 + $0x4b0] sm:$0xff]
    %v4843 = vld [vmem:[#allocation25 + $0x4b8] sm:$0xff]
    %v4844 = vld [vmem:[#allocation25 + $0x4c0] sm:$0xff]
    %v4845 = vld [vmem:[#allocation25 + $0x4c8] sm:$0xff]
    %v4846 = vld [vmem:[#allocation25 + $0x4d0] sm:$0xff]
    %v4847 = vld [vmem:[#allocation25 + $0x4d8] sm:$0xff]
    %v4848 = vld [vmem:[#allocation25 + $0x4e0] sm:$0xff]
    %v4849 = vld [vmem:[#allocation25 + $0x4e8] sm:$0xff]
    %v4850 = vld [vmem:[#allocation25 + $0x4f0] sm:$0xff]
    %v4851 = vld [vmem:[#allocation25 + $0x4f8] sm:$0xff]
    %v4852 = vld [vmem:[#allocation25 + $0x500] sm:$0xff]
    %v4853 = vld [vmem:[#allocation25 + $0x508] sm:$0xff]
    %v4854 = vld [vmem:[#allocation25 + $0x510] sm:$0xff]
    %v4855 = vld [vmem:[#allocation25 + $0x518] sm:$0xff]
    %v4856 = vld [vmem:[#allocation25 + $0x520] sm:$0xff]
    %v4857 = vld [vmem:[#allocation25 + $0x528] sm:$0xff]
    %v4858 = vld [vmem:[#allocation25 + $0x530] sm:$0xff]
    %v4859 = vld [vmem:[#allocation25 + $0x538] sm:$0xff]
    %v4860 = vld [vmem:[#allocation25 + $0x540] sm:$0xff]
    %v4861 = vld [vmem:[#allocation25 + $0x548] sm:$0xff]
    %v4862 = vld [vmem:[#allocation25 + $0x550] sm:$0xff]
    %v4863 = vld [vmem:[#allocation25 + $0x558] sm:$0xff]
    %v4864 = vld [vmem:[#allocation25 + $0x560] sm:$0xff]
    %v4865 = vld [vmem:[#allocation25 + $0x568] sm:$0xff]
    %v4866 = vld [vmem:[#allocation25 + $0x570] sm:$0xff]
    %v4867 = vld [vmem:[#allocation25 + $0x578] sm:$0xff]
    %v4868 = vld [vmem:[#allocation25 + $0x580] sm:$0xff]
    %v4869 = vld [vmem:[#allocation25 + $0x588] sm:$0xff]
    %v4870 = vld [vmem:[#allocation25 + $0x590] sm:$0xff]
    %v4871 = vld [vmem:[#allocation25 + $0x598] sm:$0xff]
    %v4872 = vld [vmem:[#allocation25 + $0x5a0] sm:$0xff]
    %v4873 = vld [vmem:[#allocation25 + $0x5a8] sm:$0xff]
    %v4874 = vld [vmem:[#allocation25 + $0x5b0] sm:$0xff]
    %v4875 = vld [vmem:[#allocation25 + $0x5b8] sm:$0xff]
    %v4876 = vld [vmem:[#allocation25 + $0x5c0] sm:$0xff]
    %v4877 = vld [vmem:[#allocation25 + $0x5c8] sm:$0xff]
    %v4878 = vld [vmem:[#allocation25 + $0x5d0] sm:$0xff]
    %v4879 = vld [vmem:[#allocation25 + $0x5d8] sm:$0xff]
    %v4880 = vld [vmem:[#allocation25 + $0x5e0] sm:$0xff]
    %v4881 = vld [vmem:[#allocation25 + $0x5e8] sm:$0xff]
    %v4882 = vld [vmem:[#allocation25 + $0x5f0] sm:$0xff]
    %v4883 = vld [vmem:[#allocation25 + $0x5f8] sm:$0xff]
    %4884 = vmatpush.msra.mxu0 %v4835
    %4885 = vmatpush.msra.mxu0 %v4834
    %4886 = vmatpush.msra.mxu0 %v4833
    %4887 = vmatpush.msra.mxu0 %v4832
    %4888 = vmatpush.msra.mxu0 %v4831
    %4889 = vmatpush.msra.mxu0 %v4830
    %4890 = vmatpush.msra.mxu0 %v4829
    %4891 = vmatpush.msra.mxu0 %v4828
    %4892 = vmatpush.msra.mxu0 %v4827
    %4893 = vmatpush.msra.mxu0 %v4826
    %4894 = vmatpush.msra.mxu0 %v4825
    %4895 = vmatpush.msra.mxu0 %v4824
    %4896 = vmatpush.msra.mxu0 %v4823
    %4897 = vmatpush.msra.mxu0 %v4822
    %4898 = vmatpush.msra.mxu0 %v4821
    %4899 = vmatpush.msra.mxu0 %v4820
    %4900 = vmatmul.f32.gmra.mxu0 %v4812
    %v4901 = vpop.f32.mrf.mxu0
    %4902 = vmatmul.f32.gmra.mxu0 %v4816
    %v4903 = vpop.f32.mrf.mxu0
    %v4904 = vadd.f32 0.0, %v4903
    %4905 = vdwg.mxu0
    %4906 = vmatpush.msra.mxu0 %v4851
    %4907 = vmatpush.msra.mxu0 %v4850
    %4908 = vmatpush.msra.mxu0 %v4849
    %4909 = vmatpush.msra.mxu0 %v4848
    %4910 = vmatpush.msra.mxu0 %v4847
    %4911 = vmatpush.msra.mxu0 %v4846
    %4912 = vmatpush.msra.mxu0 %v4845
    %4913 = vmatpush.msra.mxu0 %v4844
    %4914 = vmatpush.msra.mxu0 %v4843
    %4915 = vmatpush.msra.mxu0 %v4842
    %4916 = vmatpush.msra.mxu0 %v4841
    %4917 = vmatpush.msra.mxu0 %v4840
    %4918 = vmatpush.msra.mxu0 %v4839
    %4919 = vmatpush.msra.mxu0 %v4838
    %4920 = vmatpush.msra.mxu0 %v4837
    %4921 = vmatpush.msra.mxu0 %v4836
    %4922 = vmatmul.f32.gmra.mxu0 %v4813
    %v4923 = vpop.f32.mrf.mxu0
    %4924 = vmatmul.f32.gmra.mxu0 %v4817
    %v4925 = vpop.f32.mrf.mxu0
    %v4926 = vadd.f32 %v4904, %v4925
    %4927 = vdwg.mxu0
    %4928 = vmatpush.msra.mxu0 %v4867
    %4929 = vmatpush.msra.mxu0 %v4866
    %4930 = vmatpush.msra.mxu0 %v4865
    %4931 = vmatpush.msra.mxu0 %v4864
    %4932 = vmatpush.msra.mxu0 %v4863
    %4933 = vmatpush.msra.mxu0 %v4862
    %4934 = vmatpush.msra.mxu0 %v4861
    %4935 = vmatpush.msra.mxu0 %v4860
    %4936 = vmatpush.msra.mxu0 %v4859
    %4937 = vmatpush.msra.mxu0 %v4858
    %4938 = vmatpush.msra.mxu0 %v4857
    %4939 = vmatpush.msra.mxu0 %v4856
    %4940 = vmatpush.msra.mxu0 %v4855
    %4941 = vmatpush.msra.mxu0 %v4854
    %4942 = vmatpush.msra.mxu0 %v4853
    %4943 = vmatpush.msra.mxu0 %v4852
    %4944 = vmatmul.f32.gmra.mxu0 %v4814
    %v4945 = vpop.f32.mrf.mxu0
    %4946 = vmatmul.f32.gmra.mxu0 %v4818
    %v4947 = vpop.f32.mrf.mxu0
    %v4948 = vadd.f32 %v4926, %v4947
    %4949 = vdwg.mxu0
    %4950 = vmatpush.msra.mxu0 %v4883
    %4951 = vmatpush.msra.mxu0 %v4882
    %4952 = vmatpush.msra.mxu0 %v4881
    %4953 = vmatpush.msra.mxu0 %v4880
    %4954 = vmatpush.msra.mxu0 %v4879
    %4955 = vmatpush.msra.mxu0 %v4878
    %4956 = vmatpush.msra.mxu0 %v4877
    %4957 = vmatpush.msra.mxu0 %v4876
    %4958 = vmatpush.msra.mxu0 %v4875
    %4959 = vmatpush.msra.mxu0 %v4874
    %4960 = vmatpush.msra.mxu0 %v4873
    %4961 = vmatpush.msra.mxu0 %v4872
    %4962 = vmatpush.msra.mxu0 %v4871
    %4963 = vmatpush.msra.mxu0 %v4870
    %4964 = vmatpush.msra.mxu0 %v4869
    %4965 = vmatpush.msra.mxu0 %v4868
    %4966 = vmatmul.f32.gmra.mxu0 %v4815
    %v4967 = vpop.f32.mrf.mxu0
    %4968 = vmatmul.f32.gmra.mxu0 %v4819
    %v4969 = vpop.f32.mrf.mxu0
    %v4970 = vadd.f32 %v4948, %v4969
    %4971 = vdwg.mxu0
    %v4972 = vadd.f32 %v4644, %v4970
    %v4973 = vld [vmem:[#allocation22 + $0x60] sm:$0xff]
    %v4974 = vld [vmem:[#allocation22 + $0x68] sm:$0xff]
    %v4975 = vld [vmem:[#allocation22 + $0x70] sm:$0xff]
    %v4976 = vld [vmem:[#allocation22 + $0x78] sm:$0xff]
    %v4977 = vld [vmem:[#allocation22 + $0xe0] sm:$0xff]
    %v4978 = vld [vmem:[#allocation22 + $0xe8] sm:$0xff]
    %v4979 = vld [vmem:[#allocation22 + $0xf0] sm:$0xff]
    %v4980 = vld [vmem:[#allocation22 + $0xf8] sm:$0xff]
    %v4981 = vld [vmem:[#allocation22 + $0x160] sm:$0xff]
    %v4982 = vld [vmem:[#allocation22 + $0x168] sm:$0xff]
    %v4983 = vld [vmem:[#allocation22 + $0x170] sm:$0xff]
    %v4984 = vld [vmem:[#allocation22 + $0x178] sm:$0xff]
    %v4985 = vld [vmem:[#allocation22 + $0x1e0] sm:$0xff]
    %v4986 = vld [vmem:[#allocation22 + $0x1e8] sm:$0xff]
    %v4987 = vld [vmem:[#allocation22 + $0x1f0] sm:$0xff]
    %v4988 = vld [vmem:[#allocation22 + $0x1f8] sm:$0xff]
    %v4989 = vld [vmem:[#allocation22 + $0x260] sm:$0xff]
    %v4990 = vld [vmem:[#allocation22 + $0x268] sm:$0xff]
    %v4991 = vld [vmem:[#allocation22 + $0x270] sm:$0xff]
    %v4992 = vld [vmem:[#allocation22 + $0x278] sm:$0xff]
    %v4993 = vld [vmem:[#allocation22 + $0x2e0] sm:$0xff]
    %v4994 = vld [vmem:[#allocation22 + $0x2e8] sm:$0xff]
    %v4995 = vld [vmem:[#allocation22 + $0x2f0] sm:$0xff]
    %v4996 = vld [vmem:[#allocation22 + $0x2f8] sm:$0xff]
    %v4997 = vld [vmem:[#allocation22 + $0x360] sm:$0xff]
    %v4998 = vld [vmem:[#allocation22 + $0x368] sm:$0xff]
    %v4999 = vld [vmem:[#allocation22 + $0x370] sm:$0xff]
    %v5000 = vld [vmem:[#allocation22 + $0x378] sm:$0xff]
    %v5001 = vld [vmem:[#allocation22 + $0x3e0] sm:$0xff]
    %v5002 = vld [vmem:[#allocation22 + $0x3e8] sm:$0xff]
    %v5003 = vld [vmem:[#allocation22 + $0x3f0] sm:$0xff]
    %v5004 = vld [vmem:[#allocation22 + $0x3f8] sm:$0xff]
    %v5005 = vld [vmem:[#allocation22 + $0x460] sm:$0xff]
    %v5006 = vld [vmem:[#allocation22 + $0x468] sm:$0xff]
    %v5007 = vld [vmem:[#allocation22 + $0x470] sm:$0xff]
    %v5008 = vld [vmem:[#allocation22 + $0x478] sm:$0xff]
    %v5009 = vld [vmem:[#allocation22 + $0x4e0] sm:$0xff]
    %v5010 = vld [vmem:[#allocation22 + $0x4e8] sm:$0xff]
    %v5011 = vld [vmem:[#allocation22 + $0x4f0] sm:$0xff]
    %v5012 = vld [vmem:[#allocation22 + $0x4f8] sm:$0xff]
    %v5013 = vld [vmem:[#allocation22 + $0x560] sm:$0xff]
    %v5014 = vld [vmem:[#allocation22 + $0x568] sm:$0xff]
    %v5015 = vld [vmem:[#allocation22 + $0x570] sm:$0xff]
    %v5016 = vld [vmem:[#allocation22 + $0x578] sm:$0xff]
    %v5017 = vld [vmem:[#allocation22 + $0x5e0] sm:$0xff]
    %v5018 = vld [vmem:[#allocation22 + $0x5e8] sm:$0xff]
    %v5019 = vld [vmem:[#allocation22 + $0x5f0] sm:$0xff]
    %v5020 = vld [vmem:[#allocation22 + $0x5f8] sm:$0xff]
    %v5021 = vld [vmem:[#allocation22 + $0x660] sm:$0xff]
    %v5022 = vld [vmem:[#allocation22 + $0x668] sm:$0xff]
    %v5023 = vld [vmem:[#allocation22 + $0x670] sm:$0xff]
    %v5024 = vld [vmem:[#allocation22 + $0x678] sm:$0xff]
    %v5025 = vld [vmem:[#allocation22 + $0x6e0] sm:$0xff]
    %v5026 = vld [vmem:[#allocation22 + $0x6e8] sm:$0xff]
    %v5027 = vld [vmem:[#allocation22 + $0x6f0] sm:$0xff]
    %v5028 = vld [vmem:[#allocation22 + $0x6f8] sm:$0xff]
    %v5029 = vld [vmem:[#allocation22 + $0x760] sm:$0xff]
    %v5030 = vld [vmem:[#allocation22 + $0x768] sm:$0xff]
    %v5031 = vld [vmem:[#allocation22 + $0x770] sm:$0xff]
    %v5032 = vld [vmem:[#allocation22 + $0x778] sm:$0xff]
    %v5033 = vld [vmem:[#allocation22 + $0x7e0] sm:$0xff]
    %v5034 = vld [vmem:[#allocation22 + $0x7e8] sm:$0xff]
    %v5035 = vld [vmem:[#allocation22 + $0x7f0] sm:$0xff]
    %v5036 = vld [vmem:[#allocation22 + $0x7f8] sm:$0xff]
    %v5037 = vld [vmem:[#allocation24 + $0xc] sm:$0xf]
    %v5039 = vperm.slane %v5037, 0
    %v5040 = vperm.slane %v5037, 1
    %v5041 = vperm.slane %v5037, 2
    %v5042 = vperm.slane %v5037, 3
    %5047 = vmatpush.msra.mxu0 %v5033
    %5048 = vmatpush.msra.mxu0 %v5029
    %5049 = vmatpush.msra.mxu0 %v5025
    %5050 = vmatpush.msra.mxu0 %v5021
    %5051 = vmatpush.msra.mxu0 %v5017
    %5052 = vmatpush.msra.mxu0 %v5013
    %5053 = vmatpush.msra.mxu0 %v5009
    %5054 = vmatpush.msra.mxu0 %v5005
    %5055 = vmatpush.msra.mxu0 %v5001
    %5056 = vmatpush.msra.mxu0 %v4997
    %5057 = vmatpush.msra.mxu0 %v4993
    %5058 = vmatpush.msra.mxu0 %v4989
    %5059 = vmatpush.msra.mxu0 %v4985
    %5060 = vmatpush.msra.mxu0 %v4981
    %5061 = vmatpush.msra.mxu0 %v4977
    %5062 = vmatpush.msra.mxu0 %v4973
    %5063 = vmatmul.f32.gmra.mxu0 %v3992
    %v5064 = vpop.f32.mrf.mxu0
    %v5065 = vadd.f32 %v5039, %v5064
    %5066 = vmatmul.f32.gmra.mxu0 %v3993
    %v5067 = vpop.f32.mrf.mxu0
    %v5068 = vadd.f32 %v5039, %v5067
    %5069 = vdwg.mxu0
    %5070 = vmatpush.msra.mxu0 %v5034
    %5071 = vmatpush.msra.mxu0 %v5030
    %5072 = vmatpush.msra.mxu0 %v5026
    %5073 = vmatpush.msra.mxu0 %v5022
    %5074 = vmatpush.msra.mxu0 %v5018
    %5075 = vmatpush.msra.mxu0 %v5014
    %5076 = vmatpush.msra.mxu0 %v5010
    %5077 = vmatpush.msra.mxu0 %v5006
    %5078 = vmatpush.msra.mxu0 %v5002
    %5079 = vmatpush.msra.mxu0 %v4998
    %5080 = vmatpush.msra.mxu0 %v4994
    %5081 = vmatpush.msra.mxu0 %v4990
    %5082 = vmatpush.msra.mxu0 %v4986
    %5083 = vmatpush.msra.mxu0 %v4982
    %5084 = vmatpush.msra.mxu0 %v4978
    %5085 = vmatpush.msra.mxu0 %v4974
    %5086 = vmatmul.f32.gmra.mxu0 %v3992
    %v5087 = vpop.f32.mrf.mxu0
    %v5088 = vadd.f32 %v5040, %v5087
    %5089 = vmatmul.f32.gmra.mxu0 %v3993
    %v5090 = vpop.f32.mrf.mxu0
    %v5091 = vadd.f32 %v5040, %v5090
    %5092 = vdwg.mxu0
    %5093 = vmatpush.msra.mxu0 %v5035
    %5094 = vmatpush.msra.mxu0 %v5031
    %5095 = vmatpush.msra.mxu0 %v5027
    %5096 = vmatpush.msra.mxu0 %v5023
    %5097 = vmatpush.msra.mxu0 %v5019
    %5098 = vmatpush.msra.mxu0 %v5015
    %5099 = vmatpush.msra.mxu0 %v5011
    %5100 = vmatpush.msra.mxu0 %v5007
    %5101 = vmatpush.msra.mxu0 %v5003
    %5102 = vmatpush.msra.mxu0 %v4999
    %5103 = vmatpush.msra.mxu0 %v4995
    %5104 = vmatpush.msra.mxu0 %v4991
    %5105 = vmatpush.msra.mxu0 %v4987
    %5106 = vmatpush.msra.mxu0 %v4983
    %5107 = vmatpush.msra.mxu0 %v4979
    %5108 = vmatpush.msra.mxu0 %v4975
    %5109 = vmatmul.f32.gmra.mxu0 %v3992
    %v5110 = vpop.f32.mrf.mxu0
    %v5111 = vadd.f32 %v5041, %v5110
    %5112 = vmatmul.f32.gmra.mxu0 %v3993
    %v5113 = vpop.f32.mrf.mxu0
    %v5114 = vadd.f32 %v5041, %v5113
    %5115 = vdwg.mxu0
    %5116 = vmatpush.msra.mxu0 %v5036
    %5117 = vmatpush.msra.mxu0 %v5032
    %5118 = vmatpush.msra.mxu0 %v5028
    %5119 = vmatpush.msra.mxu0 %v5024
    %5120 = vmatpush.msra.mxu0 %v5020
    %5121 = vmatpush.msra.mxu0 %v5016
    %5122 = vmatpush.msra.mxu0 %v5012
    %5123 = vmatpush.msra.mxu0 %v5008
    %5124 = vmatpush.msra.mxu0 %v5004
    %5125 = vmatpush.msra.mxu0 %v5000
    %5126 = vmatpush.msra.mxu0 %v4996
    %5127 = vmatpush.msra.mxu0 %v4992
    %5128 = vmatpush.msra.mxu0 %v4988
    %5129 = vmatpush.msra.mxu0 %v4984
    %5130 = vmatpush.msra.mxu0 %v4980
    %5131 = vmatpush.msra.mxu0 %v4976
    %5132 = vmatmul.f32.gmra.mxu0 %v3992
    %v5133 = vpop.f32.mrf.mxu0
    %v5134 = vadd.f32 %v5042, %v5133
    %5135 = vmatmul.f32.gmra.mxu0 %v3993
    %v5136 = vpop.f32.mrf.mxu0
    %v5137 = vadd.f32 %v5042, %v5136
    %5138 = vdwg.mxu0
    %v5139 = vmax.f32 %v5065, 0.0
    %v5140 = vmax.f32 %v5088, 0.0
    %v5141 = vmax.f32 %v5111, 0.0
    %v5142 = vmax.f32 %v5134, 0.0
    %v5143 = vmax.f32 %v5068, 0.0
    %v5144 = vmax.f32 %v5091, 0.0
    %v5145 = vmax.f32 %v5114, 0.0
    %v5146 = vmax.f32 %v5137, 0.0
    %v5147 = vld [vmem:[#allocation25 + $0x600] sm:$0xff]
    %v5148 = vld [vmem:[#allocation25 + $0x608] sm:$0xff]
    %v5149 = vld [vmem:[#allocation25 + $0x610] sm:$0xff]
    %v5150 = vld [vmem:[#allocation25 + $0x618] sm:$0xff]
    %v5151 = vld [vmem:[#allocation25 + $0x620] sm:$0xff]
    %v5152 = vld [vmem:[#allocation25 + $0x628] sm:$0xff]
    %v5153 = vld [vmem:[#allocation25 + $0x630] sm:$0xff]
    %v5154 = vld [vmem:[#allocation25 + $0x638] sm:$0xff]
    %v5155 = vld [vmem:[#allocation25 + $0x640] sm:$0xff]
    %v5156 = vld [vmem:[#allocation25 + $0x648] sm:$0xff]
    %v5157 = vld [vmem:[#allocation25 + $0x650] sm:$0xff]
    %v5158 = vld [vmem:[#allocation25 + $0x658] sm:$0xff]
    %v5159 = vld [vmem:[#allocation25 + $0x660] sm:$0xff]
    %v5160 = vld [vmem:[#allocation25 + $0x668] sm:$0xff]
    %v5161 = vld [vmem:[#allocation25 + $0x670] sm:$0xff]
    %v5162 = vld [vmem:[#allocation25 + $0x678] sm:$0xff]
    %v5163 = vld [vmem:[#allocation25 + $0x680] sm:$0xff]
    %v5164 = vld [vmem:[#allocation25 + $0x688] sm:$0xff]
    %v5165 = vld [vmem:[#allocation25 + $0x690] sm:$0xff]
    %v5166 = vld [vmem:[#allocation25 + $0x698] sm:$0xff]
    %v5167 = vld [vmem:[#allocation25 + $0x6a0] sm:$0xff]
    %v5168 = vld [vmem:[#allocation25 + $0x6a8] sm:$0xff]
    %v5169 = vld [vmem:[#allocation25 + $0x6b0] sm:$0xff]
    %v5170 = vld [vmem:[#allocation25 + $0x6b8] sm:$0xff]
    %v5171 = vld [vmem:[#allocation25 + $0x6c0] sm:$0xff]
    %v5172 = vld [vmem:[#allocation25 + $0x6c8] sm:$0xff]
    %v5173 = vld [vmem:[#allocation25 + $0x6d0] sm:$0xff]
    %v5174 = vld [vmem:[#allocation25 + $0x6d8] sm:$0xff]
    %v5175 = vld [vmem:[#allocation25 + $0x6e0] sm:$0xff]
    %v5176 = vld [vmem:[#allocation25 + $0x6e8] sm:$0xff]
    %v5177 = vld [vmem:[#allocation25 + $0x6f0] sm:$0xff]
    %v5178 = vld [vmem:[#allocation25 + $0x6f8] sm:$0xff]
    %v5179 = vld [vmem:[#allocation25 + $0x700] sm:$0xff]
    %v5180 = vld [vmem:[#allocation25 + $0x708] sm:$0xff]
    %v5181 = vld [vmem:[#allocation25 + $0x710] sm:$0xff]
    %v5182 = vld [vmem:[#allocation25 + $0x718] sm:$0xff]
    %v5183 = vld [vmem:[#allocation25 + $0x720] sm:$0xff]
    %v5184 = vld [vmem:[#allocation25 + $0x728] sm:$0xff]
    %v5185 = vld [vmem:[#allocation25 + $0x730] sm:$0xff]
    %v5186 = vld [vmem:[#allocation25 + $0x738] sm:$0xff]
    %v5187 = vld [vmem:[#allocation25 + $0x740] sm:$0xff]
    %v5188 = vld [vmem:[#allocation25 + $0x748] sm:$0xff]
    %v5189 = vld [vmem:[#allocation25 + $0x750] sm:$0xff]
    %v5190 = vld [vmem:[#allocation25 + $0x758] sm:$0xff]
    %v5191 = vld [vmem:[#allocation25 + $0x760] sm:$0xff]
    %v5192 = vld [vmem:[#allocation25 + $0x768] sm:$0xff]
    %v5193 = vld [vmem:[#allocation25 + $0x770] sm:$0xff]
    %v5194 = vld [vmem:[#allocation25 + $0x778] sm:$0xff]
    %v5195 = vld [vmem:[#allocation25 + $0x780] sm:$0xff]
    %v5196 = vld [vmem:[#allocation25 + $0x788] sm:$0xff]
    %v5197 = vld [vmem:[#allocation25 + $0x790] sm:$0xff]
    %v5198 = vld [vmem:[#allocation25 + $0x798] sm:$0xff]
    %v5199 = vld [vmem:[#allocation25 + $0x7a0] sm:$0xff]
    %v5200 = vld [vmem:[#allocation25 + $0x7a8] sm:$0xff]
    %v5201 = vld [vmem:[#allocation25 + $0x7b0] sm:$0xff]
    %v5202 = vld [vmem:[#allocation25 + $0x7b8] sm:$0xff]
    %v5203 = vld [vmem:[#allocation25 + $0x7c0] sm:$0xff]
    %v5204 = vld [vmem:[#allocation25 + $0x7c8] sm:$0xff]
    %v5205 = vld [vmem:[#allocation25 + $0x7d0] sm:$0xff]
    %v5206 = vld [vmem:[#allocation25 + $0x7d8] sm:$0xff]
    %v5207 = vld [vmem:[#allocation25 + $0x7e0] sm:$0xff]
    %v5208 = vld [vmem:[#allocation25 + $0x7e8] sm:$0xff]
    %v5209 = vld [vmem:[#allocation25 + $0x7f0] sm:$0xff]
    %v5210 = vld [vmem:[#allocation25 + $0x7f8] sm:$0xff]
    %5211 = vmatpush.msra.mxu0 %v5162
    %5212 = vmatpush.msra.mxu0 %v5161
    %5213 = vmatpush.msra.mxu0 %v5160
    %5214 = vmatpush.msra.mxu0 %v5159
    %5215 = vmatpush.msra.mxu0 %v5158
    %5216 = vmatpush.msra.mxu0 %v5157
    %5217 = vmatpush.msra.mxu0 %v5156
    %5218 = vmatpush.msra.mxu0 %v5155
    %5219 = vmatpush.msra.mxu0 %v5154
    %5220 = vmatpush.msra.mxu0 %v5153
    %5221 = vmatpush.msra.mxu0 %v5152
    %5222 = vmatpush.msra.mxu0 %v5151
    %5223 = vmatpush.msra.mxu0 %v5150
    %5224 = vmatpush.msra.mxu0 %v5149
    %5225 = vmatpush.msra.mxu0 %v5148
    %5226 = vmatpush.msra.mxu0 %v5147
    %5227 = vmatmul.f32.gmra.mxu0 %v5139
    %v5228 = vpop.f32.mrf.mxu0
    %5229 = vmatmul.f32.gmra.mxu0 %v5143
    %v5230 = vpop.f32.mrf.mxu0
    %v5231 = vadd.f32 0.0, %v5230
    %5232 = vdwg.mxu0
    %5233 = vmatpush.msra.mxu0 %v5178
    %5234 = vmatpush.msra.mxu0 %v5177
    %5235 = vmatpush.msra.mxu0 %v5176
    %5236 = vmatpush.msra.mxu0 %v5175
    %5237 = vmatpush.msra.mxu0 %v5174
    %5238 = vmatpush.msra.mxu0 %v5173
    %5239 = vmatpush.msra.mxu0 %v5172
    %5240 = vmatpush.msra.mxu0 %v5171
    %5241 = vmatpush.msra.mxu0 %v5170
    %5242 = vmatpush.msra.mxu0 %v5169
    %5243 = vmatpush.msra.mxu0 %v5168
    %5244 = vmatpush.msra.mxu0 %v5167
    %5245 = vmatpush.msra.mxu0 %v5166
    %5246 = vmatpush.msra.mxu0 %v5165
    %5247 = vmatpush.msra.mxu0 %v5164
    %5248 = vmatpush.msra.mxu0 %v5163
    %5249 = vmatmul.f32.gmra.mxu0 %v5140
    %v5250 = vpop.f32.mrf.mxu0
    %5251 = vmatmul.f32.gmra.mxu0 %v5144
    %v5252 = vpop.f32.mrf.mxu0
    %v5253 = vadd.f32 %v5231, %v5252
    %5254 = vdwg.mxu0
    %5255 = vmatpush.msra.mxu0 %v5194
    %5256 = vmatpush.msra.mxu0 %v5193
    %5257 = vmatpush.msra.mxu0 %v5192
    %5258 = vmatpush.msra.mxu0 %v5191
    %5259 = vmatpush.msra.mxu0 %v5190
    %5260 = vmatpush.msra.mxu0 %v5189
    %5261 = vmatpush.msra.mxu0 %v5188
    %5262 = vmatpush.msra.mxu0 %v5187
    %5263 = vmatpush.msra.mxu0 %v5186
    %5264 = vmatpush.msra.mxu0 %v5185
    %5265 = vmatpush.msra.mxu0 %v5184
    %5266 = vmatpush.msra.mxu0 %v5183
    %5267 = vmatpush.msra.mxu0 %v5182
    %5268 = vmatpush.msra.mxu0 %v5181
    %5269 = vmatpush.msra.mxu0 %v5180
    %5270 = vmatpush.msra.mxu0 %v5179
    %5271 = vmatmul.f32.gmra.mxu0 %v5141
    %v5272 = vpop.f32.mrf.mxu0
    %5273 = vmatmul.f32.gmra.mxu0 %v5145
    %v5274 = vpop.f32.mrf.mxu0
    %v5275 = vadd.f32 %v5253, %v5274
    %5276 = vdwg.mxu0
    %5277 = vmatpush.msra.mxu0 %v5210
    %5278 = vmatpush.msra.mxu0 %v5209
    %5279 = vmatpush.msra.mxu0 %v5208
    %5280 = vmatpush.msra.mxu0 %v5207
    %5281 = vmatpush.msra.mxu0 %v5206
    %5282 = vmatpush.msra.mxu0 %v5205
    %5283 = vmatpush.msra.mxu0 %v5204
    %5284 = vmatpush.msra.mxu0 %v5203
    %5285 = vmatpush.msra.mxu0 %v5202
    %5286 = vmatpush.msra.mxu0 %v5201
    %5287 = vmatpush.msra.mxu0 %v5200
    %5288 = vmatpush.msra.mxu0 %v5199
    %5289 = vmatpush.msra.mxu0 %v5198
    %5290 = vmatpush.msra.mxu0 %v5197
    %5291 = vmatpush.msra.mxu0 %v5196
    %5292 = vmatpush.msra.mxu0 %v5195
    %5293 = vmatmul.f32.gmra.mxu0 %v5142
    %v5294 = vpop.f32.mrf.mxu0
    %5295 = vmatmul.f32.gmra.mxu0 %v5146
    %v5296 = vpop.f32.mrf.mxu0
    %v5297 = vadd.f32 %v5275, %v5296
    %5298 = vdwg.mxu0
    %v5299 = vadd.f32 %v4972, %v5297
    %v5300 = vld [vmem:[%s23] sm:$0x1]
    %v5302 = vperm.slane %v5300, 0
    %v5304 = vadd.f32 %v5299, %v5302
    %v5305 = vadd.f32 %v3993, %v5304
    %v5306 = vld [vmem:[%s26] sm:$0x1]
    %v5307 = vld [vmem:[%s27] sm:$0x1]
    %5308 = vadd.xlane.f32.xlu0 %v5305
    %v5309 = vpop.xlane.xlu0 %5308
    %v5310 = vmul.f32 %v5309, 0.01
    %v5311 = vmul.f32 %v5305, %v5305
    %5312 = vadd.xlane.f32.xlu0 %v5311
    %v5313 = vpop.xlane.xlu0 %5312
    %v5314 = vmul.f32 %v5313, 0.01
    %v5315 = vmul.f32 %v5310, %v5310
    %v5316 = vsub.f32 %v5314, %v5315
    %v5317 = vsub.f32 %v5305, %v5310
    %v5318 = vadd.f32 %v5316, 1e-05
    %v5319 = vrsqrt.pop %v5318
    %v5320 = vmul.f32 %v5319, %v5318
    %v5321 = vmul.f32 %v5320, %v5319
    %v5322 = vmul.f32 0.5, %v5321
    %v5323 = vsub.f32 1.5, %v5322
    %v5324 = vmul.f32 %v5319, %v5323
    %vm5325 = vweird.f32 %v5318
    %vm5326 = vweird.f32 %v5319
    %vm5327 = vmor %vm5325, %vm5326
    %v5328 = vsel %vm5327, %v5319, %v5324
    %v5329 = vmul.f32 %v5317, %v5328
    %v5331 = vperm.slane %v5306, 0
    %v5333 = vmul.f32 %v5329, %v5331
    %v5335 = vperm.slane %v5307, 0
    %v5337 = vadd.f32 %v5333, %v5335
    %5338 = vst [vmem:[#allocation27] sm:$0x1] %v5337
    // Predicated region
    $region170: #{model_forward_pallas.1} parent=1 // pred_check
      _
    $region171: #{model_forward_pallas.1} parent=1 // pred_check_branch
      %5340 = sbr.rel (0) target = $region173
    $region172: #{model_forward_pallas.1} parent=1 // pred_region
      %5342 = vsyncadd [#allocation6], 0
      %s5344 = sshll.u32 [#allocation27], 4
      %s5345 = int_to_ptr.vmem [resolvable:$true] %s5344
      %s5346 = sshll.u32 %s28, 4
      %s5347 = int_to_ptr.hbm [resolvable:$true] %s5346
      %5349 = dma.vmem_to_hbm [thread:$0]  %s5345, 16, %s5347, [#allocation6]
    $region173: #{model_forward_pallas.1} parent=1 // pred_fallthru
      _
    // Predicated region
    $region174: #{model_forward_pallas.1} parent=1 // pred_check
      _
    $region175: #{model_forward_pallas.1} parent=1 // pred_check_branch
      %5351 = sbr.rel (0) target = $region177
    $region176: #{model_forward_pallas.1} parent=1 // pred_region
      %5353 = dma.done [#allocation6], 16
    $region177: #{model_forward_pallas.1} parent=1 // pred_fallthru
      _
    %5354 = vsyncpa [#allocation5], 1
    %5355 = vsyncpa [#allocation8], 1
    %5356 = vsyncpa [#allocation11], 1
    %5357 = vsyncpa [#allocation14], 1
    %5358 = vsyncpa [#allocation17], 1
    %5359 = vsyncpa [#allocation20], 1
    %5360 = vsyncpa [#allocation23], 1
    %5361 = vsyncpa [#allocation26], 1
    %5362 = vsyncpa [#allocation6], 1

</llo_original>
